<compile_context>
chip_gen: v6e
topology: v6e:2x2x1
jax: 0.10.0
libtpu: 0.0.40
codegen_flags: <defaults>
</compile_context>

<pallas_src>
import jax
import jax.numpy as jnp
from jax import lax
from jax.experimental import pallas as pl
from jax.experimental.pallas import tpu as pltpu

# Small, deterministic problem sizes (queries [B, T, D], memory [B, S, D]).
B, T, S, D, H, FF, NUM_LAYERS = 2, 8, 16, 32, 4, 64, 2
HEAD_DIM = D // H
SCALE = 1.0 / float(HEAD_DIM) ** 0.5
EPS = 1e-5
BT, BS = B * T, B * S

# Lane-dense flat output shapes (last dim = 128; un-flattened in the wrapper).
LANE = 128
OUT_ROWS = (BT * D) // LANE      # 512 / 128 = 4
ATT_ROWS = (B * T * S) // LANE   # 256 / 128 = 2
assert (BT * D) % LANE == 0 and (B * T * S) % LANE == 0

# Column layout of the packed input-side weight slab WIN: [L, D, WCOLS].
# Every segment starts on a 128-lane tile boundary (zero padded).
SA_QKV = 0 * LANE   # width 3*D = 96 : self-attn fused QKV
SA_O = 1 * LANE     # width D        : self-attn out-proj
CA_Q = 2 * LANE     # width D        : cross-attn Q
CA_KV = 3 * LANE    # width 2*D = 64 : cross-attn fused KV
CA_O = 4 * LANE     # width D        : cross-attn out-proj
L1 = 5 * LANE       # width FF       : FFN linear1
WCOLS = 6 * LANE    # 768

# AUX slab: [NUM_LAYERS + 1, 8, ACOLS].
#   row 0        : bias row (same segment offsets as WIN, plus B2 for linear2)
#   rows 1..6    : LN1 gamma/beta, LN2 gamma/beta, LN3 gamma/beta (first D cols)
#   slot [L]     : final decoder LayerNorm (row 0 = gamma, row 1 = beta)
B2 = 6 * LANE       # width D : FFN linear2 bias (bias row only)
ACOLS = 7 * LANE    # 896
AUX_ROWS = 8


# ---------------------------------------------------------------- kernel math
def _layernorm(v, g, b):
    # Keep all non-matmul math in f32 (v5e VPU/EUP have no bf16 path).
    mu = jnp.mean(v, axis=-1, keepdims=True)
    var = jnp.mean((v - mu) ** 2, axis=-1, keepdims=True)
    return (v - mu) * lax.rsqrt(var + EPS) * g + b


def _lane_pack(m, rows):
    """Row-major flatten of a 2-D [R, C] array into [rows, R*C//rows] using
    only sublane slices + lane concats, so the final store is a dense,
    unmasked 128-lane write (no reliance on last-dim-changing reshapes)."""
    r_in, _ = m.shape
    per = r_in // rows
    packed = []
    for i in range(rows):
        packed.append(jnp.concatenate(
            [m[i * per + j:i * per + j + 1, :] for j in range(per)], axis=1))
    return jnp.concatenate(packed, axis=0)


def _mha(q3, k3, v3, wo, bo, need_probs):
    """Multi-head attention with all heads batched into single matmuls.

    q3: [B, Tq, D], k3/v3: [B, Tk, D] (head-major along last dim),
    wo: [D, D], bo: [1, D].
    Returns (out [B*Tq, D], head-averaged probs [B, Tq, Tk] or None).
    """
    nq, nk = q3.shape[1], k3.shape[1]

    def split_heads(x3):
        # [B, n, D] -> [H*B, n, HEAD_DIM]; head-major leading axis.
        return jnp.concatenate(
            [x3[:, :, h * HEAD_DIM:(h + 1) * HEAD_DIM] for h in range(H)], axis=0)

    qh, kh, vh = split_heads(q3), split_heads(k3), split_heads(v3)

    # One batched score matmul + ONE batched softmax for all heads.
    s = jnp.einsum("bqd,bkd->bqk", qh, kh,
                   preferred_element_type=jnp.float32) * SCALE
    s = s - jnp.max(s, axis=-1, keepdims=True)
    p = jnp.exp(s)
    # Exact divide (NOT approx reciprocal): these probabilities feed the
    # user-visible attention output — keep parity with the PyTorch reference.
    p = p / jnp.sum(p, axis=-1, keepdims=True)

    o = jnp.einsum("bqk,bkd->bqd", p, vh, preferred_element_type=jnp.float32)
    # Merge heads back onto lanes, single [BT, D] x [D, D] output projection.
    o = jnp.concatenate(
        [o[h * B:(h + 1) * B].reshape(B * nq, HEAD_DIM) for h in range(H)], axis=1)
    out = jnp.dot(o, wo, preferred_element_type=jnp.float32) + bo

    if need_probs:
        probs = jnp.mean(p.reshape(H, B, nq, nk), axis=0)   # head-averaged
        return out, probs
    return out, None


def decoder_kernel(q_ref, mem_ref, win_ref, w2_ref, aux_ref, out_ref, attn_ref):
    # Flatten batch for all dense ops; everything stays VMEM-resident.
    x = q_ref[...].reshape(BT, D)
    mem = mem_ref[...].reshape(BS, D)
    attn_acc = jnp.zeros((B, T, S), jnp.float32)

    # Static unroll over layers keeps slab indexing static and weights resident.
    # TODO(synk): at production dims / NUM_LAYERS, move layers onto a grid axis
    # (BlockSpec (1, D, WCOLS) over WIN/W2/AUX, x + attn carried in VMEM
    # scratch, axis marked "arbitrary") so layer l+1 weights double-buffer
    # behind layer l compute; cast matmul operands to bf16 on v6e/v7x and add a
    # "parallel" batch-chunk axis to use both v7x TensorCores.
    for layer in range(NUM_LAYERS):
        W = win_ref[layer]            # [D, WCOLS]   (128-aligned segments)
        W2 = w2_ref[layer]            # [FF, D]
        aux = aux_ref[layer]          # [8, ACOLS]
        bias = aux[0:1, :]            # [1, ACOLS]

        # --- self-attention block (post-norm, dropout = identity) ----------
        qkv = jnp.dot(x, W[:, SA_QKV:SA_QKV + 3 * D],
                      preferred_element_type=jnp.float32) \
            + bias[:, SA_QKV:SA_QKV + 3 * D]
        qkv3 = qkv.reshape(B, T, 3 * D)
        sa_out, _ = _mha(qkv3[:, :, 0:D], qkv3[:, :, D:2 * D],
                         qkv3[:, :, 2 * D:3 * D],
                         W[:, SA_O:SA_O + D], bias[:, SA_O:SA_O + D],
                         need_probs=False)
        x = _layernorm(x + sa_out, aux[1:2, :D], aux[2:3, :D])

        # --- cross-attention block (head-averaged weights accumulated) -----
        q = jnp.dot(x, W[:, CA_Q:CA_Q + D],
                    preferred_element_type=jnp.float32) + bias[:, CA_Q:CA_Q + D]
        kv = jnp.dot(mem, W[:, CA_KV:CA_KV + 2 * D],
                     preferred_element_type=jnp.float32) + bias[:, CA_KV:CA_KV + 2 * D]
        kv3 = kv.reshape(B, S, 2 * D)
        ca_out, probs = _mha(q.reshape(B, T, D), kv3[:, :, 0:D],
                             kv3[:, :, D:2 * D],
                             W[:, CA_O:CA_O + D], bias[:, CA_O:CA_O + D],
                             need_probs=True)
        attn_acc = attn_acc + probs
        x = _layernorm(x + ca_out, aux[3:4, :D], aux[4:5, :D])

        # --- feed-forward block (ReLU) --------------------------------------
        h1 = jnp.maximum(
            jnp.dot(x, W[:, L1:L1 + FF], preferred_element_type=jnp.float32)
            + bias[:, L1:L1 + FF], 0.0)
        ff = jnp.dot(h1, W2, preferred_element_type=jnp.float32) \
            + bias[:, B2:B2 + D]
        x = _layernorm(x + ff, aux[5:6, :D], aux[6:7, :D])

    # Final decoder LayerNorm (self.norm) and layer-averaged attention.
    fa = aux_ref[NUM_LAYERS]
    x = _layernorm(x, fa[0:1, :D], fa[1:2, :D])

    # Lane-dense stores: flat 128-wide slabs -> unmasked vst (reshaped back to
    # (B,T,D) / (B,T,S) outside the kernel).
    out_ref[...] = _lane_pack(x, OUT_ROWS)
    attn_ref[...] = _lane_pack(
        (attn_acc * (1.0 / NUM_LAYERS)).reshape(B * T, S), ATT_ROWS)


# ------------------------------------------------------------- pallas wrapper
def _vmem():
    return pl.BlockSpec(memory_space=pltpu.MemorySpace.VMEM)


@jax.jit
def transformer_decoder_with_attention(queries, memory, win, w2, aux):
    """Mirrors TransformerDecoderWithAttention.forward -> (output, avg_attention)."""
    out_flat, attn_flat = pl.pallas_call(
        decoder_kernel,
        out_shape=(jax.ShapeDtypeStruct((OUT_ROWS, LANE), jnp.float32),
                   jax.ShapeDtypeStruct((ATT_ROWS, LANE), jnp.float32)),
        in_specs=[_vmem() for _ in range(5)],
        out_specs=(_vmem(), _vmem()),
    )(queries, memory, win, w2, aux)
    # Un-flatten the lane-dense slabs outside the kernel (pure XLA layout op).
    return out_flat.reshape(B, T, D), attn_flat.reshape(B, T, S)


# ---------------------------------------------------------------- param init
def init_packed_params(key):
    """Per-layer weights (stored as [in, out] = PyTorch W.T), packed into
    128-lane-aligned slabs: WIN [L, D, WCOLS], W2 [L, FF, D] and
    AUX [L+1, 8, ACOLS] (biases + LayerNorm params + final norm)."""
    def lin(k, din, dout):
        kw, kb = jax.random.split(k)
        w = jax.random.normal(kw, (din, dout), jnp.float32) * 0.05
        b = jax.random.normal(kb, (1, dout), jnp.float32) * 0.01
        return w, b

    def seg(m, width=LANE):
        return jnp.pad(m, ((0, 0), (0, width - m.shape[1])))

    win_l, w2_l, aux_l = [], [], []
    for lk in jax.random.split(key, NUM_LAYERS):
        ks = jax.random.split(lk, 10)
        sa_wq, sa_bq = lin(ks[0], D, D)
        sa_wk, sa_bk = lin(ks[1], D, D)
        sa_wv, sa_bv = lin(ks[2], D, D)
        sa_wo, sa_bo = lin(ks[3], D, D)
        ca_wq, ca_bq = lin(ks[4], D, D)
        ca_wk, ca_bk = lin(ks[5], D, D)
        ca_wv, ca_bv = lin(ks[6], D, D)
        ca_wo, ca_bo = lin(ks[7], D, D)
        w1, b1 = lin(ks[8], D, FF)
        w2, b2 = lin(ks[9], FF, D)

        win_l.append(jnp.concatenate([
            seg(jnp.concatenate([sa_wq, sa_wk, sa_wv], axis=1)),   # 96 -> 128
            seg(sa_wo), seg(ca_wq),
            seg(jnp.concatenate([ca_wk, ca_wv], axis=1)),          # 64 -> 128
            seg(ca_wo), seg(w1)], axis=1))                         # [D, 768]
        w2_l.append(w2)                                            # [FF, D]

        bias_row = jnp.concatenate([
            seg(jnp.concatenate([sa_bq, sa_bk, sa_bv], axis=1)),
            seg(sa_bo), seg(ca_bq),
            seg(jnp.concatenate([ca_bk, ca_bv], axis=1)),
            seg(ca_bo), seg(b1), seg(b2)], axis=1)                 # [1, 896]
        ones_row = seg(jnp.ones((1, D), jnp.float32), ACOLS)       # LN gamma
        zeros_row = jnp.zeros((1, ACOLS), jnp.float32)             # LN beta
        aux_l.append(jnp.concatenate(
            [bias_row] + [ones_row, zeros_row] * 3 + [zeros_row], axis=0))

    final_norm = jnp.concatenate(
        [seg(jnp.ones((1, D), jnp.float32), ACOLS),
         jnp.zeros((AUX_ROWS - 1, ACOLS), jnp.float32)], axis=0)   # [8, 896]

    win = jnp.stack(win_l)               # [L, D, 768]
    w2 = jnp.stack(w2_l)                 # [L, FF, D]
    aux = jnp.stack(aux_l + [final_norm])  # [L+1, 8, 896]
    return win, w2, aux


if __name__ == "__main__":
    key = jax.random.PRNGKey(0)
    kq, km, kp = jax.random.split(key, 3)
    queries = jax.random.normal(kq, (B, T, D), jnp.float32)
    memory = jax.random.normal(km, (B, S, D), jnp.float32)
    win, w2, aux = init_packed_params(kp)

    out, avg_attn = transformer_decoder_with_attention(queries, memory, win, w2, aux)
    jax.block_until_ready((out, avg_attn))

    assert out.shape == (B, T, D) and avg_attn.shape == (B, T, S)
    assert bool(jnp.all(jnp.isfinite(out))) and bool(jnp.all(jnp.isfinite(avg_attn)))
    # Exact softmax divide -> attention rows are convex combinations (sum to 1).
    assert bool(jnp.allclose(jnp.sum(avg_attn, axis=-1), 1.0, atol=1e-3))
    print("KERNEL_OK")
</pallas_src>

<mosaic_0001>
module attributes {stable_mosaic.version = 11 : i64} {
  func.func @decoder_kernel(%arg0: memref<2x8x32xf32, #tpu.memory_space<vmem>>, %arg1: memref<2x16x32xf32, #tpu.memory_space<vmem>>, %arg2: memref<2x32x768xf32, #tpu.memory_space<vmem>>, %arg3: memref<2x64x32xf32, #tpu.memory_space<vmem>>, %arg4: memref<3x8x896xf32, #tpu.memory_space<vmem>>, %arg5: memref<4x128xf32, #tpu.memory_space<vmem>>, %arg6: memref<2x128xf32, #tpu.memory_space<vmem>>) attributes {dimension_semantics = [], scalar_prefetch = 0 : i64, scratch_operands = 0 : i64, tpu.core_type = #tpu.core_type<tc>} {
    %c0 = arith.constant 0 : index
    %c0_0 = arith.constant 0 : index
    %c0_1 = arith.constant 0 : index
    %0 = vector.load %arg0[%c0, %c0_0, %c0_1] : memref<2x8x32xf32, #tpu.memory_space<vmem>>, vector<2x8x32xf32>
    %1 = vector.shape_cast %0 : vector<2x8x32xf32> to vector<16x32xf32>
    %c0_2 = arith.constant 0 : index
    %c0_3 = arith.constant 0 : index
    %c0_4 = arith.constant 0 : index
    %2 = vector.load %arg1[%c0_2, %c0_3, %c0_4] : memref<2x16x32xf32, #tpu.memory_space<vmem>>, vector<2x16x32xf32>
    %3 = vector.shape_cast %2 : vector<2x16x32xf32> to vector<32x32xf32>
    %cst = arith.constant 0.000000e+00 : f32
    %4 = vector.broadcast %cst : f32 to vector<2x8x16xf32>
    %c0_5 = arith.constant 0 : index
    %c0_6 = arith.constant 0 : index
    %c0_7 = arith.constant 0 : index
    %5 = vector.load %arg2[%c0_5, %c0_6, %c0_7] : memref<2x32x768xf32, #tpu.memory_space<vmem>>, vector<1x32x768xf32>
    %6 = vector.shape_cast %5 : vector<1x32x768xf32> to vector<32x768xf32>
    %c0_8 = arith.constant 0 : index
    %c0_9 = arith.constant 0 : index
    %c0_10 = arith.constant 0 : index
    %7 = vector.load %arg3[%c0_8, %c0_9, %c0_10] : memref<2x64x32xf32, #tpu.memory_space<vmem>>, vector<1x64x32xf32>
    %8 = vector.shape_cast %7 : vector<1x64x32xf32> to vector<64x32xf32>
    %c0_11 = arith.constant 0 : index
    %c0_12 = arith.constant 0 : index
    %c0_13 = arith.constant 0 : index
    %9 = vector.load %arg4[%c0_11, %c0_12, %c0_13] : memref<3x8x896xf32, #tpu.memory_space<vmem>>, vector<1x8x896xf32>
    %10 = vector.shape_cast %9 : vector<1x8x896xf32> to vector<8x896xf32>
    %11 = vector.extract_strided_slice %10 {offsets = [0, 0], sizes = [1, 896], strides = [1, 1]} : vector<8x896xf32> to vector<1x896xf32>
    %12 = vector.extract_strided_slice %6 {offsets = [0, 0], sizes = [32, 96], strides = [1, 1]} : vector<32x768xf32> to vector<32x96xf32>
    %cst_14 = arith.constant dense<0.000000e+00> : vector<16x96xf32>
    %13 = tpu.matmul %1, %12, %cst_14 {dimension_numbers = #tpu.dot_dimension_numbers<[1], [0], [0], [1], [0, 0, 1, 1], [], []>} : vector<16x32xf32>, vector<32x96xf32>, vector<16x96xf32> -> vector<16x96xf32>
    %14 = vector.extract_strided_slice %11 {offsets = [0, 0], sizes = [1, 96], strides = [1, 1]} : vector<1x896xf32> to vector<1x96xf32>
    %15 = vector.broadcast %14 : vector<1x96xf32> to vector<16x96xf32>
    %16 = arith.addf %13, %15 : vector<16x96xf32>
    %17 = vector.shape_cast %16 : vector<16x96xf32> to vector<2x8x96xf32>
    %18 = vector.extract_strided_slice %17 {offsets = [0, 0, 0], sizes = [2, 8, 32], strides = [1, 1, 1]} : vector<2x8x96xf32> to vector<2x8x32xf32>
    %19 = vector.extract_strided_slice %17 {offsets = [0, 0, 32], sizes = [2, 8, 32], strides = [1, 1, 1]} : vector<2x8x96xf32> to vector<2x8x32xf32>
    %20 = vector.extract_strided_slice %17 {offsets = [0, 0, 64], sizes = [2, 8, 32], strides = [1, 1, 1]} : vector<2x8x96xf32> to vector<2x8x32xf32>
    %21 = vector.extract_strided_slice %6 {offsets = [0, 128], sizes = [32, 32], strides = [1, 1]} : vector<32x768xf32> to vector<32x32xf32>
    %22 = vector.extract_strided_slice %11 {offsets = [0, 128], sizes = [1, 32], strides = [1, 1]} : vector<1x896xf32> to vector<1x32xf32>
    %23 = vector.extract_strided_slice %18 {offsets = [0, 0, 0], sizes = [2, 8, 8], strides = [1, 1, 1]} : vector<2x8x32xf32> to vector<2x8x8xf32>
    %24 = vector.extract_strided_slice %18 {offsets = [0, 0, 8], sizes = [2, 8, 8], strides = [1, 1, 1]} : vector<2x8x32xf32> to vector<2x8x8xf32>
    %25 = vector.extract_strided_slice %18 {offsets = [0, 0, 16], sizes = [2, 8, 8], strides = [1, 1, 1]} : vector<2x8x32xf32> to vector<2x8x8xf32>
    %26 = vector.extract_strided_slice %18 {offsets = [0, 0, 24], sizes = [2, 8, 8], strides = [1, 1, 1]} : vector<2x8x32xf32> to vector<2x8x8xf32>
    %27 = tpu.concatenate %23, %24, %25, %26 in 0 : vector<2x8x8xf32>, vector<2x8x8xf32>, vector<2x8x8xf32>, vector<2x8x8xf32> -> vector<8x8x8xf32>
    %28 = vector.extract_strided_slice %19 {offsets = [0, 0, 0], sizes = [2, 8, 8], strides = [1, 1, 1]} : vector<2x8x32xf32> to vector<2x8x8xf32>
    %29 = vector.extract_strided_slice %19 {offsets = [0, 0, 8], sizes = [2, 8, 8], strides = [1, 1, 1]} : vector<2x8x32xf32> to vector<2x8x8xf32>
    %30 = vector.extract_strided_slice %19 {offsets = [0, 0, 16], sizes = [2, 8, 8], strides = [1, 1, 1]} : vector<2x8x32xf32> to vector<2x8x8xf32>
    %31 = vector.extract_strided_slice %19 {offsets = [0, 0, 24], sizes = [2, 8, 8], strides = [1, 1, 1]} : vector<2x8x32xf32> to vector<2x8x8xf32>
    %32 = tpu.concatenate %28, %29, %30, %31 in 0 : vector<2x8x8xf32>, vector<2x8x8xf32>, vector<2x8x8xf32>, vector<2x8x8xf32> -> vector<8x8x8xf32>
    %33 = vector.extract_strided_slice %20 {offsets = [0, 0, 0], sizes = [2, 8, 8], strides = [1, 1, 1]} : vector<2x8x32xf32> to vector<2x8x8xf32>
    %34 = vector.extract_strided_slice %20 {offsets = [0, 0, 8], sizes = [2, 8, 8], strides = [1, 1, 1]} : vector<2x8x32xf32> to vector<2x8x8xf32>
    %35 = vector.extract_strided_slice %20 {offsets = [0, 0, 16], sizes = [2, 8, 8], strides = [1, 1, 1]} : vector<2x8x32xf32> to vector<2x8x8xf32>
    %36 = vector.extract_strided_slice %20 {offsets = [0, 0, 24], sizes = [2, 8, 8], strides = [1, 1, 1]} : vector<2x8x32xf32> to vector<2x8x8xf32>
    %37 = tpu.concatenate %33, %34, %35, %36 in 0 : vector<2x8x8xf32>, vector<2x8x8xf32>, vector<2x8x8xf32>, vector<2x8x8xf32> -> vector<8x8x8xf32>
    "tpu.trace_start"() <{level = 10 : i32, message = "bqd,bkd->bqk"}> : () -> ()
    %cst_15 = arith.constant dense<0.000000e+00> : vector<8x8x8xf32>
    %38 = tpu.matmul %27, %32, %cst_15 {dimension_numbers = #tpu.dot_dimension_numbers<[2], [2], [1], [1], [0, 0, 0, 1, 1, 1], [0], [0]>} : vector<8x8x8xf32>, vector<8x8x8xf32>, vector<8x8x8xf32> -> vector<8x8x8xf32>
    "tpu.trace_stop"() : () -> ()
    %cst_16 = arith.constant 0.353553385 : f32
    %39 = vector.broadcast %cst_16 : f32 to vector<8x8x8xf32>
    %40 = arith.mulf %38, %39 : vector<8x8x8xf32>
    %cst_17 = arith.constant dense<0xFF800000> : vector<8x8xf32>
    %41 = vector.multi_reduction <maximumf>, %40, %cst_17 [2] : vector<8x8x8xf32> to vector<8x8xf32>
    %42 = vector.shape_cast %41 : vector<8x8xf32> to vector<8x8x1xf32>
    %43 = vector.broadcast %42 : vector<8x8x1xf32> to vector<8x8x8xf32>
    %44 = arith.subf %40, %43 : vector<8x8x8xf32>
    %45 = math.exp %44 : vector<8x8x8xf32>
    %cst_18 = arith.constant dense<0.000000e+00> : vector<8x8xf32>
    %46 = vector.multi_reduction <add>, %45, %cst_18 [2] : vector<8x8x8xf32> to vector<8x8xf32>
    %47 = vector.shape_cast %46 : vector<8x8xf32> to vector<8x8x1xf32>
    %48 = vector.broadcast %47 : vector<8x8x1xf32> to vector<8x8x8xf32>
    %49 = arith.divf %45, %48 : vector<8x8x8xf32>
    "tpu.trace_start"() <{level = 10 : i32, message = "bqk,bkd->bqd"}> : () -> ()
    %cst_19 = arith.constant dense<0.000000e+00> : vector<8x8x8xf32>
    %50 = tpu.matmul %49, %37, %cst_19 {dimension_numbers = #tpu.dot_dimension_numbers<[2], [1], [1], [2], [0, 0, 0, 1, 1, 2], [0], [0]>} : vector<8x8x8xf32>, vector<8x8x8xf32>, vector<8x8x8xf32> -> vector<8x8x8xf32>
    "tpu.trace_stop"() : () -> ()
    %51 = vector.extract_strided_slice %50 {offsets = [0, 0, 0], sizes = [2, 8, 8], strides = [1, 1, 1]} : vector<8x8x8xf32> to vector<2x8x8xf32>
    %52 = vector.shape_cast %51 : vector<2x8x8xf32> to vector<16x8xf32>
    %53 = vector.extract_strided_slice %50 {offsets = [2, 0, 0], sizes = [2, 8, 8], strides = [1, 1, 1]} : vector<8x8x8xf32> to vector<2x8x8xf32>
    %54 = vector.shape_cast %53 : vector<2x8x8xf32> to vector<16x8xf32>
    %55 = vector.extract_strided_slice %50 {offsets = [4, 0, 0], sizes = [2, 8, 8], strides = [1, 1, 1]} : vector<8x8x8xf32> to vector<2x8x8xf32>
    %56 = vector.shape_cast %55 : vector<2x8x8xf32> to vector<16x8xf32>
    %57 = vector.extract_strided_slice %50 {offsets = [6, 0, 0], sizes = [2, 8, 8], strides = [1, 1, 1]} : vector<8x8x8xf32> to vector<2x8x8xf32>
    %58 = vector.shape_cast %57 : vector<2x8x8xf32> to vector<16x8xf32>
    %59 = tpu.concatenate %52, %54, %56, %58 in 1 : vector<16x8xf32>, vector<16x8xf32>, vector<16x8xf32>, vector<16x8xf32> -> vector<16x32xf32>
    %cst_20 = arith.constant dense<0.000000e+00> : vector<16x32xf32>
    %60 = tpu.matmul %59, %21, %cst_20 {dimension_numbers = #tpu.dot_dimension_numbers<[1], [0], [0], [1], [0, 0, 1, 1], [], []>} : vector<16x32xf32>, vector<32x32xf32>, vector<16x32xf32> -> vector<16x32xf32>
    %61 = vector.broadcast %22 : vector<1x32xf32> to vector<16x32xf32>
    %62 = arith.addf %60, %61 : vector<16x32xf32>
    %63 = arith.addf %1, %62 : vector<16x32xf32>
    %64 = vector.extract_strided_slice %10 {offsets = [1, 0], sizes = [1, 32], strides = [1, 1]} : vector<8x896xf32> to vector<1x32xf32>
    %65 = vector.extract_strided_slice %10 {offsets = [2, 0], sizes = [1, 32], strides = [1, 1]} : vector<8x896xf32> to vector<1x32xf32>
    %cst_21 = arith.constant dense<0.000000e+00> : vector<16xf32>
    %66 = vector.multi_reduction <add>, %63, %cst_21 [1] : vector<16x32xf32> to vector<16xf32>
    %67 = vector.shape_cast %66 : vector<16xf32> to vector<16x1xf32>
    %cst_22 = arith.constant 3.200000e+01 : f32
    %68 = vector.broadcast %cst_22 : f32 to vector<16x1xf32>
    %69 = arith.divf %67, %68 : vector<16x1xf32>
    %70 = vector.broadcast %69 : vector<16x1xf32> to vector<16x32xf32>
    %71 = arith.subf %63, %70 : vector<16x32xf32>
    %72 = arith.mulf %71, %71 : vector<16x32xf32>
    %cst_23 = arith.constant dense<0.000000e+00> : vector<16xf32>
    %73 = vector.multi_reduction <add>, %72, %cst_23 [1] : vector<16x32xf32> to vector<16xf32>
    %74 = vector.shape_cast %73 : vector<16xf32> to vector<16x1xf32>
    %cst_24 = arith.constant 3.200000e+01 : f32
    %75 = vector.broadcast %cst_24 : f32 to vector<16x1xf32>
    %76 = arith.divf %74, %75 : vector<16x1xf32>
    %77 = vector.broadcast %69 : vector<16x1xf32> to vector<16x32xf32>
    %78 = arith.subf %63, %77 : vector<16x32xf32>
    %cst_25 = arith.constant 9.99999974E-6 : f32
    %79 = vector.broadcast %cst_25 : f32 to vector<16x1xf32>
    %80 = arith.addf %76, %79 : vector<16x1xf32>
    %81 = math.rsqrt %80 : vector<16x1xf32>
    %82 = vector.broadcast %81 : vector<16x1xf32> to vector<16x32xf32>
    %83 = arith.mulf %78, %82 : vector<16x32xf32>
    %84 = vector.broadcast %64 : vector<1x32xf32> to vector<16x32xf32>
    %85 = arith.mulf %83, %84 : vector<16x32xf32>
    %86 = vector.broadcast %65 : vector<1x32xf32> to vector<16x32xf32>
    %87 = arith.addf %85, %86 : vector<16x32xf32>
    %88 = vector.extract_strided_slice %6 {offsets = [0, 256], sizes = [32, 32], strides = [1, 1]} : vector<32x768xf32> to vector<32x32xf32>
    %cst_26 = arith.constant dense<0.000000e+00> : vector<16x32xf32>
    %89 = tpu.matmul %87, %88, %cst_26 {dimension_numbers = #tpu.dot_dimension_numbers<[1], [0], [0], [1], [0, 0, 1, 1], [], []>} : vector<16x32xf32>, vector<32x32xf32>, vector<16x32xf32> -> vector<16x32xf32>
    %90 = vector.extract_strided_slice %11 {offsets = [0, 256], sizes = [1, 32], strides = [1, 1]} : vector<1x896xf32> to vector<1x32xf32>
    %91 = vector.broadcast %90 : vector<1x32xf32> to vector<16x32xf32>
    %92 = arith.addf %89, %91 : vector<16x32xf32>
    %93 = vector.extract_strided_slice %6 {offsets = [0, 384], sizes = [32, 64], strides = [1, 1]} : vector<32x768xf32> to vector<32x64xf32>
    %cst_27 = arith.constant dense<0.000000e+00> : vector<32x64xf32>
    %94 = tpu.matmul %3, %93, %cst_27 {dimension_numbers = #tpu.dot_dimension_numbers<[1], [0], [0], [1], [0, 0, 1, 1], [], []>} : vector<32x32xf32>, vector<32x64xf32>, vector<32x64xf32> -> vector<32x64xf32>
    %95 = vector.extract_strided_slice %11 {offsets = [0, 384], sizes = [1, 64], strides = [1, 1]} : vector<1x896xf32> to vector<1x64xf32>
    %96 = vector.broadcast %95 : vector<1x64xf32> to vector<32x64xf32>
    %97 = arith.addf %94, %96 : vector<32x64xf32>
    %98 = vector.shape_cast %97 : vector<32x64xf32> to vector<2x16x64xf32>
    %99 = vector.shape_cast %92 : vector<16x32xf32> to vector<2x8x32xf32>
    %100 = vector.extract_strided_slice %98 {offsets = [0, 0, 0], sizes = [2, 16, 32], strides = [1, 1, 1]} : vector<2x16x64xf32> to vector<2x16x32xf32>
    %101 = vector.extract_strided_slice %98 {offsets = [0, 0, 32], sizes = [2, 16, 32], strides = [1, 1, 1]} : vector<2x16x64xf32> to vector<2x16x32xf32>
    %102 = vector.extract_strided_slice %6 {offsets = [0, 512], sizes = [32, 32], strides = [1, 1]} : vector<32x768xf32> to vector<32x32xf32>
    %103 = vector.extract_strided_slice %11 {offsets = [0, 512], sizes = [1, 32], strides = [1, 1]} : vector<1x896xf32> to vector<1x32xf32>
    %104 = vector.extract_strided_slice %99 {offsets = [0, 0, 0], sizes = [2, 8, 8], strides = [1, 1, 1]} : vector<2x8x32xf32> to vector<2x8x8xf32>
    %105 = vector.extract_strided_slice %99 {offsets = [0, 0, 8], sizes = [2, 8, 8], strides = [1, 1, 1]} : vector<2x8x32xf32> to vector<2x8x8xf32>
    %106 = vector.extract_strided_slice %99 {offsets = [0, 0, 16], sizes = [2, 8, 8], strides = [1, 1, 1]} : vector<2x8x32xf32> to vector<2x8x8xf32>
    %107 = vector.extract_strided_slice %99 {offsets = [0, 0, 24], sizes = [2, 8, 8], strides = [1, 1, 1]} : vector<2x8x32xf32> to vector<2x8x8xf32>
    %108 = tpu.concatenate %104, %105, %106, %107 in 0 : vector<2x8x8xf32>, vector<2x8x8xf32>, vector<2x8x8xf32>, vector<2x8x8xf32> -> vector<8x8x8xf32>
    %109 = vector.extract_strided_slice %100 {offsets = [0, 0, 0], sizes = [2, 16, 8], strides = [1, 1, 1]} : vector<2x16x32xf32> to vector<2x16x8xf32>
    %110 = vector.extract_strided_slice %100 {offsets = [0, 0, 8], sizes = [2, 16, 8], strides = [1, 1, 1]} : vector<2x16x32xf32> to vector<2x16x8xf32>
    %111 = vector.extract_strided_slice %100 {offsets = [0, 0, 16], sizes = [2, 16, 8], strides = [1, 1, 1]} : vector<2x16x32xf32> to vector<2x16x8xf32>
    %112 = vector.extract_strided_slice %100 {offsets = [0, 0, 24], sizes = [2, 16, 8], strides = [1, 1, 1]} : vector<2x16x32xf32> to vector<2x16x8xf32>
    %113 = tpu.concatenate %109, %110, %111, %112 in 0 : vector<2x16x8xf32>, vector<2x16x8xf32>, vector<2x16x8xf32>, vector<2x16x8xf32> -> vector<8x16x8xf32>
    %114 = vector.extract_strided_slice %101 {offsets = [0, 0, 0], sizes = [2, 16, 8], strides = [1, 1, 1]} : vector<2x16x32xf32> to vector<2x16x8xf32>
    %115 = vector.extract_strided_slice %101 {offsets = [0, 0, 8], sizes = [2, 16, 8], strides = [1, 1, 1]} : vector<2x16x32xf32> to vector<2x16x8xf32>
    %116 = vector.extract_strided_slice %101 {offsets = [0, 0, 16], sizes = [2, 16, 8], strides = [1, 1, 1]} : vector<2x16x32xf32> to vector<2x16x8xf32>
    %117 = vector.extract_strided_slice %101 {offsets = [0, 0, 24], sizes = [2, 16, 8], strides = [1, 1, 1]} : vector<2x16x32xf32> to vector<2x16x8xf32>
    %118 = tpu.concatenate %114, %115, %116, %117 in 0 : vector<2x16x8xf32>, vector<2x16x8xf32>, vector<2x16x8xf32>, vector<2x16x8xf32> -> vector<8x16x8xf32>
    "tpu.trace_start"() <{level = 10 : i32, message = "bqd,bkd->bqk"}> : () -> ()
    %cst_28 = arith.constant dense<0.000000e+00> : vector<8x8x16xf32>
    %119 = tpu.matmul %108, %113, %cst_28 {dimension_numbers = #tpu.dot_dimension_numbers<[2], [2], [1], [1], [0, 0, 0, 1, 1, 1], [0], [0]>} : vector<8x8x8xf32>, vector<8x16x8xf32>, vector<8x8x16xf32> -> vector<8x8x16xf32>
    "tpu.trace_stop"() : () -> ()
    %cst_29 = arith.constant 0.353553385 : f32
    %120 = vector.broadcast %cst_29 : f32 to vector<8x8x16xf32>
    %121 = arith.mulf %119, %120 : vector<8x8x16xf32>
    %cst_30 = arith.constant dense<0xFF800000> : vector<8x8xf32>
    %122 = vector.multi_reduction <maximumf>, %121, %cst_30 [2] : vector<8x8x16xf32> to vector<8x8xf32>
    %123 = vector.shape_cast %122 : vector<8x8xf32> to vector<8x8x1xf32>
    %124 = vector.broadcast %123 : vector<8x8x1xf32> to vector<8x8x16xf32>
    %125 = arith.subf %121, %124 : vector<8x8x16xf32>
    %126 = math.exp %125 : vector<8x8x16xf32>
    %cst_31 = arith.constant dense<0.000000e+00> : vector<8x8xf32>
    %127 = vector.multi_reduction <add>, %126, %cst_31 [2] : vector<8x8x16xf32> to vector<8x8xf32>
    %128 = vector.shape_cast %127 : vector<8x8xf32> to vector<8x8x1xf32>
    %129 = vector.broadcast %128 : vector<8x8x1xf32> to vector<8x8x16xf32>
    %130 = arith.divf %126, %129 : vector<8x8x16xf32>
    "tpu.trace_start"() <{level = 10 : i32, message = "bqk,bkd->bqd"}> : () -> ()
    %cst_32 = arith.constant dense<0.000000e+00> : vector<8x8x8xf32>
    %131 = tpu.matmul %130, %118, %cst_32 {dimension_numbers = #tpu.dot_dimension_numbers<[2], [1], [1], [2], [0, 0, 0, 1, 1, 2], [0], [0]>} : vector<8x8x16xf32>, vector<8x16x8xf32>, vector<8x8x8xf32> -> vector<8x8x8xf32>
    "tpu.trace_stop"() : () -> ()
    %132 = vector.extract_strided_slice %131 {offsets = [0, 0, 0], sizes = [2, 8, 8], strides = [1, 1, 1]} : vector<8x8x8xf32> to vector<2x8x8xf32>
    %133 = vector.shape_cast %132 : vector<2x8x8xf32> to vector<16x8xf32>
    %134 = vector.extract_strided_slice %131 {offsets = [2, 0, 0], sizes = [2, 8, 8], strides = [1, 1, 1]} : vector<8x8x8xf32> to vector<2x8x8xf32>
    %135 = vector.shape_cast %134 : vector<2x8x8xf32> to vector<16x8xf32>
    %136 = vector.extract_strided_slice %131 {offsets = [4, 0, 0], sizes = [2, 8, 8], strides = [1, 1, 1]} : vector<8x8x8xf32> to vector<2x8x8xf32>
    %137 = vector.shape_cast %136 : vector<2x8x8xf32> to vector<16x8xf32>
    %138 = vector.extract_strided_slice %131 {offsets = [6, 0, 0], sizes = [2, 8, 8], strides = [1, 1, 1]} : vector<8x8x8xf32> to vector<2x8x8xf32>
    %139 = vector.shape_cast %138 : vector<2x8x8xf32> to vector<16x8xf32>
    %140 = tpu.concatenate %133, %135, %137, %139 in 1 : vector<16x8xf32>, vector<16x8xf32>, vector<16x8xf32>, vector<16x8xf32> -> vector<16x32xf32>
    %cst_33 = arith.constant dense<0.000000e+00> : vector<16x32xf32>
    %141 = tpu.matmul %140, %102, %cst_33 {dimension_numbers = #tpu.dot_dimension_numbers<[1], [0], [0], [1], [0, 0, 1, 1], [], []>} : vector<16x32xf32>, vector<32x32xf32>, vector<16x32xf32> -> vector<16x32xf32>
    %142 = vector.broadcast %103 : vector<1x32xf32> to vector<16x32xf32>
    %143 = arith.addf %141, %142 : vector<16x32xf32>
    %144 = vector.shape_cast %130 : vector<8x8x16xf32> to vector<4x2x8x16xf32>
    %cst_34 = arith.constant dense<0.000000e+00> : vector<2x8x16xf32>
    %145 = vector.multi_reduction <add>, %144, %cst_34 [0] : vector<4x2x8x16xf32> to vector<2x8x16xf32>
    %cst_35 = arith.constant 4.000000e+00 : f32
    %146 = vector.broadcast %cst_35 : f32 to vector<2x8x16xf32>
    %147 = arith.divf %145, %146 : vector<2x8x16xf32>
    %148 = arith.addf %4, %147 : vector<2x8x16xf32>
    %149 = arith.addf %87, %143 : vector<16x32xf32>
    %150 = vector.extract_strided_slice %10 {offsets = [3, 0], sizes = [1, 32], strides = [1, 1]} : vector<8x896xf32> to vector<1x32xf32>
    %151 = vector.extract_strided_slice %10 {offsets = [4, 0], sizes = [1, 32], strides = [1, 1]} : vector<8x896xf32> to vector<1x32xf32>
    %cst_36 = arith.constant dense<0.000000e+00> : vector<16xf32>
    %152 = vector.multi_reduction <add>, %149, %cst_36 [1] : vector<16x32xf32> to vector<16xf32>
    %153 = vector.shape_cast %152 : vector<16xf32> to vector<16x1xf32>
    %cst_37 = arith.constant 3.200000e+01 : f32
    %154 = vector.broadcast %cst_37 : f32 to vector<16x1xf32>
    %155 = arith.divf %153, %154 : vector<16x1xf32>
    %156 = vector.broadcast %155 : vector<16x1xf32> to vector<16x32xf32>
    %157 = arith.subf %149, %156 : vector<16x32xf32>
    %158 = arith.mulf %157, %157 : vector<16x32xf32>
    %cst_38 = arith.constant dense<0.000000e+00> : vector<16xf32>
    %159 = vector.multi_reduction <add>, %158, %cst_38 [1] : vector<16x32xf32> to vector<16xf32>
    %160 = vector.shape_cast %159 : vector<16xf32> to vector<16x1xf32>
    %cst_39 = arith.constant 3.200000e+01 : f32
    %161 = vector.broadcast %cst_39 : f32 to vector<16x1xf32>
    %162 = arith.divf %160, %161 : vector<16x1xf32>
    %163 = vector.broadcast %155 : vector<16x1xf32> to vector<16x32xf32>
    %164 = arith.subf %149, %163 : vector<16x32xf32>
    %cst_40 = arith.constant 9.99999974E-6 : f32
    %165 = vector.broadcast %cst_40 : f32 to vector<16x1xf32>
    %166 = arith.addf %162, %165 : vector<16x1xf32>
    %167 = math.rsqrt %166 : vector<16x1xf32>
    %168 = vector.broadcast %167 : vector<16x1xf32> to vector<16x32xf32>
    %169 = arith.mulf %164, %168 : vector<16x32xf32>
    %170 = vector.broadcast %150 : vector<1x32xf32> to vector<16x32xf32>
    %171 = arith.mulf %169, %170 : vector<16x32xf32>
    %172 = vector.broadcast %151 : vector<1x32xf32> to vector<16x32xf32>
    %173 = arith.addf %171, %172 : vector<16x32xf32>
    %174 = vector.extract_strided_slice %6 {offsets = [0, 640], sizes = [32, 64], strides = [1, 1]} : vector<32x768xf32> to vector<32x64xf32>
    %cst_41 = arith.constant dense<0.000000e+00> : vector<16x64xf32>
    %175 = tpu.matmul %173, %174, %cst_41 {dimension_numbers = #tpu.dot_dimension_numbers<[1], [0], [0], [1], [0, 0, 1, 1], [], []>} : vector<16x32xf32>, vector<32x64xf32>, vector<16x64xf32> -> vector<16x64xf32>
    %176 = vector.extract_strided_slice %11 {offsets = [0, 640], sizes = [1, 64], strides = [1, 1]} : vector<1x896xf32> to vector<1x64xf32>
    %177 = vector.broadcast %176 : vector<1x64xf32> to vector<16x64xf32>
    %178 = arith.addf %175, %177 : vector<16x64xf32>
    %cst_42 = arith.constant 0.000000e+00 : f32
    %179 = vector.broadcast %cst_42 : f32 to vector<16x64xf32>
    %180 = arith.maximumf %178, %179 : vector<16x64xf32>
    %cst_43 = arith.constant dense<0.000000e+00> : vector<16x32xf32>
    %181 = tpu.matmul %180, %8, %cst_43 {dimension_numbers = #tpu.dot_dimension_numbers<[1], [0], [0], [1], [0, 0, 1, 1], [], []>} : vector<16x64xf32>, vector<64x32xf32>, vector<16x32xf32> -> vector<16x32xf32>
    %182 = vector.extract_strided_slice %11 {offsets = [0, 768], sizes = [1, 32], strides = [1, 1]} : vector<1x896xf32> to vector<1x32xf32>
    %183 = vector.broadcast %182 : vector<1x32xf32> to vector<16x32xf32>
    %184 = arith.addf %181, %183 : vector<16x32xf32>
    %185 = arith.addf %173, %184 : vector<16x32xf32>
    %186 = vector.extract_strided_slice %10 {offsets = [5, 0], sizes = [1, 32], strides = [1, 1]} : vector<8x896xf32> to vector<1x32xf32>
    %187 = vector.extract_strided_slice %10 {offsets = [6, 0], sizes = [1, 32], strides = [1, 1]} : vector<8x896xf32> to vector<1x32xf32>
    %cst_44 = arith.constant dense<0.000000e+00> : vector<16xf32>
    %188 = vector.multi_reduction <add>, %185, %cst_44 [1] : vector<16x32xf32> to vector<16xf32>
    %189 = vector.shape_cast %188 : vector<16xf32> to vector<16x1xf32>
    %cst_45 = arith.constant 3.200000e+01 : f32
    %190 = vector.broadcast %cst_45 : f32 to vector<16x1xf32>
    %191 = arith.divf %189, %190 : vector<16x1xf32>
    %192 = vector.broadcast %191 : vector<16x1xf32> to vector<16x32xf32>
    %193 = arith.subf %185, %192 : vector<16x32xf32>
    %194 = arith.mulf %193, %193 : vector<16x32xf32>
    %cst_46 = arith.constant dense<0.000000e+00> : vector<16xf32>
    %195 = vector.multi_reduction <add>, %194, %cst_46 [1] : vector<16x32xf32> to vector<16xf32>
    %196 = vector.shape_cast %195 : vector<16xf32> to vector<16x1xf32>
    %cst_47 = arith.constant 3.200000e+01 : f32
    %197 = vector.broadcast %cst_47 : f32 to vector<16x1xf32>
    %198 = arith.divf %196, %197 : vector<16x1xf32>
    %199 = vector.broadcast %191 : vector<16x1xf32> to vector<16x32xf32>
    %200 = arith.subf %185, %199 : vector<16x32xf32>
    %cst_48 = arith.constant 9.99999974E-6 : f32
    %201 = vector.broadcast %cst_48 : f32 to vector<16x1xf32>
    %202 = arith.addf %198, %201 : vector<16x1xf32>
    %203 = math.rsqrt %202 : vector<16x1xf32>
    %204 = vector.broadcast %203 : vector<16x1xf32> to vector<16x32xf32>
    %205 = arith.mulf %200, %204 : vector<16x32xf32>
    %206 = vector.broadcast %186 : vector<1x32xf32> to vector<16x32xf32>
    %207 = arith.mulf %205, %206 : vector<16x32xf32>
    %208 = vector.broadcast %187 : vector<1x32xf32> to vector<16x32xf32>
    %209 = arith.addf %207, %208 : vector<16x32xf32>
    %c1 = arith.constant 1 : index
    %c0_49 = arith.constant 0 : index
    %c0_50 = arith.constant 0 : index
    %210 = vector.load %arg2[%c1, %c0_49, %c0_50] : memref<2x32x768xf32, #tpu.memory_space<vmem>>, vector<1x32x768xf32>
    %211 = vector.shape_cast %210 : vector<1x32x768xf32> to vector<32x768xf32>
    %c1_51 = arith.constant 1 : index
    %c0_52 = arith.constant 0 : index
    %c0_53 = arith.constant 0 : index
    %212 = vector.load %arg3[%c1_51, %c0_52, %c0_53] : memref<2x64x32xf32, #tpu.memory_space<vmem>>, vector<1x64x32xf32>
    %213 = vector.shape_cast %212 : vector<1x64x32xf32> to vector<64x32xf32>
    %c1_54 = arith.constant 1 : index
    %c0_55 = arith.constant 0 : index
    %c0_56 = arith.constant 0 : index
    %214 = vector.load %arg4[%c1_54, %c0_55, %c0_56] : memref<3x8x896xf32, #tpu.memory_space<vmem>>, vector<1x8x896xf32>
    %215 = vector.shape_cast %214 : vector<1x8x896xf32> to vector<8x896xf32>
    %216 = vector.extract_strided_slice %215 {offsets = [0, 0], sizes = [1, 896], strides = [1, 1]} : vector<8x896xf32> to vector<1x896xf32>
    %217 = vector.extract_strided_slice %211 {offsets = [0, 0], sizes = [32, 96], strides = [1, 1]} : vector<32x768xf32> to vector<32x96xf32>
    %cst_57 = arith.constant dense<0.000000e+00> : vector<16x96xf32>
    %218 = tpu.matmul %209, %217, %cst_57 {dimension_numbers = #tpu.dot_dimension_numbers<[1], [0], [0], [1], [0, 0, 1, 1], [], []>} : vector<16x32xf32>, vector<32x96xf32>, vector<16x96xf32> -> vector<16x96xf32>
    %219 = vector.extract_strided_slice %216 {offsets = [0, 0], sizes = [1, 96], strides = [1, 1]} : vector<1x896xf32> to vector<1x96xf32>
    %220 = vector.broadcast %219 : vector<1x96xf32> to vector<16x96xf32>
    %221 = arith.addf %218, %220 : vector<16x96xf32>
    %222 = vector.shape_cast %221 : vector<16x96xf32> to vector<2x8x96xf32>
    %223 = vector.extract_strided_slice %222 {offsets = [0, 0, 0], sizes = [2, 8, 32], strides = [1, 1, 1]} : vector<2x8x96xf32> to vector<2x8x32xf32>
    %224 = vector.extract_strided_slice %222 {offsets = [0, 0, 32], sizes = [2, 8, 32], strides = [1, 1, 1]} : vector<2x8x96xf32> to vector<2x8x32xf32>
    %225 = vector.extract_strided_slice %222 {offsets = [0, 0, 64], sizes = [2, 8, 32], strides = [1, 1, 1]} : vector<2x8x96xf32> to vector<2x8x32xf32>
    %226 = vector.extract_strided_slice %211 {offsets = [0, 128], sizes = [32, 32], strides = [1, 1]} : vector<32x768xf32> to vector<32x32xf32>
    %227 = vector.extract_strided_slice %216 {offsets = [0, 128], sizes = [1, 32], strides = [1, 1]} : vector<1x896xf32> to vector<1x32xf32>
    %228 = vector.extract_strided_slice %223 {offsets = [0, 0, 0], sizes = [2, 8, 8], strides = [1, 1, 1]} : vector<2x8x32xf32> to vector<2x8x8xf32>
    %229 = vector.extract_strided_slice %223 {offsets = [0, 0, 8], sizes = [2, 8, 8], strides = [1, 1, 1]} : vector<2x8x32xf32> to vector<2x8x8xf32>
    %230 = vector.extract_strided_slice %223 {offsets = [0, 0, 16], sizes = [2, 8, 8], strides = [1, 1, 1]} : vector<2x8x32xf32> to vector<2x8x8xf32>
    %231 = vector.extract_strided_slice %223 {offsets = [0, 0, 24], sizes = [2, 8, 8], strides = [1, 1, 1]} : vector<2x8x32xf32> to vector<2x8x8xf32>
    %232 = tpu.concatenate %228, %229, %230, %231 in 0 : vector<2x8x8xf32>, vector<2x8x8xf32>, vector<2x8x8xf32>, vector<2x8x8xf32> -> vector<8x8x8xf32>
    %233 = vector.extract_strided_slice %224 {offsets = [0, 0, 0], sizes = [2, 8, 8], strides = [1, 1, 1]} : vector<2x8x32xf32> to vector<2x8x8xf32>
    %234 = vector.extract_strided_slice %224 {offsets = [0, 0, 8], sizes = [2, 8, 8], strides = [1, 1, 1]} : vector<2x8x32xf32> to vector<2x8x8xf32>
    %235 = vector.extract_strided_slice %224 {offsets = [0, 0, 16], sizes = [2, 8, 8], strides = [1, 1, 1]} : vector<2x8x32xf32> to vector<2x8x8xf32>
    %236 = vector.extract_strided_slice %224 {offsets = [0, 0, 24], sizes = [2, 8, 8], strides = [1, 1, 1]} : vector<2x8x32xf32> to vector<2x8x8xf32>
    %237 = tpu.concatenate %233, %234, %235, %236 in 0 : vector<2x8x8xf32>, vector<2x8x8xf32>, vector<2x8x8xf32>, vector<2x8x8xf32> -> vector<8x8x8xf32>
    %238 = vector.extract_strided_slice %225 {offsets = [0, 0, 0], sizes = [2, 8, 8], strides = [1, 1, 1]} : vector<2x8x32xf32> to vector<2x8x8xf32>
    %239 = vector.extract_strided_slice %225 {offsets = [0, 0, 8], sizes = [2, 8, 8], strides = [1, 1, 1]} : vector<2x8x32xf32> to vector<2x8x8xf32>
    %240 = vector.extract_strided_slice %225 {offsets = [0, 0, 16], sizes = [2, 8, 8], strides = [1, 1, 1]} : vector<2x8x32xf32> to vector<2x8x8xf32>
    %241 = vector.extract_strided_slice %225 {offsets = [0, 0, 24], sizes = [2, 8, 8], strides = [1, 1, 1]} : vector<2x8x32xf32> to vector<2x8x8xf32>
    %242 = tpu.concatenate %238, %239, %240, %241 in 0 : vector<2x8x8xf32>, vector<2x8x8xf32>, vector<2x8x8xf32>, vector<2x8x8xf32> -> vector<8x8x8xf32>
    "tpu.trace_start"() <{level = 10 : i32, message = "bqd,bkd->bqk"}> : () -> ()
    %cst_58 = arith.constant dense<0.000000e+00> : vector<8x8x8xf32>
    %243 = tpu.matmul %232, %237, %cst_58 {dimension_numbers = #tpu.dot_dimension_numbers<[2], [2], [1], [1], [0, 0, 0, 1, 1, 1], [0], [0]>} : vector<8x8x8xf32>, vector<8x8x8xf32>, vector<8x8x8xf32> -> vector<8x8x8xf32>
    "tpu.trace_stop"() : () -> ()
    %cst_59 = arith.constant 0.353553385 : f32
    %244 = vector.broadcast %cst_59 : f32 to vector<8x8x8xf32>
    %245 = arith.mulf %243, %244 : vector<8x8x8xf32>
    %cst_60 = arith.constant dense<0xFF800000> : vector<8x8xf32>
    %246 = vector.multi_reduction <maximumf>, %245, %cst_60 [2] : vector<8x8x8xf32> to vector<8x8xf32>
    %247 = vector.shape_cast %246 : vector<8x8xf32> to vector<8x8x1xf32>
    %248 = vector.broadcast %247 : vector<8x8x1xf32> to vector<8x8x8xf32>
    %249 = arith.subf %245, %248 : vector<8x8x8xf32>
    %250 = math.exp %249 : vector<8x8x8xf32>
    %cst_61 = arith.constant dense<0.000000e+00> : vector<8x8xf32>
    %251 = vector.multi_reduction <add>, %250, %cst_61 [2] : vector<8x8x8xf32> to vector<8x8xf32>
    %252 = vector.shape_cast %251 : vector<8x8xf32> to vector<8x8x1xf32>
    %253 = vector.broadcast %252 : vector<8x8x1xf32> to vector<8x8x8xf32>
    %254 = arith.divf %250, %253 : vector<8x8x8xf32>
    "tpu.trace_start"() <{level = 10 : i32, message = "bqk,bkd->bqd"}> : () -> ()
    %cst_62 = arith.constant dense<0.000000e+00> : vector<8x8x8xf32>
    %255 = tpu.matmul %254, %242, %cst_62 {dimension_numbers = #tpu.dot_dimension_numbers<[2], [1], [1], [2], [0, 0, 0, 1, 1, 2], [0], [0]>} : vector<8x8x8xf32>, vector<8x8x8xf32>, vector<8x8x8xf32> -> vector<8x8x8xf32>
    "tpu.trace_stop"() : () -> ()
    %256 = vector.extract_strided_slice %255 {offsets = [0, 0, 0], sizes = [2, 8, 8], strides = [1, 1, 1]} : vector<8x8x8xf32> to vector<2x8x8xf32>
    %257 = vector.shape_cast %256 : vector<2x8x8xf32> to vector<16x8xf32>
    %258 = vector.extract_strided_slice %255 {offsets = [2, 0, 0], sizes = [2, 8, 8], strides = [1, 1, 1]} : vector<8x8x8xf32> to vector<2x8x8xf32>
    %259 = vector.shape_cast %258 : vector<2x8x8xf32> to vector<16x8xf32>
    %260 = vector.extract_strided_slice %255 {offsets = [4, 0, 0], sizes = [2, 8, 8], strides = [1, 1, 1]} : vector<8x8x8xf32> to vector<2x8x8xf32>
    %261 = vector.shape_cast %260 : vector<2x8x8xf32> to vector<16x8xf32>
    %262 = vector.extract_strided_slice %255 {offsets = [6, 0, 0], sizes = [2, 8, 8], strides = [1, 1, 1]} : vector<8x8x8xf32> to vector<2x8x8xf32>
    %263 = vector.shape_cast %262 : vector<2x8x8xf32> to vector<16x8xf32>
    %264 = tpu.concatenate %257, %259, %261, %263 in 1 : vector<16x8xf32>, vector<16x8xf32>, vector<16x8xf32>, vector<16x8xf32> -> vector<16x32xf32>
    %cst_63 = arith.constant dense<0.000000e+00> : vector<16x32xf32>
    %265 = tpu.matmul %264, %226, %cst_63 {dimension_numbers = #tpu.dot_dimension_numbers<[1], [0], [0], [1], [0, 0, 1, 1], [], []>} : vector<16x32xf32>, vector<32x32xf32>, vector<16x32xf32> -> vector<16x32xf32>
    %266 = vector.broadcast %227 : vector<1x32xf32> to vector<16x32xf32>
    %267 = arith.addf %265, %266 : vector<16x32xf32>
    %268 = arith.addf %209, %267 : vector<16x32xf32>
    %269 = vector.extract_strided_slice %215 {offsets = [1, 0], sizes = [1, 32], strides = [1, 1]} : vector<8x896xf32> to vector<1x32xf32>
    %270 = vector.extract_strided_slice %215 {offsets = [2, 0], sizes = [1, 32], strides = [1, 1]} : vector<8x896xf32> to vector<1x32xf32>
    %cst_64 = arith.constant dense<0.000000e+00> : vector<16xf32>
    %271 = vector.multi_reduction <add>, %268, %cst_64 [1] : vector<16x32xf32> to vector<16xf32>
    %272 = vector.shape_cast %271 : vector<16xf32> to vector<16x1xf32>
    %cst_65 = arith.constant 3.200000e+01 : f32
    %273 = vector.broadcast %cst_65 : f32 to vector<16x1xf32>
    %274 = arith.divf %272, %273 : vector<16x1xf32>
    %275 = vector.broadcast %274 : vector<16x1xf32> to vector<16x32xf32>
    %276 = arith.subf %268, %275 : vector<16x32xf32>
    %277 = arith.mulf %276, %276 : vector<16x32xf32>
    %cst_66 = arith.constant dense<0.000000e+00> : vector<16xf32>
    %278 = vector.multi_reduction <add>, %277, %cst_66 [1] : vector<16x32xf32> to vector<16xf32>
    %279 = vector.shape_cast %278 : vector<16xf32> to vector<16x1xf32>
    %cst_67 = arith.constant 3.200000e+01 : f32
    %280 = vector.broadcast %cst_67 : f32 to vector<16x1xf32>
    %281 = arith.divf %279, %280 : vector<16x1xf32>
    %282 = vector.broadcast %274 : vector<16x1xf32> to vector<16x32xf32>
    %283 = arith.subf %268, %282 : vector<16x32xf32>
    %cst_68 = arith.constant 9.99999974E-6 : f32
    %284 = vector.broadcast %cst_68 : f32 to vector<16x1xf32>
    %285 = arith.addf %281, %284 : vector<16x1xf32>
    %286 = math.rsqrt %285 : vector<16x1xf32>
    %287 = vector.broadcast %286 : vector<16x1xf32> to vector<16x32xf32>
    %288 = arith.mulf %283, %287 : vector<16x32xf32>
    %289 = vector.broadcast %269 : vector<1x32xf32> to vector<16x32xf32>
    %290 = arith.mulf %288, %289 : vector<16x32xf32>
    %291 = vector.broadcast %270 : vector<1x32xf32> to vector<16x32xf32>
    %292 = arith.addf %290, %291 : vector<16x32xf32>
    %293 = vector.extract_strided_slice %211 {offsets = [0, 256], sizes = [32, 32], strides = [1, 1]} : vector<32x768xf32> to vector<32x32xf32>
    %cst_69 = arith.constant dense<0.000000e+00> : vector<16x32xf32>
    %294 = tpu.matmul %292, %293, %cst_69 {dimension_numbers = #tpu.dot_dimension_numbers<[1], [0], [0], [1], [0, 0, 1, 1], [], []>} : vector<16x32xf32>, vector<32x32xf32>, vector<16x32xf32> -> vector<16x32xf32>
    %295 = vector.extract_strided_slice %216 {offsets = [0, 256], sizes = [1, 32], strides = [1, 1]} : vector<1x896xf32> to vector<1x32xf32>
    %296 = vector.broadcast %295 : vector<1x32xf32> to vector<16x32xf32>
    %297 = arith.addf %294, %296 : vector<16x32xf32>
    %298 = vector.extract_strided_slice %211 {offsets = [0, 384], sizes = [32, 64], strides = [1, 1]} : vector<32x768xf32> to vector<32x64xf32>
    %cst_70 = arith.constant dense<0.000000e+00> : vector<32x64xf32>
    %299 = tpu.matmul %3, %298, %cst_70 {dimension_numbers = #tpu.dot_dimension_numbers<[1], [0], [0], [1], [0, 0, 1, 1], [], []>} : vector<32x32xf32>, vector<32x64xf32>, vector<32x64xf32> -> vector<32x64xf32>
    %300 = vector.extract_strided_slice %216 {offsets = [0, 384], sizes = [1, 64], strides = [1, 1]} : vector<1x896xf32> to vector<1x64xf32>
    %301 = vector.broadcast %300 : vector<1x64xf32> to vector<32x64xf32>
    %302 = arith.addf %299, %301 : vector<32x64xf32>
    %303 = vector.shape_cast %302 : vector<32x64xf32> to vector<2x16x64xf32>
    %304 = vector.shape_cast %297 : vector<16x32xf32> to vector<2x8x32xf32>
    %305 = vector.extract_strided_slice %303 {offsets = [0, 0, 0], sizes = [2, 16, 32], strides = [1, 1, 1]} : vector<2x16x64xf32> to vector<2x16x32xf32>
    %306 = vector.extract_strided_slice %303 {offsets = [0, 0, 32], sizes = [2, 16, 32], strides = [1, 1, 1]} : vector<2x16x64xf32> to vector<2x16x32xf32>
    %307 = vector.extract_strided_slice %211 {offsets = [0, 512], sizes = [32, 32], strides = [1, 1]} : vector<32x768xf32> to vector<32x32xf32>
    %308 = vector.extract_strided_slice %216 {offsets = [0, 512], sizes = [1, 32], strides = [1, 1]} : vector<1x896xf32> to vector<1x32xf32>
    %309 = vector.extract_strided_slice %304 {offsets = [0, 0, 0], sizes = [2, 8, 8], strides = [1, 1, 1]} : vector<2x8x32xf32> to vector<2x8x8xf32>
    %310 = vector.extract_strided_slice %304 {offsets = [0, 0, 8], sizes = [2, 8, 8], strides = [1, 1, 1]} : vector<2x8x32xf32> to vector<2x8x8xf32>
    %311 = vector.extract_strided_slice %304 {offsets = [0, 0, 16], sizes = [2, 8, 8], strides = [1, 1, 1]} : vector<2x8x32xf32> to vector<2x8x8xf32>
    %312 = vector.extract_strided_slice %304 {offsets = [0, 0, 24], sizes = [2, 8, 8], strides = [1, 1, 1]} : vector<2x8x32xf32> to vector<2x8x8xf32>
    %313 = tpu.concatenate %309, %310, %311, %312 in 0 : vector<2x8x8xf32>, vector<2x8x8xf32>, vector<2x8x8xf32>, vector<2x8x8xf32> -> vector<8x8x8xf32>
    %314 = vector.extract_strided_slice %305 {offsets = [0, 0, 0], sizes = [2, 16, 8], strides = [1, 1, 1]} : vector<2x16x32xf32> to vector<2x16x8xf32>
    %315 = vector.extract_strided_slice %305 {offsets = [0, 0, 8], sizes = [2, 16, 8], strides = [1, 1, 1]} : vector<2x16x32xf32> to vector<2x16x8xf32>
    %316 = vector.extract_strided_slice %305 {offsets = [0, 0, 16], sizes = [2, 16, 8], strides = [1, 1, 1]} : vector<2x16x32xf32> to vector<2x16x8xf32>
    %317 = vector.extract_strided_slice %305 {offsets = [0, 0, 24], sizes = [2, 16, 8], strides = [1, 1, 1]} : vector<2x16x32xf32> to vector<2x16x8xf32>
    %318 = tpu.concatenate %314, %315, %316, %317 in 0 : vector<2x16x8xf32>, vector<2x16x8xf32>, vector<2x16x8xf32>, vector<2x16x8xf32> -> vector<8x16x8xf32>
    %319 = vector.extract_strided_slice %306 {offsets = [0, 0, 0], sizes = [2, 16, 8], strides = [1, 1, 1]} : vector<2x16x32xf32> to vector<2x16x8xf32>
    %320 = vector.extract_strided_slice %306 {offsets = [0, 0, 8], sizes = [2, 16, 8], strides = [1, 1, 1]} : vector<2x16x32xf32> to vector<2x16x8xf32>
    %321 = vector.extract_strided_slice %306 {offsets = [0, 0, 16], sizes = [2, 16, 8], strides = [1, 1, 1]} : vector<2x16x32xf32> to vector<2x16x8xf32>
    %322 = vector.extract_strided_slice %306 {offsets = [0, 0, 24], sizes = [2, 16, 8], strides = [1, 1, 1]} : vector<2x16x32xf32> to vector<2x16x8xf32>
    %323 = tpu.concatenate %319, %320, %321, %322 in 0 : vector<2x16x8xf32>, vector<2x16x8xf32>, vector<2x16x8xf32>, vector<2x16x8xf32> -> vector<8x16x8xf32>
    "tpu.trace_start"() <{level = 10 : i32, message = "bqd,bkd->bqk"}> : () -> ()
    %cst_71 = arith.constant dense<0.000000e+00> : vector<8x8x16xf32>
    %324 = tpu.matmul %313, %318, %cst_71 {dimension_numbers = #tpu.dot_dimension_numbers<[2], [2], [1], [1], [0, 0, 0, 1, 1, 1], [0], [0]>} : vector<8x8x8xf32>, vector<8x16x8xf32>, vector<8x8x16xf32> -> vector<8x8x16xf32>
    "tpu.trace_stop"() : () -> ()
    %cst_72 = arith.constant 0.353553385 : f32
    %325 = vector.broadcast %cst_72 : f32 to vector<8x8x16xf32>
    %326 = arith.mulf %324, %325 : vector<8x8x16xf32>
    %cst_73 = arith.constant dense<0xFF800000> : vector<8x8xf32>
    %327 = vector.multi_reduction <maximumf>, %326, %cst_73 [2] : vector<8x8x16xf32> to vector<8x8xf32>
    %328 = vector.shape_cast %327 : vector<8x8xf32> to vector<8x8x1xf32>
    %329 = vector.broadcast %328 : vector<8x8x1xf32> to vector<8x8x16xf32>
    %330 = arith.subf %326, %329 : vector<8x8x16xf32>
    %331 = math.exp %330 : vector<8x8x16xf32>
    %cst_74 = arith.constant dense<0.000000e+00> : vector<8x8xf32>
    %332 = vector.multi_reduction <add>, %331, %cst_74 [2] : vector<8x8x16xf32> to vector<8x8xf32>
    %333 = vector.shape_cast %332 : vector<8x8xf32> to vector<8x8x1xf32>
    %334 = vector.broadcast %333 : vector<8x8x1xf32> to vector<8x8x16xf32>
    %335 = arith.divf %331, %334 : vector<8x8x16xf32>
    "tpu.trace_start"() <{level = 10 : i32, message = "bqk,bkd->bqd"}> : () -> ()
    %cst_75 = arith.constant dense<0.000000e+00> : vector<8x8x8xf32>
    %336 = tpu.matmul %335, %323, %cst_75 {dimension_numbers = #tpu.dot_dimension_numbers<[2], [1], [1], [2], [0, 0, 0, 1, 1, 2], [0], [0]>} : vector<8x8x16xf32>, vector<8x16x8xf32>, vector<8x8x8xf32> -> vector<8x8x8xf32>
    "tpu.trace_stop"() : () -> ()
    %337 = vector.extract_strided_slice %336 {offsets = [0, 0, 0], sizes = [2, 8, 8], strides = [1, 1, 1]} : vector<8x8x8xf32> to vector<2x8x8xf32>
    %338 = vector.shape_cast %337 : vector<2x8x8xf32> to vector<16x8xf32>
    %339 = vector.extract_strided_slice %336 {offsets = [2, 0, 0], sizes = [2, 8, 8], strides = [1, 1, 1]} : vector<8x8x8xf32> to vector<2x8x8xf32>
    %340 = vector.shape_cast %339 : vector<2x8x8xf32> to vector<16x8xf32>
    %341 = vector.extract_strided_slice %336 {offsets = [4, 0, 0], sizes = [2, 8, 8], strides = [1, 1, 1]} : vector<8x8x8xf32> to vector<2x8x8xf32>
    %342 = vector.shape_cast %341 : vector<2x8x8xf32> to vector<16x8xf32>
    %343 = vector.extract_strided_slice %336 {offsets = [6, 0, 0], sizes = [2, 8, 8], strides = [1, 1, 1]} : vector<8x8x8xf32> to vector<2x8x8xf32>
    %344 = vector.shape_cast %343 : vector<2x8x8xf32> to vector<16x8xf32>
    %345 = tpu.concatenate %338, %340, %342, %344 in 1 : vector<16x8xf32>, vector<16x8xf32>, vector<16x8xf32>, vector<16x8xf32> -> vector<16x32xf32>
    %cst_76 = arith.constant dense<0.000000e+00> : vector<16x32xf32>
    %346 = tpu.matmul %345, %307, %cst_76 {dimension_numbers = #tpu.dot_dimension_numbers<[1], [0], [0], [1], [0, 0, 1, 1], [], []>} : vector<16x32xf32>, vector<32x32xf32>, vector<16x32xf32> -> vector<16x32xf32>
    %347 = vector.broadcast %308 : vector<1x32xf32> to vector<16x32xf32>
    %348 = arith.addf %346, %347 : vector<16x32xf32>
    %349 = vector.shape_cast %335 : vector<8x8x16xf32> to vector<4x2x8x16xf32>
    %cst_77 = arith.constant dense<0.000000e+00> : vector<2x8x16xf32>
    %350 = vector.multi_reduction <add>, %349, %cst_77 [0] : vector<4x2x8x16xf32> to vector<2x8x16xf32>
    %cst_78 = arith.constant 4.000000e+00 : f32
    %351 = vector.broadcast %cst_78 : f32 to vector<2x8x16xf32>
    %352 = arith.divf %350, %351 : vector<2x8x16xf32>
    %353 = arith.addf %148, %352 : vector<2x8x16xf32>
    %354 = arith.addf %292, %348 : vector<16x32xf32>
    %355 = vector.extract_strided_slice %215 {offsets = [3, 0], sizes = [1, 32], strides = [1, 1]} : vector<8x896xf32> to vector<1x32xf32>
    %356 = vector.extract_strided_slice %215 {offsets = [4, 0], sizes = [1, 32], strides = [1, 1]} : vector<8x896xf32> to vector<1x32xf32>
    %cst_79 = arith.constant dense<0.000000e+00> : vector<16xf32>
    %357 = vector.multi_reduction <add>, %354, %cst_79 [1] : vector<16x32xf32> to vector<16xf32>
    %358 = vector.shape_cast %357 : vector<16xf32> to vector<16x1xf32>
    %cst_80 = arith.constant 3.200000e+01 : f32
    %359 = vector.broadcast %cst_80 : f32 to vector<16x1xf32>
    %360 = arith.divf %358, %359 : vector<16x1xf32>
    %361 = vector.broadcast %360 : vector<16x1xf32> to vector<16x32xf32>
    %362 = arith.subf %354, %361 : vector<16x32xf32>
    %363 = arith.mulf %362, %362 : vector<16x32xf32>
    %cst_81 = arith.constant dense<0.000000e+00> : vector<16xf32>
    %364 = vector.multi_reduction <add>, %363, %cst_81 [1] : vector<16x32xf32> to vector<16xf32>
    %365 = vector.shape_cast %364 : vector<16xf32> to vector<16x1xf32>
    %cst_82 = arith.constant 3.200000e+01 : f32
    %366 = vector.broadcast %cst_82 : f32 to vector<16x1xf32>
    %367 = arith.divf %365, %366 : vector<16x1xf32>
    %368 = vector.broadcast %360 : vector<16x1xf32> to vector<16x32xf32>
    %369 = arith.subf %354, %368 : vector<16x32xf32>
    %cst_83 = arith.constant 9.99999974E-6 : f32
    %370 = vector.broadcast %cst_83 : f32 to vector<16x1xf32>
    %371 = arith.addf %367, %370 : vector<16x1xf32>
    %372 = math.rsqrt %371 : vector<16x1xf32>
    %373 = vector.broadcast %372 : vector<16x1xf32> to vector<16x32xf32>
    %374 = arith.mulf %369, %373 : vector<16x32xf32>
    %375 = vector.broadcast %355 : vector<1x32xf32> to vector<16x32xf32>
    %376 = arith.mulf %374, %375 : vector<16x32xf32>
    %377 = vector.broadcast %356 : vector<1x32xf32> to vector<16x32xf32>
    %378 = arith.addf %376, %377 : vector<16x32xf32>
    %379 = vector.extract_strided_slice %211 {offsets = [0, 640], sizes = [32, 64], strides = [1, 1]} : vector<32x768xf32> to vector<32x64xf32>
    %cst_84 = arith.constant dense<0.000000e+00> : vector<16x64xf32>
    %380 = tpu.matmul %378, %379, %cst_84 {dimension_numbers = #tpu.dot_dimension_numbers<[1], [0], [0], [1], [0, 0, 1, 1], [], []>} : vector<16x32xf32>, vector<32x64xf32>, vector<16x64xf32> -> vector<16x64xf32>
    %381 = vector.extract_strided_slice %216 {offsets = [0, 640], sizes = [1, 64], strides = [1, 1]} : vector<1x896xf32> to vector<1x64xf32>
    %382 = vector.broadcast %381 : vector<1x64xf32> to vector<16x64xf32>
    %383 = arith.addf %380, %382 : vector<16x64xf32>
    %cst_85 = arith.constant 0.000000e+00 : f32
    %384 = vector.broadcast %cst_85 : f32 to vector<16x64xf32>
    %385 = arith.maximumf %383, %384 : vector<16x64xf32>
    %cst_86 = arith.constant dense<0.000000e+00> : vector<16x32xf32>
    %386 = tpu.matmul %385, %213, %cst_86 {dimension_numbers = #tpu.dot_dimension_numbers<[1], [0], [0], [1], [0, 0, 1, 1], [], []>} : vector<16x64xf32>, vector<64x32xf32>, vector<16x32xf32> -> vector<16x32xf32>
    %387 = vector.extract_strided_slice %216 {offsets = [0, 768], sizes = [1, 32], strides = [1, 1]} : vector<1x896xf32> to vector<1x32xf32>
    %388 = vector.broadcast %387 : vector<1x32xf32> to vector<16x32xf32>
    %389 = arith.addf %386, %388 : vector<16x32xf32>
    %390 = arith.addf %378, %389 : vector<16x32xf32>
    %391 = vector.extract_strided_slice %215 {offsets = [5, 0], sizes = [1, 32], strides = [1, 1]} : vector<8x896xf32> to vector<1x32xf32>
    %392 = vector.extract_strided_slice %215 {offsets = [6, 0], sizes = [1, 32], strides = [1, 1]} : vector<8x896xf32> to vector<1x32xf32>
    %cst_87 = arith.constant dense<0.000000e+00> : vector<16xf32>
    %393 = vector.multi_reduction <add>, %390, %cst_87 [1] : vector<16x32xf32> to vector<16xf32>
    %394 = vector.shape_cast %393 : vector<16xf32> to vector<16x1xf32>
    %cst_88 = arith.constant 3.200000e+01 : f32
    %395 = vector.broadcast %cst_88 : f32 to vector<16x1xf32>
    %396 = arith.divf %394, %395 : vector<16x1xf32>
    %397 = vector.broadcast %396 : vector<16x1xf32> to vector<16x32xf32>
    %398 = arith.subf %390, %397 : vector<16x32xf32>
    %399 = arith.mulf %398, %398 : vector<16x32xf32>
    %cst_89 = arith.constant dense<0.000000e+00> : vector<16xf32>
    %400 = vector.multi_reduction <add>, %399, %cst_89 [1] : vector<16x32xf32> to vector<16xf32>
    %401 = vector.shape_cast %400 : vector<16xf32> to vector<16x1xf32>
    %cst_90 = arith.constant 3.200000e+01 : f32
    %402 = vector.broadcast %cst_90 : f32 to vector<16x1xf32>
    %403 = arith.divf %401, %402 : vector<16x1xf32>
    %404 = vector.broadcast %396 : vector<16x1xf32> to vector<16x32xf32>
    %405 = arith.subf %390, %404 : vector<16x32xf32>
    %cst_91 = arith.constant 9.99999974E-6 : f32
    %406 = vector.broadcast %cst_91 : f32 to vector<16x1xf32>
    %407 = arith.addf %403, %406 : vector<16x1xf32>
    %408 = math.rsqrt %407 : vector<16x1xf32>
    %409 = vector.broadcast %408 : vector<16x1xf32> to vector<16x32xf32>
    %410 = arith.mulf %405, %409 : vector<16x32xf32>
    %411 = vector.broadcast %391 : vector<1x32xf32> to vector<16x32xf32>
    %412 = arith.mulf %410, %411 : vector<16x32xf32>
    %413 = vector.broadcast %392 : vector<1x32xf32> to vector<16x32xf32>
    %414 = arith.addf %412, %413 : vector<16x32xf32>
    %c2 = arith.constant 2 : index
    %c0_92 = arith.constant 0 : index
    %c0_93 = arith.constant 0 : index
    %415 = vector.load %arg4[%c2, %c0_92, %c0_93] : memref<3x8x896xf32, #tpu.memory_space<vmem>>, vector<1x8x896xf32>
    %416 = vector.shape_cast %415 : vector<1x8x896xf32> to vector<8x896xf32>
    %417 = vector.extract_strided_slice %416 {offsets = [0, 0], sizes = [1, 32], strides = [1, 1]} : vector<8x896xf32> to vector<1x32xf32>
    %418 = vector.extract_strided_slice %416 {offsets = [1, 0], sizes = [1, 32], strides = [1, 1]} : vector<8x896xf32> to vector<1x32xf32>
    %cst_94 = arith.constant dense<0.000000e+00> : vector<16xf32>
    %419 = vector.multi_reduction <add>, %414, %cst_94 [1] : vector<16x32xf32> to vector<16xf32>
    %420 = vector.shape_cast %419 : vector<16xf32> to vector<16x1xf32>
    %cst_95 = arith.constant 3.200000e+01 : f32
    %421 = vector.broadcast %cst_95 : f32 to vector<16x1xf32>
    %422 = arith.divf %420, %421 : vector<16x1xf32>
    %423 = vector.broadcast %422 : vector<16x1xf32> to vector<16x32xf32>
    %424 = arith.subf %414, %423 : vector<16x32xf32>
    %425 = arith.mulf %424, %424 : vector<16x32xf32>
    %cst_96 = arith.constant dense<0.000000e+00> : vector<16xf32>
    %426 = vector.multi_reduction <add>, %425, %cst_96 [1] : vector<16x32xf32> to vector<16xf32>
    %427 = vector.shape_cast %426 : vector<16xf32> to vector<16x1xf32>
    %cst_97 = arith.constant 3.200000e+01 : f32
    %428 = vector.broadcast %cst_97 : f32 to vector<16x1xf32>
    %429 = arith.divf %427, %428 : vector<16x1xf32>
    %430 = vector.broadcast %422 : vector<16x1xf32> to vector<16x32xf32>
    %431 = arith.subf %414, %430 : vector<16x32xf32>
    %cst_98 = arith.constant 9.99999974E-6 : f32
    %432 = vector.broadcast %cst_98 : f32 to vector<16x1xf32>
    %433 = arith.addf %429, %432 : vector<16x1xf32>
    %434 = math.rsqrt %433 : vector<16x1xf32>
    %435 = vector.broadcast %434 : vector<16x1xf32> to vector<16x32xf32>
    %436 = arith.mulf %431, %435 : vector<16x32xf32>
    %437 = vector.broadcast %417 : vector<1x32xf32> to vector<16x32xf32>
    %438 = arith.mulf %436, %437 : vector<16x32xf32>
    %439 = vector.broadcast %418 : vector<1x32xf32> to vector<16x32xf32>
    %440 = arith.addf %438, %439 : vector<16x32xf32>
    %441 = vector.extract_strided_slice %440 {offsets = [0, 0], sizes = [1, 32], strides = [1, 1]} : vector<16x32xf32> to vector<1x32xf32>
    %442 = vector.extract_strided_slice %440 {offsets = [1, 0], sizes = [1, 32], strides = [1, 1]} : vector<16x32xf32> to vector<1x32xf32>
    %443 = vector.extract_strided_slice %440 {offsets = [2, 0], sizes = [1, 32], strides = [1, 1]} : vector<16x32xf32> to vector<1x32xf32>
    %444 = vector.extract_strided_slice %440 {offsets = [3, 0], sizes = [1, 32], strides = [1, 1]} : vector<16x32xf32> to vector<1x32xf32>
    %445 = tpu.concatenate %441, %442, %443, %444 in 1 : vector<1x32xf32>, vector<1x32xf32>, vector<1x32xf32>, vector<1x32xf32> -> vector<1x128xf32>
    %446 = vector.extract_strided_slice %440 {offsets = [4, 0], sizes = [1, 32], strides = [1, 1]} : vector<16x32xf32> to vector<1x32xf32>
    %447 = vector.extract_strided_slice %440 {offsets = [5, 0], sizes = [1, 32], strides = [1, 1]} : vector<16x32xf32> to vector<1x32xf32>
    %448 = vector.extract_strided_slice %440 {offsets = [6, 0], sizes = [1, 32], strides = [1, 1]} : vector<16x32xf32> to vector<1x32xf32>
    %449 = vector.extract_strided_slice %440 {offsets = [7, 0], sizes = [1, 32], strides = [1, 1]} : vector<16x32xf32> to vector<1x32xf32>
    %450 = tpu.concatenate %446, %447, %448, %449 in 1 : vector<1x32xf32>, vector<1x32xf32>, vector<1x32xf32>, vector<1x32xf32> -> vector<1x128xf32>
    %451 = vector.extract_strided_slice %440 {offsets = [8, 0], sizes = [1, 32], strides = [1, 1]} : vector<16x32xf32> to vector<1x32xf32>
    %452 = vector.extract_strided_slice %440 {offsets = [9, 0], sizes = [1, 32], strides = [1, 1]} : vector<16x32xf32> to vector<1x32xf32>
    %453 = vector.extract_strided_slice %440 {offsets = [10, 0], sizes = [1, 32], strides = [1, 1]} : vector<16x32xf32> to vector<1x32xf32>
    %454 = vector.extract_strided_slice %440 {offsets = [11, 0], sizes = [1, 32], strides = [1, 1]} : vector<16x32xf32> to vector<1x32xf32>
    %455 = tpu.concatenate %451, %452, %453, %454 in 1 : vector<1x32xf32>, vector<1x32xf32>, vector<1x32xf32>, vector<1x32xf32> -> vector<1x128xf32>
    %456 = vector.extract_strided_slice %440 {offsets = [12, 0], sizes = [1, 32], strides = [1, 1]} : vector<16x32xf32> to vector<1x32xf32>
    %457 = vector.extract_strided_slice %440 {offsets = [13, 0], sizes = [1, 32], strides = [1, 1]} : vector<16x32xf32> to vector<1x32xf32>
    %458 = vector.extract_strided_slice %440 {offsets = [14, 0], sizes = [1, 32], strides = [1, 1]} : vector<16x32xf32> to vector<1x32xf32>
    %459 = vector.extract_strided_slice %440 {offsets = [15, 0], sizes = [1, 32], strides = [1, 1]} : vector<16x32xf32> to vector<1x32xf32>
    %460 = tpu.concatenate %456, %457, %458, %459 in 1 : vector<1x32xf32>, vector<1x32xf32>, vector<1x32xf32>, vector<1x32xf32> -> vector<1x128xf32>
    %461 = tpu.concatenate %445, %450, %455, %460 in 0 : vector<1x128xf32>, vector<1x128xf32>, vector<1x128xf32>, vector<1x128xf32> -> vector<4x128xf32>
    %c0_99 = arith.constant 0 : index
    %c0_100 = arith.constant 0 : index
    %462 = vector.load %arg5[%c0_99, %c0_100] : memref<4x128xf32, #tpu.memory_space<vmem>>, vector<4x128xf32>
    tpu.vector_store %arg5[%c0_99, %c0_100], %461 {strides = array<i32>} : memref<4x128xf32, #tpu.memory_space<vmem>>, vector<4x128xf32>,
    %cst_101 = arith.constant 5.000000e-01 : f32
    %463 = vector.broadcast %cst_101 : f32 to vector<2x8x16xf32>
    %464 = arith.mulf %353, %463 : vector<2x8x16xf32>
    %465 = vector.shape_cast %464 : vector<2x8x16xf32> to vector<16x16xf32>
    %466 = vector.extract_strided_slice %465 {offsets = [0, 0], sizes = [1, 16], strides = [1, 1]} : vector<16x16xf32> to vector<1x16xf32>
    %467 = vector.extract_strided_slice %465 {offsets = [1, 0], sizes = [1, 16], strides = [1, 1]} : vector<16x16xf32> to vector<1x16xf32>
    %468 = vector.extract_strided_slice %465 {offsets = [2, 0], sizes = [1, 16], strides = [1, 1]} : vector<16x16xf32> to vector<1x16xf32>
    %469 = vector.extract_strided_slice %465 {offsets = [3, 0], sizes = [1, 16], strides = [1, 1]} : vector<16x16xf32> to vector<1x16xf32>
    %470 = vector.extract_strided_slice %465 {offsets = [4, 0], sizes = [1, 16], strides = [1, 1]} : vector<16x16xf32> to vector<1x16xf32>
    %471 = vector.extract_strided_slice %465 {offsets = [5, 0], sizes = [1, 16], strides = [1, 1]} : vector<16x16xf32> to vector<1x16xf32>
    %472 = vector.extract_strided_slice %465 {offsets = [6, 0], sizes = [1, 16], strides = [1, 1]} : vector<16x16xf32> to vector<1x16xf32>
    %473 = vector.extract_strided_slice %465 {offsets = [7, 0], sizes = [1, 16], strides = [1, 1]} : vector<16x16xf32> to vector<1x16xf32>
    %474 = tpu.concatenate %466, %467, %468, %469, %470, %471, %472, %473 in 1 : vector<1x16xf32>, vector<1x16xf32>, vector<1x16xf32>, vector<1x16xf32>, vector<1x16xf32>, vector<1x16xf32>, vector<1x16xf32>, vector<1x16xf32> -> vector<1x128xf32>
    %475 = vector.extract_strided_slice %465 {offsets = [8, 0], sizes = [1, 16], strides = [1, 1]} : vector<16x16xf32> to vector<1x16xf32>
    %476 = vector.extract_strided_slice %465 {offsets = [9, 0], sizes = [1, 16], strides = [1, 1]} : vector<16x16xf32> to vector<1x16xf32>
    %477 = vector.extract_strided_slice %465 {offsets = [10, 0], sizes = [1, 16], strides = [1, 1]} : vector<16x16xf32> to vector<1x16xf32>
    %478 = vector.extract_strided_slice %465 {offsets = [11, 0], sizes = [1, 16], strides = [1, 1]} : vector<16x16xf32> to vector<1x16xf32>
    %479 = vector.extract_strided_slice %465 {offsets = [12, 0], sizes = [1, 16], strides = [1, 1]} : vector<16x16xf32> to vector<1x16xf32>
    %480 = vector.extract_strided_slice %465 {offsets = [13, 0], sizes = [1, 16], strides = [1, 1]} : vector<16x16xf32> to vector<1x16xf32>
    %481 = vector.extract_strided_slice %465 {offsets = [14, 0], sizes = [1, 16], strides = [1, 1]} : vector<16x16xf32> to vector<1x16xf32>
    %482 = vector.extract_strided_slice %465 {offsets = [15, 0], sizes = [1, 16], strides = [1, 1]} : vector<16x16xf32> to vector<1x16xf32>
    %483 = tpu.concatenate %475, %476, %477, %478, %479, %480, %481, %482 in 1 : vector<1x16xf32>, vector<1x16xf32>, vector<1x16xf32>, vector<1x16xf32>, vector<1x16xf32>, vector<1x16xf32>, vector<1x16xf32>, vector<1x16xf32> -> vector<1x128xf32>
    %484 = tpu.concatenate %474, %483 in 0 : vector<1x128xf32>, vector<1x128xf32> -> vector<2x128xf32>
    %c0_102 = arith.constant 0 : index
    %c0_103 = arith.constant 0 : index
    %485 = vector.load %arg6[%c0_102, %c0_103] : memref<2x128xf32, #tpu.memory_space<vmem>>, vector<2x128xf32>
    tpu.vector_store %arg6[%c0_102, %c0_103], %484 {strides = array<i32>} : memref<2x128xf32, #tpu.memory_space<vmem>>, vector<2x128xf32>,
    return
  }
}

</mosaic_0001>

<llo_original>
// kernel: transformer_decoder_with_attention.1
$region0: #{transformer_decoder_with_attention.1}
  #allocation0 [shape = 'u32[]', space=smem, size = 0x4, offset = 0x4, fixed_abs, tag = 'smem constant byte address 0x4 - core index']
  #allocation1 [shape = 'u32[144,128]{1,0:T(1,128)}', space=vmem, size = 0x12000, scoped, tag = 'internal scratch']
  %s0 = inlined_call_operand.vmem [shape: f32[2,8,32], index: 0, kind: input, shape index: {}]
  %s1 = inlined_call_operand.hbm [shape: f32[2,16,32], index: 1, kind: input, shape index: {}]
  %s2 = inlined_call_operand.hbm [shape: f32[2,32,768], index: 2, kind: input, shape index: {}]
  %s3 = inlined_call_operand.vmem [shape: f32[2,64,32], index: 3, kind: input, shape index: {}]
  %s4 = inlined_call_operand.vmem [shape: f32[3,8,896], index: 4, kind: input, shape index: {}]
  %s5 = inlined_call_operand.vmem [shape: f32[4,128], index: 5, kind: output, shape index: {0}]
  %s6 = inlined_call_operand.vmem [shape: f32[2,128], index: 6, kind: output, shape index: {1}]
  %7 = xla_tuple %s5, %s6
  %s8 = sld [smem:[#allocation0]]
  $region46: #{transformer_decoder_with_attention.1} parent=0
    _
  %s10 = ssub.s32 1, %s8
  %s11 = scalar_select 0, %s10, %s8
  $region1: #{transformer_decoder_with_attention.1} parent=0
    #allocation2 [shape = 'u8[16384]{0}', space=vmem, size = 0x4000, scoped, tag = 'input window, operand 1, single buffered']
    #allocation3 [shape = 's32[1]{0}', space=sflag, size = 0x4, scoped, tag = 'scoped memory for transformer_decoder_with_attention.1']
    #allocation4 [shape = 'u8[196608]{0}', space=vmem, size = 0x30000, scoped, tag = 'input window, operand 2, single buffered']
    #allocation5 [shape = 's32[1]{0}', space=sflag, size = 0x4, scoped, tag = 'scoped memory for transformer_decoder_with_attention.1']
    %12 = vsyncpa [#allocation3], 0
    %13 = vsyncpa [#allocation5], 0
    // Predicated region
    $region2: #{transformer_decoder_with_attention.1} parent=1 // pred_check
      _
    $region3: #{transformer_decoder_with_attention.1} parent=1 // pred_check_branch
      %15 = sbr.rel (0) target = $region5
    $region4: #{transformer_decoder_with_attention.1} parent=1 // pred_region
      _
    $region5: #{transformer_decoder_with_attention.1} parent=1 // pred_fallthru
      _
    // Predicated region
    $region6: #{transformer_decoder_with_attention.1} parent=1 // pred_check
      _
    $region7: #{transformer_decoder_with_attention.1} parent=1 // pred_check_branch
      %17 = sbr.rel (0) target = $region9
    $region8: #{transformer_decoder_with_attention.1} parent=1 // pred_region
      %s19 = ssub.s32 512, 512
      %20 = vsyncadd [#allocation3], %s19
      %s21 = sshll.u32 [#allocation2], 4
      %s22 = int_to_ptr.vmem [resolvable:$true] %s21
      %27 = dma.hbm_to_vmem [thread:$0]  %s1, 512, %s22, [#allocation3], 128, 128, 8
    $region9: #{transformer_decoder_with_attention.1} parent=1 // pred_fallthru
      _
    // Predicated region
    $region10: #{transformer_decoder_with_attention.1} parent=1 // pred_check
      _
    $region11: #{transformer_decoder_with_attention.1} parent=1 // pred_check_branch
      %29 = sbr.rel (0) target = $region13
    $region12: #{transformer_decoder_with_attention.1} parent=1 // pred_region
      %s31 = ssub.s32 6144, 6144
      %32 = vsyncadd [#allocation5], %s31
      %s33 = sshll.u32 [#allocation4], 4
      %s34 = int_to_ptr.vmem [resolvable:$true] %s33
      %39 = dma.hbm_to_vmem [thread:$0]  %s2, 6144, %s34, [#allocation5], 768, 768, 48
    $region13: #{transformer_decoder_with_attention.1} parent=1 // pred_fallthru
      _
    // Predicated region
    $region14: #{transformer_decoder_with_attention.1} parent=1 // pred_check
      _
    $region15: #{transformer_decoder_with_attention.1} parent=1 // pred_check_branch
      %41 = sbr.rel (0) target = $region17
    $region16: #{transformer_decoder_with_attention.1} parent=1 // pred_region
      _
    $region17: #{transformer_decoder_with_attention.1} parent=1 // pred_fallthru
      _
    // Predicated region
    $region18: #{transformer_decoder_with_attention.1} parent=1 // pred_check
      _
    $region19: #{transformer_decoder_with_attention.1} parent=1 // pred_check_branch
      %43 = sbr.rel (0) target = $region21
    $region20: #{transformer_decoder_with_attention.1} parent=1 // pred_region
      _
    $region21: #{transformer_decoder_with_attention.1} parent=1 // pred_fallthru
      _
    // Predicated region
    $region22: #{transformer_decoder_with_attention.1} parent=1 // pred_check
      _
    $region23: #{transformer_decoder_with_attention.1} parent=1 // pred_check_branch
      %45 = sbr.rel (0) target = $region25
    $region24: #{transformer_decoder_with_attention.1} parent=1 // pred_region
      %46 = dma.done [#allocation3], 512
    $region25: #{transformer_decoder_with_attention.1} parent=1 // pred_fallthru
      _
    // Predicated region
    $region26: #{transformer_decoder_with_attention.1} parent=1 // pred_check
      _
    $region27: #{transformer_decoder_with_attention.1} parent=1 // pred_check_branch
      %48 = sbr.rel (0) target = $region29
    $region28: #{transformer_decoder_with_attention.1} parent=1 // pred_region
      %49 = dma.done [#allocation5], 6144
    $region29: #{transformer_decoder_with_attention.1} parent=1 // pred_fallthru
      _
    %v50 = vld [vmem:[%s0] sm:$0xff]
    %v51 = vld [vmem:[%s0 + $0x8] sm:$0xff]
    %v52 = vld [vmem:[#allocation2] sm:$0xff]
    %v53 = vld [vmem:[#allocation2 + $0x8] sm:$0xff]
    %v54 = vld [vmem:[#allocation2 + $0x10] sm:$0xff]
    %v55 = vld [vmem:[#allocation2 + $0x18] sm:$0xff]
    %v56 = vld [vmem:[#allocation4] sm:$0xff]
    %v57 = vld [vmem:[#allocation4 + $0x8] sm:$0xff]
    %v58 = vld [vmem:[#allocation4 + $0x10] sm:$0xff]
    %v59 = vld [vmem:[#allocation4 + $0x18] sm:$0xff]
    %v60 = vld [vmem:[#allocation4 + $0x20] sm:$0xff]
    %v61 = vld [vmem:[#allocation4 + $0x28] sm:$0xff]
    %v62 = vld [vmem:[#allocation4 + $0x30] sm:$0xff]
    %v63 = vld [vmem:[#allocation4 + $0x38] sm:$0xff]
    %v64 = vld [vmem:[#allocation4 + $0x40] sm:$0xff]
    %v65 = vld [vmem:[#allocation4 + $0x48] sm:$0xff]
    %v66 = vld [vmem:[#allocation4 + $0x50] sm:$0xff]
    %v67 = vld [vmem:[#allocation4 + $0x58] sm:$0xff]
    %v68 = vld [vmem:[#allocation4 + $0x60] sm:$0xff]
    %v69 = vld [vmem:[#allocation4 + $0x68] sm:$0xff]
    %v70 = vld [vmem:[#allocation4 + $0x70] sm:$0xff]
    %v71 = vld [vmem:[#allocation4 + $0x78] sm:$0xff]
    %v72 = vld [vmem:[#allocation4 + $0x80] sm:$0xff]
    %v73 = vld [vmem:[#allocation4 + $0x88] sm:$0xff]
    %v74 = vld [vmem:[#allocation4 + $0x90] sm:$0xff]
    %v75 = vld [vmem:[#allocation4 + $0x98] sm:$0xff]
    %v76 = vld [vmem:[#allocation4 + $0xa0] sm:$0xff]
    %v77 = vld [vmem:[#allocation4 + $0xa8] sm:$0xff]
    %v78 = vld [vmem:[#allocation4 + $0xb0] sm:$0xff]
    %v79 = vld [vmem:[#allocation4 + $0xb8] sm:$0xff]
    %v80 = vld [vmem:[%s3] sm:$0xff]
    %v81 = vld [vmem:[%s3 + $0x8] sm:$0xff]
    %v82 = vld [vmem:[%s3 + $0x10] sm:$0xff]
    %v83 = vld [vmem:[%s3 + $0x18] sm:$0xff]
    %v84 = vld [vmem:[%s3 + $0x20] sm:$0xff]
    %v85 = vld [vmem:[%s3 + $0x28] sm:$0xff]
    %v86 = vld [vmem:[%s3 + $0x30] sm:$0xff]
    %v87 = vld [vmem:[%s3 + $0x38] sm:$0xff]
    %v88 = vld [vmem:[%s4] sm:$0xff]
    %v89 = vld [vmem:[%s4 + $0x8] sm:$0xff]
    %v90 = vld [vmem:[%s4 + $0x10] sm:$0xff]
    %v91 = vld [vmem:[%s4 + $0x18] sm:$0xff]
    %v92 = vld [vmem:[%s4 + $0x20] sm:$0xff]
    %v93 = vld [vmem:[%s4 + $0x28] sm:$0xff]
    %v94 = vld [vmem:[%s4 + $0x30] sm:$0xff]
    %v95 = vlaneseq
    %v96 = vshrl.u32 %v95, 7
    %v97 = vsub.s32 0, %v96
    %v98 = vrot.slane %v88, %v97
    %vm99 = vcmask 261120
    %v101 = vsel %vm99, %v50, 0
    %v104 = vsel %vm99, %v51, 0
    %106 = vmatprep.subr.mxu0 0.0
    %107 = vmatpush1.msra.mxu0 0.0
    %108 = vmatprep.subr.mxu0 0.0
    %109 = vmatpush1.msra.mxu0 0.0
    %110 = vmatprep.subr.mxu0 0.0
    %111 = vmatpush1.msra.mxu0 0.0
    %112 = vmatprep.subr.mxu0 0.0
    %113 = vmatpush1.msra.mxu0 0.0
    %114 = vmatprep.subr.mxu0 0.0
    %115 = vmatpush1.msra.mxu0 0.0
    %116 = vmatprep.subr.mxu0 0.0
    %117 = vmatpush1.msra.mxu0 0.0
    %118 = vmatprep.subr.mxu0 0.0
    %119 = vmatpush1.msra.mxu0 0.0
    %120 = vmatprep.subr.mxu0 0.0
    %121 = vmatpush1.msra.mxu0 0.0
    %122 = vmatprep.subr.mxu0 0.0
    %123 = vmatpush1.msra.mxu0 0.0
    %124 = vmatprep.subr.mxu0 0.0
    %125 = vmatpush1.msra.mxu0 0.0
    %126 = vmatprep.subr.mxu0 0.0
    %127 = vmatpush1.msra.mxu0 0.0
    %128 = vmatprep.subr.mxu0 0.0
    %129 = vmatpush1.msra.mxu0 0.0
    %130 = vmatprep.subr.mxu0 0.0
    %131 = vmatpush1.msra.mxu0 %v74
    %132 = vmatprep.subr.mxu0 0.0
    %133 = vmatpush1.msra.mxu0 %v68
    %134 = vmatprep.subr.mxu0 0.0
    %135 = vmatpush1.msra.mxu0 %v62
    %136 = vmatprep.subr.mxu0 0.0
    %137 = vmatpush1.msra.mxu0 %v56
    %138 = vmatprep.subr.mxu0 0.0
    %139 = vmatpush2.msra.mxu0 0.0
    %140 = vmatprep.subr.mxu0 0.0
    %141 = vmatpush2.msra.mxu0 0.0
    %142 = vmatprep.subr.mxu0 0.0
    %143 = vmatpush2.msra.mxu0 0.0
    %144 = vmatprep.subr.mxu0 0.0
    %145 = vmatpush2.msra.mxu0 0.0
    %146 = vmatprep.subr.mxu0 0.0
    %147 = vmatpush2.msra.mxu0 0.0
    %148 = vmatprep.subr.mxu0 0.0
    %149 = vmatpush2.msra.mxu0 0.0
    %150 = vmatprep.subr.mxu0 0.0
    %151 = vmatpush2.msra.mxu0 0.0
    %152 = vmatprep.subr.mxu0 0.0
    %153 = vmatpush2.msra.mxu0 0.0
    %154 = vmatprep.subr.mxu0 0.0
    %155 = vmatpush2.msra.mxu0 0.0
    %156 = vmatprep.subr.mxu0 0.0
    %157 = vmatpush2.msra.mxu0 0.0
    %158 = vmatprep.subr.mxu0 0.0
    %159 = vmatpush2.msra.mxu0 0.0
    %160 = vmatprep.subr.mxu0 0.0
    %161 = vmatpush2.msra.mxu0 0.0
    %162 = vmatprep.subr.mxu0 0.0
    %163 = vmatpush2.msra.mxu0 0.0
    %164 = vmatprep.subr.mxu0 0.0
    %165 = vmatpush2.msra.mxu0 0.0
    %166 = vmatprep.subr.mxu0 0.0
    %167 = vmatpush2.msra.mxu0 0.0
    %168 = vmatprep.subr.mxu0 0.0
    %169 = vmatpush2.msra.mxu0 0.0
    %170 = vmatprep.mubr.f32.mxu0 0.0
    %171 = vmatmul.mubr.f32.gmra.mxu0 %v101
    %v172 = vpop.f32.mrf.mxu0
    %v173 = vadd.f32 %v98, %v172
    %v174 = vpop.f32.mrf.mxu0
    %175 = vmatprep.mubr.f32.mxu0 0.0
    %176 = vmatmul.mubr.f32.gmra.mxu0 %v104
    %v177 = vpop.f32.mrf.mxu0
    %v178 = vadd.f32 %v98, %v177
    %v179 = vpop.f32.mrf.mxu0
    %180 = vdwg.mxu0
    %183 = vrot.lane.b32.xlu0 %v173, 120
    %v184 = vpop.permute.xlu0 %183
    %185 = vrot.lane.b32.xlu0 %v178, 120
    %v186 = vpop.permute.xlu0 %185
    %187 = vrot.lane.b32.xlu0 %v173, 112
    %v188 = vpop.permute.xlu0 %187
    %189 = vrot.lane.b32.xlu0 %v178, 112
    %v190 = vpop.permute.xlu0 %189
    %191 = vrot.lane.b32.xlu0 %v173, 104
    %v192 = vpop.permute.xlu0 %191
    %193 = vrot.lane.b32.xlu0 %v178, 104
    %v194 = vpop.permute.xlu0 %193
    %195 = vrot.lane.b32.xlu0 %v173, 96
    %v196 = vpop.permute.xlu0 %195
    %vm197 = vcmask 64512
    %v198 = vsel %vm197, %v173, 0
    %v200 = vsel %vm197, %v196, 0
    %202 = vmatprep.subr.mxu0 0.0
    %203 = vmatpush1.xpose.msra.mxu0 0.0
    %204 = vmatprep.subr.mxu0 0.0
    %205 = vmatpush1.xpose.msra.mxu0 0.0
    %206 = vmatprep.subr.mxu0 0.0
    %207 = vmatpush1.xpose.msra.mxu0 0.0
    %208 = vmatprep.subr.mxu0 0.0
    %209 = vmatpush1.xpose.msra.mxu0 0.0
    %210 = vmatprep.subr.mxu0 0.0
    %211 = vmatpush1.xpose.msra.mxu0 0.0
    %212 = vmatprep.subr.mxu0 0.0
    %213 = vmatpush1.xpose.msra.mxu0 0.0
    %214 = vmatprep.subr.mxu0 0.0
    %215 = vmatpush1.xpose.msra.mxu0 0.0
    %216 = vmatprep.subr.mxu0 0.0
    %217 = vmatpush1.xpose.msra.mxu0 0.0
    %218 = vmatprep.subr.mxu0 0.0
    %219 = vmatpush1.xpose.msra.mxu0 0.0
    %220 = vmatprep.subr.mxu0 0.0
    %221 = vmatpush1.xpose.msra.mxu0 0.0
    %222 = vmatprep.subr.mxu0 0.0
    %223 = vmatpush1.xpose.msra.mxu0 0.0
    %224 = vmatprep.subr.mxu0 0.0
    %225 = vmatpush1.xpose.msra.mxu0 0.0
    %226 = vmatprep.subr.mxu0 0.0
    %227 = vmatpush1.xpose.msra.mxu0 0.0
    %228 = vmatprep.subr.mxu0 0.0
    %229 = vmatpush1.xpose.msra.mxu0 0.0
    %230 = vmatprep.subr.mxu0 0.0
    %231 = vmatpush1.xpose.msra.mxu0 0.0
    %232 = vmatprep.subr.mxu0 0.0
    %233 = vmatpush1.xpose.msra.mxu0 %v200
    %234 = vmatprep.subr.mxu0 0.0
    %235 = vmatpush2.xpose.msra.mxu0 0.0
    %236 = vmatprep.subr.mxu0 0.0
    %237 = vmatpush2.xpose.msra.mxu0 0.0
    %238 = vmatprep.subr.mxu0 0.0
    %239 = vmatpush2.xpose.msra.mxu0 0.0
    %240 = vmatprep.subr.mxu0 0.0
    %241 = vmatpush2.xpose.msra.mxu0 0.0
    %242 = vmatprep.subr.mxu0 0.0
    %243 = vmatpush2.xpose.msra.mxu0 0.0
    %244 = vmatprep.subr.mxu0 0.0
    %245 = vmatpush2.xpose.msra.mxu0 0.0
    %246 = vmatprep.subr.mxu0 0.0
    %247 = vmatpush2.xpose.msra.mxu0 0.0
    %248 = vmatprep.subr.mxu0 0.0
    %249 = vmatpush2.xpose.msra.mxu0 0.0
    %250 = vmatprep.subr.mxu0 0.0
    %251 = vmatpush2.xpose.msra.mxu0 0.0
    %252 = vmatprep.subr.mxu0 0.0
    %253 = vmatpush2.xpose.msra.mxu0 0.0
    %254 = vmatprep.subr.mxu0 0.0
    %255 = vmatpush2.xpose.msra.mxu0 0.0
    %256 = vmatprep.subr.mxu0 0.0
    %257 = vmatpush2.xpose.msra.mxu0 0.0
    %258 = vmatprep.subr.mxu0 0.0
    %259 = vmatpush2.xpose.msra.mxu0 0.0
    %260 = vmatprep.subr.mxu0 0.0
    %261 = vmatpush2.xpose.msra.mxu0 0.0
    %262 = vmatprep.subr.mxu0 0.0
    %263 = vmatpush2.xpose.msra.mxu0 0.0
    %264 = vmatprep.subr.mxu0 0.0
    %265 = vmatpush2.xpose.msra.mxu0 0.0
    %266 = vmatprep.mubr.f32.mxu0 0.0
    %267 = vmatmul.mubr.f32.gmra.mxu0 %v198
    %v268 = vpop.f32.mrf.mxu0
    %v269 = vadd.f32 0.0, %v268
    %v270 = vpop.f32.mrf.mxu0
    %271 = vdwg.mxu0
    %272 = vrot.lane.b32.xlu0 %v178, 96
    %v273 = vpop.permute.xlu0 %272
    %v274 = vsel %vm197, %v178, 0
    %v276 = vsel %vm197, %v273, 0
    %278 = vmatprep.subr.mxu0 0.0
    %279 = vmatpush1.xpose.msra.mxu0 0.0
    %280 = vmatprep.subr.mxu0 0.0
    %281 = vmatpush1.xpose.msra.mxu0 0.0
    %282 = vmatprep.subr.mxu0 0.0
    %283 = vmatpush1.xpose.msra.mxu0 0.0
    %284 = vmatprep.subr.mxu0 0.0
    %285 = vmatpush1.xpose.msra.mxu0 0.0
    %286 = vmatprep.subr.mxu0 0.0
    %287 = vmatpush1.xpose.msra.mxu0 0.0
    %288 = vmatprep.subr.mxu0 0.0
    %289 = vmatpush1.xpose.msra.mxu0 0.0
    %290 = vmatprep.subr.mxu0 0.0
    %291 = vmatpush1.xpose.msra.mxu0 0.0
    %292 = vmatprep.subr.mxu0 0.0
    %293 = vmatpush1.xpose.msra.mxu0 0.0
    %294 = vmatprep.subr.mxu0 0.0
    %295 = vmatpush1.xpose.msra.mxu0 0.0
    %296 = vmatprep.subr.mxu0 0.0
    %297 = vmatpush1.xpose.msra.mxu0 0.0
    %298 = vmatprep.subr.mxu0 0.0
    %299 = vmatpush1.xpose.msra.mxu0 0.0
    %300 = vmatprep.subr.mxu0 0.0
    %301 = vmatpush1.xpose.msra.mxu0 0.0
    %302 = vmatprep.subr.mxu0 0.0
    %303 = vmatpush1.xpose.msra.mxu0 0.0
    %304 = vmatprep.subr.mxu0 0.0
    %305 = vmatpush1.xpose.msra.mxu0 0.0
    %306 = vmatprep.subr.mxu0 0.0
    %307 = vmatpush1.xpose.msra.mxu0 0.0
    %308 = vmatprep.subr.mxu0 0.0
    %309 = vmatpush1.xpose.msra.mxu0 %v276
    %310 = vmatprep.subr.mxu0 0.0
    %311 = vmatpush2.xpose.msra.mxu0 0.0
    %312 = vmatprep.subr.mxu0 0.0
    %313 = vmatpush2.xpose.msra.mxu0 0.0
    %314 = vmatprep.subr.mxu0 0.0
    %315 = vmatpush2.xpose.msra.mxu0 0.0
    %316 = vmatprep.subr.mxu0 0.0
    %317 = vmatpush2.xpose.msra.mxu0 0.0
    %318 = vmatprep.subr.mxu0 0.0
    %319 = vmatpush2.xpose.msra.mxu0 0.0
    %320 = vmatprep.subr.mxu0 0.0
    %321 = vmatpush2.xpose.msra.mxu0 0.0
    %322 = vmatprep.subr.mxu0 0.0
    %323 = vmatpush2.xpose.msra.mxu0 0.0
    %324 = vmatprep.subr.mxu0 0.0
    %325 = vmatpush2.xpose.msra.mxu0 0.0
    %326 = vmatprep.subr.mxu0 0.0
    %327 = vmatpush2.xpose.msra.mxu0 0.0
    %328 = vmatprep.subr.mxu0 0.0
    %329 = vmatpush2.xpose.msra.mxu0 0.0
    %330 = vmatprep.subr.mxu0 0.0
    %331 = vmatpush2.xpose.msra.mxu0 0.0
    %332 = vmatprep.subr.mxu0 0.0
    %333 = vmatpush2.xpose.msra.mxu0 0.0
    %334 = vmatprep.subr.mxu0 0.0
    %335 = vmatpush2.xpose.msra.mxu0 0.0
    %336 = vmatprep.subr.mxu0 0.0
    %337 = vmatpush2.xpose.msra.mxu0 0.0
    %338 = vmatprep.subr.mxu0 0.0
    %339 = vmatpush2.xpose.msra.mxu0 0.0
    %340 = vmatprep.subr.mxu0 0.0
    %341 = vmatpush2.xpose.msra.mxu0 0.0
    %342 = vmatprep.mubr.f32.mxu0 0.0
    %343 = vmatmul.mubr.f32.gmra.mxu0 %v274
    %v344 = vpop.f32.mrf.mxu0
    %v345 = vadd.f32 0.0, %v344
    %v346 = vpop.f32.mrf.mxu0
    %347 = vdwg.mxu0
    %348 = vrot.lane.b32.xlu0 %v184, 96
    %v349 = vpop.permute.xlu0 %348
    %v350 = vsel %vm197, %v184, 0
    %v352 = vsel %vm197, %v349, 0
    %354 = vmatprep.subr.mxu0 0.0
    %355 = vmatpush1.xpose.msra.mxu0 0.0
    %356 = vmatprep.subr.mxu0 0.0
    %357 = vmatpush1.xpose.msra.mxu0 0.0
    %358 = vmatprep.subr.mxu0 0.0
    %359 = vmatpush1.xpose.msra.mxu0 0.0
    %360 = vmatprep.subr.mxu0 0.0
    %361 = vmatpush1.xpose.msra.mxu0 0.0
    %362 = vmatprep.subr.mxu0 0.0
    %363 = vmatpush1.xpose.msra.mxu0 0.0
    %364 = vmatprep.subr.mxu0 0.0
    %365 = vmatpush1.xpose.msra.mxu0 0.0
    %366 = vmatprep.subr.mxu0 0.0
    %367 = vmatpush1.xpose.msra.mxu0 0.0
    %368 = vmatprep.subr.mxu0 0.0
    %369 = vmatpush1.xpose.msra.mxu0 0.0
    %370 = vmatprep.subr.mxu0 0.0
    %371 = vmatpush1.xpose.msra.mxu0 0.0
    %372 = vmatprep.subr.mxu0 0.0
    %373 = vmatpush1.xpose.msra.mxu0 0.0
    %374 = vmatprep.subr.mxu0 0.0
    %375 = vmatpush1.xpose.msra.mxu0 0.0
    %376 = vmatprep.subr.mxu0 0.0
    %377 = vmatpush1.xpose.msra.mxu0 0.0
    %378 = vmatprep.subr.mxu0 0.0
    %379 = vmatpush1.xpose.msra.mxu0 0.0
    %380 = vmatprep.subr.mxu0 0.0
    %381 = vmatpush1.xpose.msra.mxu0 0.0
    %382 = vmatprep.subr.mxu0 0.0
    %383 = vmatpush1.xpose.msra.mxu0 0.0
    %384 = vmatprep.subr.mxu0 0.0
    %385 = vmatpush1.xpose.msra.mxu0 %v352
    %386 = vmatprep.subr.mxu0 0.0
    %387 = vmatpush2.xpose.msra.mxu0 0.0
    %388 = vmatprep.subr.mxu0 0.0
    %389 = vmatpush2.xpose.msra.mxu0 0.0
    %390 = vmatprep.subr.mxu0 0.0
    %391 = vmatpush2.xpose.msra.mxu0 0.0
    %392 = vmatprep.subr.mxu0 0.0
    %393 = vmatpush2.xpose.msra.mxu0 0.0
    %394 = vmatprep.subr.mxu0 0.0
    %395 = vmatpush2.xpose.msra.mxu0 0.0
    %396 = vmatprep.subr.mxu0 0.0
    %397 = vmatpush2.xpose.msra.mxu0 0.0
    %398 = vmatprep.subr.mxu0 0.0
    %399 = vmatpush2.xpose.msra.mxu0 0.0
    %400 = vmatprep.subr.mxu0 0.0
    %401 = vmatpush2.xpose.msra.mxu0 0.0
    %402 = vmatprep.subr.mxu0 0.0
    %403 = vmatpush2.xpose.msra.mxu0 0.0
    %404 = vmatprep.subr.mxu0 0.0
    %405 = vmatpush2.xpose.msra.mxu0 0.0
    %406 = vmatprep.subr.mxu0 0.0
    %407 = vmatpush2.xpose.msra.mxu0 0.0
    %408 = vmatprep.subr.mxu0 0.0
    %409 = vmatpush2.xpose.msra.mxu0 0.0
    %410 = vmatprep.subr.mxu0 0.0
    %411 = vmatpush2.xpose.msra.mxu0 0.0
    %412 = vmatprep.subr.mxu0 0.0
    %413 = vmatpush2.xpose.msra.mxu0 0.0
    %414 = vmatprep.subr.mxu0 0.0
    %415 = vmatpush2.xpose.msra.mxu0 0.0
    %416 = vmatprep.subr.mxu0 0.0
    %417 = vmatpush2.xpose.msra.mxu0 0.0
    %418 = vmatprep.mubr.f32.mxu0 0.0
    %419 = vmatmul.mubr.f32.gmra.mxu0 %v350
    %v420 = vpop.f32.mrf.mxu0
    %v421 = vadd.f32 0.0, %v420
    %v422 = vpop.f32.mrf.mxu0
    %423 = vdwg.mxu0
    %424 = vrot.lane.b32.xlu0 %v186, 96
    %v425 = vpop.permute.xlu0 %424
    %v426 = vsel %vm197, %v186, 0
    %v428 = vsel %vm197, %v425, 0
    %430 = vmatprep.subr.mxu0 0.0
    %431 = vmatpush1.xpose.msra.mxu0 0.0
    %432 = vmatprep.subr.mxu0 0.0
    %433 = vmatpush1.xpose.msra.mxu0 0.0
    %434 = vmatprep.subr.mxu0 0.0
    %435 = vmatpush1.xpose.msra.mxu0 0.0
    %436 = vmatprep.subr.mxu0 0.0
    %437 = vmatpush1.xpose.msra.mxu0 0.0
    %438 = vmatprep.subr.mxu0 0.0
    %439 = vmatpush1.xpose.msra.mxu0 0.0
    %440 = vmatprep.subr.mxu0 0.0
    %441 = vmatpush1.xpose.msra.mxu0 0.0
    %442 = vmatprep.subr.mxu0 0.0
    %443 = vmatpush1.xpose.msra.mxu0 0.0
    %444 = vmatprep.subr.mxu0 0.0
    %445 = vmatpush1.xpose.msra.mxu0 0.0
    %446 = vmatprep.subr.mxu0 0.0
    %447 = vmatpush1.xpose.msra.mxu0 0.0
    %448 = vmatprep.subr.mxu0 0.0
    %449 = vmatpush1.xpose.msra.mxu0 0.0
    %450 = vmatprep.subr.mxu0 0.0
    %451 = vmatpush1.xpose.msra.mxu0 0.0
    %452 = vmatprep.subr.mxu0 0.0
    %453 = vmatpush1.xpose.msra.mxu0 0.0
    %454 = vmatprep.subr.mxu0 0.0
    %455 = vmatpush1.xpose.msra.mxu0 0.0
    %456 = vmatprep.subr.mxu0 0.0
    %457 = vmatpush1.xpose.msra.mxu0 0.0
    %458 = vmatprep.subr.mxu0 0.0
    %459 = vmatpush1.xpose.msra.mxu0 0.0
    %460 = vmatprep.subr.mxu0 0.0
    %461 = vmatpush1.xpose.msra.mxu0 %v428
    %462 = vmatprep.subr.mxu0 0.0
    %463 = vmatpush2.xpose.msra.mxu0 0.0
    %464 = vmatprep.subr.mxu0 0.0
    %465 = vmatpush2.xpose.msra.mxu0 0.0
    %466 = vmatprep.subr.mxu0 0.0
    %467 = vmatpush2.xpose.msra.mxu0 0.0
    %468 = vmatprep.subr.mxu0 0.0
    %469 = vmatpush2.xpose.msra.mxu0 0.0
    %470 = vmatprep.subr.mxu0 0.0
    %471 = vmatpush2.xpose.msra.mxu0 0.0
    %472 = vmatprep.subr.mxu0 0.0
    %473 = vmatpush2.xpose.msra.mxu0 0.0
    %474 = vmatprep.subr.mxu0 0.0
    %475 = vmatpush2.xpose.msra.mxu0 0.0
    %476 = vmatprep.subr.mxu0 0.0
    %477 = vmatpush2.xpose.msra.mxu0 0.0
    %478 = vmatprep.subr.mxu0 0.0
    %479 = vmatpush2.xpose.msra.mxu0 0.0
    %480 = vmatprep.subr.mxu0 0.0
    %481 = vmatpush2.xpose.msra.mxu0 0.0
    %482 = vmatprep.subr.mxu0 0.0
    %483 = vmatpush2.xpose.msra.mxu0 0.0
    %484 = vmatprep.subr.mxu0 0.0
    %485 = vmatpush2.xpose.msra.mxu0 0.0
    %486 = vmatprep.subr.mxu0 0.0
    %487 = vmatpush2.xpose.msra.mxu0 0.0
    %488 = vmatprep.subr.mxu0 0.0
    %489 = vmatpush2.xpose.msra.mxu0 0.0
    %490 = vmatprep.subr.mxu0 0.0
    %491 = vmatpush2.xpose.msra.mxu0 0.0
    %492 = vmatprep.subr.mxu0 0.0
    %493 = vmatpush2.xpose.msra.mxu0 0.0
    %494 = vmatprep.mubr.f32.mxu0 0.0
    %495 = vmatmul.mubr.f32.gmra.mxu0 %v426
    %v496 = vpop.f32.mrf.mxu0
    %v497 = vadd.f32 0.0, %v496
    %v498 = vpop.f32.mrf.mxu0
    %499 = vdwg.mxu0
    %500 = vrot.lane.b32.xlu0 %v188, 96
    %v501 = vpop.permute.xlu0 %500
    %v502 = vsel %vm197, %v188, 0
    %v504 = vsel %vm197, %v501, 0
    %506 = vmatprep.subr.mxu0 0.0
    %507 = vmatpush1.xpose.msra.mxu0 0.0
    %508 = vmatprep.subr.mxu0 0.0
    %509 = vmatpush1.xpose.msra.mxu0 0.0
    %510 = vmatprep.subr.mxu0 0.0
    %511 = vmatpush1.xpose.msra.mxu0 0.0
    %512 = vmatprep.subr.mxu0 0.0
    %513 = vmatpush1.xpose.msra.mxu0 0.0
    %514 = vmatprep.subr.mxu0 0.0
    %515 = vmatpush1.xpose.msra.mxu0 0.0
    %516 = vmatprep.subr.mxu0 0.0
    %517 = vmatpush1.xpose.msra.mxu0 0.0
    %518 = vmatprep.subr.mxu0 0.0
    %519 = vmatpush1.xpose.msra.mxu0 0.0
    %520 = vmatprep.subr.mxu0 0.0
    %521 = vmatpush1.xpose.msra.mxu0 0.0
    %522 = vmatprep.subr.mxu0 0.0
    %523 = vmatpush1.xpose.msra.mxu0 0.0
    %524 = vmatprep.subr.mxu0 0.0
    %525 = vmatpush1.xpose.msra.mxu0 0.0
    %526 = vmatprep.subr.mxu0 0.0
    %527 = vmatpush1.xpose.msra.mxu0 0.0
    %528 = vmatprep.subr.mxu0 0.0
    %529 = vmatpush1.xpose.msra.mxu0 0.0
    %530 = vmatprep.subr.mxu0 0.0
    %531 = vmatpush1.xpose.msra.mxu0 0.0
    %532 = vmatprep.subr.mxu0 0.0
    %533 = vmatpush1.xpose.msra.mxu0 0.0
    %534 = vmatprep.subr.mxu0 0.0
    %535 = vmatpush1.xpose.msra.mxu0 0.0
    %536 = vmatprep.subr.mxu0 0.0
    %537 = vmatpush1.xpose.msra.mxu0 %v504
    %538 = vmatprep.subr.mxu0 0.0
    %539 = vmatpush2.xpose.msra.mxu0 0.0
    %540 = vmatprep.subr.mxu0 0.0
    %541 = vmatpush2.xpose.msra.mxu0 0.0
    %542 = vmatprep.subr.mxu0 0.0
    %543 = vmatpush2.xpose.msra.mxu0 0.0
    %544 = vmatprep.subr.mxu0 0.0
    %545 = vmatpush2.xpose.msra.mxu0 0.0
    %546 = vmatprep.subr.mxu0 0.0
    %547 = vmatpush2.xpose.msra.mxu0 0.0
    %548 = vmatprep.subr.mxu0 0.0
    %549 = vmatpush2.xpose.msra.mxu0 0.0
    %550 = vmatprep.subr.mxu0 0.0
    %551 = vmatpush2.xpose.msra.mxu0 0.0
    %552 = vmatprep.subr.mxu0 0.0
    %553 = vmatpush2.xpose.msra.mxu0 0.0
    %554 = vmatprep.subr.mxu0 0.0
    %555 = vmatpush2.xpose.msra.mxu0 0.0
    %556 = vmatprep.subr.mxu0 0.0
    %557 = vmatpush2.xpose.msra.mxu0 0.0
    %558 = vmatprep.subr.mxu0 0.0
    %559 = vmatpush2.xpose.msra.mxu0 0.0
    %560 = vmatprep.subr.mxu0 0.0
    %561 = vmatpush2.xpose.msra.mxu0 0.0
    %562 = vmatprep.subr.mxu0 0.0
    %563 = vmatpush2.xpose.msra.mxu0 0.0
    %564 = vmatprep.subr.mxu0 0.0
    %565 = vmatpush2.xpose.msra.mxu0 0.0
    %566 = vmatprep.subr.mxu0 0.0
    %567 = vmatpush2.xpose.msra.mxu0 0.0
    %568 = vmatprep.subr.mxu0 0.0
    %569 = vmatpush2.xpose.msra.mxu0 0.0
    %570 = vmatprep.mubr.f32.mxu0 0.0
    %571 = vmatmul.mubr.f32.gmra.mxu0 %v502
    %v572 = vpop.f32.mrf.mxu0
    %v573 = vadd.f32 0.0, %v572
    %v574 = vpop.f32.mrf.mxu0
    %575 = vdwg.mxu0
    %576 = vrot.lane.b32.xlu0 %v190, 96
    %v577 = vpop.permute.xlu0 %576
    %v578 = vsel %vm197, %v190, 0
    %v580 = vsel %vm197, %v577, 0
    %582 = vmatprep.subr.mxu0 0.0
    %583 = vmatpush1.xpose.msra.mxu0 0.0
    %584 = vmatprep.subr.mxu0 0.0
    %585 = vmatpush1.xpose.msra.mxu0 0.0
    %586 = vmatprep.subr.mxu0 0.0
    %587 = vmatpush1.xpose.msra.mxu0 0.0
    %588 = vmatprep.subr.mxu0 0.0
    %589 = vmatpush1.xpose.msra.mxu0 0.0
    %590 = vmatprep.subr.mxu0 0.0
    %591 = vmatpush1.xpose.msra.mxu0 0.0
    %592 = vmatprep.subr.mxu0 0.0
    %593 = vmatpush1.xpose.msra.mxu0 0.0
    %594 = vmatprep.subr.mxu0 0.0
    %595 = vmatpush1.xpose.msra.mxu0 0.0
    %596 = vmatprep.subr.mxu0 0.0
    %597 = vmatpush1.xpose.msra.mxu0 0.0
    %598 = vmatprep.subr.mxu0 0.0
    %599 = vmatpush1.xpose.msra.mxu0 0.0
    %600 = vmatprep.subr.mxu0 0.0
    %601 = vmatpush1.xpose.msra.mxu0 0.0
    %602 = vmatprep.subr.mxu0 0.0
    %603 = vmatpush1.xpose.msra.mxu0 0.0
    %604 = vmatprep.subr.mxu0 0.0
    %605 = vmatpush1.xpose.msra.mxu0 0.0
    %606 = vmatprep.subr.mxu0 0.0
    %607 = vmatpush1.xpose.msra.mxu0 0.0
    %608 = vmatprep.subr.mxu0 0.0
    %609 = vmatpush1.xpose.msra.mxu0 0.0
    %610 = vmatprep.subr.mxu0 0.0
    %611 = vmatpush1.xpose.msra.mxu0 0.0
    %612 = vmatprep.subr.mxu0 0.0
    %613 = vmatpush1.xpose.msra.mxu0 %v580
    %614 = vmatprep.subr.mxu0 0.0
    %615 = vmatpush2.xpose.msra.mxu0 0.0
    %616 = vmatprep.subr.mxu0 0.0
    %617 = vmatpush2.xpose.msra.mxu0 0.0
    %618 = vmatprep.subr.mxu0 0.0
    %619 = vmatpush2.xpose.msra.mxu0 0.0
    %620 = vmatprep.subr.mxu0 0.0
    %621 = vmatpush2.xpose.msra.mxu0 0.0
    %622 = vmatprep.subr.mxu0 0.0
    %623 = vmatpush2.xpose.msra.mxu0 0.0
    %624 = vmatprep.subr.mxu0 0.0
    %625 = vmatpush2.xpose.msra.mxu0 0.0
    %626 = vmatprep.subr.mxu0 0.0
    %627 = vmatpush2.xpose.msra.mxu0 0.0
    %628 = vmatprep.subr.mxu0 0.0
    %629 = vmatpush2.xpose.msra.mxu0 0.0
    %630 = vmatprep.subr.mxu0 0.0
    %631 = vmatpush2.xpose.msra.mxu0 0.0
    %632 = vmatprep.subr.mxu0 0.0
    %633 = vmatpush2.xpose.msra.mxu0 0.0
    %634 = vmatprep.subr.mxu0 0.0
    %635 = vmatpush2.xpose.msra.mxu0 0.0
    %636 = vmatprep.subr.mxu0 0.0
    %637 = vmatpush2.xpose.msra.mxu0 0.0
    %638 = vmatprep.subr.mxu0 0.0
    %639 = vmatpush2.xpose.msra.mxu0 0.0
    %640 = vmatprep.subr.mxu0 0.0
    %641 = vmatpush2.xpose.msra.mxu0 0.0
    %642 = vmatprep.subr.mxu0 0.0
    %643 = vmatpush2.xpose.msra.mxu0 0.0
    %644 = vmatprep.subr.mxu0 0.0
    %645 = vmatpush2.xpose.msra.mxu0 0.0
    %646 = vmatprep.mubr.f32.mxu0 0.0
    %647 = vmatmul.mubr.f32.gmra.mxu0 %v578
    %v648 = vpop.f32.mrf.mxu0
    %v649 = vadd.f32 0.0, %v648
    %v650 = vpop.f32.mrf.mxu0
    %651 = vdwg.mxu0
    %652 = vrot.lane.b32.xlu0 %v192, 96
    %v653 = vpop.permute.xlu0 %652
    %v654 = vsel %vm197, %v192, 0
    %v656 = vsel %vm197, %v653, 0
    %658 = vmatprep.subr.mxu0 0.0
    %659 = vmatpush1.xpose.msra.mxu0 0.0
    %660 = vmatprep.subr.mxu0 0.0
    %661 = vmatpush1.xpose.msra.mxu0 0.0
    %662 = vmatprep.subr.mxu0 0.0
    %663 = vmatpush1.xpose.msra.mxu0 0.0
    %664 = vmatprep.subr.mxu0 0.0
    %665 = vmatpush1.xpose.msra.mxu0 0.0
    %666 = vmatprep.subr.mxu0 0.0
    %667 = vmatpush1.xpose.msra.mxu0 0.0
    %668 = vmatprep.subr.mxu0 0.0
    %669 = vmatpush1.xpose.msra.mxu0 0.0
    %670 = vmatprep.subr.mxu0 0.0
    %671 = vmatpush1.xpose.msra.mxu0 0.0
    %672 = vmatprep.subr.mxu0 0.0
    %673 = vmatpush1.xpose.msra.mxu0 0.0
    %674 = vmatprep.subr.mxu0 0.0
    %675 = vmatpush1.xpose.msra.mxu0 0.0
    %676 = vmatprep.subr.mxu0 0.0
    %677 = vmatpush1.xpose.msra.mxu0 0.0
    %678 = vmatprep.subr.mxu0 0.0
    %679 = vmatpush1.xpose.msra.mxu0 0.0
    %680 = vmatprep.subr.mxu0 0.0
    %681 = vmatpush1.xpose.msra.mxu0 0.0
    %682 = vmatprep.subr.mxu0 0.0
    %683 = vmatpush1.xpose.msra.mxu0 0.0
    %684 = vmatprep.subr.mxu0 0.0
    %685 = vmatpush1.xpose.msra.mxu0 0.0
    %686 = vmatprep.subr.mxu0 0.0
    %687 = vmatpush1.xpose.msra.mxu0 0.0
    %688 = vmatprep.subr.mxu0 0.0
    %689 = vmatpush1.xpose.msra.mxu0 %v656
    %690 = vmatprep.subr.mxu0 0.0
    %691 = vmatpush2.xpose.msra.mxu0 0.0
    %692 = vmatprep.subr.mxu0 0.0
    %693 = vmatpush2.xpose.msra.mxu0 0.0
    %694 = vmatprep.subr.mxu0 0.0
    %695 = vmatpush2.xpose.msra.mxu0 0.0
    %696 = vmatprep.subr.mxu0 0.0
    %697 = vmatpush2.xpose.msra.mxu0 0.0
    %698 = vmatprep.subr.mxu0 0.0
    %699 = vmatpush2.xpose.msra.mxu0 0.0
    %700 = vmatprep.subr.mxu0 0.0
    %701 = vmatpush2.xpose.msra.mxu0 0.0
    %702 = vmatprep.subr.mxu0 0.0
    %703 = vmatpush2.xpose.msra.mxu0 0.0
    %704 = vmatprep.subr.mxu0 0.0
    %705 = vmatpush2.xpose.msra.mxu0 0.0
    %706 = vmatprep.subr.mxu0 0.0
    %707 = vmatpush2.xpose.msra.mxu0 0.0
    %708 = vmatprep.subr.mxu0 0.0
    %709 = vmatpush2.xpose.msra.mxu0 0.0
    %710 = vmatprep.subr.mxu0 0.0
    %711 = vmatpush2.xpose.msra.mxu0 0.0
    %712 = vmatprep.subr.mxu0 0.0
    %713 = vmatpush2.xpose.msra.mxu0 0.0
    %714 = vmatprep.subr.mxu0 0.0
    %715 = vmatpush2.xpose.msra.mxu0 0.0
    %716 = vmatprep.subr.mxu0 0.0
    %717 = vmatpush2.xpose.msra.mxu0 0.0
    %718 = vmatprep.subr.mxu0 0.0
    %719 = vmatpush2.xpose.msra.mxu0 0.0
    %720 = vmatprep.subr.mxu0 0.0
    %721 = vmatpush2.xpose.msra.mxu0 0.0
    %722 = vmatprep.mubr.f32.mxu0 0.0
    %723 = vmatmul.mubr.f32.gmra.mxu0 %v654
    %v724 = vpop.f32.mrf.mxu0
    %v725 = vadd.f32 0.0, %v724
    %v726 = vpop.f32.mrf.mxu0
    %727 = vdwg.mxu0
    %728 = vrot.lane.b32.xlu0 %v194, 96
    %v729 = vpop.permute.xlu0 %728
    %v730 = vsel %vm197, %v194, 0
    %v732 = vsel %vm197, %v729, 0
    %734 = vmatprep.subr.mxu0 0.0
    %735 = vmatpush1.xpose.msra.mxu0 0.0
    %736 = vmatprep.subr.mxu0 0.0
    %737 = vmatpush1.xpose.msra.mxu0 0.0
    %738 = vmatprep.subr.mxu0 0.0
    %739 = vmatpush1.xpose.msra.mxu0 0.0
    %740 = vmatprep.subr.mxu0 0.0
    %741 = vmatpush1.xpose.msra.mxu0 0.0
    %742 = vmatprep.subr.mxu0 0.0
    %743 = vmatpush1.xpose.msra.mxu0 0.0
    %744 = vmatprep.subr.mxu0 0.0
    %745 = vmatpush1.xpose.msra.mxu0 0.0
    %746 = vmatprep.subr.mxu0 0.0
    %747 = vmatpush1.xpose.msra.mxu0 0.0
    %748 = vmatprep.subr.mxu0 0.0
    %749 = vmatpush1.xpose.msra.mxu0 0.0
    %750 = vmatprep.subr.mxu0 0.0
    %751 = vmatpush1.xpose.msra.mxu0 0.0
    %752 = vmatprep.subr.mxu0 0.0
    %753 = vmatpush1.xpose.msra.mxu0 0.0
    %754 = vmatprep.subr.mxu0 0.0
    %755 = vmatpush1.xpose.msra.mxu0 0.0
    %756 = vmatprep.subr.mxu0 0.0
    %757 = vmatpush1.xpose.msra.mxu0 0.0
    %758 = vmatprep.subr.mxu0 0.0
    %759 = vmatpush1.xpose.msra.mxu0 0.0
    %760 = vmatprep.subr.mxu0 0.0
    %761 = vmatpush1.xpose.msra.mxu0 0.0
    %762 = vmatprep.subr.mxu0 0.0
    %763 = vmatpush1.xpose.msra.mxu0 0.0
    %764 = vmatprep.subr.mxu0 0.0
    %765 = vmatpush1.xpose.msra.mxu0 %v732
    %766 = vmatprep.subr.mxu0 0.0
    %767 = vmatpush2.xpose.msra.mxu0 0.0
    %768 = vmatprep.subr.mxu0 0.0
    %769 = vmatpush2.xpose.msra.mxu0 0.0
    %770 = vmatprep.subr.mxu0 0.0
    %771 = vmatpush2.xpose.msra.mxu0 0.0
    %772 = vmatprep.subr.mxu0 0.0
    %773 = vmatpush2.xpose.msra.mxu0 0.0
    %774 = vmatprep.subr.mxu0 0.0
    %775 = vmatpush2.xpose.msra.mxu0 0.0
    %776 = vmatprep.subr.mxu0 0.0
    %777 = vmatpush2.xpose.msra.mxu0 0.0
    %778 = vmatprep.subr.mxu0 0.0
    %779 = vmatpush2.xpose.msra.mxu0 0.0
    %780 = vmatprep.subr.mxu0 0.0
    %781 = vmatpush2.xpose.msra.mxu0 0.0
    %782 = vmatprep.subr.mxu0 0.0
    %783 = vmatpush2.xpose.msra.mxu0 0.0
    %784 = vmatprep.subr.mxu0 0.0
    %785 = vmatpush2.xpose.msra.mxu0 0.0
    %786 = vmatprep.subr.mxu0 0.0
    %787 = vmatpush2.xpose.msra.mxu0 0.0
    %788 = vmatprep.subr.mxu0 0.0
    %789 = vmatpush2.xpose.msra.mxu0 0.0
    %790 = vmatprep.subr.mxu0 0.0
    %791 = vmatpush2.xpose.msra.mxu0 0.0
    %792 = vmatprep.subr.mxu0 0.0
    %793 = vmatpush2.xpose.msra.mxu0 0.0
    %794 = vmatprep.subr.mxu0 0.0
    %795 = vmatpush2.xpose.msra.mxu0 0.0
    %796 = vmatprep.subr.mxu0 0.0
    %797 = vmatpush2.xpose.msra.mxu0 0.0
    %798 = vmatprep.mubr.f32.mxu0 0.0
    %799 = vmatmul.mubr.f32.gmra.mxu0 %v730
    %v800 = vpop.f32.mrf.mxu0
    %v801 = vadd.f32 0.0, %v800
    %v802 = vpop.f32.mrf.mxu0
    %803 = vdwg.mxu0
    %v804 = vmul.f32 %v269, 0.35355338
    %v805 = vmul.f32 %v345, 0.35355338
    %v806 = vmul.f32 %v421, 0.35355338
    %v807 = vmul.f32 %v497, 0.35355338
    %v808 = vmul.f32 %v573, 0.35355338
    %v809 = vmul.f32 %v649, 0.35355338
    %v810 = vmul.f32 %v725, 0.35355338
    %v811 = vmul.f32 %v801, 0.35355338
    %v812 = vsel %vm197, %v804, -inf
    %813 = vmax.xlane.f32.xlu0 %v812
    %v814 = vpop.xlane.xlu0 %813
    %v815 = vsel %vm197, %v805, -inf
    %816 = vmax.xlane.f32.xlu0 %v815
    %v817 = vpop.xlane.xlu0 %816
    %v818 = vsel %vm197, %v806, -inf
    %819 = vmax.xlane.f32.xlu0 %v818
    %v820 = vpop.xlane.xlu0 %819
    %v821 = vsel %vm197, %v807, -inf
    %822 = vmax.xlane.f32.xlu0 %v821
    %v823 = vpop.xlane.xlu0 %822
    %v824 = vsel %vm197, %v808, -inf
    %825 = vmax.xlane.f32.xlu0 %v824
    %v826 = vpop.xlane.xlu0 %825
    %v827 = vsel %vm197, %v809, -inf
    %828 = vmax.xlane.f32.xlu0 %v827
    %v829 = vpop.xlane.xlu0 %828
    %v830 = vsel %vm197, %v810, -inf
    %831 = vmax.xlane.f32.xlu0 %v830
    %v832 = vpop.xlane.xlu0 %831
    %v833 = vsel %vm197, %v811, -inf
    %834 = vmax.xlane.f32.xlu0 %v833
    %v835 = vpop.xlane.xlu0 %834
    %v836 = vsub.f32 %v804, %v814
    %v837 = vsub.f32 %v805, %v817
    %v838 = vsub.f32 %v806, %v820
    %v839 = vsub.f32 %v807, %v823
    %v840 = vsub.f32 %v808, %v826
    %v841 = vsub.f32 %v809, %v829
    %v842 = vsub.f32 %v810, %v832
    %v843 = vsub.f32 %v811, %v835
    %v844 = vmul.f32 %v836, 1.442695
    %v845 = vpow.pop %v844
    %v846 = vmul.f32 %v837, 1.442695
    %v847 = vpow.pop %v846
    %v848 = vmul.f32 %v838, 1.442695
    %v849 = vpow.pop %v848
    %v850 = vmul.f32 %v839, 1.442695
    %v851 = vpow.pop %v850
    %v852 = vmul.f32 %v840, 1.442695
    %v853 = vpow.pop %v852
    %v854 = vmul.f32 %v841, 1.442695
    %v855 = vpow.pop %v854
    %v856 = vmul.f32 %v842, 1.442695
    %v857 = vpow.pop %v856
    %v858 = vmul.f32 %v843, 1.442695
    %v859 = vpow.pop %v858
    %v860 = vsel %vm197, %v845, 0.0
    %861 = vadd.xlane.f32.xlu0 %v860
    %v862 = vpop.xlane.xlu0 %861
    %v863 = vsel %vm197, %v847, 0.0
    %864 = vadd.xlane.f32.xlu0 %v863
    %v865 = vpop.xlane.xlu0 %864
    %v866 = vsel %vm197, %v849, 0.0
    %867 = vadd.xlane.f32.xlu0 %v866
    %v868 = vpop.xlane.xlu0 %867
    %v869 = vsel %vm197, %v851, 0.0
    %870 = vadd.xlane.f32.xlu0 %v869
    %v871 = vpop.xlane.xlu0 %870
    %v872 = vsel %vm197, %v853, 0.0
    %873 = vadd.xlane.f32.xlu0 %v872
    %v874 = vpop.xlane.xlu0 %873
    %v875 = vsel %vm197, %v855, 0.0
    %876 = vadd.xlane.f32.xlu0 %v875
    %v877 = vpop.xlane.xlu0 %876
    %v878 = vsel %vm197, %v857, 0.0
    %879 = vadd.xlane.f32.xlu0 %v878
    %v880 = vpop.xlane.xlu0 %879
    %v881 = vsel %vm197, %v859, 0.0
    %882 = vadd.xlane.f32.xlu0 %v881
    %v883 = vpop.xlane.xlu0 %882
    %v884 = vrcp.pop %v862
    %v885 = vmul.f32 %v845, %v884
    %v886 = vrcp.pop %v865
    %v887 = vmul.f32 %v847, %v886
    %v888 = vrcp.pop %v868
    %v889 = vmul.f32 %v849, %v888
    %v890 = vrcp.pop %v871
    %v891 = vmul.f32 %v851, %v890
    %v892 = vrcp.pop %v874
    %v893 = vmul.f32 %v853, %v892
    %v894 = vrcp.pop %v877
    %v895 = vmul.f32 %v855, %v894
    %v896 = vrcp.pop %v880
    %v897 = vmul.f32 %v857, %v896
    %v898 = vrcp.pop %v883
    %v899 = vmul.f32 %v859, %v898
    %900 = vrot.lane.b32.xlu0 %v173, 64
    %v901 = vpop.permute.xlu0 %900
    %v904 = vsel %vm197, %v885, 0
    %906 = vmatprep.subr.mxu0 0.0
    %907 = vmatpush1.msra.mxu0 0.0
    %908 = vmatprep.subr.mxu0 0.0
    %909 = vmatpush1.msra.mxu0 0.0
    %910 = vmatprep.subr.mxu0 0.0
    %911 = vmatpush1.msra.mxu0 0.0
    %912 = vmatprep.subr.mxu0 0.0
    %913 = vmatpush1.msra.mxu0 0.0
    %914 = vmatprep.subr.mxu0 0.0
    %915 = vmatpush1.msra.mxu0 0.0
    %916 = vmatprep.subr.mxu0 0.0
    %917 = vmatpush1.msra.mxu0 0.0
    %918 = vmatprep.subr.mxu0 0.0
    %919 = vmatpush1.msra.mxu0 0.0
    %920 = vmatprep.subr.mxu0 0.0
    %921 = vmatpush1.msra.mxu0 0.0
    %922 = vmatprep.subr.mxu0 0.0
    %923 = vmatpush1.msra.mxu0 0.0
    %924 = vmatprep.subr.mxu0 0.0
    %925 = vmatpush1.msra.mxu0 0.0
    %926 = vmatprep.subr.mxu0 0.0
    %927 = vmatpush1.msra.mxu0 0.0
    %928 = vmatprep.subr.mxu0 0.0
    %929 = vmatpush1.msra.mxu0 0.0
    %930 = vmatprep.subr.mxu0 0.0
    %931 = vmatpush1.msra.mxu0 0.0
    %932 = vmatprep.subr.mxu0 0.0
    %933 = vmatpush1.msra.mxu0 0.0
    %934 = vmatprep.subr.mxu0 0.0
    %935 = vmatpush1.msra.mxu0 0.0
    %936 = vmatprep.subr.mxu0 0.0
    %937 = vmatpush1.msra.mxu0 %v901
    %938 = vmatprep.subr.mxu0 0.0
    %939 = vmatpush2.msra.mxu0 0.0
    %940 = vmatprep.subr.mxu0 0.0
    %941 = vmatpush2.msra.mxu0 0.0
    %942 = vmatprep.subr.mxu0 0.0
    %943 = vmatpush2.msra.mxu0 0.0
    %944 = vmatprep.subr.mxu0 0.0
    %945 = vmatpush2.msra.mxu0 0.0
    %946 = vmatprep.subr.mxu0 0.0
    %947 = vmatpush2.msra.mxu0 0.0
    %948 = vmatprep.subr.mxu0 0.0
    %949 = vmatpush2.msra.mxu0 0.0
    %950 = vmatprep.subr.mxu0 0.0
    %951 = vmatpush2.msra.mxu0 0.0
    %952 = vmatprep.subr.mxu0 0.0
    %953 = vmatpush2.msra.mxu0 0.0
    %954 = vmatprep.subr.mxu0 0.0
    %955 = vmatpush2.msra.mxu0 0.0
    %956 = vmatprep.subr.mxu0 0.0
    %957 = vmatpush2.msra.mxu0 0.0
    %958 = vmatprep.subr.mxu0 0.0
    %959 = vmatpush2.msra.mxu0 0.0
    %960 = vmatprep.subr.mxu0 0.0
    %961 = vmatpush2.msra.mxu0 0.0
    %962 = vmatprep.subr.mxu0 0.0
    %963 = vmatpush2.msra.mxu0 0.0
    %964 = vmatprep.subr.mxu0 0.0
    %965 = vmatpush2.msra.mxu0 0.0
    %966 = vmatprep.subr.mxu0 0.0
    %967 = vmatpush2.msra.mxu0 0.0
    %968 = vmatprep.subr.mxu0 0.0
    %969 = vmatpush2.msra.mxu0 0.0
    %970 = vmatprep.mubr.f32.mxu0 0.0
    %971 = vmatmul.mubr.f32.gmra.mxu0 %v904
    %v972 = vpop.f32.mrf.mxu0
    %v973 = vadd.f32 0.0, %v972
    %v974 = vpop.f32.mrf.mxu0
    %975 = vdwg.mxu0
    %976 = vrot.lane.b32.xlu0 %v178, 64
    %v977 = vpop.permute.xlu0 %976
    %v980 = vsel %vm197, %v887, 0
    %982 = vmatprep.subr.mxu0 0.0
    %983 = vmatpush1.msra.mxu0 0.0
    %984 = vmatprep.subr.mxu0 0.0
    %985 = vmatpush1.msra.mxu0 0.0
    %986 = vmatprep.subr.mxu0 0.0
    %987 = vmatpush1.msra.mxu0 0.0
    %988 = vmatprep.subr.mxu0 0.0
    %989 = vmatpush1.msra.mxu0 0.0
    %990 = vmatprep.subr.mxu0 0.0
    %991 = vmatpush1.msra.mxu0 0.0
    %992 = vmatprep.subr.mxu0 0.0
    %993 = vmatpush1.msra.mxu0 0.0
    %994 = vmatprep.subr.mxu0 0.0
    %995 = vmatpush1.msra.mxu0 0.0
    %996 = vmatprep.subr.mxu0 0.0
    %997 = vmatpush1.msra.mxu0 0.0
    %998 = vmatprep.subr.mxu0 0.0
    %999 = vmatpush1.msra.mxu0 0.0
    %1000 = vmatprep.subr.mxu0 0.0
    %1001 = vmatpush1.msra.mxu0 0.0
    %1002 = vmatprep.subr.mxu0 0.0
    %1003 = vmatpush1.msra.mxu0 0.0
    %1004 = vmatprep.subr.mxu0 0.0
    %1005 = vmatpush1.msra.mxu0 0.0
    %1006 = vmatprep.subr.mxu0 0.0
    %1007 = vmatpush1.msra.mxu0 0.0
    %1008 = vmatprep.subr.mxu0 0.0
    %1009 = vmatpush1.msra.mxu0 0.0
    %1010 = vmatprep.subr.mxu0 0.0
    %1011 = vmatpush1.msra.mxu0 0.0
    %1012 = vmatprep.subr.mxu0 0.0
    %1013 = vmatpush1.msra.mxu0 %v977
    %1014 = vmatprep.subr.mxu0 0.0
    %1015 = vmatpush2.msra.mxu0 0.0
    %1016 = vmatprep.subr.mxu0 0.0
    %1017 = vmatpush2.msra.mxu0 0.0
    %1018 = vmatprep.subr.mxu0 0.0
    %1019 = vmatpush2.msra.mxu0 0.0
    %1020 = vmatprep.subr.mxu0 0.0
    %1021 = vmatpush2.msra.mxu0 0.0
    %1022 = vmatprep.subr.mxu0 0.0
    %1023 = vmatpush2.msra.mxu0 0.0
    %1024 = vmatprep.subr.mxu0 0.0
    %1025 = vmatpush2.msra.mxu0 0.0
    %1026 = vmatprep.subr.mxu0 0.0
    %1027 = vmatpush2.msra.mxu0 0.0
    %1028 = vmatprep.subr.mxu0 0.0
    %1029 = vmatpush2.msra.mxu0 0.0
    %1030 = vmatprep.subr.mxu0 0.0
    %1031 = vmatpush2.msra.mxu0 0.0
    %1032 = vmatprep.subr.mxu0 0.0
    %1033 = vmatpush2.msra.mxu0 0.0
    %1034 = vmatprep.subr.mxu0 0.0
    %1035 = vmatpush2.msra.mxu0 0.0
    %1036 = vmatprep.subr.mxu0 0.0
    %1037 = vmatpush2.msra.mxu0 0.0
    %1038 = vmatprep.subr.mxu0 0.0
    %1039 = vmatpush2.msra.mxu0 0.0
    %1040 = vmatprep.subr.mxu0 0.0
    %1041 = vmatpush2.msra.mxu0 0.0
    %1042 = vmatprep.subr.mxu0 0.0
    %1043 = vmatpush2.msra.mxu0 0.0
    %1044 = vmatprep.subr.mxu0 0.0
    %1045 = vmatpush2.msra.mxu0 0.0
    %1046 = vmatprep.mubr.f32.mxu0 0.0
    %1047 = vmatmul.mubr.f32.gmra.mxu0 %v980
    %v1048 = vpop.f32.mrf.mxu0
    %v1049 = vadd.f32 0.0, %v1048
    %v1050 = vpop.f32.mrf.mxu0
    %1051 = vdwg.mxu0
    %1052 = vrot.lane.b32.xlu0 %v184, 64
    %v1053 = vpop.permute.xlu0 %1052
    %v1056 = vsel %vm197, %v889, 0
    %1058 = vmatprep.subr.mxu0 0.0
    %1059 = vmatpush1.msra.mxu0 0.0
    %1060 = vmatprep.subr.mxu0 0.0
    %1061 = vmatpush1.msra.mxu0 0.0
    %1062 = vmatprep.subr.mxu0 0.0
    %1063 = vmatpush1.msra.mxu0 0.0
    %1064 = vmatprep.subr.mxu0 0.0
    %1065 = vmatpush1.msra.mxu0 0.0
    %1066 = vmatprep.subr.mxu0 0.0
    %1067 = vmatpush1.msra.mxu0 0.0
    %1068 = vmatprep.subr.mxu0 0.0
    %1069 = vmatpush1.msra.mxu0 0.0
    %1070 = vmatprep.subr.mxu0 0.0
    %1071 = vmatpush1.msra.mxu0 0.0
    %1072 = vmatprep.subr.mxu0 0.0
    %1073 = vmatpush1.msra.mxu0 0.0
    %1074 = vmatprep.subr.mxu0 0.0
    %1075 = vmatpush1.msra.mxu0 0.0
    %1076 = vmatprep.subr.mxu0 0.0
    %1077 = vmatpush1.msra.mxu0 0.0
    %1078 = vmatprep.subr.mxu0 0.0
    %1079 = vmatpush1.msra.mxu0 0.0
    %1080 = vmatprep.subr.mxu0 0.0
    %1081 = vmatpush1.msra.mxu0 0.0
    %1082 = vmatprep.subr.mxu0 0.0
    %1083 = vmatpush1.msra.mxu0 0.0
    %1084 = vmatprep.subr.mxu0 0.0
    %1085 = vmatpush1.msra.mxu0 0.0
    %1086 = vmatprep.subr.mxu0 0.0
    %1087 = vmatpush1.msra.mxu0 0.0
    %1088 = vmatprep.subr.mxu0 0.0
    %1089 = vmatpush1.msra.mxu0 %v1053
    %1090 = vmatprep.subr.mxu0 0.0
    %1091 = vmatpush2.msra.mxu0 0.0
    %1092 = vmatprep.subr.mxu0 0.0
    %1093 = vmatpush2.msra.mxu0 0.0
    %1094 = vmatprep.subr.mxu0 0.0
    %1095 = vmatpush2.msra.mxu0 0.0
    %1096 = vmatprep.subr.mxu0 0.0
    %1097 = vmatpush2.msra.mxu0 0.0
    %1098 = vmatprep.subr.mxu0 0.0
    %1099 = vmatpush2.msra.mxu0 0.0
    %1100 = vmatprep.subr.mxu0 0.0
    %1101 = vmatpush2.msra.mxu0 0.0
    %1102 = vmatprep.subr.mxu0 0.0
    %1103 = vmatpush2.msra.mxu0 0.0
    %1104 = vmatprep.subr.mxu0 0.0
    %1105 = vmatpush2.msra.mxu0 0.0
    %1106 = vmatprep.subr.mxu0 0.0
    %1107 = vmatpush2.msra.mxu0 0.0
    %1108 = vmatprep.subr.mxu0 0.0
    %1109 = vmatpush2.msra.mxu0 0.0
    %1110 = vmatprep.subr.mxu0 0.0
    %1111 = vmatpush2.msra.mxu0 0.0
    %1112 = vmatprep.subr.mxu0 0.0
    %1113 = vmatpush2.msra.mxu0 0.0
    %1114 = vmatprep.subr.mxu0 0.0
    %1115 = vmatpush2.msra.mxu0 0.0
    %1116 = vmatprep.subr.mxu0 0.0
    %1117 = vmatpush2.msra.mxu0 0.0
    %1118 = vmatprep.subr.mxu0 0.0
    %1119 = vmatpush2.msra.mxu0 0.0
    %1120 = vmatprep.subr.mxu0 0.0
    %1121 = vmatpush2.msra.mxu0 0.0
    %1122 = vmatprep.mubr.f32.mxu0 0.0
    %1123 = vmatmul.mubr.f32.gmra.mxu0 %v1056
    %v1124 = vpop.f32.mrf.mxu0
    %v1125 = vadd.f32 0.0, %v1124
    %v1126 = vpop.f32.mrf.mxu0
    %1127 = vdwg.mxu0
    %1128 = vrot.lane.b32.xlu0 %v186, 64
    %v1129 = vpop.permute.xlu0 %1128
    %v1132 = vsel %vm197, %v891, 0
    %1134 = vmatprep.subr.mxu0 0.0
    %1135 = vmatpush1.msra.mxu0 0.0
    %1136 = vmatprep.subr.mxu0 0.0
    %1137 = vmatpush1.msra.mxu0 0.0
    %1138 = vmatprep.subr.mxu0 0.0
    %1139 = vmatpush1.msra.mxu0 0.0
    %1140 = vmatprep.subr.mxu0 0.0
    %1141 = vmatpush1.msra.mxu0 0.0
    %1142 = vmatprep.subr.mxu0 0.0
    %1143 = vmatpush1.msra.mxu0 0.0
    %1144 = vmatprep.subr.mxu0 0.0
    %1145 = vmatpush1.msra.mxu0 0.0
    %1146 = vmatprep.subr.mxu0 0.0
    %1147 = vmatpush1.msra.mxu0 0.0
    %1148 = vmatprep.subr.mxu0 0.0
    %1149 = vmatpush1.msra.mxu0 0.0
    %1150 = vmatprep.subr.mxu0 0.0
    %1151 = vmatpush1.msra.mxu0 0.0
    %1152 = vmatprep.subr.mxu0 0.0
    %1153 = vmatpush1.msra.mxu0 0.0
    %1154 = vmatprep.subr.mxu0 0.0
    %1155 = vmatpush1.msra.mxu0 0.0
    %1156 = vmatprep.subr.mxu0 0.0
    %1157 = vmatpush1.msra.mxu0 0.0
    %1158 = vmatprep.subr.mxu0 0.0
    %1159 = vmatpush1.msra.mxu0 0.0
    %1160 = vmatprep.subr.mxu0 0.0
    %1161 = vmatpush1.msra.mxu0 0.0
    %1162 = vmatprep.subr.mxu0 0.0
    %1163 = vmatpush1.msra.mxu0 0.0
    %1164 = vmatprep.subr.mxu0 0.0
    %1165 = vmatpush1.msra.mxu0 %v1129
    %1166 = vmatprep.subr.mxu0 0.0
    %1167 = vmatpush2.msra.mxu0 0.0
    %1168 = vmatprep.subr.mxu0 0.0
    %1169 = vmatpush2.msra.mxu0 0.0
    %1170 = vmatprep.subr.mxu0 0.0
    %1171 = vmatpush2.msra.mxu0 0.0
    %1172 = vmatprep.subr.mxu0 0.0
    %1173 = vmatpush2.msra.mxu0 0.0
    %1174 = vmatprep.subr.mxu0 0.0
    %1175 = vmatpush2.msra.mxu0 0.0
    %1176 = vmatprep.subr.mxu0 0.0
    %1177 = vmatpush2.msra.mxu0 0.0
    %1178 = vmatprep.subr.mxu0 0.0
    %1179 = vmatpush2.msra.mxu0 0.0
    %1180 = vmatprep.subr.mxu0 0.0
    %1181 = vmatpush2.msra.mxu0 0.0
    %1182 = vmatprep.subr.mxu0 0.0
    %1183 = vmatpush2.msra.mxu0 0.0
    %1184 = vmatprep.subr.mxu0 0.0
    %1185 = vmatpush2.msra.mxu0 0.0
    %1186 = vmatprep.subr.mxu0 0.0
    %1187 = vmatpush2.msra.mxu0 0.0
    %1188 = vmatprep.subr.mxu0 0.0
    %1189 = vmatpush2.msra.mxu0 0.0
    %1190 = vmatprep.subr.mxu0 0.0
    %1191 = vmatpush2.msra.mxu0 0.0
    %1192 = vmatprep.subr.mxu0 0.0
    %1193 = vmatpush2.msra.mxu0 0.0
    %1194 = vmatprep.subr.mxu0 0.0
    %1195 = vmatpush2.msra.mxu0 0.0
    %1196 = vmatprep.subr.mxu0 0.0
    %1197 = vmatpush2.msra.mxu0 0.0
    %1198 = vmatprep.mubr.f32.mxu0 0.0
    %1199 = vmatmul.mubr.f32.gmra.mxu0 %v1132
    %v1200 = vpop.f32.mrf.mxu0
    %v1201 = vadd.f32 0.0, %v1200
    %v1202 = vpop.f32.mrf.mxu0
    %1203 = vdwg.mxu0
    %1204 = vrot.lane.b32.xlu0 %v188, 64
    %v1205 = vpop.permute.xlu0 %1204
    %v1208 = vsel %vm197, %v893, 0
    %1210 = vmatprep.subr.mxu0 0.0
    %1211 = vmatpush1.msra.mxu0 0.0
    %1212 = vmatprep.subr.mxu0 0.0
    %1213 = vmatpush1.msra.mxu0 0.0
    %1214 = vmatprep.subr.mxu0 0.0
    %1215 = vmatpush1.msra.mxu0 0.0
    %1216 = vmatprep.subr.mxu0 0.0
    %1217 = vmatpush1.msra.mxu0 0.0
    %1218 = vmatprep.subr.mxu0 0.0
    %1219 = vmatpush1.msra.mxu0 0.0
    %1220 = vmatprep.subr.mxu0 0.0
    %1221 = vmatpush1.msra.mxu0 0.0
    %1222 = vmatprep.subr.mxu0 0.0
    %1223 = vmatpush1.msra.mxu0 0.0
    %1224 = vmatprep.subr.mxu0 0.0
    %1225 = vmatpush1.msra.mxu0 0.0
    %1226 = vmatprep.subr.mxu0 0.0
    %1227 = vmatpush1.msra.mxu0 0.0
    %1228 = vmatprep.subr.mxu0 0.0
    %1229 = vmatpush1.msra.mxu0 0.0
    %1230 = vmatprep.subr.mxu0 0.0
    %1231 = vmatpush1.msra.mxu0 0.0
    %1232 = vmatprep.subr.mxu0 0.0
    %1233 = vmatpush1.msra.mxu0 0.0
    %1234 = vmatprep.subr.mxu0 0.0
    %1235 = vmatpush1.msra.mxu0 0.0
    %1236 = vmatprep.subr.mxu0 0.0
    %1237 = vmatpush1.msra.mxu0 0.0
    %1238 = vmatprep.subr.mxu0 0.0
    %1239 = vmatpush1.msra.mxu0 0.0
    %1240 = vmatprep.subr.mxu0 0.0
    %1241 = vmatpush1.msra.mxu0 %v1205
    %1242 = vmatprep.subr.mxu0 0.0
    %1243 = vmatpush2.msra.mxu0 0.0
    %1244 = vmatprep.subr.mxu0 0.0
    %1245 = vmatpush2.msra.mxu0 0.0
    %1246 = vmatprep.subr.mxu0 0.0
    %1247 = vmatpush2.msra.mxu0 0.0
    %1248 = vmatprep.subr.mxu0 0.0
    %1249 = vmatpush2.msra.mxu0 0.0
    %1250 = vmatprep.subr.mxu0 0.0
    %1251 = vmatpush2.msra.mxu0 0.0
    %1252 = vmatprep.subr.mxu0 0.0
    %1253 = vmatpush2.msra.mxu0 0.0
    %1254 = vmatprep.subr.mxu0 0.0
    %1255 = vmatpush2.msra.mxu0 0.0
    %1256 = vmatprep.subr.mxu0 0.0
    %1257 = vmatpush2.msra.mxu0 0.0
    %1258 = vmatprep.subr.mxu0 0.0
    %1259 = vmatpush2.msra.mxu0 0.0
    %1260 = vmatprep.subr.mxu0 0.0
    %1261 = vmatpush2.msra.mxu0 0.0
    %1262 = vmatprep.subr.mxu0 0.0
    %1263 = vmatpush2.msra.mxu0 0.0
    %1264 = vmatprep.subr.mxu0 0.0
    %1265 = vmatpush2.msra.mxu0 0.0
    %1266 = vmatprep.subr.mxu0 0.0
    %1267 = vmatpush2.msra.mxu0 0.0
    %1268 = vmatprep.subr.mxu0 0.0
    %1269 = vmatpush2.msra.mxu0 0.0
    %1270 = vmatprep.subr.mxu0 0.0
    %1271 = vmatpush2.msra.mxu0 0.0
    %1272 = vmatprep.subr.mxu0 0.0
    %1273 = vmatpush2.msra.mxu0 0.0
    %1274 = vmatprep.mubr.f32.mxu0 0.0
    %1275 = vmatmul.mubr.f32.gmra.mxu0 %v1208
    %v1276 = vpop.f32.mrf.mxu0
    %v1277 = vadd.f32 0.0, %v1276
    %v1278 = vpop.f32.mrf.mxu0
    %1279 = vdwg.mxu0
    %1280 = vrot.lane.b32.xlu0 %v190, 64
    %v1281 = vpop.permute.xlu0 %1280
    %v1284 = vsel %vm197, %v895, 0
    %1286 = vmatprep.subr.mxu0 0.0
    %1287 = vmatpush1.msra.mxu0 0.0
    %1288 = vmatprep.subr.mxu0 0.0
    %1289 = vmatpush1.msra.mxu0 0.0
    %1290 = vmatprep.subr.mxu0 0.0
    %1291 = vmatpush1.msra.mxu0 0.0
    %1292 = vmatprep.subr.mxu0 0.0
    %1293 = vmatpush1.msra.mxu0 0.0
    %1294 = vmatprep.subr.mxu0 0.0
    %1295 = vmatpush1.msra.mxu0 0.0
    %1296 = vmatprep.subr.mxu0 0.0
    %1297 = vmatpush1.msra.mxu0 0.0
    %1298 = vmatprep.subr.mxu0 0.0
    %1299 = vmatpush1.msra.mxu0 0.0
    %1300 = vmatprep.subr.mxu0 0.0
    %1301 = vmatpush1.msra.mxu0 0.0
    %1302 = vmatprep.subr.mxu0 0.0
    %1303 = vmatpush1.msra.mxu0 0.0
    %1304 = vmatprep.subr.mxu0 0.0
    %1305 = vmatpush1.msra.mxu0 0.0
    %1306 = vmatprep.subr.mxu0 0.0
    %1307 = vmatpush1.msra.mxu0 0.0
    %1308 = vmatprep.subr.mxu0 0.0
    %1309 = vmatpush1.msra.mxu0 0.0
    %1310 = vmatprep.subr.mxu0 0.0
    %1311 = vmatpush1.msra.mxu0 0.0
    %1312 = vmatprep.subr.mxu0 0.0
    %1313 = vmatpush1.msra.mxu0 0.0
    %1314 = vmatprep.subr.mxu0 0.0
    %1315 = vmatpush1.msra.mxu0 0.0
    %1316 = vmatprep.subr.mxu0 0.0
    %1317 = vmatpush1.msra.mxu0 %v1281
    %1318 = vmatprep.subr.mxu0 0.0
    %1319 = vmatpush2.msra.mxu0 0.0
    %1320 = vmatprep.subr.mxu0 0.0
    %1321 = vmatpush2.msra.mxu0 0.0
    %1322 = vmatprep.subr.mxu0 0.0
    %1323 = vmatpush2.msra.mxu0 0.0
    %1324 = vmatprep.subr.mxu0 0.0
    %1325 = vmatpush2.msra.mxu0 0.0
    %1326 = vmatprep.subr.mxu0 0.0
    %1327 = vmatpush2.msra.mxu0 0.0
    %1328 = vmatprep.subr.mxu0 0.0
    %1329 = vmatpush2.msra.mxu0 0.0
    %1330 = vmatprep.subr.mxu0 0.0
    %1331 = vmatpush2.msra.mxu0 0.0
    %1332 = vmatprep.subr.mxu0 0.0
    %1333 = vmatpush2.msra.mxu0 0.0
    %1334 = vmatprep.subr.mxu0 0.0
    %1335 = vmatpush2.msra.mxu0 0.0
    %1336 = vmatprep.subr.mxu0 0.0
    %1337 = vmatpush2.msra.mxu0 0.0
    %1338 = vmatprep.subr.mxu0 0.0
    %1339 = vmatpush2.msra.mxu0 0.0
    %1340 = vmatprep.subr.mxu0 0.0
    %1341 = vmatpush2.msra.mxu0 0.0
    %1342 = vmatprep.subr.mxu0 0.0
    %1343 = vmatpush2.msra.mxu0 0.0
    %1344 = vmatprep.subr.mxu0 0.0
    %1345 = vmatpush2.msra.mxu0 0.0
    %1346 = vmatprep.subr.mxu0 0.0
    %1347 = vmatpush2.msra.mxu0 0.0
    %1348 = vmatprep.subr.mxu0 0.0
    %1349 = vmatpush2.msra.mxu0 0.0
    %1350 = vmatprep.mubr.f32.mxu0 0.0
    %1351 = vmatmul.mubr.f32.gmra.mxu0 %v1284
    %v1352 = vpop.f32.mrf.mxu0
    %v1353 = vadd.f32 0.0, %v1352
    %v1354 = vpop.f32.mrf.mxu0
    %1355 = vdwg.mxu0
    %1356 = vrot.lane.b32.xlu0 %v192, 64
    %v1357 = vpop.permute.xlu0 %1356
    %v1360 = vsel %vm197, %v897, 0
    %1362 = vmatprep.subr.mxu0 0.0
    %1363 = vmatpush1.msra.mxu0 0.0
    %1364 = vmatprep.subr.mxu0 0.0
    %1365 = vmatpush1.msra.mxu0 0.0
    %1366 = vmatprep.subr.mxu0 0.0
    %1367 = vmatpush1.msra.mxu0 0.0
    %1368 = vmatprep.subr.mxu0 0.0
    %1369 = vmatpush1.msra.mxu0 0.0
    %1370 = vmatprep.subr.mxu0 0.0
    %1371 = vmatpush1.msra.mxu0 0.0
    %1372 = vmatprep.subr.mxu0 0.0
    %1373 = vmatpush1.msra.mxu0 0.0
    %1374 = vmatprep.subr.mxu0 0.0
    %1375 = vmatpush1.msra.mxu0 0.0
    %1376 = vmatprep.subr.mxu0 0.0
    %1377 = vmatpush1.msra.mxu0 0.0
    %1378 = vmatprep.subr.mxu0 0.0
    %1379 = vmatpush1.msra.mxu0 0.0
    %1380 = vmatprep.subr.mxu0 0.0
    %1381 = vmatpush1.msra.mxu0 0.0
    %1382 = vmatprep.subr.mxu0 0.0
    %1383 = vmatpush1.msra.mxu0 0.0
    %1384 = vmatprep.subr.mxu0 0.0
    %1385 = vmatpush1.msra.mxu0 0.0
    %1386 = vmatprep.subr.mxu0 0.0
    %1387 = vmatpush1.msra.mxu0 0.0
    %1388 = vmatprep.subr.mxu0 0.0
    %1389 = vmatpush1.msra.mxu0 0.0
    %1390 = vmatprep.subr.mxu0 0.0
    %1391 = vmatpush1.msra.mxu0 0.0
    %1392 = vmatprep.subr.mxu0 0.0
    %1393 = vmatpush1.msra.mxu0 %v1357
    %1394 = vmatprep.subr.mxu0 0.0
    %1395 = vmatpush2.msra.mxu0 0.0
    %1396 = vmatprep.subr.mxu0 0.0
    %1397 = vmatpush2.msra.mxu0 0.0
    %1398 = vmatprep.subr.mxu0 0.0
    %1399 = vmatpush2.msra.mxu0 0.0
    %1400 = vmatprep.subr.mxu0 0.0
    %1401 = vmatpush2.msra.mxu0 0.0
    %1402 = vmatprep.subr.mxu0 0.0
    %1403 = vmatpush2.msra.mxu0 0.0
    %1404 = vmatprep.subr.mxu0 0.0
    %1405 = vmatpush2.msra.mxu0 0.0
    %1406 = vmatprep.subr.mxu0 0.0
    %1407 = vmatpush2.msra.mxu0 0.0
    %1408 = vmatprep.subr.mxu0 0.0
    %1409 = vmatpush2.msra.mxu0 0.0
    %1410 = vmatprep.subr.mxu0 0.0
    %1411 = vmatpush2.msra.mxu0 0.0
    %1412 = vmatprep.subr.mxu0 0.0
    %1413 = vmatpush2.msra.mxu0 0.0
    %1414 = vmatprep.subr.mxu0 0.0
    %1415 = vmatpush2.msra.mxu0 0.0
    %1416 = vmatprep.subr.mxu0 0.0
    %1417 = vmatpush2.msra.mxu0 0.0
    %1418 = vmatprep.subr.mxu0 0.0
    %1419 = vmatpush2.msra.mxu0 0.0
    %1420 = vmatprep.subr.mxu0 0.0
    %1421 = vmatpush2.msra.mxu0 0.0
    %1422 = vmatprep.subr.mxu0 0.0
    %1423 = vmatpush2.msra.mxu0 0.0
    %1424 = vmatprep.subr.mxu0 0.0
    %1425 = vmatpush2.msra.mxu0 0.0
    %1426 = vmatprep.mubr.f32.mxu0 0.0
    %1427 = vmatmul.mubr.f32.gmra.mxu0 %v1360
    %v1428 = vpop.f32.mrf.mxu0
    %v1429 = vadd.f32 0.0, %v1428
    %v1430 = vpop.f32.mrf.mxu0
    %1431 = vdwg.mxu0
    %1432 = vrot.lane.b32.xlu0 %v194, 64
    %v1433 = vpop.permute.xlu0 %1432
    %v1436 = vsel %vm197, %v899, 0
    %1438 = vmatprep.subr.mxu0 0.0
    %1439 = vmatpush1.msra.mxu0 0.0
    %1440 = vmatprep.subr.mxu0 0.0
    %1441 = vmatpush1.msra.mxu0 0.0
    %1442 = vmatprep.subr.mxu0 0.0
    %1443 = vmatpush1.msra.mxu0 0.0
    %1444 = vmatprep.subr.mxu0 0.0
    %1445 = vmatpush1.msra.mxu0 0.0
    %1446 = vmatprep.subr.mxu0 0.0
    %1447 = vmatpush1.msra.mxu0 0.0
    %1448 = vmatprep.subr.mxu0 0.0
    %1449 = vmatpush1.msra.mxu0 0.0
    %1450 = vmatprep.subr.mxu0 0.0
    %1451 = vmatpush1.msra.mxu0 0.0
    %1452 = vmatprep.subr.mxu0 0.0
    %1453 = vmatpush1.msra.mxu0 0.0
    %1454 = vmatprep.subr.mxu0 0.0
    %1455 = vmatpush1.msra.mxu0 0.0
    %1456 = vmatprep.subr.mxu0 0.0
    %1457 = vmatpush1.msra.mxu0 0.0
    %1458 = vmatprep.subr.mxu0 0.0
    %1459 = vmatpush1.msra.mxu0 0.0
    %1460 = vmatprep.subr.mxu0 0.0
    %1461 = vmatpush1.msra.mxu0 0.0
    %1462 = vmatprep.subr.mxu0 0.0
    %1463 = vmatpush1.msra.mxu0 0.0
    %1464 = vmatprep.subr.mxu0 0.0
    %1465 = vmatpush1.msra.mxu0 0.0
    %1466 = vmatprep.subr.mxu0 0.0
    %1467 = vmatpush1.msra.mxu0 0.0
    %1468 = vmatprep.subr.mxu0 0.0
    %1469 = vmatpush1.msra.mxu0 %v1433
    %1470 = vmatprep.subr.mxu0 0.0
    %1471 = vmatpush2.msra.mxu0 0.0
    %1472 = vmatprep.subr.mxu0 0.0
    %1473 = vmatpush2.msra.mxu0 0.0
    %1474 = vmatprep.subr.mxu0 0.0
    %1475 = vmatpush2.msra.mxu0 0.0
    %1476 = vmatprep.subr.mxu0 0.0
    %1477 = vmatpush2.msra.mxu0 0.0
    %1478 = vmatprep.subr.mxu0 0.0
    %1479 = vmatpush2.msra.mxu0 0.0
    %1480 = vmatprep.subr.mxu0 0.0
    %1481 = vmatpush2.msra.mxu0 0.0
    %1482 = vmatprep.subr.mxu0 0.0
    %1483 = vmatpush2.msra.mxu0 0.0
    %1484 = vmatprep.subr.mxu0 0.0
    %1485 = vmatpush2.msra.mxu0 0.0
    %1486 = vmatprep.subr.mxu0 0.0
    %1487 = vmatpush2.msra.mxu0 0.0
    %1488 = vmatprep.subr.mxu0 0.0
    %1489 = vmatpush2.msra.mxu0 0.0
    %1490 = vmatprep.subr.mxu0 0.0
    %1491 = vmatpush2.msra.mxu0 0.0
    %1492 = vmatprep.subr.mxu0 0.0
    %1493 = vmatpush2.msra.mxu0 0.0
    %1494 = vmatprep.subr.mxu0 0.0
    %1495 = vmatpush2.msra.mxu0 0.0
    %1496 = vmatprep.subr.mxu0 0.0
    %1497 = vmatpush2.msra.mxu0 0.0
    %1498 = vmatprep.subr.mxu0 0.0
    %1499 = vmatpush2.msra.mxu0 0.0
    %1500 = vmatprep.subr.mxu0 0.0
    %1501 = vmatpush2.msra.mxu0 0.0
    %1502 = vmatprep.mubr.f32.mxu0 0.0
    %1503 = vmatmul.mubr.f32.gmra.mxu0 %v1436
    %v1504 = vpop.f32.mrf.mxu0
    %v1505 = vadd.f32 0.0, %v1504
    %v1506 = vpop.f32.mrf.mxu0
    %1507 = vdwg.mxu0
    %1510 = vrot.lane.b32.xlu0 %v1125, 8
    %v1511 = vpop.permute.xlu0 %1510
    %1512 = vrot.lane.b32.xlu0 %v1201, 8
    %v1513 = vpop.permute.xlu0 %1512
    %1518 = vrot.lane.b32.xlu0 %v1277, 16
    %v1519 = vpop.permute.xlu0 %1518
    %1520 = vrot.lane.b32.xlu0 %v1353, 16
    %v1521 = vpop.permute.xlu0 %1520
    %1526 = vrot.lane.b32.xlu0 %v1429, 24
    %v1527 = vpop.permute.xlu0 %1526
    %1528 = vrot.lane.b32.xlu0 %v1505, 24
    %v1529 = vpop.permute.xlu0 %1528
    %v1532 = vsel %vm197, %v973, %v1511
    %v1533 = vsel %vm197, %v1049, %v1513
    %vm1534 = vcmask 130048
    %v1535 = vsel %vm1534, %v1532, %v1519
    %v1536 = vsel %vm1534, %v1533, %v1521
    %vm1537 = vcmask 195584
    %v1538 = vsel %vm1537, %v1535, %v1527
    %v1539 = vsel %vm1537, %v1536, %v1529
    %v1540 = vlaneseq
    %v1541 = vshrl.u32 %v1540, 7
    %v1542 = vsub.s32 0, %v1541
    %v1543 = vrot.slane %v89, %v1542
    %v1545 = vsel %vm99, %v1538, 0
    %v1548 = vsel %vm99, %v1539, 0
    %1550 = vmatprep.subr.mxu0 0.0
    %1551 = vmatpush1.msra.mxu0 0.0
    %1552 = vmatprep.subr.mxu0 0.0
    %1553 = vmatpush1.msra.mxu0 0.0
    %1554 = vmatprep.subr.mxu0 0.0
    %1555 = vmatpush1.msra.mxu0 0.0
    %1556 = vmatprep.subr.mxu0 0.0
    %1557 = vmatpush1.msra.mxu0 0.0
    %1558 = vmatprep.subr.mxu0 0.0
    %1559 = vmatpush1.msra.mxu0 0.0
    %1560 = vmatprep.subr.mxu0 0.0
    %1561 = vmatpush1.msra.mxu0 0.0
    %1562 = vmatprep.subr.mxu0 0.0
    %1563 = vmatpush1.msra.mxu0 0.0
    %1564 = vmatprep.subr.mxu0 0.0
    %1565 = vmatpush1.msra.mxu0 0.0
    %1566 = vmatprep.subr.mxu0 0.0
    %1567 = vmatpush1.msra.mxu0 0.0
    %1568 = vmatprep.subr.mxu0 0.0
    %1569 = vmatpush1.msra.mxu0 0.0
    %1570 = vmatprep.subr.mxu0 0.0
    %1571 = vmatpush1.msra.mxu0 0.0
    %1572 = vmatprep.subr.mxu0 0.0
    %1573 = vmatpush1.msra.mxu0 0.0
    %1574 = vmatprep.subr.mxu0 0.0
    %1575 = vmatpush1.msra.mxu0 %v75
    %1576 = vmatprep.subr.mxu0 0.0
    %1577 = vmatpush1.msra.mxu0 %v69
    %1578 = vmatprep.subr.mxu0 0.0
    %1579 = vmatpush1.msra.mxu0 %v63
    %1580 = vmatprep.subr.mxu0 0.0
    %1581 = vmatpush1.msra.mxu0 %v57
    %1582 = vmatprep.subr.mxu0 0.0
    %1583 = vmatpush2.msra.mxu0 0.0
    %1584 = vmatprep.subr.mxu0 0.0
    %1585 = vmatpush2.msra.mxu0 0.0
    %1586 = vmatprep.subr.mxu0 0.0
    %1587 = vmatpush2.msra.mxu0 0.0
    %1588 = vmatprep.subr.mxu0 0.0
    %1589 = vmatpush2.msra.mxu0 0.0
    %1590 = vmatprep.subr.mxu0 0.0
    %1591 = vmatpush2.msra.mxu0 0.0
    %1592 = vmatprep.subr.mxu0 0.0
    %1593 = vmatpush2.msra.mxu0 0.0
    %1594 = vmatprep.subr.mxu0 0.0
    %1595 = vmatpush2.msra.mxu0 0.0
    %1596 = vmatprep.subr.mxu0 0.0
    %1597 = vmatpush2.msra.mxu0 0.0
    %1598 = vmatprep.subr.mxu0 0.0
    %1599 = vmatpush2.msra.mxu0 0.0
    %1600 = vmatprep.subr.mxu0 0.0
    %1601 = vmatpush2.msra.mxu0 0.0
    %1602 = vmatprep.subr.mxu0 0.0
    %1603 = vmatpush2.msra.mxu0 0.0
    %1604 = vmatprep.subr.mxu0 0.0
    %1605 = vmatpush2.msra.mxu0 0.0
    %1606 = vmatprep.subr.mxu0 0.0
    %1607 = vmatpush2.msra.mxu0 0.0
    %1608 = vmatprep.subr.mxu0 0.0
    %1609 = vmatpush2.msra.mxu0 0.0
    %1610 = vmatprep.subr.mxu0 0.0
    %1611 = vmatpush2.msra.mxu0 0.0
    %1612 = vmatprep.subr.mxu0 0.0
    %1613 = vmatpush2.msra.mxu0 0.0
    %1614 = vmatprep.mubr.f32.mxu0 0.0
    %1615 = vmatmul.mubr.f32.gmra.mxu0 %v1545
    %v1616 = vpop.f32.mrf.mxu0
    %v1617 = vadd.f32 %v1543, %v1616
    %v1618 = vpop.f32.mrf.mxu0
    %1619 = vmatprep.mubr.f32.mxu0 0.0
    %1620 = vmatmul.mubr.f32.gmra.mxu0 %v1548
    %v1621 = vpop.f32.mrf.mxu0
    %v1622 = vadd.f32 %v1543, %v1621
    %v1623 = vpop.f32.mrf.mxu0
    %1624 = vdwg.mxu0
    %v1625 = vadd.f32 %v50, %v1617
    %v1626 = vadd.f32 %v51, %v1622
    %v1627 = vsel %vm99, %v1625, 0.0
    %1628 = vadd.xlane.f32.xlu0 %v1627
    %v1629 = vpop.xlane.xlu0 %1628
    %v1630 = vsel %vm99, %v1626, 0.0
    %1631 = vadd.xlane.f32.xlu0 %v1630
    %v1632 = vpop.xlane.xlu0 %1631
    %v1633 = vrcp.pop 32.0
    %v1634 = vmul.f32 %v1629, %v1633
    %v1635 = vmul.f32 %v1632, %v1633
    %v1636 = vsub.f32 %v1625, %v1634
    %v1637 = vsub.f32 %v1626, %v1635
    %v1638 = vmul.f32 %v1636, %v1636
    %v1639 = vmul.f32 %v1637, %v1637
    %v1640 = vsel %vm99, %v1638, 0.0
    %1641 = vadd.xlane.f32.xlu0 %v1640
    %v1642 = vpop.xlane.xlu0 %1641
    %v1643 = vsel %vm99, %v1639, 0.0
    %1644 = vadd.xlane.f32.xlu0 %v1643
    %v1645 = vpop.xlane.xlu0 %1644
    %v1646 = vmul.f32 %v1642, %v1633
    %v1647 = vmul.f32 %v1645, %v1633
    %v1648 = vadd.f32 %v1646, 1e-05
    %v1649 = vadd.f32 %v1647, 1e-05
    %v1650 = vrsqrt.pop %v1648
    %v1651 = vrsqrt.pop %v1649
    %v1652 = vmul.f32 %v1636, %v1650
    %v1653 = vmul.f32 %v1637, %v1651
    %v1654 = vlaneseq
    %v1655 = vshrl.u32 %v1654, 7
    %v1656 = vsub.s32 1, %v1655
    %v1657 = vrot.slane %v88, %v1656
    %v1658 = vmul.f32 %v1652, %v1657
    %v1659 = vmul.f32 %v1653, %v1657
    %v1660 = vlaneseq
    %v1661 = vshrl.u32 %v1660, 7
    %v1662 = vsub.s32 2, %v1661
    %v1663 = vrot.slane %v88, %v1662
    %v1664 = vadd.f32 %v1658, %v1663
    %v1665 = vadd.f32 %v1659, %v1663
    %v1666 = vlaneseq
    %v1667 = vshrl.u32 %v1666, 7
    %v1668 = vsub.s32 0, %v1667
    %v1669 = vrot.slane %v90, %v1668
    %v1671 = vsel %vm99, %v1664, 0
    %v1674 = vsel %vm99, %v1665, 0
    %1676 = vmatprep.subr.mxu0 0.0
    %1677 = vmatpush1.msra.mxu0 0.0
    %1678 = vmatprep.subr.mxu0 0.0
    %1679 = vmatpush1.msra.mxu0 0.0
    %1680 = vmatprep.subr.mxu0 0.0
    %1681 = vmatpush1.msra.mxu0 0.0
    %1682 = vmatprep.subr.mxu0 0.0
    %1683 = vmatpush1.msra.mxu0 0.0
    %1684 = vmatprep.subr.mxu0 0.0
    %1685 = vmatpush1.msra.mxu0 0.0
    %1686 = vmatprep.subr.mxu0 0.0
    %1687 = vmatpush1.msra.mxu0 0.0
    %1688 = vmatprep.subr.mxu0 0.0
    %1689 = vmatpush1.msra.mxu0 0.0
    %1690 = vmatprep.subr.mxu0 0.0
    %1691 = vmatpush1.msra.mxu0 0.0
    %1692 = vmatprep.subr.mxu0 0.0
    %1693 = vmatpush1.msra.mxu0 0.0
    %1694 = vmatprep.subr.mxu0 0.0
    %1695 = vmatpush1.msra.mxu0 0.0
    %1696 = vmatprep.subr.mxu0 0.0
    %1697 = vmatpush1.msra.mxu0 0.0
    %1698 = vmatprep.subr.mxu0 0.0
    %1699 = vmatpush1.msra.mxu0 0.0
    %1700 = vmatprep.subr.mxu0 0.0
    %1701 = vmatpush1.msra.mxu0 %v76
    %1702 = vmatprep.subr.mxu0 0.0
    %1703 = vmatpush1.msra.mxu0 %v70
    %1704 = vmatprep.subr.mxu0 0.0
    %1705 = vmatpush1.msra.mxu0 %v64
    %1706 = vmatprep.subr.mxu0 0.0
    %1707 = vmatpush1.msra.mxu0 %v58
    %1708 = vmatprep.subr.mxu0 0.0
    %1709 = vmatpush2.msra.mxu0 0.0
    %1710 = vmatprep.subr.mxu0 0.0
    %1711 = vmatpush2.msra.mxu0 0.0
    %1712 = vmatprep.subr.mxu0 0.0
    %1713 = vmatpush2.msra.mxu0 0.0
    %1714 = vmatprep.subr.mxu0 0.0
    %1715 = vmatpush2.msra.mxu0 0.0
    %1716 = vmatprep.subr.mxu0 0.0
    %1717 = vmatpush2.msra.mxu0 0.0
    %1718 = vmatprep.subr.mxu0 0.0
    %1719 = vmatpush2.msra.mxu0 0.0
    %1720 = vmatprep.subr.mxu0 0.0
    %1721 = vmatpush2.msra.mxu0 0.0
    %1722 = vmatprep.subr.mxu0 0.0
    %1723 = vmatpush2.msra.mxu0 0.0
    %1724 = vmatprep.subr.mxu0 0.0
    %1725 = vmatpush2.msra.mxu0 0.0
    %1726 = vmatprep.subr.mxu0 0.0
    %1727 = vmatpush2.msra.mxu0 0.0
    %1728 = vmatprep.subr.mxu0 0.0
    %1729 = vmatpush2.msra.mxu0 0.0
    %1730 = vmatprep.subr.mxu0 0.0
    %1731 = vmatpush2.msra.mxu0 0.0
    %1732 = vmatprep.subr.mxu0 0.0
    %1733 = vmatpush2.msra.mxu0 0.0
    %1734 = vmatprep.subr.mxu0 0.0
    %1735 = vmatpush2.msra.mxu0 0.0
    %1736 = vmatprep.subr.mxu0 0.0
    %1737 = vmatpush2.msra.mxu0 0.0
    %1738 = vmatprep.subr.mxu0 0.0
    %1739 = vmatpush2.msra.mxu0 0.0
    %1740 = vmatprep.mubr.f32.mxu0 0.0
    %1741 = vmatmul.mubr.f32.gmra.mxu0 %v1671
    %v1742 = vpop.f32.mrf.mxu0
    %v1743 = vadd.f32 %v1669, %v1742
    %v1744 = vpop.f32.mrf.mxu0
    %1745 = vmatprep.mubr.f32.mxu0 0.0
    %1746 = vmatmul.mubr.f32.gmra.mxu0 %v1674
    %v1747 = vpop.f32.mrf.mxu0
    %v1748 = vadd.f32 %v1669, %v1747
    %v1749 = vpop.f32.mrf.mxu0
    %1750 = vdwg.mxu0
    %v1751 = vlaneseq
    %v1752 = vshrl.u32 %v1751, 7
    %v1753 = vsub.s32 0, %v1752
    %v1754 = vrot.slane %v91, %v1753
    %v1756 = vsel %vm99, %v52, 0
    %v1759 = vsel %vm99, %v53, 0
    %v1762 = vsel %vm99, %v54, 0
    %v1765 = vsel %vm99, %v55, 0
    %1767 = vmatprep.subr.mxu0 0.0
    %1768 = vmatpush1.msra.mxu0 0.0
    %1769 = vmatprep.subr.mxu0 0.0
    %1770 = vmatpush1.msra.mxu0 0.0
    %1771 = vmatprep.subr.mxu0 0.0
    %1772 = vmatpush1.msra.mxu0 0.0
    %1773 = vmatprep.subr.mxu0 0.0
    %1774 = vmatpush1.msra.mxu0 0.0
    %1775 = vmatprep.subr.mxu0 0.0
    %1776 = vmatpush1.msra.mxu0 0.0
    %1777 = vmatprep.subr.mxu0 0.0
    %1778 = vmatpush1.msra.mxu0 0.0
    %1779 = vmatprep.subr.mxu0 0.0
    %1780 = vmatpush1.msra.mxu0 0.0
    %1781 = vmatprep.subr.mxu0 0.0
    %1782 = vmatpush1.msra.mxu0 0.0
    %1783 = vmatprep.subr.mxu0 0.0
    %1784 = vmatpush1.msra.mxu0 0.0
    %1785 = vmatprep.subr.mxu0 0.0
    %1786 = vmatpush1.msra.mxu0 0.0
    %1787 = vmatprep.subr.mxu0 0.0
    %1788 = vmatpush1.msra.mxu0 0.0
    %1789 = vmatprep.subr.mxu0 0.0
    %1790 = vmatpush1.msra.mxu0 0.0
    %1791 = vmatprep.subr.mxu0 0.0
    %1792 = vmatpush1.msra.mxu0 %v77
    %1793 = vmatprep.subr.mxu0 0.0
    %1794 = vmatpush1.msra.mxu0 %v71
    %1795 = vmatprep.subr.mxu0 0.0
    %1796 = vmatpush1.msra.mxu0 %v65
    %1797 = vmatprep.subr.mxu0 0.0
    %1798 = vmatpush1.msra.mxu0 %v59
    %1799 = vmatprep.subr.mxu0 0.0
    %1800 = vmatpush2.msra.mxu0 0.0
    %1801 = vmatprep.subr.mxu0 0.0
    %1802 = vmatpush2.msra.mxu0 0.0
    %1803 = vmatprep.subr.mxu0 0.0
    %1804 = vmatpush2.msra.mxu0 0.0
    %1805 = vmatprep.subr.mxu0 0.0
    %1806 = vmatpush2.msra.mxu0 0.0
    %1807 = vmatprep.subr.mxu0 0.0
    %1808 = vmatpush2.msra.mxu0 0.0
    %1809 = vmatprep.subr.mxu0 0.0
    %1810 = vmatpush2.msra.mxu0 0.0
    %1811 = vmatprep.subr.mxu0 0.0
    %1812 = vmatpush2.msra.mxu0 0.0
    %1813 = vmatprep.subr.mxu0 0.0
    %1814 = vmatpush2.msra.mxu0 0.0
    %1815 = vmatprep.subr.mxu0 0.0
    %1816 = vmatpush2.msra.mxu0 0.0
    %1817 = vmatprep.subr.mxu0 0.0
    %1818 = vmatpush2.msra.mxu0 0.0
    %1819 = vmatprep.subr.mxu0 0.0
    %1820 = vmatpush2.msra.mxu0 0.0
    %1821 = vmatprep.subr.mxu0 0.0
    %1822 = vmatpush2.msra.mxu0 0.0
    %1823 = vmatprep.subr.mxu0 0.0
    %1824 = vmatpush2.msra.mxu0 0.0
    %1825 = vmatprep.subr.mxu0 0.0
    %1826 = vmatpush2.msra.mxu0 0.0
    %1827 = vmatprep.subr.mxu0 0.0
    %1828 = vmatpush2.msra.mxu0 0.0
    %1829 = vmatprep.subr.mxu0 0.0
    %1830 = vmatpush2.msra.mxu0 0.0
    %1831 = vmatprep.mubr.f32.mxu0 0.0
    %1832 = vmatmul.mubr.f32.gmra.mxu0 %v1756
    %v1833 = vpop.f32.mrf.mxu0
    %v1834 = vadd.f32 %v1754, %v1833
    %v1835 = vpop.f32.mrf.mxu0
    %1836 = vmatprep.mubr.f32.mxu0 0.0
    %1837 = vmatmul.mubr.f32.gmra.mxu0 %v1759
    %v1838 = vpop.f32.mrf.mxu0
    %v1839 = vadd.f32 %v1754, %v1838
    %v1840 = vpop.f32.mrf.mxu0
    %1841 = vmatprep.mubr.f32.mxu0 0.0
    %1842 = vmatmul.mubr.f32.gmra.mxu0 %v1762
    %v1843 = vpop.f32.mrf.mxu0
    %v1844 = vadd.f32 %v1754, %v1843
    %v1845 = vpop.f32.mrf.mxu0
    %1846 = vmatprep.mubr.f32.mxu0 0.0
    %1847 = vmatmul.mubr.f32.gmra.mxu0 %v1765
    %v1848 = vpop.f32.mrf.mxu0
    %v1849 = vadd.f32 %v1754, %v1848
    %v1850 = vpop.f32.mrf.mxu0
    %1851 = vdwg.mxu0
    %1854 = vrot.lane.b32.xlu0 %v1743, 120
    %v1855 = vpop.permute.xlu0 %1854
    %1856 = vrot.lane.b32.xlu0 %v1748, 120
    %v1857 = vpop.permute.xlu0 %1856
    %1858 = vrot.lane.b32.xlu0 %v1743, 112
    %v1859 = vpop.permute.xlu0 %1858
    %1860 = vrot.lane.b32.xlu0 %v1748, 112
    %v1861 = vpop.permute.xlu0 %1860
    %1862 = vrot.lane.b32.xlu0 %v1743, 104
    %v1863 = vpop.permute.xlu0 %1862
    %1864 = vrot.lane.b32.xlu0 %v1748, 104
    %v1865 = vpop.permute.xlu0 %1864
    %1870 = vrot.lane.b32.xlu0 %v1834, 120
    %v1871 = vpop.permute.xlu0 %1870
    %1872 = vrot.lane.b32.xlu0 %v1839, 120
    %v1873 = vpop.permute.xlu0 %1872
    %1874 = vrot.lane.b32.xlu0 %v1844, 120
    %v1875 = vpop.permute.xlu0 %1874
    %1876 = vrot.lane.b32.xlu0 %v1849, 120
    %v1877 = vpop.permute.xlu0 %1876
    %1878 = vrot.lane.b32.xlu0 %v1834, 112
    %v1879 = vpop.permute.xlu0 %1878
    %1880 = vrot.lane.b32.xlu0 %v1839, 112
    %v1881 = vpop.permute.xlu0 %1880
    %1882 = vrot.lane.b32.xlu0 %v1844, 112
    %v1883 = vpop.permute.xlu0 %1882
    %1884 = vrot.lane.b32.xlu0 %v1849, 112
    %v1885 = vpop.permute.xlu0 %1884
    %1886 = vrot.lane.b32.xlu0 %v1834, 104
    %v1887 = vpop.permute.xlu0 %1886
    %1888 = vrot.lane.b32.xlu0 %v1839, 104
    %v1889 = vpop.permute.xlu0 %1888
    %1890 = vrot.lane.b32.xlu0 %v1844, 104
    %v1891 = vpop.permute.xlu0 %1890
    %1892 = vrot.lane.b32.xlu0 %v1849, 104
    %v1893 = vpop.permute.xlu0 %1892
    %v1894 = vsel %vm197, %v1743, 0
    %v1896 = vsel %vm197, %v1834, 0
    %v1898 = vsel %vm197, %v1839, 0
    %1900 = vmatprep.subr.mxu0 0.0
    %1901 = vmatpush1.xpose.msra.mxu0 0.0
    %1902 = vmatprep.subr.mxu0 0.0
    %1903 = vmatpush1.xpose.msra.mxu0 0.0
    %1904 = vmatprep.subr.mxu0 0.0
    %1905 = vmatpush1.xpose.msra.mxu0 0.0
    %1906 = vmatprep.subr.mxu0 0.0
    %1907 = vmatpush1.xpose.msra.mxu0 0.0
    %1908 = vmatprep.subr.mxu0 0.0
    %1909 = vmatpush1.xpose.msra.mxu0 0.0
    %1910 = vmatprep.subr.mxu0 0.0
    %1911 = vmatpush1.xpose.msra.mxu0 0.0
    %1912 = vmatprep.subr.mxu0 0.0
    %1913 = vmatpush1.xpose.msra.mxu0 0.0
    %1914 = vmatprep.subr.mxu0 0.0
    %1915 = vmatpush1.xpose.msra.mxu0 0.0
    %1916 = vmatprep.subr.mxu0 0.0
    %1917 = vmatpush1.xpose.msra.mxu0 0.0
    %1918 = vmatprep.subr.mxu0 0.0
    %1919 = vmatpush1.xpose.msra.mxu0 0.0
    %1920 = vmatprep.subr.mxu0 0.0
    %1921 = vmatpush1.xpose.msra.mxu0 0.0
    %1922 = vmatprep.subr.mxu0 0.0
    %1923 = vmatpush1.xpose.msra.mxu0 0.0
    %1924 = vmatprep.subr.mxu0 0.0
    %1925 = vmatpush1.xpose.msra.mxu0 0.0
    %1926 = vmatprep.subr.mxu0 0.0
    %1927 = vmatpush1.xpose.msra.mxu0 0.0
    %1928 = vmatprep.subr.mxu0 0.0
    %1929 = vmatpush1.xpose.msra.mxu0 %v1898
    %1930 = vmatprep.subr.mxu0 0.0
    %1931 = vmatpush1.xpose.msra.mxu0 %v1896
    %1932 = vmatprep.subr.mxu0 0.0
    %1933 = vmatpush2.xpose.msra.mxu0 0.0
    %1934 = vmatprep.subr.mxu0 0.0
    %1935 = vmatpush2.xpose.msra.mxu0 0.0
    %1936 = vmatprep.subr.mxu0 0.0
    %1937 = vmatpush2.xpose.msra.mxu0 0.0
    %1938 = vmatprep.subr.mxu0 0.0
    %1939 = vmatpush2.xpose.msra.mxu0 0.0
    %1940 = vmatprep.subr.mxu0 0.0
    %1941 = vmatpush2.xpose.msra.mxu0 0.0
    %1942 = vmatprep.subr.mxu0 0.0
    %1943 = vmatpush2.xpose.msra.mxu0 0.0
    %1944 = vmatprep.subr.mxu0 0.0
    %1945 = vmatpush2.xpose.msra.mxu0 0.0
    %1946 = vmatprep.subr.mxu0 0.0
    %1947 = vmatpush2.xpose.msra.mxu0 0.0
    %1948 = vmatprep.subr.mxu0 0.0
    %1949 = vmatpush2.xpose.msra.mxu0 0.0
    %1950 = vmatprep.subr.mxu0 0.0
    %1951 = vmatpush2.xpose.msra.mxu0 0.0
    %1952 = vmatprep.subr.mxu0 0.0
    %1953 = vmatpush2.xpose.msra.mxu0 0.0
    %1954 = vmatprep.subr.mxu0 0.0
    %1955 = vmatpush2.xpose.msra.mxu0 0.0
    %1956 = vmatprep.subr.mxu0 0.0
    %1957 = vmatpush2.xpose.msra.mxu0 0.0
    %1958 = vmatprep.subr.mxu0 0.0
    %1959 = vmatpush2.xpose.msra.mxu0 0.0
    %1960 = vmatprep.subr.mxu0 0.0
    %1961 = vmatpush2.xpose.msra.mxu0 0.0
    %1962 = vmatprep.subr.mxu0 0.0
    %1963 = vmatpush2.xpose.msra.mxu0 0.0
    %1964 = vmatprep.mubr.f32.mxu0 0.0
    %1965 = vmatmul.mubr.f32.gmra.mxu0 %v1894
    %v1966 = vpop.f32.mrf.mxu0
    %v1967 = vadd.f32 0.0, %v1966
    %v1968 = vpop.f32.mrf.mxu0
    %1969 = vdwg.mxu0
    %v1970 = vsel %vm197, %v1748, 0
    %v1972 = vsel %vm197, %v1844, 0
    %v1974 = vsel %vm197, %v1849, 0
    %1976 = vmatprep.subr.mxu0 0.0
    %1977 = vmatpush1.xpose.msra.mxu0 0.0
    %1978 = vmatprep.subr.mxu0 0.0
    %1979 = vmatpush1.xpose.msra.mxu0 0.0
    %1980 = vmatprep.subr.mxu0 0.0
    %1981 = vmatpush1.xpose.msra.mxu0 0.0
    %1982 = vmatprep.subr.mxu0 0.0
    %1983 = vmatpush1.xpose.msra.mxu0 0.0
    %1984 = vmatprep.subr.mxu0 0.0
    %1985 = vmatpush1.xpose.msra.mxu0 0.0
    %1986 = vmatprep.subr.mxu0 0.0
    %1987 = vmatpush1.xpose.msra.mxu0 0.0
    %1988 = vmatprep.subr.mxu0 0.0
    %1989 = vmatpush1.xpose.msra.mxu0 0.0
    %1990 = vmatprep.subr.mxu0 0.0
    %1991 = vmatpush1.xpose.msra.mxu0 0.0
    %1992 = vmatprep.subr.mxu0 0.0
    %1993 = vmatpush1.xpose.msra.mxu0 0.0
    %1994 = vmatprep.subr.mxu0 0.0
    %1995 = vmatpush1.xpose.msra.mxu0 0.0
    %1996 = vmatprep.subr.mxu0 0.0
    %1997 = vmatpush1.xpose.msra.mxu0 0.0
    %1998 = vmatprep.subr.mxu0 0.0
    %1999 = vmatpush1.xpose.msra.mxu0 0.0
    %2000 = vmatprep.subr.mxu0 0.0
    %2001 = vmatpush1.xpose.msra.mxu0 0.0
    %2002 = vmatprep.subr.mxu0 0.0
    %2003 = vmatpush1.xpose.msra.mxu0 0.0
    %2004 = vmatprep.subr.mxu0 0.0
    %2005 = vmatpush1.xpose.msra.mxu0 %v1974
    %2006 = vmatprep.subr.mxu0 0.0
    %2007 = vmatpush1.xpose.msra.mxu0 %v1972
    %2008 = vmatprep.subr.mxu0 0.0
    %2009 = vmatpush2.xpose.msra.mxu0 0.0
    %2010 = vmatprep.subr.mxu0 0.0
    %2011 = vmatpush2.xpose.msra.mxu0 0.0
    %2012 = vmatprep.subr.mxu0 0.0
    %2013 = vmatpush2.xpose.msra.mxu0 0.0
    %2014 = vmatprep.subr.mxu0 0.0
    %2015 = vmatpush2.xpose.msra.mxu0 0.0
    %2016 = vmatprep.subr.mxu0 0.0
    %2017 = vmatpush2.xpose.msra.mxu0 0.0
    %2018 = vmatprep.subr.mxu0 0.0
    %2019 = vmatpush2.xpose.msra.mxu0 0.0
    %2020 = vmatprep.subr.mxu0 0.0
    %2021 = vmatpush2.xpose.msra.mxu0 0.0
    %2022 = vmatprep.subr.mxu0 0.0
    %2023 = vmatpush2.xpose.msra.mxu0 0.0
    %2024 = vmatprep.subr.mxu0 0.0
    %2025 = vmatpush2.xpose.msra.mxu0 0.0
    %2026 = vmatprep.subr.mxu0 0.0
    %2027 = vmatpush2.xpose.msra.mxu0 0.0
    %2028 = vmatprep.subr.mxu0 0.0
    %2029 = vmatpush2.xpose.msra.mxu0 0.0
    %2030 = vmatprep.subr.mxu0 0.0
    %2031 = vmatpush2.xpose.msra.mxu0 0.0
    %2032 = vmatprep.subr.mxu0 0.0
    %2033 = vmatpush2.xpose.msra.mxu0 0.0
    %2034 = vmatprep.subr.mxu0 0.0
    %2035 = vmatpush2.xpose.msra.mxu0 0.0
    %2036 = vmatprep.subr.mxu0 0.0
    %2037 = vmatpush2.xpose.msra.mxu0 0.0
    %2038 = vmatprep.subr.mxu0 0.0
    %2039 = vmatpush2.xpose.msra.mxu0 0.0
    %2040 = vmatprep.mubr.f32.mxu0 0.0
    %2041 = vmatmul.mubr.f32.gmra.mxu0 %v1970
    %v2042 = vpop.f32.mrf.mxu0
    %v2043 = vadd.f32 0.0, %v2042
    %v2044 = vpop.f32.mrf.mxu0
    %2045 = vdwg.mxu0
    %v2046 = vsel %vm197, %v1855, 0
    %v2048 = vsel %vm197, %v1871, 0
    %v2050 = vsel %vm197, %v1873, 0
    %2052 = vmatprep.subr.mxu0 0.0
    %2053 = vmatpush1.xpose.msra.mxu0 0.0
    %2054 = vmatprep.subr.mxu0 0.0
    %2055 = vmatpush1.xpose.msra.mxu0 0.0
    %2056 = vmatprep.subr.mxu0 0.0
    %2057 = vmatpush1.xpose.msra.mxu0 0.0
    %2058 = vmatprep.subr.mxu0 0.0
    %2059 = vmatpush1.xpose.msra.mxu0 0.0
    %2060 = vmatprep.subr.mxu0 0.0
    %2061 = vmatpush1.xpose.msra.mxu0 0.0
    %2062 = vmatprep.subr.mxu0 0.0
    %2063 = vmatpush1.xpose.msra.mxu0 0.0
    %2064 = vmatprep.subr.mxu0 0.0
    %2065 = vmatpush1.xpose.msra.mxu0 0.0
    %2066 = vmatprep.subr.mxu0 0.0
    %2067 = vmatpush1.xpose.msra.mxu0 0.0
    %2068 = vmatprep.subr.mxu0 0.0
    %2069 = vmatpush1.xpose.msra.mxu0 0.0
    %2070 = vmatprep.subr.mxu0 0.0
    %2071 = vmatpush1.xpose.msra.mxu0 0.0
    %2072 = vmatprep.subr.mxu0 0.0
    %2073 = vmatpush1.xpose.msra.mxu0 0.0
    %2074 = vmatprep.subr.mxu0 0.0
    %2075 = vmatpush1.xpose.msra.mxu0 0.0
    %2076 = vmatprep.subr.mxu0 0.0
    %2077 = vmatpush1.xpose.msra.mxu0 0.0
    %2078 = vmatprep.subr.mxu0 0.0
    %2079 = vmatpush1.xpose.msra.mxu0 0.0
    %2080 = vmatprep.subr.mxu0 0.0
    %2081 = vmatpush1.xpose.msra.mxu0 %v2050
    %2082 = vmatprep.subr.mxu0 0.0
    %2083 = vmatpush1.xpose.msra.mxu0 %v2048
    %2084 = vmatprep.subr.mxu0 0.0
    %2085 = vmatpush2.xpose.msra.mxu0 0.0
    %2086 = vmatprep.subr.mxu0 0.0
    %2087 = vmatpush2.xpose.msra.mxu0 0.0
    %2088 = vmatprep.subr.mxu0 0.0
    %2089 = vmatpush2.xpose.msra.mxu0 0.0
    %2090 = vmatprep.subr.mxu0 0.0
    %2091 = vmatpush2.xpose.msra.mxu0 0.0
    %2092 = vmatprep.subr.mxu0 0.0
    %2093 = vmatpush2.xpose.msra.mxu0 0.0
    %2094 = vmatprep.subr.mxu0 0.0
    %2095 = vmatpush2.xpose.msra.mxu0 0.0
    %2096 = vmatprep.subr.mxu0 0.0
    %2097 = vmatpush2.xpose.msra.mxu0 0.0
    %2098 = vmatprep.subr.mxu0 0.0
    %2099 = vmatpush2.xpose.msra.mxu0 0.0
    %2100 = vmatprep.subr.mxu0 0.0
    %2101 = vmatpush2.xpose.msra.mxu0 0.0
    %2102 = vmatprep.subr.mxu0 0.0
    %2103 = vmatpush2.xpose.msra.mxu0 0.0
    %2104 = vmatprep.subr.mxu0 0.0
    %2105 = vmatpush2.xpose.msra.mxu0 0.0
    %2106 = vmatprep.subr.mxu0 0.0
    %2107 = vmatpush2.xpose.msra.mxu0 0.0
    %2108 = vmatprep.subr.mxu0 0.0
    %2109 = vmatpush2.xpose.msra.mxu0 0.0
    %2110 = vmatprep.subr.mxu0 0.0
    %2111 = vmatpush2.xpose.msra.mxu0 0.0
    %2112 = vmatprep.subr.mxu0 0.0
    %2113 = vmatpush2.xpose.msra.mxu0 0.0
    %2114 = vmatprep.subr.mxu0 0.0
    %2115 = vmatpush2.xpose.msra.mxu0 0.0
    %2116 = vmatprep.mubr.f32.mxu0 0.0
    %2117 = vmatmul.mubr.f32.gmra.mxu0 %v2046
    %v2118 = vpop.f32.mrf.mxu0
    %v2119 = vadd.f32 0.0, %v2118
    %v2120 = vpop.f32.mrf.mxu0
    %2121 = vdwg.mxu0
    %v2122 = vsel %vm197, %v1857, 0
    %v2124 = vsel %vm197, %v1875, 0
    %v2126 = vsel %vm197, %v1877, 0
    %2128 = vmatprep.subr.mxu0 0.0
    %2129 = vmatpush1.xpose.msra.mxu0 0.0
    %2130 = vmatprep.subr.mxu0 0.0
    %2131 = vmatpush1.xpose.msra.mxu0 0.0
    %2132 = vmatprep.subr.mxu0 0.0
    %2133 = vmatpush1.xpose.msra.mxu0 0.0
    %2134 = vmatprep.subr.mxu0 0.0
    %2135 = vmatpush1.xpose.msra.mxu0 0.0
    %2136 = vmatprep.subr.mxu0 0.0
    %2137 = vmatpush1.xpose.msra.mxu0 0.0
    %2138 = vmatprep.subr.mxu0 0.0
    %2139 = vmatpush1.xpose.msra.mxu0 0.0
    %2140 = vmatprep.subr.mxu0 0.0
    %2141 = vmatpush1.xpose.msra.mxu0 0.0
    %2142 = vmatprep.subr.mxu0 0.0
    %2143 = vmatpush1.xpose.msra.mxu0 0.0
    %2144 = vmatprep.subr.mxu0 0.0
    %2145 = vmatpush1.xpose.msra.mxu0 0.0
    %2146 = vmatprep.subr.mxu0 0.0
    %2147 = vmatpush1.xpose.msra.mxu0 0.0
    %2148 = vmatprep.subr.mxu0 0.0
    %2149 = vmatpush1.xpose.msra.mxu0 0.0
    %2150 = vmatprep.subr.mxu0 0.0
    %2151 = vmatpush1.xpose.msra.mxu0 0.0
    %2152 = vmatprep.subr.mxu0 0.0
    %2153 = vmatpush1.xpose.msra.mxu0 0.0
    %2154 = vmatprep.subr.mxu0 0.0
    %2155 = vmatpush1.xpose.msra.mxu0 0.0
    %2156 = vmatprep.subr.mxu0 0.0
    %2157 = vmatpush1.xpose.msra.mxu0 %v2126
    %2158 = vmatprep.subr.mxu0 0.0
    %2159 = vmatpush1.xpose.msra.mxu0 %v2124
    %2160 = vmatprep.subr.mxu0 0.0
    %2161 = vmatpush2.xpose.msra.mxu0 0.0
    %2162 = vmatprep.subr.mxu0 0.0
    %2163 = vmatpush2.xpose.msra.mxu0 0.0
    %2164 = vmatprep.subr.mxu0 0.0
    %2165 = vmatpush2.xpose.msra.mxu0 0.0
    %2166 = vmatprep.subr.mxu0 0.0
    %2167 = vmatpush2.xpose.msra.mxu0 0.0
    %2168 = vmatprep.subr.mxu0 0.0
    %2169 = vmatpush2.xpose.msra.mxu0 0.0
    %2170 = vmatprep.subr.mxu0 0.0
    %2171 = vmatpush2.xpose.msra.mxu0 0.0
    %2172 = vmatprep.subr.mxu0 0.0
    %2173 = vmatpush2.xpose.msra.mxu0 0.0
    %2174 = vmatprep.subr.mxu0 0.0
    %2175 = vmatpush2.xpose.msra.mxu0 0.0
    %2176 = vmatprep.subr.mxu0 0.0
    %2177 = vmatpush2.xpose.msra.mxu0 0.0
    %2178 = vmatprep.subr.mxu0 0.0
    %2179 = vmatpush2.xpose.msra.mxu0 0.0
    %2180 = vmatprep.subr.mxu0 0.0
    %2181 = vmatpush2.xpose.msra.mxu0 0.0
    %2182 = vmatprep.subr.mxu0 0.0
    %2183 = vmatpush2.xpose.msra.mxu0 0.0
    %2184 = vmatprep.subr.mxu0 0.0
    %2185 = vmatpush2.xpose.msra.mxu0 0.0
    %2186 = vmatprep.subr.mxu0 0.0
    %2187 = vmatpush2.xpose.msra.mxu0 0.0
    %2188 = vmatprep.subr.mxu0 0.0
    %2189 = vmatpush2.xpose.msra.mxu0 0.0
    %2190 = vmatprep.subr.mxu0 0.0
    %2191 = vmatpush2.xpose.msra.mxu0 0.0
    %2192 = vmatprep.mubr.f32.mxu0 0.0
    %2193 = vmatmul.mubr.f32.gmra.mxu0 %v2122
    %v2194 = vpop.f32.mrf.mxu0
    %v2195 = vadd.f32 0.0, %v2194
    %v2196 = vpop.f32.mrf.mxu0
    %2197 = vdwg.mxu0
    %v2198 = vsel %vm197, %v1859, 0
    %v2200 = vsel %vm197, %v1879, 0
    %v2202 = vsel %vm197, %v1881, 0
    %2204 = vmatprep.subr.mxu0 0.0
    %2205 = vmatpush1.xpose.msra.mxu0 0.0
    %2206 = vmatprep.subr.mxu0 0.0
    %2207 = vmatpush1.xpose.msra.mxu0 0.0
    %2208 = vmatprep.subr.mxu0 0.0
    %2209 = vmatpush1.xpose.msra.mxu0 0.0
    %2210 = vmatprep.subr.mxu0 0.0
    %2211 = vmatpush1.xpose.msra.mxu0 0.0
    %2212 = vmatprep.subr.mxu0 0.0
    %2213 = vmatpush1.xpose.msra.mxu0 0.0
    %2214 = vmatprep.subr.mxu0 0.0
    %2215 = vmatpush1.xpose.msra.mxu0 0.0
    %2216 = vmatprep.subr.mxu0 0.0
    %2217 = vmatpush1.xpose.msra.mxu0 0.0
    %2218 = vmatprep.subr.mxu0 0.0
    %2219 = vmatpush1.xpose.msra.mxu0 0.0
    %2220 = vmatprep.subr.mxu0 0.0
    %2221 = vmatpush1.xpose.msra.mxu0 0.0
    %2222 = vmatprep.subr.mxu0 0.0
    %2223 = vmatpush1.xpose.msra.mxu0 0.0
    %2224 = vmatprep.subr.mxu0 0.0
    %2225 = vmatpush1.xpose.msra.mxu0 0.0
    %2226 = vmatprep.subr.mxu0 0.0
    %2227 = vmatpush1.xpose.msra.mxu0 0.0
    %2228 = vmatprep.subr.mxu0 0.0
    %2229 = vmatpush1.xpose.msra.mxu0 0.0
    %2230 = vmatprep.subr.mxu0 0.0
    %2231 = vmatpush1.xpose.msra.mxu0 0.0
    %2232 = vmatprep.subr.mxu0 0.0
    %2233 = vmatpush1.xpose.msra.mxu0 %v2202
    %2234 = vmatprep.subr.mxu0 0.0
    %2235 = vmatpush1.xpose.msra.mxu0 %v2200
    %2236 = vmatprep.subr.mxu0 0.0
    %2237 = vmatpush2.xpose.msra.mxu0 0.0
    %2238 = vmatprep.subr.mxu0 0.0
    %2239 = vmatpush2.xpose.msra.mxu0 0.0
    %2240 = vmatprep.subr.mxu0 0.0
    %2241 = vmatpush2.xpose.msra.mxu0 0.0
    %2242 = vmatprep.subr.mxu0 0.0
    %2243 = vmatpush2.xpose.msra.mxu0 0.0
    %2244 = vmatprep.subr.mxu0 0.0
    %2245 = vmatpush2.xpose.msra.mxu0 0.0
    %2246 = vmatprep.subr.mxu0 0.0
    %2247 = vmatpush2.xpose.msra.mxu0 0.0
    %2248 = vmatprep.subr.mxu0 0.0
    %2249 = vmatpush2.xpose.msra.mxu0 0.0
    %2250 = vmatprep.subr.mxu0 0.0
    %2251 = vmatpush2.xpose.msra.mxu0 0.0
    %2252 = vmatprep.subr.mxu0 0.0
    %2253 = vmatpush2.xpose.msra.mxu0 0.0
    %2254 = vmatprep.subr.mxu0 0.0
    %2255 = vmatpush2.xpose.msra.mxu0 0.0
    %2256 = vmatprep.subr.mxu0 0.0
    %2257 = vmatpush2.xpose.msra.mxu0 0.0
    %2258 = vmatprep.subr.mxu0 0.0
    %2259 = vmatpush2.xpose.msra.mxu0 0.0
    %2260 = vmatprep.subr.mxu0 0.0
    %2261 = vmatpush2.xpose.msra.mxu0 0.0
    %2262 = vmatprep.subr.mxu0 0.0
    %2263 = vmatpush2.xpose.msra.mxu0 0.0
    %2264 = vmatprep.subr.mxu0 0.0
    %2265 = vmatpush2.xpose.msra.mxu0 0.0
    %2266 = vmatprep.subr.mxu0 0.0
    %2267 = vmatpush2.xpose.msra.mxu0 0.0
    %2268 = vmatprep.mubr.f32.mxu0 0.0
    %2269 = vmatmul.mubr.f32.gmra.mxu0 %v2198
    %v2270 = vpop.f32.mrf.mxu0
    %v2271 = vadd.f32 0.0, %v2270
    %v2272 = vpop.f32.mrf.mxu0
    %2273 = vdwg.mxu0
    %v2274 = vsel %vm197, %v1861, 0
    %v2276 = vsel %vm197, %v1883, 0
    %v2278 = vsel %vm197, %v1885, 0
    %2280 = vmatprep.subr.mxu0 0.0
    %2281 = vmatpush1.xpose.msra.mxu0 0.0
    %2282 = vmatprep.subr.mxu0 0.0
    %2283 = vmatpush1.xpose.msra.mxu0 0.0
    %2284 = vmatprep.subr.mxu0 0.0
    %2285 = vmatpush1.xpose.msra.mxu0 0.0
    %2286 = vmatprep.subr.mxu0 0.0
    %2287 = vmatpush1.xpose.msra.mxu0 0.0
    %2288 = vmatprep.subr.mxu0 0.0
    %2289 = vmatpush1.xpose.msra.mxu0 0.0
    %2290 = vmatprep.subr.mxu0 0.0
    %2291 = vmatpush1.xpose.msra.mxu0 0.0
    %2292 = vmatprep.subr.mxu0 0.0
    %2293 = vmatpush1.xpose.msra.mxu0 0.0
    %2294 = vmatprep.subr.mxu0 0.0
    %2295 = vmatpush1.xpose.msra.mxu0 0.0
    %2296 = vmatprep.subr.mxu0 0.0
    %2297 = vmatpush1.xpose.msra.mxu0 0.0
    %2298 = vmatprep.subr.mxu0 0.0
    %2299 = vmatpush1.xpose.msra.mxu0 0.0
    %2300 = vmatprep.subr.mxu0 0.0
    %2301 = vmatpush1.xpose.msra.mxu0 0.0
    %2302 = vmatprep.subr.mxu0 0.0
    %2303 = vmatpush1.xpose.msra.mxu0 0.0
    %2304 = vmatprep.subr.mxu0 0.0
    %2305 = vmatpush1.xpose.msra.mxu0 0.0
    %2306 = vmatprep.subr.mxu0 0.0
    %2307 = vmatpush1.xpose.msra.mxu0 0.0
    %2308 = vmatprep.subr.mxu0 0.0
    %2309 = vmatpush1.xpose.msra.mxu0 %v2278
    %2310 = vmatprep.subr.mxu0 0.0
    %2311 = vmatpush1.xpose.msra.mxu0 %v2276
    %2312 = vmatprep.subr.mxu0 0.0
    %2313 = vmatpush2.xpose.msra.mxu0 0.0
    %2314 = vmatprep.subr.mxu0 0.0
    %2315 = vmatpush2.xpose.msra.mxu0 0.0
    %2316 = vmatprep.subr.mxu0 0.0
    %2317 = vmatpush2.xpose.msra.mxu0 0.0
    %2318 = vmatprep.subr.mxu0 0.0
    %2319 = vmatpush2.xpose.msra.mxu0 0.0
    %2320 = vmatprep.subr.mxu0 0.0
    %2321 = vmatpush2.xpose.msra.mxu0 0.0
    %2322 = vmatprep.subr.mxu0 0.0
    %2323 = vmatpush2.xpose.msra.mxu0 0.0
    %2324 = vmatprep.subr.mxu0 0.0
    %2325 = vmatpush2.xpose.msra.mxu0 0.0
    %2326 = vmatprep.subr.mxu0 0.0
    %2327 = vmatpush2.xpose.msra.mxu0 0.0
    %2328 = vmatprep.subr.mxu0 0.0
    %2329 = vmatpush2.xpose.msra.mxu0 0.0
    %2330 = vmatprep.subr.mxu0 0.0
    %2331 = vmatpush2.xpose.msra.mxu0 0.0
    %2332 = vmatprep.subr.mxu0 0.0
    %2333 = vmatpush2.xpose.msra.mxu0 0.0
    %2334 = vmatprep.subr.mxu0 0.0
    %2335 = vmatpush2.xpose.msra.mxu0 0.0
    %2336 = vmatprep.subr.mxu0 0.0
    %2337 = vmatpush2.xpose.msra.mxu0 0.0
    %2338 = vmatprep.subr.mxu0 0.0
    %2339 = vmatpush2.xpose.msra.mxu0 0.0
    %2340 = vmatprep.subr.mxu0 0.0
    %2341 = vmatpush2.xpose.msra.mxu0 0.0
    %2342 = vmatprep.subr.mxu0 0.0
    %2343 = vmatpush2.xpose.msra.mxu0 0.0
    %2344 = vmatprep.mubr.f32.mxu0 0.0
    %2345 = vmatmul.mubr.f32.gmra.mxu0 %v2274
    %v2346 = vpop.f32.mrf.mxu0
    %v2347 = vadd.f32 0.0, %v2346
    %v2348 = vpop.f32.mrf.mxu0
    %2349 = vdwg.mxu0
    %v2350 = vsel %vm197, %v1863, 0
    %v2352 = vsel %vm197, %v1887, 0
    %v2354 = vsel %vm197, %v1889, 0
    %2356 = vmatprep.subr.mxu0 0.0
    %2357 = vmatpush1.xpose.msra.mxu0 0.0
    %2358 = vmatprep.subr.mxu0 0.0
    %2359 = vmatpush1.xpose.msra.mxu0 0.0
    %2360 = vmatprep.subr.mxu0 0.0
    %2361 = vmatpush1.xpose.msra.mxu0 0.0
    %2362 = vmatprep.subr.mxu0 0.0
    %2363 = vmatpush1.xpose.msra.mxu0 0.0
    %2364 = vmatprep.subr.mxu0 0.0
    %2365 = vmatpush1.xpose.msra.mxu0 0.0
    %2366 = vmatprep.subr.mxu0 0.0
    %2367 = vmatpush1.xpose.msra.mxu0 0.0
    %2368 = vmatprep.subr.mxu0 0.0
    %2369 = vmatpush1.xpose.msra.mxu0 0.0
    %2370 = vmatprep.subr.mxu0 0.0
    %2371 = vmatpush1.xpose.msra.mxu0 0.0
    %2372 = vmatprep.subr.mxu0 0.0
    %2373 = vmatpush1.xpose.msra.mxu0 0.0
    %2374 = vmatprep.subr.mxu0 0.0
    %2375 = vmatpush1.xpose.msra.mxu0 0.0
    %2376 = vmatprep.subr.mxu0 0.0
    %2377 = vmatpush1.xpose.msra.mxu0 0.0
    %2378 = vmatprep.subr.mxu0 0.0
    %2379 = vmatpush1.xpose.msra.mxu0 0.0
    %2380 = vmatprep.subr.mxu0 0.0
    %2381 = vmatpush1.xpose.msra.mxu0 0.0
    %2382 = vmatprep.subr.mxu0 0.0
    %2383 = vmatpush1.xpose.msra.mxu0 0.0
    %2384 = vmatprep.subr.mxu0 0.0
    %2385 = vmatpush1.xpose.msra.mxu0 %v2354
    %2386 = vmatprep.subr.mxu0 0.0
    %2387 = vmatpush1.xpose.msra.mxu0 %v2352
    %2388 = vmatprep.subr.mxu0 0.0
    %2389 = vmatpush2.xpose.msra.mxu0 0.0
    %2390 = vmatprep.subr.mxu0 0.0
    %2391 = vmatpush2.xpose.msra.mxu0 0.0
    %2392 = vmatprep.subr.mxu0 0.0
    %2393 = vmatpush2.xpose.msra.mxu0 0.0
    %2394 = vmatprep.subr.mxu0 0.0
    %2395 = vmatpush2.xpose.msra.mxu0 0.0
    %2396 = vmatprep.subr.mxu0 0.0
    %2397 = vmatpush2.xpose.msra.mxu0 0.0
    %2398 = vmatprep.subr.mxu0 0.0
    %2399 = vmatpush2.xpose.msra.mxu0 0.0
    %2400 = vmatprep.subr.mxu0 0.0
    %2401 = vmatpush2.xpose.msra.mxu0 0.0
    %2402 = vmatprep.subr.mxu0 0.0
    %2403 = vmatpush2.xpose.msra.mxu0 0.0
    %2404 = vmatprep.subr.mxu0 0.0
    %2405 = vmatpush2.xpose.msra.mxu0 0.0
    %2406 = vmatprep.subr.mxu0 0.0
    %2407 = vmatpush2.xpose.msra.mxu0 0.0
    %2408 = vmatprep.subr.mxu0 0.0
    %2409 = vmatpush2.xpose.msra.mxu0 0.0
    %2410 = vmatprep.subr.mxu0 0.0
    %2411 = vmatpush2.xpose.msra.mxu0 0.0
    %2412 = vmatprep.subr.mxu0 0.0
    %2413 = vmatpush2.xpose.msra.mxu0 0.0
    %2414 = vmatprep.subr.mxu0 0.0
    %2415 = vmatpush2.xpose.msra.mxu0 0.0
    %2416 = vmatprep.subr.mxu0 0.0
    %2417 = vmatpush2.xpose.msra.mxu0 0.0
    %2418 = vmatprep.subr.mxu0 0.0
    %2419 = vmatpush2.xpose.msra.mxu0 0.0
    %2420 = vmatprep.mubr.f32.mxu0 0.0
    %2421 = vmatmul.mubr.f32.gmra.mxu0 %v2350
    %v2422 = vpop.f32.mrf.mxu0
    %v2423 = vadd.f32 0.0, %v2422
    %v2424 = vpop.f32.mrf.mxu0
    %2425 = vdwg.mxu0
    %v2426 = vsel %vm197, %v1865, 0
    %v2428 = vsel %vm197, %v1891, 0
    %v2430 = vsel %vm197, %v1893, 0
    %2432 = vmatprep.subr.mxu0 0.0
    %2433 = vmatpush1.xpose.msra.mxu0 0.0
    %2434 = vmatprep.subr.mxu0 0.0
    %2435 = vmatpush1.xpose.msra.mxu0 0.0
    %2436 = vmatprep.subr.mxu0 0.0
    %2437 = vmatpush1.xpose.msra.mxu0 0.0
    %2438 = vmatprep.subr.mxu0 0.0
    %2439 = vmatpush1.xpose.msra.mxu0 0.0
    %2440 = vmatprep.subr.mxu0 0.0
    %2441 = vmatpush1.xpose.msra.mxu0 0.0
    %2442 = vmatprep.subr.mxu0 0.0
    %2443 = vmatpush1.xpose.msra.mxu0 0.0
    %2444 = vmatprep.subr.mxu0 0.0
    %2445 = vmatpush1.xpose.msra.mxu0 0.0
    %2446 = vmatprep.subr.mxu0 0.0
    %2447 = vmatpush1.xpose.msra.mxu0 0.0
    %2448 = vmatprep.subr.mxu0 0.0
    %2449 = vmatpush1.xpose.msra.mxu0 0.0
    %2450 = vmatprep.subr.mxu0 0.0
    %2451 = vmatpush1.xpose.msra.mxu0 0.0
    %2452 = vmatprep.subr.mxu0 0.0
    %2453 = vmatpush1.xpose.msra.mxu0 0.0
    %2454 = vmatprep.subr.mxu0 0.0
    %2455 = vmatpush1.xpose.msra.mxu0 0.0
    %2456 = vmatprep.subr.mxu0 0.0
    %2457 = vmatpush1.xpose.msra.mxu0 0.0
    %2458 = vmatprep.subr.mxu0 0.0
    %2459 = vmatpush1.xpose.msra.mxu0 0.0
    %2460 = vmatprep.subr.mxu0 0.0
    %2461 = vmatpush1.xpose.msra.mxu0 %v2430
    %2462 = vmatprep.subr.mxu0 0.0
    %2463 = vmatpush1.xpose.msra.mxu0 %v2428
    %2464 = vmatprep.subr.mxu0 0.0
    %2465 = vmatpush2.xpose.msra.mxu0 0.0
    %2466 = vmatprep.subr.mxu0 0.0
    %2467 = vmatpush2.xpose.msra.mxu0 0.0
    %2468 = vmatprep.subr.mxu0 0.0
    %2469 = vmatpush2.xpose.msra.mxu0 0.0
    %2470 = vmatprep.subr.mxu0 0.0
    %2471 = vmatpush2.xpose.msra.mxu0 0.0
    %2472 = vmatprep.subr.mxu0 0.0
    %2473 = vmatpush2.xpose.msra.mxu0 0.0
    %2474 = vmatprep.subr.mxu0 0.0
    %2475 = vmatpush2.xpose.msra.mxu0 0.0
    %2476 = vmatprep.subr.mxu0 0.0
    %2477 = vmatpush2.xpose.msra.mxu0 0.0
    %2478 = vmatprep.subr.mxu0 0.0
    %2479 = vmatpush2.xpose.msra.mxu0 0.0
    %2480 = vmatprep.subr.mxu0 0.0
    %2481 = vmatpush2.xpose.msra.mxu0 0.0
    %2482 = vmatprep.subr.mxu0 0.0
    %2483 = vmatpush2.xpose.msra.mxu0 0.0
    %2484 = vmatprep.subr.mxu0 0.0
    %2485 = vmatpush2.xpose.msra.mxu0 0.0
    %2486 = vmatprep.subr.mxu0 0.0
    %2487 = vmatpush2.xpose.msra.mxu0 0.0
    %2488 = vmatprep.subr.mxu0 0.0
    %2489 = vmatpush2.xpose.msra.mxu0 0.0
    %2490 = vmatprep.subr.mxu0 0.0
    %2491 = vmatpush2.xpose.msra.mxu0 0.0
    %2492 = vmatprep.subr.mxu0 0.0
    %2493 = vmatpush2.xpose.msra.mxu0 0.0
    %2494 = vmatprep.subr.mxu0 0.0
    %2495 = vmatpush2.xpose.msra.mxu0 0.0
    %2496 = vmatprep.mubr.f32.mxu0 0.0
    %2497 = vmatmul.mubr.f32.gmra.mxu0 %v2426
    %v2498 = vpop.f32.mrf.mxu0
    %v2499 = vadd.f32 0.0, %v2498
    %v2500 = vpop.f32.mrf.mxu0
    %2501 = vdwg.mxu0
    %v2502 = vmul.f32 %v1967, 0.35355338
    %v2503 = vmul.f32 %v2043, 0.35355338
    %v2504 = vmul.f32 %v2119, 0.35355338
    %v2505 = vmul.f32 %v2195, 0.35355338
    %v2506 = vmul.f32 %v2271, 0.35355338
    %v2507 = vmul.f32 %v2347, 0.35355338
    %v2508 = vmul.f32 %v2423, 0.35355338
    %v2509 = vmul.f32 %v2499, 0.35355338
    %v2510 = vsel %vm1534, %v2502, -inf
    %2511 = vmax.xlane.f32.xlu0 %v2510
    %v2512 = vpop.xlane.xlu0 %2511
    %v2513 = vsel %vm1534, %v2503, -inf
    %2514 = vmax.xlane.f32.xlu0 %v2513
    %v2515 = vpop.xlane.xlu0 %2514
    %v2516 = vsel %vm1534, %v2504, -inf
    %2517 = vmax.xlane.f32.xlu0 %v2516
    %v2518 = vpop.xlane.xlu0 %2517
    %v2519 = vsel %vm1534, %v2505, -inf
    %2520 = vmax.xlane.f32.xlu0 %v2519
    %v2521 = vpop.xlane.xlu0 %2520
    %v2522 = vsel %vm1534, %v2506, -inf
    %2523 = vmax.xlane.f32.xlu0 %v2522
    %v2524 = vpop.xlane.xlu0 %2523
    %v2525 = vsel %vm1534, %v2507, -inf
    %2526 = vmax.xlane.f32.xlu0 %v2525
    %v2527 = vpop.xlane.xlu0 %2526
    %v2528 = vsel %vm1534, %v2508, -inf
    %2529 = vmax.xlane.f32.xlu0 %v2528
    %v2530 = vpop.xlane.xlu0 %2529
    %v2531 = vsel %vm1534, %v2509, -inf
    %2532 = vmax.xlane.f32.xlu0 %v2531
    %v2533 = vpop.xlane.xlu0 %2532
    %v2534 = vsub.f32 %v2502, %v2512
    %v2535 = vsub.f32 %v2503, %v2515
    %v2536 = vsub.f32 %v2504, %v2518
    %v2537 = vsub.f32 %v2505, %v2521
    %v2538 = vsub.f32 %v2506, %v2524
    %v2539 = vsub.f32 %v2507, %v2527
    %v2540 = vsub.f32 %v2508, %v2530
    %v2541 = vsub.f32 %v2509, %v2533
    %v2542 = vmul.f32 %v2534, 1.442695
    %v2543 = vpow.pop %v2542
    %v2544 = vmul.f32 %v2535, 1.442695
    %v2545 = vpow.pop %v2544
    %v2546 = vmul.f32 %v2536, 1.442695
    %v2547 = vpow.pop %v2546
    %v2548 = vmul.f32 %v2537, 1.442695
    %v2549 = vpow.pop %v2548
    %v2550 = vmul.f32 %v2538, 1.442695
    %v2551 = vpow.pop %v2550
    %v2552 = vmul.f32 %v2539, 1.442695
    %v2553 = vpow.pop %v2552
    %v2554 = vmul.f32 %v2540, 1.442695
    %v2555 = vpow.pop %v2554
    %v2556 = vmul.f32 %v2541, 1.442695
    %v2557 = vpow.pop %v2556
    %v2558 = vsel %vm1534, %v2543, 0.0
    %2559 = vadd.xlane.f32.xlu0 %v2558
    %v2560 = vpop.xlane.xlu0 %2559
    %v2561 = vsel %vm1534, %v2545, 0.0
    %2562 = vadd.xlane.f32.xlu0 %v2561
    %v2563 = vpop.xlane.xlu0 %2562
    %v2564 = vsel %vm1534, %v2547, 0.0
    %2565 = vadd.xlane.f32.xlu0 %v2564
    %v2566 = vpop.xlane.xlu0 %2565
    %v2567 = vsel %vm1534, %v2549, 0.0
    %2568 = vadd.xlane.f32.xlu0 %v2567
    %v2569 = vpop.xlane.xlu0 %2568
    %v2570 = vsel %vm1534, %v2551, 0.0
    %2571 = vadd.xlane.f32.xlu0 %v2570
    %v2572 = vpop.xlane.xlu0 %2571
    %v2573 = vsel %vm1534, %v2553, 0.0
    %2574 = vadd.xlane.f32.xlu0 %v2573
    %v2575 = vpop.xlane.xlu0 %2574
    %v2576 = vsel %vm1534, %v2555, 0.0
    %2577 = vadd.xlane.f32.xlu0 %v2576
    %v2578 = vpop.xlane.xlu0 %2577
    %v2579 = vsel %vm1534, %v2557, 0.0
    %2580 = vadd.xlane.f32.xlu0 %v2579
    %v2581 = vpop.xlane.xlu0 %2580
    %v2582 = vrcp.pop %v2560
    %v2583 = vmul.f32 %v2543, %v2582
    %v2584 = vrcp.pop %v2563
    %v2585 = vmul.f32 %v2545, %v2584
    %v2586 = vrcp.pop %v2566
    %v2587 = vmul.f32 %v2547, %v2586
    %v2588 = vrcp.pop %v2569
    %v2589 = vmul.f32 %v2549, %v2588
    %v2590 = vrcp.pop %v2572
    %v2591 = vmul.f32 %v2551, %v2590
    %v2592 = vrcp.pop %v2575
    %v2593 = vmul.f32 %v2553, %v2592
    %v2594 = vrcp.pop %v2578
    %v2595 = vmul.f32 %v2555, %v2594
    %v2596 = vrcp.pop %v2581
    %v2597 = vmul.f32 %v2557, %v2596
    %2598 = vrot.lane.b32.xlu0 %v1834, 96
    %v2599 = vpop.permute.xlu0 %2598
    %2600 = vrot.lane.b32.xlu0 %v1839, 96
    %v2601 = vpop.permute.xlu0 %2600
    %v2605 = vsel %vm1534, %v2583, 0
    %2607 = vmatprep.subr.mxu0 0.0
    %2608 = vmatpush1.msra.mxu0 0.0
    %2609 = vmatprep.subr.mxu0 0.0
    %2610 = vmatpush1.msra.mxu0 0.0
    %2611 = vmatprep.subr.mxu0 0.0
    %2612 = vmatpush1.msra.mxu0 0.0
    %2613 = vmatprep.subr.mxu0 0.0
    %2614 = vmatpush1.msra.mxu0 0.0
    %2615 = vmatprep.subr.mxu0 0.0
    %2616 = vmatpush1.msra.mxu0 0.0
    %2617 = vmatprep.subr.mxu0 0.0
    %2618 = vmatpush1.msra.mxu0 0.0
    %2619 = vmatprep.subr.mxu0 0.0
    %2620 = vmatpush1.msra.mxu0 0.0
    %2621 = vmatprep.subr.mxu0 0.0
    %2622 = vmatpush1.msra.mxu0 0.0
    %2623 = vmatprep.subr.mxu0 0.0
    %2624 = vmatpush1.msra.mxu0 0.0
    %2625 = vmatprep.subr.mxu0 0.0
    %2626 = vmatpush1.msra.mxu0 0.0
    %2627 = vmatprep.subr.mxu0 0.0
    %2628 = vmatpush1.msra.mxu0 0.0
    %2629 = vmatprep.subr.mxu0 0.0
    %2630 = vmatpush1.msra.mxu0 0.0
    %2631 = vmatprep.subr.mxu0 0.0
    %2632 = vmatpush1.msra.mxu0 0.0
    %2633 = vmatprep.subr.mxu0 0.0
    %2634 = vmatpush1.msra.mxu0 0.0
    %2635 = vmatprep.subr.mxu0 0.0
    %2636 = vmatpush1.msra.mxu0 %v2601
    %2637 = vmatprep.subr.mxu0 0.0
    %2638 = vmatpush1.msra.mxu0 %v2599
    %2639 = vmatprep.subr.mxu0 0.0
    %2640 = vmatpush2.msra.mxu0 0.0
    %2641 = vmatprep.subr.mxu0 0.0
    %2642 = vmatpush2.msra.mxu0 0.0
    %2643 = vmatprep.subr.mxu0 0.0
    %2644 = vmatpush2.msra.mxu0 0.0
    %2645 = vmatprep.subr.mxu0 0.0
    %2646 = vmatpush2.msra.mxu0 0.0
    %2647 = vmatprep.subr.mxu0 0.0
    %2648 = vmatpush2.msra.mxu0 0.0
    %2649 = vmatprep.subr.mxu0 0.0
    %2650 = vmatpush2.msra.mxu0 0.0
    %2651 = vmatprep.subr.mxu0 0.0
    %2652 = vmatpush2.msra.mxu0 0.0
    %2653 = vmatprep.subr.mxu0 0.0
    %2654 = vmatpush2.msra.mxu0 0.0
    %2655 = vmatprep.subr.mxu0 0.0
    %2656 = vmatpush2.msra.mxu0 0.0
    %2657 = vmatprep.subr.mxu0 0.0
    %2658 = vmatpush2.msra.mxu0 0.0
    %2659 = vmatprep.subr.mxu0 0.0
    %2660 = vmatpush2.msra.mxu0 0.0
    %2661 = vmatprep.subr.mxu0 0.0
    %2662 = vmatpush2.msra.mxu0 0.0
    %2663 = vmatprep.subr.mxu0 0.0
    %2664 = vmatpush2.msra.mxu0 0.0
    %2665 = vmatprep.subr.mxu0 0.0
    %2666 = vmatpush2.msra.mxu0 0.0
    %2667 = vmatprep.subr.mxu0 0.0
    %2668 = vmatpush2.msra.mxu0 0.0
    %2669 = vmatprep.subr.mxu0 0.0
    %2670 = vmatpush2.msra.mxu0 0.0
    %2671 = vmatprep.mubr.f32.mxu0 0.0
    %2672 = vmatmul.mubr.f32.gmra.mxu0 %v2605
    %v2673 = vpop.f32.mrf.mxu0
    %v2674 = vadd.f32 0.0, %v2673
    %v2675 = vpop.f32.mrf.mxu0
    %2676 = vdwg.mxu0
    %2677 = vrot.lane.b32.xlu0 %v1844, 96
    %v2678 = vpop.permute.xlu0 %2677
    %2679 = vrot.lane.b32.xlu0 %v1849, 96
    %v2680 = vpop.permute.xlu0 %2679
    %v2684 = vsel %vm1534, %v2585, 0
    %2686 = vmatprep.subr.mxu0 0.0
    %2687 = vmatpush1.msra.mxu0 0.0
    %2688 = vmatprep.subr.mxu0 0.0
    %2689 = vmatpush1.msra.mxu0 0.0
    %2690 = vmatprep.subr.mxu0 0.0
    %2691 = vmatpush1.msra.mxu0 0.0
    %2692 = vmatprep.subr.mxu0 0.0
    %2693 = vmatpush1.msra.mxu0 0.0
    %2694 = vmatprep.subr.mxu0 0.0
    %2695 = vmatpush1.msra.mxu0 0.0
    %2696 = vmatprep.subr.mxu0 0.0
    %2697 = vmatpush1.msra.mxu0 0.0
    %2698 = vmatprep.subr.mxu0 0.0
    %2699 = vmatpush1.msra.mxu0 0.0
    %2700 = vmatprep.subr.mxu0 0.0
    %2701 = vmatpush1.msra.mxu0 0.0
    %2702 = vmatprep.subr.mxu0 0.0
    %2703 = vmatpush1.msra.mxu0 0.0
    %2704 = vmatprep.subr.mxu0 0.0
    %2705 = vmatpush1.msra.mxu0 0.0
    %2706 = vmatprep.subr.mxu0 0.0
    %2707 = vmatpush1.msra.mxu0 0.0
    %2708 = vmatprep.subr.mxu0 0.0
    %2709 = vmatpush1.msra.mxu0 0.0
    %2710 = vmatprep.subr.mxu0 0.0
    %2711 = vmatpush1.msra.mxu0 0.0
    %2712 = vmatprep.subr.mxu0 0.0
    %2713 = vmatpush1.msra.mxu0 0.0
    %2714 = vmatprep.subr.mxu0 0.0
    %2715 = vmatpush1.msra.mxu0 %v2680
    %2716 = vmatprep.subr.mxu0 0.0
    %2717 = vmatpush1.msra.mxu0 %v2678
    %2718 = vmatprep.subr.mxu0 0.0
    %2719 = vmatpush2.msra.mxu0 0.0
    %2720 = vmatprep.subr.mxu0 0.0
    %2721 = vmatpush2.msra.mxu0 0.0
    %2722 = vmatprep.subr.mxu0 0.0
    %2723 = vmatpush2.msra.mxu0 0.0
    %2724 = vmatprep.subr.mxu0 0.0
    %2725 = vmatpush2.msra.mxu0 0.0
    %2726 = vmatprep.subr.mxu0 0.0
    %2727 = vmatpush2.msra.mxu0 0.0
    %2728 = vmatprep.subr.mxu0 0.0
    %2729 = vmatpush2.msra.mxu0 0.0
    %2730 = vmatprep.subr.mxu0 0.0
    %2731 = vmatpush2.msra.mxu0 0.0
    %2732 = vmatprep.subr.mxu0 0.0
    %2733 = vmatpush2.msra.mxu0 0.0
    %2734 = vmatprep.subr.mxu0 0.0
    %2735 = vmatpush2.msra.mxu0 0.0
    %2736 = vmatprep.subr.mxu0 0.0
    %2737 = vmatpush2.msra.mxu0 0.0
    %2738 = vmatprep.subr.mxu0 0.0
    %2739 = vmatpush2.msra.mxu0 0.0
    %2740 = vmatprep.subr.mxu0 0.0
    %2741 = vmatpush2.msra.mxu0 0.0
    %2742 = vmatprep.subr.mxu0 0.0
    %2743 = vmatpush2.msra.mxu0 0.0
    %2744 = vmatprep.subr.mxu0 0.0
    %2745 = vmatpush2.msra.mxu0 0.0
    %2746 = vmatprep.subr.mxu0 0.0
    %2747 = vmatpush2.msra.mxu0 0.0
    %2748 = vmatprep.subr.mxu0 0.0
    %2749 = vmatpush2.msra.mxu0 0.0
    %2750 = vmatprep.mubr.f32.mxu0 0.0
    %2751 = vmatmul.mubr.f32.gmra.mxu0 %v2684
    %v2752 = vpop.f32.mrf.mxu0
    %v2753 = vadd.f32 0.0, %v2752
    %v2754 = vpop.f32.mrf.mxu0
    %2755 = vdwg.mxu0
    %2756 = vrot.lane.b32.xlu0 %v1871, 96
    %v2757 = vpop.permute.xlu0 %2756
    %2758 = vrot.lane.b32.xlu0 %v1873, 96
    %v2759 = vpop.permute.xlu0 %2758
    %v2763 = vsel %vm1534, %v2587, 0
    %2765 = vmatprep.subr.mxu0 0.0
    %2766 = vmatpush1.msra.mxu0 0.0
    %2767 = vmatprep.subr.mxu0 0.0
    %2768 = vmatpush1.msra.mxu0 0.0
    %2769 = vmatprep.subr.mxu0 0.0
    %2770 = vmatpush1.msra.mxu0 0.0
    %2771 = vmatprep.subr.mxu0 0.0
    %2772 = vmatpush1.msra.mxu0 0.0
    %2773 = vmatprep.subr.mxu0 0.0
    %2774 = vmatpush1.msra.mxu0 0.0
    %2775 = vmatprep.subr.mxu0 0.0
    %2776 = vmatpush1.msra.mxu0 0.0
    %2777 = vmatprep.subr.mxu0 0.0
    %2778 = vmatpush1.msra.mxu0 0.0
    %2779 = vmatprep.subr.mxu0 0.0
    %2780 = vmatpush1.msra.mxu0 0.0
    %2781 = vmatprep.subr.mxu0 0.0
    %2782 = vmatpush1.msra.mxu0 0.0
    %2783 = vmatprep.subr.mxu0 0.0
    %2784 = vmatpush1.msra.mxu0 0.0
    %2785 = vmatprep.subr.mxu0 0.0
    %2786 = vmatpush1.msra.mxu0 0.0
    %2787 = vmatprep.subr.mxu0 0.0
    %2788 = vmatpush1.msra.mxu0 0.0
    %2789 = vmatprep.subr.mxu0 0.0
    %2790 = vmatpush1.msra.mxu0 0.0
    %2791 = vmatprep.subr.mxu0 0.0
    %2792 = vmatpush1.msra.mxu0 0.0
    %2793 = vmatprep.subr.mxu0 0.0
    %2794 = vmatpush1.msra.mxu0 %v2759
    %2795 = vmatprep.subr.mxu0 0.0
    %2796 = vmatpush1.msra.mxu0 %v2757
    %2797 = vmatprep.subr.mxu0 0.0
    %2798 = vmatpush2.msra.mxu0 0.0
    %2799 = vmatprep.subr.mxu0 0.0
    %2800 = vmatpush2.msra.mxu0 0.0
    %2801 = vmatprep.subr.mxu0 0.0
    %2802 = vmatpush2.msra.mxu0 0.0
    %2803 = vmatprep.subr.mxu0 0.0
    %2804 = vmatpush2.msra.mxu0 0.0
    %2805 = vmatprep.subr.mxu0 0.0
    %2806 = vmatpush2.msra.mxu0 0.0
    %2807 = vmatprep.subr.mxu0 0.0
    %2808 = vmatpush2.msra.mxu0 0.0
    %2809 = vmatprep.subr.mxu0 0.0
    %2810 = vmatpush2.msra.mxu0 0.0
    %2811 = vmatprep.subr.mxu0 0.0
    %2812 = vmatpush2.msra.mxu0 0.0
    %2813 = vmatprep.subr.mxu0 0.0
    %2814 = vmatpush2.msra.mxu0 0.0
    %2815 = vmatprep.subr.mxu0 0.0
    %2816 = vmatpush2.msra.mxu0 0.0
    %2817 = vmatprep.subr.mxu0 0.0
    %2818 = vmatpush2.msra.mxu0 0.0
    %2819 = vmatprep.subr.mxu0 0.0
    %2820 = vmatpush2.msra.mxu0 0.0
    %2821 = vmatprep.subr.mxu0 0.0
    %2822 = vmatpush2.msra.mxu0 0.0
    %2823 = vmatprep.subr.mxu0 0.0
    %2824 = vmatpush2.msra.mxu0 0.0
    %2825 = vmatprep.subr.mxu0 0.0
    %2826 = vmatpush2.msra.mxu0 0.0
    %2827 = vmatprep.subr.mxu0 0.0
    %2828 = vmatpush2.msra.mxu0 0.0
    %2829 = vmatprep.mubr.f32.mxu0 0.0
    %2830 = vmatmul.mubr.f32.gmra.mxu0 %v2763
    %v2831 = vpop.f32.mrf.mxu0
    %v2832 = vadd.f32 0.0, %v2831
    %v2833 = vpop.f32.mrf.mxu0
    %2834 = vdwg.mxu0
    %2835 = vrot.lane.b32.xlu0 %v1875, 96
    %v2836 = vpop.permute.xlu0 %2835
    %2837 = vrot.lane.b32.xlu0 %v1877, 96
    %v2838 = vpop.permute.xlu0 %2837
    %v2842 = vsel %vm1534, %v2589, 0
    %2844 = vmatprep.subr.mxu0 0.0
    %2845 = vmatpush1.msra.mxu0 0.0
    %2846 = vmatprep.subr.mxu0 0.0
    %2847 = vmatpush1.msra.mxu0 0.0
    %2848 = vmatprep.subr.mxu0 0.0
    %2849 = vmatpush1.msra.mxu0 0.0
    %2850 = vmatprep.subr.mxu0 0.0
    %2851 = vmatpush1.msra.mxu0 0.0
    %2852 = vmatprep.subr.mxu0 0.0
    %2853 = vmatpush1.msra.mxu0 0.0
    %2854 = vmatprep.subr.mxu0 0.0
    %2855 = vmatpush1.msra.mxu0 0.0
    %2856 = vmatprep.subr.mxu0 0.0
    %2857 = vmatpush1.msra.mxu0 0.0
    %2858 = vmatprep.subr.mxu0 0.0
    %2859 = vmatpush1.msra.mxu0 0.0
    %2860 = vmatprep.subr.mxu0 0.0
    %2861 = vmatpush1.msra.mxu0 0.0
    %2862 = vmatprep.subr.mxu0 0.0
    %2863 = vmatpush1.msra.mxu0 0.0
    %2864 = vmatprep.subr.mxu0 0.0
    %2865 = vmatpush1.msra.mxu0 0.0
    %2866 = vmatprep.subr.mxu0 0.0
    %2867 = vmatpush1.msra.mxu0 0.0
    %2868 = vmatprep.subr.mxu0 0.0
    %2869 = vmatpush1.msra.mxu0 0.0
    %2870 = vmatprep.subr.mxu0 0.0
    %2871 = vmatpush1.msra.mxu0 0.0
    %2872 = vmatprep.subr.mxu0 0.0
    %2873 = vmatpush1.msra.mxu0 %v2838
    %2874 = vmatprep.subr.mxu0 0.0
    %2875 = vmatpush1.msra.mxu0 %v2836
    %2876 = vmatprep.subr.mxu0 0.0
    %2877 = vmatpush2.msra.mxu0 0.0
    %2878 = vmatprep.subr.mxu0 0.0
    %2879 = vmatpush2.msra.mxu0 0.0
    %2880 = vmatprep.subr.mxu0 0.0
    %2881 = vmatpush2.msra.mxu0 0.0
    %2882 = vmatprep.subr.mxu0 0.0
    %2883 = vmatpush2.msra.mxu0 0.0
    %2884 = vmatprep.subr.mxu0 0.0
    %2885 = vmatpush2.msra.mxu0 0.0
    %2886 = vmatprep.subr.mxu0 0.0
    %2887 = vmatpush2.msra.mxu0 0.0
    %2888 = vmatprep.subr.mxu0 0.0
    %2889 = vmatpush2.msra.mxu0 0.0
    %2890 = vmatprep.subr.mxu0 0.0
    %2891 = vmatpush2.msra.mxu0 0.0
    %2892 = vmatprep.subr.mxu0 0.0
    %2893 = vmatpush2.msra.mxu0 0.0
    %2894 = vmatprep.subr.mxu0 0.0
    %2895 = vmatpush2.msra.mxu0 0.0
    %2896 = vmatprep.subr.mxu0 0.0
    %2897 = vmatpush2.msra.mxu0 0.0
    %2898 = vmatprep.subr.mxu0 0.0
    %2899 = vmatpush2.msra.mxu0 0.0
    %2900 = vmatprep.subr.mxu0 0.0
    %2901 = vmatpush2.msra.mxu0 0.0
    %2902 = vmatprep.subr.mxu0 0.0
    %2903 = vmatpush2.msra.mxu0 0.0
    %2904 = vmatprep.subr.mxu0 0.0
    %2905 = vmatpush2.msra.mxu0 0.0
    %2906 = vmatprep.subr.mxu0 0.0
    %2907 = vmatpush2.msra.mxu0 0.0
    %2908 = vmatprep.mubr.f32.mxu0 0.0
    %2909 = vmatmul.mubr.f32.gmra.mxu0 %v2842
    %v2910 = vpop.f32.mrf.mxu0
    %v2911 = vadd.f32 0.0, %v2910
    %v2912 = vpop.f32.mrf.mxu0
    %2913 = vdwg.mxu0
    %2914 = vrot.lane.b32.xlu0 %v1879, 96
    %v2915 = vpop.permute.xlu0 %2914
    %2916 = vrot.lane.b32.xlu0 %v1881, 96
    %v2917 = vpop.permute.xlu0 %2916
    %v2921 = vsel %vm1534, %v2591, 0
    %2923 = vmatprep.subr.mxu0 0.0
    %2924 = vmatpush1.msra.mxu0 0.0
    %2925 = vmatprep.subr.mxu0 0.0
    %2926 = vmatpush1.msra.mxu0 0.0
    %2927 = vmatprep.subr.mxu0 0.0
    %2928 = vmatpush1.msra.mxu0 0.0
    %2929 = vmatprep.subr.mxu0 0.0
    %2930 = vmatpush1.msra.mxu0 0.0
    %2931 = vmatprep.subr.mxu0 0.0
    %2932 = vmatpush1.msra.mxu0 0.0
    %2933 = vmatprep.subr.mxu0 0.0
    %2934 = vmatpush1.msra.mxu0 0.0
    %2935 = vmatprep.subr.mxu0 0.0
    %2936 = vmatpush1.msra.mxu0 0.0
    %2937 = vmatprep.subr.mxu0 0.0
    %2938 = vmatpush1.msra.mxu0 0.0
    %2939 = vmatprep.subr.mxu0 0.0
    %2940 = vmatpush1.msra.mxu0 0.0
    %2941 = vmatprep.subr.mxu0 0.0
    %2942 = vmatpush1.msra.mxu0 0.0
    %2943 = vmatprep.subr.mxu0 0.0
    %2944 = vmatpush1.msra.mxu0 0.0
    %2945 = vmatprep.subr.mxu0 0.0
    %2946 = vmatpush1.msra.mxu0 0.0
    %2947 = vmatprep.subr.mxu0 0.0
    %2948 = vmatpush1.msra.mxu0 0.0
    %2949 = vmatprep.subr.mxu0 0.0
    %2950 = vmatpush1.msra.mxu0 0.0
    %2951 = vmatprep.subr.mxu0 0.0
    %2952 = vmatpush1.msra.mxu0 %v2917
    %2953 = vmatprep.subr.mxu0 0.0
    %2954 = vmatpush1.msra.mxu0 %v2915
    %2955 = vmatprep.subr.mxu0 0.0
    %2956 = vmatpush2.msra.mxu0 0.0
    %2957 = vmatprep.subr.mxu0 0.0
    %2958 = vmatpush2.msra.mxu0 0.0
    %2959 = vmatprep.subr.mxu0 0.0
    %2960 = vmatpush2.msra.mxu0 0.0
    %2961 = vmatprep.subr.mxu0 0.0
    %2962 = vmatpush2.msra.mxu0 0.0
    %2963 = vmatprep.subr.mxu0 0.0
    %2964 = vmatpush2.msra.mxu0 0.0
    %2965 = vmatprep.subr.mxu0 0.0
    %2966 = vmatpush2.msra.mxu0 0.0
    %2967 = vmatprep.subr.mxu0 0.0
    %2968 = vmatpush2.msra.mxu0 0.0
    %2969 = vmatprep.subr.mxu0 0.0
    %2970 = vmatpush2.msra.mxu0 0.0
    %2971 = vmatprep.subr.mxu0 0.0
    %2972 = vmatpush2.msra.mxu0 0.0
    %2973 = vmatprep.subr.mxu0 0.0
    %2974 = vmatpush2.msra.mxu0 0.0
    %2975 = vmatprep.subr.mxu0 0.0
    %2976 = vmatpush2.msra.mxu0 0.0
    %2977 = vmatprep.subr.mxu0 0.0
    %2978 = vmatpush2.msra.mxu0 0.0
    %2979 = vmatprep.subr.mxu0 0.0
    %2980 = vmatpush2.msra.mxu0 0.0
    %2981 = vmatprep.subr.mxu0 0.0
    %2982 = vmatpush2.msra.mxu0 0.0
    %2983 = vmatprep.subr.mxu0 0.0
    %2984 = vmatpush2.msra.mxu0 0.0
    %2985 = vmatprep.subr.mxu0 0.0
    %2986 = vmatpush2.msra.mxu0 0.0
    %2987 = vmatprep.mubr.f32.mxu0 0.0
    %2988 = vmatmul.mubr.f32.gmra.mxu0 %v2921
    %v2989 = vpop.f32.mrf.mxu0
    %v2990 = vadd.f32 0.0, %v2989
    %v2991 = vpop.f32.mrf.mxu0
    %2992 = vdwg.mxu0
    %2993 = vrot.lane.b32.xlu0 %v1883, 96
    %v2994 = vpop.permute.xlu0 %2993
    %2995 = vrot.lane.b32.xlu0 %v1885, 96
    %v2996 = vpop.permute.xlu0 %2995
    %v3000 = vsel %vm1534, %v2593, 0
    %3002 = vmatprep.subr.mxu0 0.0
    %3003 = vmatpush1.msra.mxu0 0.0
    %3004 = vmatprep.subr.mxu0 0.0
    %3005 = vmatpush1.msra.mxu0 0.0
    %3006 = vmatprep.subr.mxu0 0.0
    %3007 = vmatpush1.msra.mxu0 0.0
    %3008 = vmatprep.subr.mxu0 0.0
    %3009 = vmatpush1.msra.mxu0 0.0
    %3010 = vmatprep.subr.mxu0 0.0
    %3011 = vmatpush1.msra.mxu0 0.0
    %3012 = vmatprep.subr.mxu0 0.0
    %3013 = vmatpush1.msra.mxu0 0.0
    %3014 = vmatprep.subr.mxu0 0.0
    %3015 = vmatpush1.msra.mxu0 0.0
    %3016 = vmatprep.subr.mxu0 0.0
    %3017 = vmatpush1.msra.mxu0 0.0
    %3018 = vmatprep.subr.mxu0 0.0
    %3019 = vmatpush1.msra.mxu0 0.0
    %3020 = vmatprep.subr.mxu0 0.0
    %3021 = vmatpush1.msra.mxu0 0.0
    %3022 = vmatprep.subr.mxu0 0.0
    %3023 = vmatpush1.msra.mxu0 0.0
    %3024 = vmatprep.subr.mxu0 0.0
    %3025 = vmatpush1.msra.mxu0 0.0
    %3026 = vmatprep.subr.mxu0 0.0
    %3027 = vmatpush1.msra.mxu0 0.0
    %3028 = vmatprep.subr.mxu0 0.0
    %3029 = vmatpush1.msra.mxu0 0.0
    %3030 = vmatprep.subr.mxu0 0.0
    %3031 = vmatpush1.msra.mxu0 %v2996
    %3032 = vmatprep.subr.mxu0 0.0
    %3033 = vmatpush1.msra.mxu0 %v2994
    %3034 = vmatprep.subr.mxu0 0.0
    %3035 = vmatpush2.msra.mxu0 0.0
    %3036 = vmatprep.subr.mxu0 0.0
    %3037 = vmatpush2.msra.mxu0 0.0
    %3038 = vmatprep.subr.mxu0 0.0
    %3039 = vmatpush2.msra.mxu0 0.0
    %3040 = vmatprep.subr.mxu0 0.0
    %3041 = vmatpush2.msra.mxu0 0.0
    %3042 = vmatprep.subr.mxu0 0.0
    %3043 = vmatpush2.msra.mxu0 0.0
    %3044 = vmatprep.subr.mxu0 0.0
    %3045 = vmatpush2.msra.mxu0 0.0
    %3046 = vmatprep.subr.mxu0 0.0
    %3047 = vmatpush2.msra.mxu0 0.0
    %3048 = vmatprep.subr.mxu0 0.0
    %3049 = vmatpush2.msra.mxu0 0.0
    %3050 = vmatprep.subr.mxu0 0.0
    %3051 = vmatpush2.msra.mxu0 0.0
    %3052 = vmatprep.subr.mxu0 0.0
    %3053 = vmatpush2.msra.mxu0 0.0
    %3054 = vmatprep.subr.mxu0 0.0
    %3055 = vmatpush2.msra.mxu0 0.0
    %3056 = vmatprep.subr.mxu0 0.0
    %3057 = vmatpush2.msra.mxu0 0.0
    %3058 = vmatprep.subr.mxu0 0.0
    %3059 = vmatpush2.msra.mxu0 0.0
    %3060 = vmatprep.subr.mxu0 0.0
    %3061 = vmatpush2.msra.mxu0 0.0
    %3062 = vmatprep.subr.mxu0 0.0
    %3063 = vmatpush2.msra.mxu0 0.0
    %3064 = vmatprep.subr.mxu0 0.0
    %3065 = vmatpush2.msra.mxu0 0.0
    %3066 = vmatprep.mubr.f32.mxu0 0.0
    %3067 = vmatmul.mubr.f32.gmra.mxu0 %v3000
    %v3068 = vpop.f32.mrf.mxu0
    %v3069 = vadd.f32 0.0, %v3068
    %v3070 = vpop.f32.mrf.mxu0
    %3071 = vdwg.mxu0
    %3072 = vrot.lane.b32.xlu0 %v1887, 96
    %v3073 = vpop.permute.xlu0 %3072
    %3074 = vrot.lane.b32.xlu0 %v1889, 96
    %v3075 = vpop.permute.xlu0 %3074
    %v3079 = vsel %vm1534, %v2595, 0
    %3081 = vmatprep.subr.mxu0 0.0
    %3082 = vmatpush1.msra.mxu0 0.0
    %3083 = vmatprep.subr.mxu0 0.0
    %3084 = vmatpush1.msra.mxu0 0.0
    %3085 = vmatprep.subr.mxu0 0.0
    %3086 = vmatpush1.msra.mxu0 0.0
    %3087 = vmatprep.subr.mxu0 0.0
    %3088 = vmatpush1.msra.mxu0 0.0
    %3089 = vmatprep.subr.mxu0 0.0
    %3090 = vmatpush1.msra.mxu0 0.0
    %3091 = vmatprep.subr.mxu0 0.0
    %3092 = vmatpush1.msra.mxu0 0.0
    %3093 = vmatprep.subr.mxu0 0.0
    %3094 = vmatpush1.msra.mxu0 0.0
    %3095 = vmatprep.subr.mxu0 0.0
    %3096 = vmatpush1.msra.mxu0 0.0
    %3097 = vmatprep.subr.mxu0 0.0
    %3098 = vmatpush1.msra.mxu0 0.0
    %3099 = vmatprep.subr.mxu0 0.0
    %3100 = vmatpush1.msra.mxu0 0.0
    %3101 = vmatprep.subr.mxu0 0.0
    %3102 = vmatpush1.msra.mxu0 0.0
    %3103 = vmatprep.subr.mxu0 0.0
    %3104 = vmatpush1.msra.mxu0 0.0
    %3105 = vmatprep.subr.mxu0 0.0
    %3106 = vmatpush1.msra.mxu0 0.0
    %3107 = vmatprep.subr.mxu0 0.0
    %3108 = vmatpush1.msra.mxu0 0.0
    %3109 = vmatprep.subr.mxu0 0.0
    %3110 = vmatpush1.msra.mxu0 %v3075
    %3111 = vmatprep.subr.mxu0 0.0
    %3112 = vmatpush1.msra.mxu0 %v3073
    %3113 = vmatprep.subr.mxu0 0.0
    %3114 = vmatpush2.msra.mxu0 0.0
    %3115 = vmatprep.subr.mxu0 0.0
    %3116 = vmatpush2.msra.mxu0 0.0
    %3117 = vmatprep.subr.mxu0 0.0
    %3118 = vmatpush2.msra.mxu0 0.0
    %3119 = vmatprep.subr.mxu0 0.0
    %3120 = vmatpush2.msra.mxu0 0.0
    %3121 = vmatprep.subr.mxu0 0.0
    %3122 = vmatpush2.msra.mxu0 0.0
    %3123 = vmatprep.subr.mxu0 0.0
    %3124 = vmatpush2.msra.mxu0 0.0
    %3125 = vmatprep.subr.mxu0 0.0
    %3126 = vmatpush2.msra.mxu0 0.0
    %3127 = vmatprep.subr.mxu0 0.0
    %3128 = vmatpush2.msra.mxu0 0.0
    %3129 = vmatprep.subr.mxu0 0.0
    %3130 = vmatpush2.msra.mxu0 0.0
    %3131 = vmatprep.subr.mxu0 0.0
    %3132 = vmatpush2.msra.mxu0 0.0
    %3133 = vmatprep.subr.mxu0 0.0
    %3134 = vmatpush2.msra.mxu0 0.0
    %3135 = vmatprep.subr.mxu0 0.0
    %3136 = vmatpush2.msra.mxu0 0.0
    %3137 = vmatprep.subr.mxu0 0.0
    %3138 = vmatpush2.msra.mxu0 0.0
    %3139 = vmatprep.subr.mxu0 0.0
    %3140 = vmatpush2.msra.mxu0 0.0
    %3141 = vmatprep.subr.mxu0 0.0
    %3142 = vmatpush2.msra.mxu0 0.0
    %3143 = vmatprep.subr.mxu0 0.0
    %3144 = vmatpush2.msra.mxu0 0.0
    %3145 = vmatprep.mubr.f32.mxu0 0.0
    %3146 = vmatmul.mubr.f32.gmra.mxu0 %v3079
    %v3147 = vpop.f32.mrf.mxu0
    %v3148 = vadd.f32 0.0, %v3147
    %v3149 = vpop.f32.mrf.mxu0
    %3150 = vdwg.mxu0
    %3151 = vrot.lane.b32.xlu0 %v1891, 96
    %v3152 = vpop.permute.xlu0 %3151
    %3153 = vrot.lane.b32.xlu0 %v1893, 96
    %v3154 = vpop.permute.xlu0 %3153
    %v3158 = vsel %vm1534, %v2597, 0
    %3160 = vmatprep.subr.mxu0 0.0
    %3161 = vmatpush1.msra.mxu0 0.0
    %3162 = vmatprep.subr.mxu0 0.0
    %3163 = vmatpush1.msra.mxu0 0.0
    %3164 = vmatprep.subr.mxu0 0.0
    %3165 = vmatpush1.msra.mxu0 0.0
    %3166 = vmatprep.subr.mxu0 0.0
    %3167 = vmatpush1.msra.mxu0 0.0
    %3168 = vmatprep.subr.mxu0 0.0
    %3169 = vmatpush1.msra.mxu0 0.0
    %3170 = vmatprep.subr.mxu0 0.0
    %3171 = vmatpush1.msra.mxu0 0.0
    %3172 = vmatprep.subr.mxu0 0.0
    %3173 = vmatpush1.msra.mxu0 0.0
    %3174 = vmatprep.subr.mxu0 0.0
    %3175 = vmatpush1.msra.mxu0 0.0
    %3176 = vmatprep.subr.mxu0 0.0
    %3177 = vmatpush1.msra.mxu0 0.0
    %3178 = vmatprep.subr.mxu0 0.0
    %3179 = vmatpush1.msra.mxu0 0.0
    %3180 = vmatprep.subr.mxu0 0.0
    %3181 = vmatpush1.msra.mxu0 0.0
    %3182 = vmatprep.subr.mxu0 0.0
    %3183 = vmatpush1.msra.mxu0 0.0
    %3184 = vmatprep.subr.mxu0 0.0
    %3185 = vmatpush1.msra.mxu0 0.0
    %3186 = vmatprep.subr.mxu0 0.0
    %3187 = vmatpush1.msra.mxu0 0.0
    %3188 = vmatprep.subr.mxu0 0.0
    %3189 = vmatpush1.msra.mxu0 %v3154
    %3190 = vmatprep.subr.mxu0 0.0
    %3191 = vmatpush1.msra.mxu0 %v3152
    %3192 = vmatprep.subr.mxu0 0.0
    %3193 = vmatpush2.msra.mxu0 0.0
    %3194 = vmatprep.subr.mxu0 0.0
    %3195 = vmatpush2.msra.mxu0 0.0
    %3196 = vmatprep.subr.mxu0 0.0
    %3197 = vmatpush2.msra.mxu0 0.0
    %3198 = vmatprep.subr.mxu0 0.0
    %3199 = vmatpush2.msra.mxu0 0.0
    %3200 = vmatprep.subr.mxu0 0.0
    %3201 = vmatpush2.msra.mxu0 0.0
    %3202 = vmatprep.subr.mxu0 0.0
    %3203 = vmatpush2.msra.mxu0 0.0
    %3204 = vmatprep.subr.mxu0 0.0
    %3205 = vmatpush2.msra.mxu0 0.0
    %3206 = vmatprep.subr.mxu0 0.0
    %3207 = vmatpush2.msra.mxu0 0.0
    %3208 = vmatprep.subr.mxu0 0.0
    %3209 = vmatpush2.msra.mxu0 0.0
    %3210 = vmatprep.subr.mxu0 0.0
    %3211 = vmatpush2.msra.mxu0 0.0
    %3212 = vmatprep.subr.mxu0 0.0
    %3213 = vmatpush2.msra.mxu0 0.0
    %3214 = vmatprep.subr.mxu0 0.0
    %3215 = vmatpush2.msra.mxu0 0.0
    %3216 = vmatprep.subr.mxu0 0.0
    %3217 = vmatpush2.msra.mxu0 0.0
    %3218 = vmatprep.subr.mxu0 0.0
    %3219 = vmatpush2.msra.mxu0 0.0
    %3220 = vmatprep.subr.mxu0 0.0
    %3221 = vmatpush2.msra.mxu0 0.0
    %3222 = vmatprep.subr.mxu0 0.0
    %3223 = vmatpush2.msra.mxu0 0.0
    %3224 = vmatprep.mubr.f32.mxu0 0.0
    %3225 = vmatmul.mubr.f32.gmra.mxu0 %v3158
    %v3226 = vpop.f32.mrf.mxu0
    %v3227 = vadd.f32 0.0, %v3226
    %v3228 = vpop.f32.mrf.mxu0
    %3229 = vdwg.mxu0
    %3232 = vrot.lane.b32.xlu0 %v2832, 8
    %v3233 = vpop.permute.xlu0 %3232
    %3234 = vrot.lane.b32.xlu0 %v2911, 8
    %v3235 = vpop.permute.xlu0 %3234
    %3240 = vrot.lane.b32.xlu0 %v2990, 16
    %v3241 = vpop.permute.xlu0 %3240
    %3242 = vrot.lane.b32.xlu0 %v3069, 16
    %v3243 = vpop.permute.xlu0 %3242
    %3248 = vrot.lane.b32.xlu0 %v3148, 24
    %v3249 = vpop.permute.xlu0 %3248
    %3250 = vrot.lane.b32.xlu0 %v3227, 24
    %v3251 = vpop.permute.xlu0 %3250
    %v3254 = vsel %vm197, %v2674, %v3233
    %v3255 = vsel %vm197, %v2753, %v3235
    %v3256 = vsel %vm1534, %v3254, %v3241
    %v3257 = vsel %vm1534, %v3255, %v3243
    %v3258 = vsel %vm1537, %v3256, %v3249
    %v3259 = vsel %vm1537, %v3257, %v3251
    %v3260 = vlaneseq
    %v3261 = vshrl.u32 %v3260, 7
    %v3262 = vsub.s32 0, %v3261
    %v3263 = vrot.slane %v92, %v3262
    %v3265 = vsel %vm99, %v3258, 0
    %v3268 = vsel %vm99, %v3259, 0
    %3270 = vmatprep.subr.mxu0 0.0
    %3271 = vmatpush1.msra.mxu0 0.0
    %3272 = vmatprep.subr.mxu0 0.0
    %3273 = vmatpush1.msra.mxu0 0.0
    %3274 = vmatprep.subr.mxu0 0.0
    %3275 = vmatpush1.msra.mxu0 0.0
    %3276 = vmatprep.subr.mxu0 0.0
    %3277 = vmatpush1.msra.mxu0 0.0
    %3278 = vmatprep.subr.mxu0 0.0
    %3279 = vmatpush1.msra.mxu0 0.0
    %3280 = vmatprep.subr.mxu0 0.0
    %3281 = vmatpush1.msra.mxu0 0.0
    %3282 = vmatprep.subr.mxu0 0.0
    %3283 = vmatpush1.msra.mxu0 0.0
    %3284 = vmatprep.subr.mxu0 0.0
    %3285 = vmatpush1.msra.mxu0 0.0
    %3286 = vmatprep.subr.mxu0 0.0
    %3287 = vmatpush1.msra.mxu0 0.0
    %3288 = vmatprep.subr.mxu0 0.0
    %3289 = vmatpush1.msra.mxu0 0.0
    %3290 = vmatprep.subr.mxu0 0.0
    %3291 = vmatpush1.msra.mxu0 0.0
    %3292 = vmatprep.subr.mxu0 0.0
    %3293 = vmatpush1.msra.mxu0 0.0
    %3294 = vmatprep.subr.mxu0 0.0
    %3295 = vmatpush1.msra.mxu0 %v78
    %3296 = vmatprep.subr.mxu0 0.0
    %3297 = vmatpush1.msra.mxu0 %v72
    %3298 = vmatprep.subr.mxu0 0.0
    %3299 = vmatpush1.msra.mxu0 %v66
    %3300 = vmatprep.subr.mxu0 0.0
    %3301 = vmatpush1.msra.mxu0 %v60
    %3302 = vmatprep.subr.mxu0 0.0
    %3303 = vmatpush2.msra.mxu0 0.0
    %3304 = vmatprep.subr.mxu0 0.0
    %3305 = vmatpush2.msra.mxu0 0.0
    %3306 = vmatprep.subr.mxu0 0.0
    %3307 = vmatpush2.msra.mxu0 0.0
    %3308 = vmatprep.subr.mxu0 0.0
    %3309 = vmatpush2.msra.mxu0 0.0
    %3310 = vmatprep.subr.mxu0 0.0
    %3311 = vmatpush2.msra.mxu0 0.0
    %3312 = vmatprep.subr.mxu0 0.0
    %3313 = vmatpush2.msra.mxu0 0.0
    %3314 = vmatprep.subr.mxu0 0.0
    %3315 = vmatpush2.msra.mxu0 0.0
    %3316 = vmatprep.subr.mxu0 0.0
    %3317 = vmatpush2.msra.mxu0 0.0
    %3318 = vmatprep.subr.mxu0 0.0
    %3319 = vmatpush2.msra.mxu0 0.0
    %3320 = vmatprep.subr.mxu0 0.0
    %3321 = vmatpush2.msra.mxu0 0.0
    %3322 = vmatprep.subr.mxu0 0.0
    %3323 = vmatpush2.msra.mxu0 0.0
    %3324 = vmatprep.subr.mxu0 0.0
    %3325 = vmatpush2.msra.mxu0 0.0
    %3326 = vmatprep.subr.mxu0 0.0
    %3327 = vmatpush2.msra.mxu0 0.0
    %3328 = vmatprep.subr.mxu0 0.0
    %3329 = vmatpush2.msra.mxu0 0.0
    %3330 = vmatprep.subr.mxu0 0.0
    %3331 = vmatpush2.msra.mxu0 0.0
    %3332 = vmatprep.subr.mxu0 0.0
    %3333 = vmatpush2.msra.mxu0 0.0
    %3334 = vmatprep.mubr.f32.mxu0 0.0
    %3335 = vmatmul.mubr.f32.gmra.mxu0 %v3265
    %v3336 = vpop.f32.mrf.mxu0
    %v3337 = vadd.f32 %v3263, %v3336
    %v3338 = vpop.f32.mrf.mxu0
    %3339 = vmatprep.mubr.f32.mxu0 0.0
    %3340 = vmatmul.mubr.f32.gmra.mxu0 %v3268
    %v3341 = vpop.f32.mrf.mxu0
    %v3342 = vadd.f32 %v3263, %v3341
    %v3343 = vpop.f32.mrf.mxu0
    %3344 = vdwg.mxu0
    %v3345 = vsel %vm1534, %v2583, 0.0
    %v3346 = vsel %vm1534, %v2587, 0.0
    %v3347 = vadd.f32 %v3345, %v3346
    %v3348 = vsel %vm1534, %v2591, 0.0
    %v3349 = vadd.f32 %v3347, %v3348
    %v3350 = vsel %vm1534, %v2595, 0.0
    %v3351 = vadd.f32 %v3349, %v3350
    %v3352 = vsel %vm1534, %v2585, 0.0
    %v3353 = vsel %vm1534, %v2589, 0.0
    %v3354 = vadd.f32 %v3352, %v3353
    %v3355 = vsel %vm1534, %v2593, 0.0
    %v3356 = vadd.f32 %v3354, %v3355
    %v3357 = vsel %vm1534, %v2597, 0.0
    %v3358 = vadd.f32 %v3356, %v3357
    %v3359 = vrcp.pop 4.0
    %v3360 = vmul.f32 %v3351, %v3359
    %v3361 = vmul.f32 %v3358, %v3359
    %v3362 = vadd.f32 %v3360, 0.0
    %v3363 = vadd.f32 %v3361, 0.0
    %v3364 = vadd.f32 %v1664, %v3337
    %v3365 = vadd.f32 %v1665, %v3342
    %v3366 = vsel %vm99, %v3364, 0.0
    %3367 = vadd.xlane.f32.xlu0 %v3366
    %v3368 = vpop.xlane.xlu0 %3367
    %v3369 = vsel %vm99, %v3365, 0.0
    %3370 = vadd.xlane.f32.xlu0 %v3369
    %v3371 = vpop.xlane.xlu0 %3370
    %v3372 = vmul.f32 %v3368, %v1633
    %v3373 = vmul.f32 %v3371, %v1633
    %v3374 = vsub.f32 %v3364, %v3372
    %v3375 = vsub.f32 %v3365, %v3373
    %v3376 = vmul.f32 %v3374, %v3374
    %v3377 = vmul.f32 %v3375, %v3375
    %v3378 = vsel %vm99, %v3376, 0.0
    %3379 = vadd.xlane.f32.xlu0 %v3378
    %v3380 = vpop.xlane.xlu0 %3379
    %v3381 = vsel %vm99, %v3377, 0.0
    %3382 = vadd.xlane.f32.xlu0 %v3381
    %v3383 = vpop.xlane.xlu0 %3382
    %v3384 = vmul.f32 %v3380, %v1633
    %v3385 = vmul.f32 %v3383, %v1633
    %v3386 = vadd.f32 %v3384, 1e-05
    %v3387 = vadd.f32 %v3385, 1e-05
    %v3388 = vrsqrt.pop %v3386
    %v3389 = vrsqrt.pop %v3387
    %v3390 = vmul.f32 %v3374, %v3388
    %v3391 = vmul.f32 %v3375, %v3389
    %v3392 = vlaneseq
    %v3393 = vshrl.u32 %v3392, 7
    %v3394 = vsub.s32 3, %v3393
    %v3395 = vrot.slane %v88, %v3394
    %v3396 = vmul.f32 %v3390, %v3395
    %v3397 = vmul.f32 %v3391, %v3395
    %v3398 = vlaneseq
    %v3399 = vshrl.u32 %v3398, 7
    %v3400 = vsub.s32 4, %v3399
    %v3401 = vrot.slane %v88, %v3400
    %v3402 = vadd.f32 %v3396, %v3401
    %v3403 = vadd.f32 %v3397, %v3401
    %v3404 = vlaneseq
    %v3405 = vshrl.u32 %v3404, 7
    %v3406 = vsub.s32 0, %v3405
    %v3407 = vrot.slane %v93, %v3406
    %v3409 = vsel %vm99, %v3402, 0
    %v3412 = vsel %vm99, %v3403, 0
    %3414 = vmatprep.subr.mxu0 0.0
    %3415 = vmatpush1.msra.mxu0 0.0
    %3416 = vmatprep.subr.mxu0 0.0
    %3417 = vmatpush1.msra.mxu0 0.0
    %3418 = vmatprep.subr.mxu0 0.0
    %3419 = vmatpush1.msra.mxu0 0.0
    %3420 = vmatprep.subr.mxu0 0.0
    %3421 = vmatpush1.msra.mxu0 0.0
    %3422 = vmatprep.subr.mxu0 0.0
    %3423 = vmatpush1.msra.mxu0 0.0
    %3424 = vmatprep.subr.mxu0 0.0
    %3425 = vmatpush1.msra.mxu0 0.0
    %3426 = vmatprep.subr.mxu0 0.0
    %3427 = vmatpush1.msra.mxu0 0.0
    %3428 = vmatprep.subr.mxu0 0.0
    %3429 = vmatpush1.msra.mxu0 0.0
    %3430 = vmatprep.subr.mxu0 0.0
    %3431 = vmatpush1.msra.mxu0 0.0
    %3432 = vmatprep.subr.mxu0 0.0
    %3433 = vmatpush1.msra.mxu0 0.0
    %3434 = vmatprep.subr.mxu0 0.0
    %3435 = vmatpush1.msra.mxu0 0.0
    %3436 = vmatprep.subr.mxu0 0.0
    %3437 = vmatpush1.msra.mxu0 0.0
    %3438 = vmatprep.subr.mxu0 0.0
    %3439 = vmatpush1.msra.mxu0 %v79
    %3440 = vmatprep.subr.mxu0 0.0
    %3441 = vmatpush1.msra.mxu0 %v73
    %3442 = vmatprep.subr.mxu0 0.0
    %3443 = vmatpush1.msra.mxu0 %v67
    %3444 = vmatprep.subr.mxu0 0.0
    %3445 = vmatpush1.msra.mxu0 %v61
    %3446 = vmatprep.subr.mxu0 0.0
    %3447 = vmatpush2.msra.mxu0 0.0
    %3448 = vmatprep.subr.mxu0 0.0
    %3449 = vmatpush2.msra.mxu0 0.0
    %3450 = vmatprep.subr.mxu0 0.0
    %3451 = vmatpush2.msra.mxu0 0.0
    %3452 = vmatprep.subr.mxu0 0.0
    %3453 = vmatpush2.msra.mxu0 0.0
    %3454 = vmatprep.subr.mxu0 0.0
    %3455 = vmatpush2.msra.mxu0 0.0
    %3456 = vmatprep.subr.mxu0 0.0
    %3457 = vmatpush2.msra.mxu0 0.0
    %3458 = vmatprep.subr.mxu0 0.0
    %3459 = vmatpush2.msra.mxu0 0.0
    %3460 = vmatprep.subr.mxu0 0.0
    %3461 = vmatpush2.msra.mxu0 0.0
    %3462 = vmatprep.subr.mxu0 0.0
    %3463 = vmatpush2.msra.mxu0 0.0
    %3464 = vmatprep.subr.mxu0 0.0
    %3465 = vmatpush2.msra.mxu0 0.0
    %3466 = vmatprep.subr.mxu0 0.0
    %3467 = vmatpush2.msra.mxu0 0.0
    %3468 = vmatprep.subr.mxu0 0.0
    %3469 = vmatpush2.msra.mxu0 0.0
    %3470 = vmatprep.subr.mxu0 0.0
    %3471 = vmatpush2.msra.mxu0 0.0
    %3472 = vmatprep.subr.mxu0 0.0
    %3473 = vmatpush2.msra.mxu0 0.0
    %3474 = vmatprep.subr.mxu0 0.0
    %3475 = vmatpush2.msra.mxu0 0.0
    %3476 = vmatprep.subr.mxu0 0.0
    %3477 = vmatpush2.msra.mxu0 0.0
    %3478 = vmatprep.mubr.f32.mxu0 0.0
    %3479 = vmatmul.mubr.f32.gmra.mxu0 %v3409
    %v3480 = vpop.f32.mrf.mxu0
    %v3481 = vadd.f32 %v3407, %v3480
    %v3482 = vpop.f32.mrf.mxu0
    %3483 = vmatprep.mubr.f32.mxu0 0.0
    %3484 = vmatmul.mubr.f32.gmra.mxu0 %v3412
    %v3485 = vpop.f32.mrf.mxu0
    %v3486 = vadd.f32 %v3407, %v3485
    %v3487 = vpop.f32.mrf.mxu0
    %3488 = vdwg.mxu0
    %v3489 = vmax.f32 %v3481, 0.0
    %v3490 = vmax.f32 %v3486, 0.0
    %v3491 = vlaneseq
    %v3492 = vshrl.u32 %v3491, 7
    %v3493 = vsub.s32 0, %v3492
    %v3494 = vrot.slane %v94, %v3493
    %vm3495 = vcmask 523264
    %v3497 = vsel %vm3495, %v3489, 0
    %v3500 = vsel %vm3495, %v3490, 0
    %3502 = vmatprep.subr.mxu0 0.0
    %3503 = vmatpush1.msra.mxu0 0.0
    %3504 = vmatprep.subr.mxu0 0.0
    %3505 = vmatpush1.msra.mxu0 0.0
    %3506 = vmatprep.subr.mxu0 0.0
    %3507 = vmatpush1.msra.mxu0 0.0
    %3508 = vmatprep.subr.mxu0 0.0
    %3509 = vmatpush1.msra.mxu0 0.0
    %3510 = vmatprep.subr.mxu0 0.0
    %3511 = vmatpush1.msra.mxu0 0.0
    %3512 = vmatprep.subr.mxu0 0.0
    %3513 = vmatpush1.msra.mxu0 0.0
    %3514 = vmatprep.subr.mxu0 0.0
    %3515 = vmatpush1.msra.mxu0 0.0
    %3516 = vmatprep.subr.mxu0 0.0
    %3517 = vmatpush1.msra.mxu0 0.0
    %3518 = vmatprep.subr.mxu0 0.0
    %3519 = vmatpush1.msra.mxu0 %v87
    %3520 = vmatprep.subr.mxu0 0.0
    %3521 = vmatpush1.msra.mxu0 %v86
    %3522 = vmatprep.subr.mxu0 0.0
    %3523 = vmatpush1.msra.mxu0 %v85
    %3524 = vmatprep.subr.mxu0 0.0
    %3525 = vmatpush1.msra.mxu0 %v84
    %3526 = vmatprep.subr.mxu0 0.0
    %3527 = vmatpush1.msra.mxu0 %v83
    %3528 = vmatprep.subr.mxu0 0.0
    %3529 = vmatpush1.msra.mxu0 %v82
    %3530 = vmatprep.subr.mxu0 0.0
    %3531 = vmatpush1.msra.mxu0 %v81
    %3532 = vmatprep.subr.mxu0 0.0
    %3533 = vmatpush1.msra.mxu0 %v80
    %3534 = vmatprep.subr.mxu0 0.0
    %3535 = vmatpush2.msra.mxu0 0.0
    %3536 = vmatprep.subr.mxu0 0.0
    %3537 = vmatpush2.msra.mxu0 0.0
    %3538 = vmatprep.subr.mxu0 0.0
    %3539 = vmatpush2.msra.mxu0 0.0
    %3540 = vmatprep.subr.mxu0 0.0
    %3541 = vmatpush2.msra.mxu0 0.0
    %3542 = vmatprep.subr.mxu0 0.0
    %3543 = vmatpush2.msra.mxu0 0.0
    %3544 = vmatprep.subr.mxu0 0.0
    %3545 = vmatpush2.msra.mxu0 0.0
    %3546 = vmatprep.subr.mxu0 0.0
    %3547 = vmatpush2.msra.mxu0 0.0
    %3548 = vmatprep.subr.mxu0 0.0
    %3549 = vmatpush2.msra.mxu0 0.0
    %3550 = vmatprep.subr.mxu0 0.0
    %3551 = vmatpush2.msra.mxu0 0.0
    %3552 = vmatprep.subr.mxu0 0.0
    %3553 = vmatpush2.msra.mxu0 0.0
    %3554 = vmatprep.subr.mxu0 0.0
    %3555 = vmatpush2.msra.mxu0 0.0
    %3556 = vmatprep.subr.mxu0 0.0
    %3557 = vmatpush2.msra.mxu0 0.0
    %3558 = vmatprep.subr.mxu0 0.0
    %3559 = vmatpush2.msra.mxu0 0.0
    %3560 = vmatprep.subr.mxu0 0.0
    %3561 = vmatpush2.msra.mxu0 0.0
    %3562 = vmatprep.subr.mxu0 0.0
    %3563 = vmatpush2.msra.mxu0 0.0
    %3564 = vmatprep.subr.mxu0 0.0
    %3565 = vmatpush2.msra.mxu0 0.0
    %3566 = vmatprep.mubr.f32.mxu0 0.0
    %3567 = vmatmul.mubr.f32.gmra.mxu0 %v3497
    %v3568 = vpop.f32.mrf.mxu0
    %v3569 = vadd.f32 %v3494, %v3568
    %v3570 = vpop.f32.mrf.mxu0
    %3571 = vmatprep.mubr.f32.mxu0 0.0
    %3572 = vmatmul.mubr.f32.gmra.mxu0 %v3500
    %v3573 = vpop.f32.mrf.mxu0
    %v3574 = vadd.f32 %v3494, %v3573
    %v3575 = vpop.f32.mrf.mxu0
    %3576 = vdwg.mxu0
    %v3577 = vadd.f32 %v3402, %v3569
    %v3578 = vadd.f32 %v3403, %v3574
    %v3579 = vsel %vm99, %v3577, 0.0
    %3580 = vadd.xlane.f32.xlu0 %v3579
    %v3581 = vpop.xlane.xlu0 %3580
    %v3582 = vsel %vm99, %v3578, 0.0
    %3583 = vadd.xlane.f32.xlu0 %v3582
    %v3584 = vpop.xlane.xlu0 %3583
    %v3585 = vmul.f32 %v3581, %v1633
    %v3586 = vmul.f32 %v3584, %v1633
    %v3587 = vsub.f32 %v3577, %v3585
    %v3588 = vsub.f32 %v3578, %v3586
    %v3589 = vmul.f32 %v3587, %v3587
    %v3590 = vmul.f32 %v3588, %v3588
    %v3591 = vsel %vm99, %v3589, 0.0
    %3592 = vadd.xlane.f32.xlu0 %v3591
    %v3593 = vpop.xlane.xlu0 %3592
    %v3594 = vsel %vm99, %v3590, 0.0
    %3595 = vadd.xlane.f32.xlu0 %v3594
    %v3596 = vpop.xlane.xlu0 %3595
    %v3597 = vmul.f32 %v3593, %v1633
    %v3598 = vmul.f32 %v3596, %v1633
    %v3599 = vadd.f32 %v3597, 1e-05
    %v3600 = vadd.f32 %v3598, 1e-05
    %v3601 = vrsqrt.pop %v3599
    %v3602 = vrsqrt.pop %v3600
    %v3603 = vmul.f32 %v3587, %v3601
    %v3604 = vmul.f32 %v3588, %v3602
    %v3605 = vlaneseq
    %v3606 = vshrl.u32 %v3605, 7
    %v3607 = vsub.s32 5, %v3606
    %v3608 = vrot.slane %v88, %v3607
    %v3609 = vmul.f32 %v3603, %v3608
    %v3610 = vmul.f32 %v3604, %v3608
    %v3611 = vlaneseq
    %v3612 = vshrl.u32 %v3611, 7
    %v3613 = vsub.s32 6, %v3612
    %v3614 = vrot.slane %v88, %v3613
    %v3615 = vadd.f32 %v3609, %v3614
    %v3616 = vadd.f32 %v3610, %v3614
    %s3617 = scalar_lea.vmem [#allocation4], 192
    %v3618 = vld [vmem:[%s3617] sm:$0xff]
    %v3619 = vld [vmem:[%s3617 + $0x8] sm:$0xff]
    %v3620 = vld [vmem:[%s3617 + $0x10] sm:$0xff]
    %v3621 = vld [vmem:[%s3617 + $0x18] sm:$0xff]
    %v3622 = vld [vmem:[%s3617 + $0x20] sm:$0xff]
    %v3623 = vld [vmem:[%s3617 + $0x28] sm:$0xff]
    %v3624 = vld [vmem:[%s3617 + $0x30] sm:$0xff]
    %v3625 = vld [vmem:[%s3617 + $0x38] sm:$0xff]
    %v3626 = vld [vmem:[%s3617 + $0x40] sm:$0xff]
    %v3627 = vld [vmem:[%s3617 + $0x48] sm:$0xff]
    %v3628 = vld [vmem:[%s3617 + $0x50] sm:$0xff]
    %v3629 = vld [vmem:[%s3617 + $0x58] sm:$0xff]
    %v3630 = vld [vmem:[%s3617 + $0x60] sm:$0xff]
    %v3631 = vld [vmem:[%s3617 + $0x68] sm:$0xff]
    %v3632 = vld [vmem:[%s3617 + $0x70] sm:$0xff]
    %v3633 = vld [vmem:[%s3617 + $0x78] sm:$0xff]
    %v3634 = vld [vmem:[%s3617 + $0x80] sm:$0xff]
    %v3635 = vld [vmem:[%s3617 + $0x88] sm:$0xff]
    %v3636 = vld [vmem:[%s3617 + $0x90] sm:$0xff]
    %v3637 = vld [vmem:[%s3617 + $0x98] sm:$0xff]
    %v3638 = vld [vmem:[%s3617 + $0xa0] sm:$0xff]
    %v3639 = vld [vmem:[%s3617 + $0xa8] sm:$0xff]
    %v3640 = vld [vmem:[%s3617 + $0xb0] sm:$0xff]
    %v3641 = vld [vmem:[%s3617 + $0xb8] sm:$0xff]
    %s3642 = scalar_lea.vmem %s3, 64
    %v3643 = vld [vmem:[%s3642] sm:$0xff]
    %v3644 = vld [vmem:[%s3642 + $0x8] sm:$0xff]
    %v3645 = vld [vmem:[%s3642 + $0x10] sm:$0xff]
    %v3646 = vld [vmem:[%s3642 + $0x18] sm:$0xff]
    %v3647 = vld [vmem:[%s3642 + $0x20] sm:$0xff]
    %v3648 = vld [vmem:[%s3642 + $0x28] sm:$0xff]
    %v3649 = vld [vmem:[%s3642 + $0x30] sm:$0xff]
    %v3650 = vld [vmem:[%s3642 + $0x38] sm:$0xff]
    %s3651 = scalar_lea.vmem %s4, 56
    %v3652 = vld [vmem:[%s3651] sm:$0xff]
    %v3653 = vld [vmem:[%s3651 + $0x8] sm:$0xff]
    %v3654 = vld [vmem:[%s3651 + $0x10] sm:$0xff]
    %v3655 = vld [vmem:[%s3651 + $0x18] sm:$0xff]
    %v3656 = vld [vmem:[%s3651 + $0x20] sm:$0xff]
    %v3657 = vld [vmem:[%s3651 + $0x28] sm:$0xff]
    %v3658 = vld [vmem:[%s3651 + $0x30] sm:$0xff]
    %v3659 = vlaneseq
    %v3660 = vshrl.u32 %v3659, 7
    %v3661 = vsub.s32 0, %v3660
    %v3662 = vrot.slane %v3652, %v3661
    %v3664 = vsel %vm99, %v3615, 0
    %v3667 = vsel %vm99, %v3616, 0
    %3669 = vmatprep.subr.mxu0 0.0
    %3670 = vmatpush1.msra.mxu0 0.0
    %3671 = vmatprep.subr.mxu0 0.0
    %3672 = vmatpush1.msra.mxu0 0.0
    %3673 = vmatprep.subr.mxu0 0.0
    %3674 = vmatpush1.msra.mxu0 0.0
    %3675 = vmatprep.subr.mxu0 0.0
    %3676 = vmatpush1.msra.mxu0 0.0
    %3677 = vmatprep.subr.mxu0 0.0
    %3678 = vmatpush1.msra.mxu0 0.0
    %3679 = vmatprep.subr.mxu0 0.0
    %3680 = vmatpush1.msra.mxu0 0.0
    %3681 = vmatprep.subr.mxu0 0.0
    %3682 = vmatpush1.msra.mxu0 0.0
    %3683 = vmatprep.subr.mxu0 0.0
    %3684 = vmatpush1.msra.mxu0 0.0
    %3685 = vmatprep.subr.mxu0 0.0
    %3686 = vmatpush1.msra.mxu0 0.0
    %3687 = vmatprep.subr.mxu0 0.0
    %3688 = vmatpush1.msra.mxu0 0.0
    %3689 = vmatprep.subr.mxu0 0.0
    %3690 = vmatpush1.msra.mxu0 0.0
    %3691 = vmatprep.subr.mxu0 0.0
    %3692 = vmatpush1.msra.mxu0 0.0
    %3693 = vmatprep.subr.mxu0 0.0
    %3694 = vmatpush1.msra.mxu0 %v3636
    %3695 = vmatprep.subr.mxu0 0.0
    %3696 = vmatpush1.msra.mxu0 %v3630
    %3697 = vmatprep.subr.mxu0 0.0
    %3698 = vmatpush1.msra.mxu0 %v3624
    %3699 = vmatprep.subr.mxu0 0.0
    %3700 = vmatpush1.msra.mxu0 %v3618
    %3701 = vmatprep.subr.mxu0 0.0
    %3702 = vmatpush2.msra.mxu0 0.0
    %3703 = vmatprep.subr.mxu0 0.0
    %3704 = vmatpush2.msra.mxu0 0.0
    %3705 = vmatprep.subr.mxu0 0.0
    %3706 = vmatpush2.msra.mxu0 0.0
    %3707 = vmatprep.subr.mxu0 0.0
    %3708 = vmatpush2.msra.mxu0 0.0
    %3709 = vmatprep.subr.mxu0 0.0
    %3710 = vmatpush2.msra.mxu0 0.0
    %3711 = vmatprep.subr.mxu0 0.0
    %3712 = vmatpush2.msra.mxu0 0.0
    %3713 = vmatprep.subr.mxu0 0.0
    %3714 = vmatpush2.msra.mxu0 0.0
    %3715 = vmatprep.subr.mxu0 0.0
    %3716 = vmatpush2.msra.mxu0 0.0
    %3717 = vmatprep.subr.mxu0 0.0
    %3718 = vmatpush2.msra.mxu0 0.0
    %3719 = vmatprep.subr.mxu0 0.0
    %3720 = vmatpush2.msra.mxu0 0.0
    %3721 = vmatprep.subr.mxu0 0.0
    %3722 = vmatpush2.msra.mxu0 0.0
    %3723 = vmatprep.subr.mxu0 0.0
    %3724 = vmatpush2.msra.mxu0 0.0
    %3725 = vmatprep.subr.mxu0 0.0
    %3726 = vmatpush2.msra.mxu0 0.0
    %3727 = vmatprep.subr.mxu0 0.0
    %3728 = vmatpush2.msra.mxu0 0.0
    %3729 = vmatprep.subr.mxu0 0.0
    %3730 = vmatpush2.msra.mxu0 0.0
    %3731 = vmatprep.subr.mxu0 0.0
    %3732 = vmatpush2.msra.mxu0 0.0
    %3733 = vmatprep.mubr.f32.mxu0 0.0
    %3734 = vmatmul.mubr.f32.gmra.mxu0 %v3664
    %v3735 = vpop.f32.mrf.mxu0
    %v3736 = vadd.f32 %v3662, %v3735
    %v3737 = vpop.f32.mrf.mxu0
    %3738 = vmatprep.mubr.f32.mxu0 0.0
    %3739 = vmatmul.mubr.f32.gmra.mxu0 %v3667
    %v3740 = vpop.f32.mrf.mxu0
    %v3741 = vadd.f32 %v3662, %v3740
    %v3742 = vpop.f32.mrf.mxu0
    %3743 = vdwg.mxu0
    %3746 = vrot.lane.b32.xlu0 %v3736, 120
    %v3747 = vpop.permute.xlu0 %3746
    %3748 = vrot.lane.b32.xlu0 %v3741, 120
    %v3749 = vpop.permute.xlu0 %3748
    %3750 = vrot.lane.b32.xlu0 %v3736, 112
    %v3751 = vpop.permute.xlu0 %3750
    %3752 = vrot.lane.b32.xlu0 %v3741, 112
    %v3753 = vpop.permute.xlu0 %3752
    %3754 = vrot.lane.b32.xlu0 %v3736, 104
    %v3755 = vpop.permute.xlu0 %3754
    %3756 = vrot.lane.b32.xlu0 %v3741, 104
    %v3757 = vpop.permute.xlu0 %3756
    %3758 = vrot.lane.b32.xlu0 %v3736, 96
    %v3759 = vpop.permute.xlu0 %3758
    %v3760 = vsel %vm197, %v3736, 0
    %v3762 = vsel %vm197, %v3759, 0
    %3764 = vmatprep.subr.mxu0 0.0
    %3765 = vmatpush1.xpose.msra.mxu0 0.0
    %3766 = vmatprep.subr.mxu0 0.0
    %3767 = vmatpush1.xpose.msra.mxu0 0.0
    %3768 = vmatprep.subr.mxu0 0.0
    %3769 = vmatpush1.xpose.msra.mxu0 0.0
    %3770 = vmatprep.subr.mxu0 0.0
    %3771 = vmatpush1.xpose.msra.mxu0 0.0
    %3772 = vmatprep.subr.mxu0 0.0
    %3773 = vmatpush1.xpose.msra.mxu0 0.0
    %3774 = vmatprep.subr.mxu0 0.0
    %3775 = vmatpush1.xpose.msra.mxu0 0.0
    %3776 = vmatprep.subr.mxu0 0.0
    %3777 = vmatpush1.xpose.msra.mxu0 0.0
    %3778 = vmatprep.subr.mxu0 0.0
    %3779 = vmatpush1.xpose.msra.mxu0 0.0
    %3780 = vmatprep.subr.mxu0 0.0
    %3781 = vmatpush1.xpose.msra.mxu0 0.0
    %3782 = vmatprep.subr.mxu0 0.0
    %3783 = vmatpush1.xpose.msra.mxu0 0.0
    %3784 = vmatprep.subr.mxu0 0.0
    %3785 = vmatpush1.xpose.msra.mxu0 0.0
    %3786 = vmatprep.subr.mxu0 0.0
    %3787 = vmatpush1.xpose.msra.mxu0 0.0
    %3788 = vmatprep.subr.mxu0 0.0
    %3789 = vmatpush1.xpose.msra.mxu0 0.0
    %3790 = vmatprep.subr.mxu0 0.0
    %3791 = vmatpush1.xpose.msra.mxu0 0.0
    %3792 = vmatprep.subr.mxu0 0.0
    %3793 = vmatpush1.xpose.msra.mxu0 0.0
    %3794 = vmatprep.subr.mxu0 0.0
    %3795 = vmatpush1.xpose.msra.mxu0 %v3762
    %3796 = vmatprep.subr.mxu0 0.0
    %3797 = vmatpush2.xpose.msra.mxu0 0.0
    %3798 = vmatprep.subr.mxu0 0.0
    %3799 = vmatpush2.xpose.msra.mxu0 0.0
    %3800 = vmatprep.subr.mxu0 0.0
    %3801 = vmatpush2.xpose.msra.mxu0 0.0
    %3802 = vmatprep.subr.mxu0 0.0
    %3803 = vmatpush2.xpose.msra.mxu0 0.0
    %3804 = vmatprep.subr.mxu0 0.0
    %3805 = vmatpush2.xpose.msra.mxu0 0.0
    %3806 = vmatprep.subr.mxu0 0.0
    %3807 = vmatpush2.xpose.msra.mxu0 0.0
    %3808 = vmatprep.subr.mxu0 0.0
    %3809 = vmatpush2.xpose.msra.mxu0 0.0
    %3810 = vmatprep.subr.mxu0 0.0
    %3811 = vmatpush2.xpose.msra.mxu0 0.0
    %3812 = vmatprep.subr.mxu0 0.0
    %3813 = vmatpush2.xpose.msra.mxu0 0.0
    %3814 = vmatprep.subr.mxu0 0.0
    %3815 = vmatpush2.xpose.msra.mxu0 0.0
    %3816 = vmatprep.subr.mxu0 0.0
    %3817 = vmatpush2.xpose.msra.mxu0 0.0
    %3818 = vmatprep.subr.mxu0 0.0
    %3819 = vmatpush2.xpose.msra.mxu0 0.0
    %3820 = vmatprep.subr.mxu0 0.0
    %3821 = vmatpush2.xpose.msra.mxu0 0.0
    %3822 = vmatprep.subr.mxu0 0.0
    %3823 = vmatpush2.xpose.msra.mxu0 0.0
    %3824 = vmatprep.subr.mxu0 0.0
    %3825 = vmatpush2.xpose.msra.mxu0 0.0
    %3826 = vmatprep.subr.mxu0 0.0
    %3827 = vmatpush2.xpose.msra.mxu0 0.0
    %3828 = vmatprep.mubr.f32.mxu0 0.0
    %3829 = vmatmul.mubr.f32.gmra.mxu0 %v3760
    %v3830 = vpop.f32.mrf.mxu0
    %v3831 = vadd.f32 0.0, %v3830
    %v3832 = vpop.f32.mrf.mxu0
    %3833 = vdwg.mxu0
    %3834 = vrot.lane.b32.xlu0 %v3741, 96
    %v3835 = vpop.permute.xlu0 %3834
    %v3836 = vsel %vm197, %v3741, 0
    %v3838 = vsel %vm197, %v3835, 0
    %3840 = vmatprep.subr.mxu0 0.0
    %3841 = vmatpush1.xpose.msra.mxu0 0.0
    %3842 = vmatprep.subr.mxu0 0.0
    %3843 = vmatpush1.xpose.msra.mxu0 0.0
    %3844 = vmatprep.subr.mxu0 0.0
    %3845 = vmatpush1.xpose.msra.mxu0 0.0
    %3846 = vmatprep.subr.mxu0 0.0
    %3847 = vmatpush1.xpose.msra.mxu0 0.0
    %3848 = vmatprep.subr.mxu0 0.0
    %3849 = vmatpush1.xpose.msra.mxu0 0.0
    %3850 = vmatprep.subr.mxu0 0.0
    %3851 = vmatpush1.xpose.msra.mxu0 0.0
    %3852 = vmatprep.subr.mxu0 0.0
    %3853 = vmatpush1.xpose.msra.mxu0 0.0
    %3854 = vmatprep.subr.mxu0 0.0
    %3855 = vmatpush1.xpose.msra.mxu0 0.0
    %3856 = vmatprep.subr.mxu0 0.0
    %3857 = vmatpush1.xpose.msra.mxu0 0.0
    %3858 = vmatprep.subr.mxu0 0.0
    %3859 = vmatpush1.xpose.msra.mxu0 0.0
    %3860 = vmatprep.subr.mxu0 0.0
    %3861 = vmatpush1.xpose.msra.mxu0 0.0
    %3862 = vmatprep.subr.mxu0 0.0
    %3863 = vmatpush1.xpose.msra.mxu0 0.0
    %3864 = vmatprep.subr.mxu0 0.0
    %3865 = vmatpush1.xpose.msra.mxu0 0.0
    %3866 = vmatprep.subr.mxu0 0.0
    %3867 = vmatpush1.xpose.msra.mxu0 0.0
    %3868 = vmatprep.subr.mxu0 0.0
    %3869 = vmatpush1.xpose.msra.mxu0 0.0
    %3870 = vmatprep.subr.mxu0 0.0
    %3871 = vmatpush1.xpose.msra.mxu0 %v3838
    %3872 = vmatprep.subr.mxu0 0.0
    %3873 = vmatpush2.xpose.msra.mxu0 0.0
    %3874 = vmatprep.subr.mxu0 0.0
    %3875 = vmatpush2.xpose.msra.mxu0 0.0
    %3876 = vmatprep.subr.mxu0 0.0
    %3877 = vmatpush2.xpose.msra.mxu0 0.0
    %3878 = vmatprep.subr.mxu0 0.0
    %3879 = vmatpush2.xpose.msra.mxu0 0.0
    %3880 = vmatprep.subr.mxu0 0.0
    %3881 = vmatpush2.xpose.msra.mxu0 0.0
    %3882 = vmatprep.subr.mxu0 0.0
    %3883 = vmatpush2.xpose.msra.mxu0 0.0
    %3884 = vmatprep.subr.mxu0 0.0
    %3885 = vmatpush2.xpose.msra.mxu0 0.0
    %3886 = vmatprep.subr.mxu0 0.0
    %3887 = vmatpush2.xpose.msra.mxu0 0.0
    %3888 = vmatprep.subr.mxu0 0.0
    %3889 = vmatpush2.xpose.msra.mxu0 0.0
    %3890 = vmatprep.subr.mxu0 0.0
    %3891 = vmatpush2.xpose.msra.mxu0 0.0
    %3892 = vmatprep.subr.mxu0 0.0
    %3893 = vmatpush2.xpose.msra.mxu0 0.0
    %3894 = vmatprep.subr.mxu0 0.0
    %3895 = vmatpush2.xpose.msra.mxu0 0.0
    %3896 = vmatprep.subr.mxu0 0.0
    %3897 = vmatpush2.xpose.msra.mxu0 0.0
    %3898 = vmatprep.subr.mxu0 0.0
    %3899 = vmatpush2.xpose.msra.mxu0 0.0
    %3900 = vmatprep.subr.mxu0 0.0
    %3901 = vmatpush2.xpose.msra.mxu0 0.0
    %3902 = vmatprep.subr.mxu0 0.0
    %3903 = vmatpush2.xpose.msra.mxu0 0.0
    %3904 = vmatprep.mubr.f32.mxu0 0.0
    %3905 = vmatmul.mubr.f32.gmra.mxu0 %v3836
    %v3906 = vpop.f32.mrf.mxu0
    %v3907 = vadd.f32 0.0, %v3906
    %v3908 = vpop.f32.mrf.mxu0
    %3909 = vdwg.mxu0
    %3910 = vrot.lane.b32.xlu0 %v3747, 96
    %v3911 = vpop.permute.xlu0 %3910
    %v3912 = vsel %vm197, %v3747, 0
    %v3914 = vsel %vm197, %v3911, 0
    %3916 = vmatprep.subr.mxu0 0.0
    %3917 = vmatpush1.xpose.msra.mxu0 0.0
    %3918 = vmatprep.subr.mxu0 0.0
    %3919 = vmatpush1.xpose.msra.mxu0 0.0
    %3920 = vmatprep.subr.mxu0 0.0
    %3921 = vmatpush1.xpose.msra.mxu0 0.0
    %3922 = vmatprep.subr.mxu0 0.0
    %3923 = vmatpush1.xpose.msra.mxu0 0.0
    %3924 = vmatprep.subr.mxu0 0.0
    %3925 = vmatpush1.xpose.msra.mxu0 0.0
    %3926 = vmatprep.subr.mxu0 0.0
    %3927 = vmatpush1.xpose.msra.mxu0 0.0
    %3928 = vmatprep.subr.mxu0 0.0
    %3929 = vmatpush1.xpose.msra.mxu0 0.0
    %3930 = vmatprep.subr.mxu0 0.0
    %3931 = vmatpush1.xpose.msra.mxu0 0.0
    %3932 = vmatprep.subr.mxu0 0.0
    %3933 = vmatpush1.xpose.msra.mxu0 0.0
    %3934 = vmatprep.subr.mxu0 0.0
    %3935 = vmatpush1.xpose.msra.mxu0 0.0
    %3936 = vmatprep.subr.mxu0 0.0
    %3937 = vmatpush1.xpose.msra.mxu0 0.0
    %3938 = vmatprep.subr.mxu0 0.0
    %3939 = vmatpush1.xpose.msra.mxu0 0.0
    %3940 = vmatprep.subr.mxu0 0.0
    %3941 = vmatpush1.xpose.msra.mxu0 0.0
    %3942 = vmatprep.subr.mxu0 0.0
    %3943 = vmatpush1.xpose.msra.mxu0 0.0
    %3944 = vmatprep.subr.mxu0 0.0
    %3945 = vmatpush1.xpose.msra.mxu0 0.0
    %3946 = vmatprep.subr.mxu0 0.0
    %3947 = vmatpush1.xpose.msra.mxu0 %v3914
    %3948 = vmatprep.subr.mxu0 0.0
    %3949 = vmatpush2.xpose.msra.mxu0 0.0
    %3950 = vmatprep.subr.mxu0 0.0
    %3951 = vmatpush2.xpose.msra.mxu0 0.0
    %3952 = vmatprep.subr.mxu0 0.0
    %3953 = vmatpush2.xpose.msra.mxu0 0.0
    %3954 = vmatprep.subr.mxu0 0.0
    %3955 = vmatpush2.xpose.msra.mxu0 0.0
    %3956 = vmatprep.subr.mxu0 0.0
    %3957 = vmatpush2.xpose.msra.mxu0 0.0
    %3958 = vmatprep.subr.mxu0 0.0
    %3959 = vmatpush2.xpose.msra.mxu0 0.0
    %3960 = vmatprep.subr.mxu0 0.0
    %3961 = vmatpush2.xpose.msra.mxu0 0.0
    %3962 = vmatprep.subr.mxu0 0.0
    %3963 = vmatpush2.xpose.msra.mxu0 0.0
    %3964 = vmatprep.subr.mxu0 0.0
    %3965 = vmatpush2.xpose.msra.mxu0 0.0
    %3966 = vmatprep.subr.mxu0 0.0
    %3967 = vmatpush2.xpose.msra.mxu0 0.0
    %3968 = vmatprep.subr.mxu0 0.0
    %3969 = vmatpush2.xpose.msra.mxu0 0.0
    %3970 = vmatprep.subr.mxu0 0.0
    %3971 = vmatpush2.xpose.msra.mxu0 0.0
    %3972 = vmatprep.subr.mxu0 0.0
    %3973 = vmatpush2.xpose.msra.mxu0 0.0
    %3974 = vmatprep.subr.mxu0 0.0
    %3975 = vmatpush2.xpose.msra.mxu0 0.0
    %3976 = vmatprep.subr.mxu0 0.0
    %3977 = vmatpush2.xpose.msra.mxu0 0.0
    %3978 = vmatprep.subr.mxu0 0.0
    %3979 = vmatpush2.xpose.msra.mxu0 0.0
    %3980 = vmatprep.mubr.f32.mxu0 0.0
    %3981 = vmatmul.mubr.f32.gmra.mxu0 %v3912
    %v3982 = vpop.f32.mrf.mxu0
    %v3983 = vadd.f32 0.0, %v3982
    %v3984 = vpop.f32.mrf.mxu0
    %3985 = vdwg.mxu0
    %3986 = vrot.lane.b32.xlu0 %v3749, 96
    %v3987 = vpop.permute.xlu0 %3986
    %v3988 = vsel %vm197, %v3749, 0
    %v3990 = vsel %vm197, %v3987, 0
    %3992 = vmatprep.subr.mxu0 0.0
    %3993 = vmatpush1.xpose.msra.mxu0 0.0
    %3994 = vmatprep.subr.mxu0 0.0
    %3995 = vmatpush1.xpose.msra.mxu0 0.0
    %3996 = vmatprep.subr.mxu0 0.0
    %3997 = vmatpush1.xpose.msra.mxu0 0.0
    %3998 = vmatprep.subr.mxu0 0.0
    %3999 = vmatpush1.xpose.msra.mxu0 0.0
    %4000 = vmatprep.subr.mxu0 0.0
    %4001 = vmatpush1.xpose.msra.mxu0 0.0
    %4002 = vmatprep.subr.mxu0 0.0
    %4003 = vmatpush1.xpose.msra.mxu0 0.0
    %4004 = vmatprep.subr.mxu0 0.0
    %4005 = vmatpush1.xpose.msra.mxu0 0.0
    %4006 = vmatprep.subr.mxu0 0.0
    %4007 = vmatpush1.xpose.msra.mxu0 0.0
    %4008 = vmatprep.subr.mxu0 0.0
    %4009 = vmatpush1.xpose.msra.mxu0 0.0
    %4010 = vmatprep.subr.mxu0 0.0
    %4011 = vmatpush1.xpose.msra.mxu0 0.0
    %4012 = vmatprep.subr.mxu0 0.0
    %4013 = vmatpush1.xpose.msra.mxu0 0.0
    %4014 = vmatprep.subr.mxu0 0.0
    %4015 = vmatpush1.xpose.msra.mxu0 0.0
    %4016 = vmatprep.subr.mxu0 0.0
    %4017 = vmatpush1.xpose.msra.mxu0 0.0
    %4018 = vmatprep.subr.mxu0 0.0
    %4019 = vmatpush1.xpose.msra.mxu0 0.0
    %4020 = vmatprep.subr.mxu0 0.0
    %4021 = vmatpush1.xpose.msra.mxu0 0.0
    %4022 = vmatprep.subr.mxu0 0.0
    %4023 = vmatpush1.xpose.msra.mxu0 %v3990
    %4024 = vmatprep.subr.mxu0 0.0
    %4025 = vmatpush2.xpose.msra.mxu0 0.0
    %4026 = vmatprep.subr.mxu0 0.0
    %4027 = vmatpush2.xpose.msra.mxu0 0.0
    %4028 = vmatprep.subr.mxu0 0.0
    %4029 = vmatpush2.xpose.msra.mxu0 0.0
    %4030 = vmatprep.subr.mxu0 0.0
    %4031 = vmatpush2.xpose.msra.mxu0 0.0
    %4032 = vmatprep.subr.mxu0 0.0
    %4033 = vmatpush2.xpose.msra.mxu0 0.0
    %4034 = vmatprep.subr.mxu0 0.0
    %4035 = vmatpush2.xpose.msra.mxu0 0.0
    %4036 = vmatprep.subr.mxu0 0.0
    %4037 = vmatpush2.xpose.msra.mxu0 0.0
    %4038 = vmatprep.subr.mxu0 0.0
    %4039 = vmatpush2.xpose.msra.mxu0 0.0
    %4040 = vmatprep.subr.mxu0 0.0
    %4041 = vmatpush2.xpose.msra.mxu0 0.0
    %4042 = vmatprep.subr.mxu0 0.0
    %4043 = vmatpush2.xpose.msra.mxu0 0.0
    %4044 = vmatprep.subr.mxu0 0.0
    %4045 = vmatpush2.xpose.msra.mxu0 0.0
    %4046 = vmatprep.subr.mxu0 0.0
    %4047 = vmatpush2.xpose.msra.mxu0 0.0
    %4048 = vmatprep.subr.mxu0 0.0
    %4049 = vmatpush2.xpose.msra.mxu0 0.0
    %4050 = vmatprep.subr.mxu0 0.0
    %4051 = vmatpush2.xpose.msra.mxu0 0.0
    %4052 = vmatprep.subr.mxu0 0.0
    %4053 = vmatpush2.xpose.msra.mxu0 0.0
    %4054 = vmatprep.subr.mxu0 0.0
    %4055 = vmatpush2.xpose.msra.mxu0 0.0
    %4056 = vmatprep.mubr.f32.mxu0 0.0
    %4057 = vmatmul.mubr.f32.gmra.mxu0 %v3988
    %v4058 = vpop.f32.mrf.mxu0
    %v4059 = vadd.f32 0.0, %v4058
    %v4060 = vpop.f32.mrf.mxu0
    %4061 = vdwg.mxu0
    %4062 = vrot.lane.b32.xlu0 %v3751, 96
    %v4063 = vpop.permute.xlu0 %4062
    %v4064 = vsel %vm197, %v3751, 0
    %v4066 = vsel %vm197, %v4063, 0
    %4068 = vmatprep.subr.mxu0 0.0
    %4069 = vmatpush1.xpose.msra.mxu0 0.0
    %4070 = vmatprep.subr.mxu0 0.0
    %4071 = vmatpush1.xpose.msra.mxu0 0.0
    %4072 = vmatprep.subr.mxu0 0.0
    %4073 = vmatpush1.xpose.msra.mxu0 0.0
    %4074 = vmatprep.subr.mxu0 0.0
    %4075 = vmatpush1.xpose.msra.mxu0 0.0
    %4076 = vmatprep.subr.mxu0 0.0
    %4077 = vmatpush1.xpose.msra.mxu0 0.0
    %4078 = vmatprep.subr.mxu0 0.0
    %4079 = vmatpush1.xpose.msra.mxu0 0.0
    %4080 = vmatprep.subr.mxu0 0.0
    %4081 = vmatpush1.xpose.msra.mxu0 0.0
    %4082 = vmatprep.subr.mxu0 0.0
    %4083 = vmatpush1.xpose.msra.mxu0 0.0
    %4084 = vmatprep.subr.mxu0 0.0
    %4085 = vmatpush1.xpose.msra.mxu0 0.0
    %4086 = vmatprep.subr.mxu0 0.0
    %4087 = vmatpush1.xpose.msra.mxu0 0.0
    %4088 = vmatprep.subr.mxu0 0.0
    %4089 = vmatpush1.xpose.msra.mxu0 0.0
    %4090 = vmatprep.subr.mxu0 0.0
    %4091 = vmatpush1.xpose.msra.mxu0 0.0
    %4092 = vmatprep.subr.mxu0 0.0
    %4093 = vmatpush1.xpose.msra.mxu0 0.0
    %4094 = vmatprep.subr.mxu0 0.0
    %4095 = vmatpush1.xpose.msra.mxu0 0.0
    %4096 = vmatprep.subr.mxu0 0.0
    %4097 = vmatpush1.xpose.msra.mxu0 0.0
    %4098 = vmatprep.subr.mxu0 0.0
    %4099 = vmatpush1.xpose.msra.mxu0 %v4066
    %4100 = vmatprep.subr.mxu0 0.0
    %4101 = vmatpush2.xpose.msra.mxu0 0.0
    %4102 = vmatprep.subr.mxu0 0.0
    %4103 = vmatpush2.xpose.msra.mxu0 0.0
    %4104 = vmatprep.subr.mxu0 0.0
    %4105 = vmatpush2.xpose.msra.mxu0 0.0
    %4106 = vmatprep.subr.mxu0 0.0
    %4107 = vmatpush2.xpose.msra.mxu0 0.0
    %4108 = vmatprep.subr.mxu0 0.0
    %4109 = vmatpush2.xpose.msra.mxu0 0.0
    %4110 = vmatprep.subr.mxu0 0.0
    %4111 = vmatpush2.xpose.msra.mxu0 0.0
    %4112 = vmatprep.subr.mxu0 0.0
    %4113 = vmatpush2.xpose.msra.mxu0 0.0
    %4114 = vmatprep.subr.mxu0 0.0
    %4115 = vmatpush2.xpose.msra.mxu0 0.0
    %4116 = vmatprep.subr.mxu0 0.0
    %4117 = vmatpush2.xpose.msra.mxu0 0.0
    %4118 = vmatprep.subr.mxu0 0.0
    %4119 = vmatpush2.xpose.msra.mxu0 0.0
    %4120 = vmatprep.subr.mxu0 0.0
    %4121 = vmatpush2.xpose.msra.mxu0 0.0
    %4122 = vmatprep.subr.mxu0 0.0
    %4123 = vmatpush2.xpose.msra.mxu0 0.0
    %4124 = vmatprep.subr.mxu0 0.0
    %4125 = vmatpush2.xpose.msra.mxu0 0.0
    %4126 = vmatprep.subr.mxu0 0.0
    %4127 = vmatpush2.xpose.msra.mxu0 0.0
    %4128 = vmatprep.subr.mxu0 0.0
    %4129 = vmatpush2.xpose.msra.mxu0 0.0
    %4130 = vmatprep.subr.mxu0 0.0
    %4131 = vmatpush2.xpose.msra.mxu0 0.0
    %4132 = vmatprep.mubr.f32.mxu0 0.0
    %4133 = vmatmul.mubr.f32.gmra.mxu0 %v4064
    %v4134 = vpop.f32.mrf.mxu0
    %v4135 = vadd.f32 0.0, %v4134
    %v4136 = vpop.f32.mrf.mxu0
    %4137 = vdwg.mxu0
    %4138 = vrot.lane.b32.xlu0 %v3753, 96
    %v4139 = vpop.permute.xlu0 %4138
    %v4140 = vsel %vm197, %v3753, 0
    %v4142 = vsel %vm197, %v4139, 0
    %4144 = vmatprep.subr.mxu0 0.0
    %4145 = vmatpush1.xpose.msra.mxu0 0.0
    %4146 = vmatprep.subr.mxu0 0.0
    %4147 = vmatpush1.xpose.msra.mxu0 0.0
    %4148 = vmatprep.subr.mxu0 0.0
    %4149 = vmatpush1.xpose.msra.mxu0 0.0
    %4150 = vmatprep.subr.mxu0 0.0
    %4151 = vmatpush1.xpose.msra.mxu0 0.0
    %4152 = vmatprep.subr.mxu0 0.0
    %4153 = vmatpush1.xpose.msra.mxu0 0.0
    %4154 = vmatprep.subr.mxu0 0.0
    %4155 = vmatpush1.xpose.msra.mxu0 0.0
    %4156 = vmatprep.subr.mxu0 0.0
    %4157 = vmatpush1.xpose.msra.mxu0 0.0
    %4158 = vmatprep.subr.mxu0 0.0
    %4159 = vmatpush1.xpose.msra.mxu0 0.0
    %4160 = vmatprep.subr.mxu0 0.0
    %4161 = vmatpush1.xpose.msra.mxu0 0.0
    %4162 = vmatprep.subr.mxu0 0.0
    %4163 = vmatpush1.xpose.msra.mxu0 0.0
    %4164 = vmatprep.subr.mxu0 0.0
    %4165 = vmatpush1.xpose.msra.mxu0 0.0
    %4166 = vmatprep.subr.mxu0 0.0
    %4167 = vmatpush1.xpose.msra.mxu0 0.0
    %4168 = vmatprep.subr.mxu0 0.0
    %4169 = vmatpush1.xpose.msra.mxu0 0.0
    %4170 = vmatprep.subr.mxu0 0.0
    %4171 = vmatpush1.xpose.msra.mxu0 0.0
    %4172 = vmatprep.subr.mxu0 0.0
    %4173 = vmatpush1.xpose.msra.mxu0 0.0
    %4174 = vmatprep.subr.mxu0 0.0
    %4175 = vmatpush1.xpose.msra.mxu0 %v4142
    %4176 = vmatprep.subr.mxu0 0.0
    %4177 = vmatpush2.xpose.msra.mxu0 0.0
    %4178 = vmatprep.subr.mxu0 0.0
    %4179 = vmatpush2.xpose.msra.mxu0 0.0
    %4180 = vmatprep.subr.mxu0 0.0
    %4181 = vmatpush2.xpose.msra.mxu0 0.0
    %4182 = vmatprep.subr.mxu0 0.0
    %4183 = vmatpush2.xpose.msra.mxu0 0.0
    %4184 = vmatprep.subr.mxu0 0.0
    %4185 = vmatpush2.xpose.msra.mxu0 0.0
    %4186 = vmatprep.subr.mxu0 0.0
    %4187 = vmatpush2.xpose.msra.mxu0 0.0
    %4188 = vmatprep.subr.mxu0 0.0
    %4189 = vmatpush2.xpose.msra.mxu0 0.0
    %4190 = vmatprep.subr.mxu0 0.0
    %4191 = vmatpush2.xpose.msra.mxu0 0.0
    %4192 = vmatprep.subr.mxu0 0.0
    %4193 = vmatpush2.xpose.msra.mxu0 0.0
    %4194 = vmatprep.subr.mxu0 0.0
    %4195 = vmatpush2.xpose.msra.mxu0 0.0
    %4196 = vmatprep.subr.mxu0 0.0
    %4197 = vmatpush2.xpose.msra.mxu0 0.0
    %4198 = vmatprep.subr.mxu0 0.0
    %4199 = vmatpush2.xpose.msra.mxu0 0.0
    %4200 = vmatprep.subr.mxu0 0.0
    %4201 = vmatpush2.xpose.msra.mxu0 0.0
    %4202 = vmatprep.subr.mxu0 0.0
    %4203 = vmatpush2.xpose.msra.mxu0 0.0
    %4204 = vmatprep.subr.mxu0 0.0
    %4205 = vmatpush2.xpose.msra.mxu0 0.0
    %4206 = vmatprep.subr.mxu0 0.0
    %4207 = vmatpush2.xpose.msra.mxu0 0.0
    %4208 = vmatprep.mubr.f32.mxu0 0.0
    %4209 = vmatmul.mubr.f32.gmra.mxu0 %v4140
    %v4210 = vpop.f32.mrf.mxu0
    %v4211 = vadd.f32 0.0, %v4210
    %v4212 = vpop.f32.mrf.mxu0
    %4213 = vdwg.mxu0
    %4214 = vrot.lane.b32.xlu0 %v3755, 96
    %v4215 = vpop.permute.xlu0 %4214
    %v4216 = vsel %vm197, %v3755, 0
    %v4218 = vsel %vm197, %v4215, 0
    %4220 = vmatprep.subr.mxu0 0.0
    %4221 = vmatpush1.xpose.msra.mxu0 0.0
    %4222 = vmatprep.subr.mxu0 0.0
    %4223 = vmatpush1.xpose.msra.mxu0 0.0
    %4224 = vmatprep.subr.mxu0 0.0
    %4225 = vmatpush1.xpose.msra.mxu0 0.0
    %4226 = vmatprep.subr.mxu0 0.0
    %4227 = vmatpush1.xpose.msra.mxu0 0.0
    %4228 = vmatprep.subr.mxu0 0.0
    %4229 = vmatpush1.xpose.msra.mxu0 0.0
    %4230 = vmatprep.subr.mxu0 0.0
    %4231 = vmatpush1.xpose.msra.mxu0 0.0
    %4232 = vmatprep.subr.mxu0 0.0
    %4233 = vmatpush1.xpose.msra.mxu0 0.0
    %4234 = vmatprep.subr.mxu0 0.0
    %4235 = vmatpush1.xpose.msra.mxu0 0.0
    %4236 = vmatprep.subr.mxu0 0.0
    %4237 = vmatpush1.xpose.msra.mxu0 0.0
    %4238 = vmatprep.subr.mxu0 0.0
    %4239 = vmatpush1.xpose.msra.mxu0 0.0
    %4240 = vmatprep.subr.mxu0 0.0
    %4241 = vmatpush1.xpose.msra.mxu0 0.0
    %4242 = vmatprep.subr.mxu0 0.0
    %4243 = vmatpush1.xpose.msra.mxu0 0.0
    %4244 = vmatprep.subr.mxu0 0.0
    %4245 = vmatpush1.xpose.msra.mxu0 0.0
    %4246 = vmatprep.subr.mxu0 0.0
    %4247 = vmatpush1.xpose.msra.mxu0 0.0
    %4248 = vmatprep.subr.mxu0 0.0
    %4249 = vmatpush1.xpose.msra.mxu0 0.0
    %4250 = vmatprep.subr.mxu0 0.0
    %4251 = vmatpush1.xpose.msra.mxu0 %v4218
    %4252 = vmatprep.subr.mxu0 0.0
    %4253 = vmatpush2.xpose.msra.mxu0 0.0
    %4254 = vmatprep.subr.mxu0 0.0
    %4255 = vmatpush2.xpose.msra.mxu0 0.0
    %4256 = vmatprep.subr.mxu0 0.0
    %4257 = vmatpush2.xpose.msra.mxu0 0.0
    %4258 = vmatprep.subr.mxu0 0.0
    %4259 = vmatpush2.xpose.msra.mxu0 0.0
    %4260 = vmatprep.subr.mxu0 0.0
    %4261 = vmatpush2.xpose.msra.mxu0 0.0
    %4262 = vmatprep.subr.mxu0 0.0
    %4263 = vmatpush2.xpose.msra.mxu0 0.0
    %4264 = vmatprep.subr.mxu0 0.0
    %4265 = vmatpush2.xpose.msra.mxu0 0.0
    %4266 = vmatprep.subr.mxu0 0.0
    %4267 = vmatpush2.xpose.msra.mxu0 0.0
    %4268 = vmatprep.subr.mxu0 0.0
    %4269 = vmatpush2.xpose.msra.mxu0 0.0
    %4270 = vmatprep.subr.mxu0 0.0
    %4271 = vmatpush2.xpose.msra.mxu0 0.0
    %4272 = vmatprep.subr.mxu0 0.0
    %4273 = vmatpush2.xpose.msra.mxu0 0.0
    %4274 = vmatprep.subr.mxu0 0.0
    %4275 = vmatpush2.xpose.msra.mxu0 0.0
    %4276 = vmatprep.subr.mxu0 0.0
    %4277 = vmatpush2.xpose.msra.mxu0 0.0
    %4278 = vmatprep.subr.mxu0 0.0
    %4279 = vmatpush2.xpose.msra.mxu0 0.0
    %4280 = vmatprep.subr.mxu0 0.0
    %4281 = vmatpush2.xpose.msra.mxu0 0.0
    %4282 = vmatprep.subr.mxu0 0.0
    %4283 = vmatpush2.xpose.msra.mxu0 0.0
    %4284 = vmatprep.mubr.f32.mxu0 0.0
    %4285 = vmatmul.mubr.f32.gmra.mxu0 %v4216
    %v4286 = vpop.f32.mrf.mxu0
    %v4287 = vadd.f32 0.0, %v4286
    %v4288 = vpop.f32.mrf.mxu0
    %4289 = vdwg.mxu0
    %4290 = vrot.lane.b32.xlu0 %v3757, 96
    %v4291 = vpop.permute.xlu0 %4290
    %v4292 = vsel %vm197, %v3757, 0
    %v4294 = vsel %vm197, %v4291, 0
    %4296 = vmatprep.subr.mxu0 0.0
    %4297 = vmatpush1.xpose.msra.mxu0 0.0
    %4298 = vmatprep.subr.mxu0 0.0
    %4299 = vmatpush1.xpose.msra.mxu0 0.0
    %4300 = vmatprep.subr.mxu0 0.0
    %4301 = vmatpush1.xpose.msra.mxu0 0.0
    %4302 = vmatprep.subr.mxu0 0.0
    %4303 = vmatpush1.xpose.msra.mxu0 0.0
    %4304 = vmatprep.subr.mxu0 0.0
    %4305 = vmatpush1.xpose.msra.mxu0 0.0
    %4306 = vmatprep.subr.mxu0 0.0
    %4307 = vmatpush1.xpose.msra.mxu0 0.0
    %4308 = vmatprep.subr.mxu0 0.0
    %4309 = vmatpush1.xpose.msra.mxu0 0.0
    %4310 = vmatprep.subr.mxu0 0.0
    %4311 = vmatpush1.xpose.msra.mxu0 0.0
    %4312 = vmatprep.subr.mxu0 0.0
    %4313 = vmatpush1.xpose.msra.mxu0 0.0
    %4314 = vmatprep.subr.mxu0 0.0
    %4315 = vmatpush1.xpose.msra.mxu0 0.0
    %4316 = vmatprep.subr.mxu0 0.0
    %4317 = vmatpush1.xpose.msra.mxu0 0.0
    %4318 = vmatprep.subr.mxu0 0.0
    %4319 = vmatpush1.xpose.msra.mxu0 0.0
    %4320 = vmatprep.subr.mxu0 0.0
    %4321 = vmatpush1.xpose.msra.mxu0 0.0
    %4322 = vmatprep.subr.mxu0 0.0
    %4323 = vmatpush1.xpose.msra.mxu0 0.0
    %4324 = vmatprep.subr.mxu0 0.0
    %4325 = vmatpush1.xpose.msra.mxu0 0.0
    %4326 = vmatprep.subr.mxu0 0.0
    %4327 = vmatpush1.xpose.msra.mxu0 %v4294
    %4328 = vmatprep.subr.mxu0 0.0
    %4329 = vmatpush2.xpose.msra.mxu0 0.0
    %4330 = vmatprep.subr.mxu0 0.0
    %4331 = vmatpush2.xpose.msra.mxu0 0.0
    %4332 = vmatprep.subr.mxu0 0.0
    %4333 = vmatpush2.xpose.msra.mxu0 0.0
    %4334 = vmatprep.subr.mxu0 0.0
    %4335 = vmatpush2.xpose.msra.mxu0 0.0
    %4336 = vmatprep.subr.mxu0 0.0
    %4337 = vmatpush2.xpose.msra.mxu0 0.0
    %4338 = vmatprep.subr.mxu0 0.0
    %4339 = vmatpush2.xpose.msra.mxu0 0.0
    %4340 = vmatprep.subr.mxu0 0.0
    %4341 = vmatpush2.xpose.msra.mxu0 0.0
    %4342 = vmatprep.subr.mxu0 0.0
    %4343 = vmatpush2.xpose.msra.mxu0 0.0
    %4344 = vmatprep.subr.mxu0 0.0
    %4345 = vmatpush2.xpose.msra.mxu0 0.0
    %4346 = vmatprep.subr.mxu0 0.0
    %4347 = vmatpush2.xpose.msra.mxu0 0.0
    %4348 = vmatprep.subr.mxu0 0.0
    %4349 = vmatpush2.xpose.msra.mxu0 0.0
    %4350 = vmatprep.subr.mxu0 0.0
    %4351 = vmatpush2.xpose.msra.mxu0 0.0
    %4352 = vmatprep.subr.mxu0 0.0
    %4353 = vmatpush2.xpose.msra.mxu0 0.0
    %4354 = vmatprep.subr.mxu0 0.0
    %4355 = vmatpush2.xpose.msra.mxu0 0.0
    %4356 = vmatprep.subr.mxu0 0.0
    %4357 = vmatpush2.xpose.msra.mxu0 0.0
    %4358 = vmatprep.subr.mxu0 0.0
    %4359 = vmatpush2.xpose.msra.mxu0 0.0
    %4360 = vmatprep.mubr.f32.mxu0 0.0
    %4361 = vmatmul.mubr.f32.gmra.mxu0 %v4292
    %v4362 = vpop.f32.mrf.mxu0
    %v4363 = vadd.f32 0.0, %v4362
    %v4364 = vpop.f32.mrf.mxu0
    %4365 = vdwg.mxu0
    %v4366 = vmul.f32 %v3831, 0.35355338
    %v4367 = vmul.f32 %v3907, 0.35355338
    %v4368 = vmul.f32 %v3983, 0.35355338
    %v4369 = vmul.f32 %v4059, 0.35355338
    %v4370 = vmul.f32 %v4135, 0.35355338
    %v4371 = vmul.f32 %v4211, 0.35355338
    %v4372 = vmul.f32 %v4287, 0.35355338
    %v4373 = vmul.f32 %v4363, 0.35355338
    %v4374 = vsel %vm197, %v4366, -inf
    %4375 = vmax.xlane.f32.xlu0 %v4374
    %v4376 = vpop.xlane.xlu0 %4375
    %v4377 = vsel %vm197, %v4367, -inf
    %4378 = vmax.xlane.f32.xlu0 %v4377
    %v4379 = vpop.xlane.xlu0 %4378
    %v4380 = vsel %vm197, %v4368, -inf
    %4381 = vmax.xlane.f32.xlu0 %v4380
    %v4382 = vpop.xlane.xlu0 %4381
    %v4383 = vsel %vm197, %v4369, -inf
    %4384 = vmax.xlane.f32.xlu0 %v4383
    %v4385 = vpop.xlane.xlu0 %4384
    %v4386 = vsel %vm197, %v4370, -inf
    %4387 = vmax.xlane.f32.xlu0 %v4386
    %v4388 = vpop.xlane.xlu0 %4387
    %v4389 = vsel %vm197, %v4371, -inf
    %4390 = vmax.xlane.f32.xlu0 %v4389
    %v4391 = vpop.xlane.xlu0 %4390
    %v4392 = vsel %vm197, %v4372, -inf
    %4393 = vmax.xlane.f32.xlu0 %v4392
    %v4394 = vpop.xlane.xlu0 %4393
    %v4395 = vsel %vm197, %v4373, -inf
    %4396 = vmax.xlane.f32.xlu0 %v4395
    %v4397 = vpop.xlane.xlu0 %4396
    %v4398 = vsub.f32 %v4366, %v4376
    %v4399 = vsub.f32 %v4367, %v4379
    %v4400 = vsub.f32 %v4368, %v4382
    %v4401 = vsub.f32 %v4369, %v4385
    %v4402 = vsub.f32 %v4370, %v4388
    %v4403 = vsub.f32 %v4371, %v4391
    %v4404 = vsub.f32 %v4372, %v4394
    %v4405 = vsub.f32 %v4373, %v4397
    %v4406 = vmul.f32 %v4398, 1.442695
    %v4407 = vpow.pop %v4406
    %v4408 = vmul.f32 %v4399, 1.442695
    %v4409 = vpow.pop %v4408
    %v4410 = vmul.f32 %v4400, 1.442695
    %v4411 = vpow.pop %v4410
    %v4412 = vmul.f32 %v4401, 1.442695
    %v4413 = vpow.pop %v4412
    %v4414 = vmul.f32 %v4402, 1.442695
    %v4415 = vpow.pop %v4414
    %v4416 = vmul.f32 %v4403, 1.442695
    %v4417 = vpow.pop %v4416
    %v4418 = vmul.f32 %v4404, 1.442695
    %v4419 = vpow.pop %v4418
    %v4420 = vmul.f32 %v4405, 1.442695
    %v4421 = vpow.pop %v4420
    %v4422 = vsel %vm197, %v4407, 0.0
    %4423 = vadd.xlane.f32.xlu0 %v4422
    %v4424 = vpop.xlane.xlu0 %4423
    %v4425 = vsel %vm197, %v4409, 0.0
    %4426 = vadd.xlane.f32.xlu0 %v4425
    %v4427 = vpop.xlane.xlu0 %4426
    %v4428 = vsel %vm197, %v4411, 0.0
    %4429 = vadd.xlane.f32.xlu0 %v4428
    %v4430 = vpop.xlane.xlu0 %4429
    %v4431 = vsel %vm197, %v4413, 0.0
    %4432 = vadd.xlane.f32.xlu0 %v4431
    %v4433 = vpop.xlane.xlu0 %4432
    %v4434 = vsel %vm197, %v4415, 0.0
    %4435 = vadd.xlane.f32.xlu0 %v4434
    %v4436 = vpop.xlane.xlu0 %4435
    %v4437 = vsel %vm197, %v4417, 0.0
    %4438 = vadd.xlane.f32.xlu0 %v4437
    %v4439 = vpop.xlane.xlu0 %4438
    %v4440 = vsel %vm197, %v4419, 0.0
    %4441 = vadd.xlane.f32.xlu0 %v4440
    %v4442 = vpop.xlane.xlu0 %4441
    %v4443 = vsel %vm197, %v4421, 0.0
    %4444 = vadd.xlane.f32.xlu0 %v4443
    %v4445 = vpop.xlane.xlu0 %4444
    %v4446 = vrcp.pop %v4424
    %v4447 = vmul.f32 %v4407, %v4446
    %v4448 = vrcp.pop %v4427
    %v4449 = vmul.f32 %v4409, %v4448
    %v4450 = vrcp.pop %v4430
    %v4451 = vmul.f32 %v4411, %v4450
    %v4452 = vrcp.pop %v4433
    %v4453 = vmul.f32 %v4413, %v4452
    %v4454 = vrcp.pop %v4436
    %v4455 = vmul.f32 %v4415, %v4454
    %v4456 = vrcp.pop %v4439
    %v4457 = vmul.f32 %v4417, %v4456
    %v4458 = vrcp.pop %v4442
    %v4459 = vmul.f32 %v4419, %v4458
    %v4460 = vrcp.pop %v4445
    %v4461 = vmul.f32 %v4421, %v4460
    %4462 = vrot.lane.b32.xlu0 %v3736, 64
    %v4463 = vpop.permute.xlu0 %4462
    %v4466 = vsel %vm197, %v4447, 0
    %4468 = vmatprep.subr.mxu0 0.0
    %4469 = vmatpush1.msra.mxu0 0.0
    %4470 = vmatprep.subr.mxu0 0.0
    %4471 = vmatpush1.msra.mxu0 0.0
    %4472 = vmatprep.subr.mxu0 0.0
    %4473 = vmatpush1.msra.mxu0 0.0
    %4474 = vmatprep.subr.mxu0 0.0
    %4475 = vmatpush1.msra.mxu0 0.0
    %4476 = vmatprep.subr.mxu0 0.0
    %4477 = vmatpush1.msra.mxu0 0.0
    %4478 = vmatprep.subr.mxu0 0.0
    %4479 = vmatpush1.msra.mxu0 0.0
    %4480 = vmatprep.subr.mxu0 0.0
    %4481 = vmatpush1.msra.mxu0 0.0
    %4482 = vmatprep.subr.mxu0 0.0
    %4483 = vmatpush1.msra.mxu0 0.0
    %4484 = vmatprep.subr.mxu0 0.0
    %4485 = vmatpush1.msra.mxu0 0.0
    %4486 = vmatprep.subr.mxu0 0.0
    %4487 = vmatpush1.msra.mxu0 0.0
    %4488 = vmatprep.subr.mxu0 0.0
    %4489 = vmatpush1.msra.mxu0 0.0
    %4490 = vmatprep.subr.mxu0 0.0
    %4491 = vmatpush1.msra.mxu0 0.0
    %4492 = vmatprep.subr.mxu0 0.0
    %4493 = vmatpush1.msra.mxu0 0.0
    %4494 = vmatprep.subr.mxu0 0.0
    %4495 = vmatpush1.msra.mxu0 0.0
    %4496 = vmatprep.subr.mxu0 0.0
    %4497 = vmatpush1.msra.mxu0 0.0
    %4498 = vmatprep.subr.mxu0 0.0
    %4499 = vmatpush1.msra.mxu0 %v4463
    %4500 = vmatprep.subr.mxu0 0.0
    %4501 = vmatpush2.msra.mxu0 0.0
    %4502 = vmatprep.subr.mxu0 0.0
    %4503 = vmatpush2.msra.mxu0 0.0
    %4504 = vmatprep.subr.mxu0 0.0
    %4505 = vmatpush2.msra.mxu0 0.0
    %4506 = vmatprep.subr.mxu0 0.0
    %4507 = vmatpush2.msra.mxu0 0.0
    %4508 = vmatprep.subr.mxu0 0.0
    %4509 = vmatpush2.msra.mxu0 0.0
    %4510 = vmatprep.subr.mxu0 0.0
    %4511 = vmatpush2.msra.mxu0 0.0
    %4512 = vmatprep.subr.mxu0 0.0
    %4513 = vmatpush2.msra.mxu0 0.0
    %4514 = vmatprep.subr.mxu0 0.0
    %4515 = vmatpush2.msra.mxu0 0.0
    %4516 = vmatprep.subr.mxu0 0.0
    %4517 = vmatpush2.msra.mxu0 0.0
    %4518 = vmatprep.subr.mxu0 0.0
    %4519 = vmatpush2.msra.mxu0 0.0
    %4520 = vmatprep.subr.mxu0 0.0
    %4521 = vmatpush2.msra.mxu0 0.0
    %4522 = vmatprep.subr.mxu0 0.0
    %4523 = vmatpush2.msra.mxu0 0.0
    %4524 = vmatprep.subr.mxu0 0.0
    %4525 = vmatpush2.msra.mxu0 0.0
    %4526 = vmatprep.subr.mxu0 0.0
    %4527 = vmatpush2.msra.mxu0 0.0
    %4528 = vmatprep.subr.mxu0 0.0
    %4529 = vmatpush2.msra.mxu0 0.0
    %4530 = vmatprep.subr.mxu0 0.0
    %4531 = vmatpush2.msra.mxu0 0.0
    %4532 = vmatprep.mubr.f32.mxu0 0.0
    %4533 = vmatmul.mubr.f32.gmra.mxu0 %v4466
    %v4534 = vpop.f32.mrf.mxu0
    %v4535 = vadd.f32 0.0, %v4534
    %v4536 = vpop.f32.mrf.mxu0
    %4537 = vdwg.mxu0
    %4538 = vrot.lane.b32.xlu0 %v3741, 64
    %v4539 = vpop.permute.xlu0 %4538
    %v4542 = vsel %vm197, %v4449, 0
    %4544 = vmatprep.subr.mxu0 0.0
    %4545 = vmatpush1.msra.mxu0 0.0
    %4546 = vmatprep.subr.mxu0 0.0
    %4547 = vmatpush1.msra.mxu0 0.0
    %4548 = vmatprep.subr.mxu0 0.0
    %4549 = vmatpush1.msra.mxu0 0.0
    %4550 = vmatprep.subr.mxu0 0.0
    %4551 = vmatpush1.msra.mxu0 0.0
    %4552 = vmatprep.subr.mxu0 0.0
    %4553 = vmatpush1.msra.mxu0 0.0
    %4554 = vmatprep.subr.mxu0 0.0
    %4555 = vmatpush1.msra.mxu0 0.0
    %4556 = vmatprep.subr.mxu0 0.0
    %4557 = vmatpush1.msra.mxu0 0.0
    %4558 = vmatprep.subr.mxu0 0.0
    %4559 = vmatpush1.msra.mxu0 0.0
    %4560 = vmatprep.subr.mxu0 0.0
    %4561 = vmatpush1.msra.mxu0 0.0
    %4562 = vmatprep.subr.mxu0 0.0
    %4563 = vmatpush1.msra.mxu0 0.0
    %4564 = vmatprep.subr.mxu0 0.0
    %4565 = vmatpush1.msra.mxu0 0.0
    %4566 = vmatprep.subr.mxu0 0.0
    %4567 = vmatpush1.msra.mxu0 0.0
    %4568 = vmatprep.subr.mxu0 0.0
    %4569 = vmatpush1.msra.mxu0 0.0
    %4570 = vmatprep.subr.mxu0 0.0
    %4571 = vmatpush1.msra.mxu0 0.0
    %4572 = vmatprep.subr.mxu0 0.0
    %4573 = vmatpush1.msra.mxu0 0.0
    %4574 = vmatprep.subr.mxu0 0.0
    %4575 = vmatpush1.msra.mxu0 %v4539
    %4576 = vmatprep.subr.mxu0 0.0
    %4577 = vmatpush2.msra.mxu0 0.0
    %4578 = vmatprep.subr.mxu0 0.0
    %4579 = vmatpush2.msra.mxu0 0.0
    %4580 = vmatprep.subr.mxu0 0.0
    %4581 = vmatpush2.msra.mxu0 0.0
    %4582 = vmatprep.subr.mxu0 0.0
    %4583 = vmatpush2.msra.mxu0 0.0
    %4584 = vmatprep.subr.mxu0 0.0
    %4585 = vmatpush2.msra.mxu0 0.0
    %4586 = vmatprep.subr.mxu0 0.0
    %4587 = vmatpush2.msra.mxu0 0.0
    %4588 = vmatprep.subr.mxu0 0.0
    %4589 = vmatpush2.msra.mxu0 0.0
    %4590 = vmatprep.subr.mxu0 0.0
    %4591 = vmatpush2.msra.mxu0 0.0
    %4592 = vmatprep.subr.mxu0 0.0
    %4593 = vmatpush2.msra.mxu0 0.0
    %4594 = vmatprep.subr.mxu0 0.0
    %4595 = vmatpush2.msra.mxu0 0.0
    %4596 = vmatprep.subr.mxu0 0.0
    %4597 = vmatpush2.msra.mxu0 0.0
    %4598 = vmatprep.subr.mxu0 0.0
    %4599 = vmatpush2.msra.mxu0 0.0
    %4600 = vmatprep.subr.mxu0 0.0
    %4601 = vmatpush2.msra.mxu0 0.0
    %4602 = vmatprep.subr.mxu0 0.0
    %4603 = vmatpush2.msra.mxu0 0.0
    %4604 = vmatprep.subr.mxu0 0.0
    %4605 = vmatpush2.msra.mxu0 0.0
    %4606 = vmatprep.subr.mxu0 0.0
    %4607 = vmatpush2.msra.mxu0 0.0
    %4608 = vmatprep.mubr.f32.mxu0 0.0
    %4609 = vmatmul.mubr.f32.gmra.mxu0 %v4542
    %v4610 = vpop.f32.mrf.mxu0
    %v4611 = vadd.f32 0.0, %v4610
    %v4612 = vpop.f32.mrf.mxu0
    %4613 = vdwg.mxu0
    %4614 = vrot.lane.b32.xlu0 %v3747, 64
    %v4615 = vpop.permute.xlu0 %4614
    %v4618 = vsel %vm197, %v4451, 0
    %4620 = vmatprep.subr.mxu0 0.0
    %4621 = vmatpush1.msra.mxu0 0.0
    %4622 = vmatprep.subr.mxu0 0.0
    %4623 = vmatpush1.msra.mxu0 0.0
    %4624 = vmatprep.subr.mxu0 0.0
    %4625 = vmatpush1.msra.mxu0 0.0
    %4626 = vmatprep.subr.mxu0 0.0
    %4627 = vmatpush1.msra.mxu0 0.0
    %4628 = vmatprep.subr.mxu0 0.0
    %4629 = vmatpush1.msra.mxu0 0.0
    %4630 = vmatprep.subr.mxu0 0.0
    %4631 = vmatpush1.msra.mxu0 0.0
    %4632 = vmatprep.subr.mxu0 0.0
    %4633 = vmatpush1.msra.mxu0 0.0
    %4634 = vmatprep.subr.mxu0 0.0
    %4635 = vmatpush1.msra.mxu0 0.0
    %4636 = vmatprep.subr.mxu0 0.0
    %4637 = vmatpush1.msra.mxu0 0.0
    %4638 = vmatprep.subr.mxu0 0.0
    %4639 = vmatpush1.msra.mxu0 0.0
    %4640 = vmatprep.subr.mxu0 0.0
    %4641 = vmatpush1.msra.mxu0 0.0
    %4642 = vmatprep.subr.mxu0 0.0
    %4643 = vmatpush1.msra.mxu0 0.0
    %4644 = vmatprep.subr.mxu0 0.0
    %4645 = vmatpush1.msra.mxu0 0.0
    %4646 = vmatprep.subr.mxu0 0.0
    %4647 = vmatpush1.msra.mxu0 0.0
    %4648 = vmatprep.subr.mxu0 0.0
    %4649 = vmatpush1.msra.mxu0 0.0
    %4650 = vmatprep.subr.mxu0 0.0
    %4651 = vmatpush1.msra.mxu0 %v4615
    %4652 = vmatprep.subr.mxu0 0.0
    %4653 = vmatpush2.msra.mxu0 0.0
    %4654 = vmatprep.subr.mxu0 0.0
    %4655 = vmatpush2.msra.mxu0 0.0
    %4656 = vmatprep.subr.mxu0 0.0
    %4657 = vmatpush2.msra.mxu0 0.0
    %4658 = vmatprep.subr.mxu0 0.0
    %4659 = vmatpush2.msra.mxu0 0.0
    %4660 = vmatprep.subr.mxu0 0.0
    %4661 = vmatpush2.msra.mxu0 0.0
    %4662 = vmatprep.subr.mxu0 0.0
    %4663 = vmatpush2.msra.mxu0 0.0
    %4664 = vmatprep.subr.mxu0 0.0
    %4665 = vmatpush2.msra.mxu0 0.0
    %4666 = vmatprep.subr.mxu0 0.0
    %4667 = vmatpush2.msra.mxu0 0.0
    %4668 = vmatprep.subr.mxu0 0.0
    %4669 = vmatpush2.msra.mxu0 0.0
    %4670 = vmatprep.subr.mxu0 0.0
    %4671 = vmatpush2.msra.mxu0 0.0
    %4672 = vmatprep.subr.mxu0 0.0
    %4673 = vmatpush2.msra.mxu0 0.0
    %4674 = vmatprep.subr.mxu0 0.0
    %4675 = vmatpush2.msra.mxu0 0.0
    %4676 = vmatprep.subr.mxu0 0.0
    %4677 = vmatpush2.msra.mxu0 0.0
    %4678 = vmatprep.subr.mxu0 0.0
    %4679 = vmatpush2.msra.mxu0 0.0
    %4680 = vmatprep.subr.mxu0 0.0
    %4681 = vmatpush2.msra.mxu0 0.0
    %4682 = vmatprep.subr.mxu0 0.0
    %4683 = vmatpush2.msra.mxu0 0.0
    %4684 = vmatprep.mubr.f32.mxu0 0.0
    %4685 = vmatmul.mubr.f32.gmra.mxu0 %v4618
    %v4686 = vpop.f32.mrf.mxu0
    %v4687 = vadd.f32 0.0, %v4686
    %v4688 = vpop.f32.mrf.mxu0
    %4689 = vdwg.mxu0
    %4690 = vrot.lane.b32.xlu0 %v3749, 64
    %v4691 = vpop.permute.xlu0 %4690
    %v4694 = vsel %vm197, %v4453, 0
    %4696 = vmatprep.subr.mxu0 0.0
    %4697 = vmatpush1.msra.mxu0 0.0
    %4698 = vmatprep.subr.mxu0 0.0
    %4699 = vmatpush1.msra.mxu0 0.0
    %4700 = vmatprep.subr.mxu0 0.0
    %4701 = vmatpush1.msra.mxu0 0.0
    %4702 = vmatprep.subr.mxu0 0.0
    %4703 = vmatpush1.msra.mxu0 0.0
    %4704 = vmatprep.subr.mxu0 0.0
    %4705 = vmatpush1.msra.mxu0 0.0
    %4706 = vmatprep.subr.mxu0 0.0
    %4707 = vmatpush1.msra.mxu0 0.0
    %4708 = vmatprep.subr.mxu0 0.0
    %4709 = vmatpush1.msra.mxu0 0.0
    %4710 = vmatprep.subr.mxu0 0.0
    %4711 = vmatpush1.msra.mxu0 0.0
    %4712 = vmatprep.subr.mxu0 0.0
    %4713 = vmatpush1.msra.mxu0 0.0
    %4714 = vmatprep.subr.mxu0 0.0
    %4715 = vmatpush1.msra.mxu0 0.0
    %4716 = vmatprep.subr.mxu0 0.0
    %4717 = vmatpush1.msra.mxu0 0.0
    %4718 = vmatprep.subr.mxu0 0.0
    %4719 = vmatpush1.msra.mxu0 0.0
    %4720 = vmatprep.subr.mxu0 0.0
    %4721 = vmatpush1.msra.mxu0 0.0
    %4722 = vmatprep.subr.mxu0 0.0
    %4723 = vmatpush1.msra.mxu0 0.0
    %4724 = vmatprep.subr.mxu0 0.0
    %4725 = vmatpush1.msra.mxu0 0.0
    %4726 = vmatprep.subr.mxu0 0.0
    %4727 = vmatpush1.msra.mxu0 %v4691
    %4728 = vmatprep.subr.mxu0 0.0
    %4729 = vmatpush2.msra.mxu0 0.0
    %4730 = vmatprep.subr.mxu0 0.0
    %4731 = vmatpush2.msra.mxu0 0.0
    %4732 = vmatprep.subr.mxu0 0.0
    %4733 = vmatpush2.msra.mxu0 0.0
    %4734 = vmatprep.subr.mxu0 0.0
    %4735 = vmatpush2.msra.mxu0 0.0
    %4736 = vmatprep.subr.mxu0 0.0
    %4737 = vmatpush2.msra.mxu0 0.0
    %4738 = vmatprep.subr.mxu0 0.0
    %4739 = vmatpush2.msra.mxu0 0.0
    %4740 = vmatprep.subr.mxu0 0.0
    %4741 = vmatpush2.msra.mxu0 0.0
    %4742 = vmatprep.subr.mxu0 0.0
    %4743 = vmatpush2.msra.mxu0 0.0
    %4744 = vmatprep.subr.mxu0 0.0
    %4745 = vmatpush2.msra.mxu0 0.0
    %4746 = vmatprep.subr.mxu0 0.0
    %4747 = vmatpush2.msra.mxu0 0.0
    %4748 = vmatprep.subr.mxu0 0.0
    %4749 = vmatpush2.msra.mxu0 0.0
    %4750 = vmatprep.subr.mxu0 0.0
    %4751 = vmatpush2.msra.mxu0 0.0
    %4752 = vmatprep.subr.mxu0 0.0
    %4753 = vmatpush2.msra.mxu0 0.0
    %4754 = vmatprep.subr.mxu0 0.0
    %4755 = vmatpush2.msra.mxu0 0.0
    %4756 = vmatprep.subr.mxu0 0.0
    %4757 = vmatpush2.msra.mxu0 0.0
    %4758 = vmatprep.subr.mxu0 0.0
    %4759 = vmatpush2.msra.mxu0 0.0
    %4760 = vmatprep.mubr.f32.mxu0 0.0
    %4761 = vmatmul.mubr.f32.gmra.mxu0 %v4694
    %v4762 = vpop.f32.mrf.mxu0
    %v4763 = vadd.f32 0.0, %v4762
    %v4764 = vpop.f32.mrf.mxu0
    %4765 = vdwg.mxu0
    %4766 = vrot.lane.b32.xlu0 %v3751, 64
    %v4767 = vpop.permute.xlu0 %4766
    %v4770 = vsel %vm197, %v4455, 0
    %4772 = vmatprep.subr.mxu0 0.0
    %4773 = vmatpush1.msra.mxu0 0.0
    %4774 = vmatprep.subr.mxu0 0.0
    %4775 = vmatpush1.msra.mxu0 0.0
    %4776 = vmatprep.subr.mxu0 0.0
    %4777 = vmatpush1.msra.mxu0 0.0
    %4778 = vmatprep.subr.mxu0 0.0
    %4779 = vmatpush1.msra.mxu0 0.0
    %4780 = vmatprep.subr.mxu0 0.0
    %4781 = vmatpush1.msra.mxu0 0.0
    %4782 = vmatprep.subr.mxu0 0.0
    %4783 = vmatpush1.msra.mxu0 0.0
    %4784 = vmatprep.subr.mxu0 0.0
    %4785 = vmatpush1.msra.mxu0 0.0
    %4786 = vmatprep.subr.mxu0 0.0
    %4787 = vmatpush1.msra.mxu0 0.0
    %4788 = vmatprep.subr.mxu0 0.0
    %4789 = vmatpush1.msra.mxu0 0.0
    %4790 = vmatprep.subr.mxu0 0.0
    %4791 = vmatpush1.msra.mxu0 0.0
    %4792 = vmatprep.subr.mxu0 0.0
    %4793 = vmatpush1.msra.mxu0 0.0
    %4794 = vmatprep.subr.mxu0 0.0
    %4795 = vmatpush1.msra.mxu0 0.0
    %4796 = vmatprep.subr.mxu0 0.0
    %4797 = vmatpush1.msra.mxu0 0.0
    %4798 = vmatprep.subr.mxu0 0.0
    %4799 = vmatpush1.msra.mxu0 0.0
    %4800 = vmatprep.subr.mxu0 0.0
    %4801 = vmatpush1.msra.mxu0 0.0
    %4802 = vmatprep.subr.mxu0 0.0
    %4803 = vmatpush1.msra.mxu0 %v4767
    %4804 = vmatprep.subr.mxu0 0.0
    %4805 = vmatpush2.msra.mxu0 0.0
    %4806 = vmatprep.subr.mxu0 0.0
    %4807 = vmatpush2.msra.mxu0 0.0
    %4808 = vmatprep.subr.mxu0 0.0
    %4809 = vmatpush2.msra.mxu0 0.0
    %4810 = vmatprep.subr.mxu0 0.0
    %4811 = vmatpush2.msra.mxu0 0.0
    %4812 = vmatprep.subr.mxu0 0.0
    %4813 = vmatpush2.msra.mxu0 0.0
    %4814 = vmatprep.subr.mxu0 0.0
    %4815 = vmatpush2.msra.mxu0 0.0
    %4816 = vmatprep.subr.mxu0 0.0
    %4817 = vmatpush2.msra.mxu0 0.0
    %4818 = vmatprep.subr.mxu0 0.0
    %4819 = vmatpush2.msra.mxu0 0.0
    %4820 = vmatprep.subr.mxu0 0.0
    %4821 = vmatpush2.msra.mxu0 0.0
    %4822 = vmatprep.subr.mxu0 0.0
    %4823 = vmatpush2.msra.mxu0 0.0
    %4824 = vmatprep.subr.mxu0 0.0
    %4825 = vmatpush2.msra.mxu0 0.0
    %4826 = vmatprep.subr.mxu0 0.0
    %4827 = vmatpush2.msra.mxu0 0.0
    %4828 = vmatprep.subr.mxu0 0.0
    %4829 = vmatpush2.msra.mxu0 0.0
    %4830 = vmatprep.subr.mxu0 0.0
    %4831 = vmatpush2.msra.mxu0 0.0
    %4832 = vmatprep.subr.mxu0 0.0
    %4833 = vmatpush2.msra.mxu0 0.0
    %4834 = vmatprep.subr.mxu0 0.0
    %4835 = vmatpush2.msra.mxu0 0.0
    %4836 = vmatprep.mubr.f32.mxu0 0.0
    %4837 = vmatmul.mubr.f32.gmra.mxu0 %v4770
    %v4838 = vpop.f32.mrf.mxu0
    %v4839 = vadd.f32 0.0, %v4838
    %v4840 = vpop.f32.mrf.mxu0
    %4841 = vdwg.mxu0
    %4842 = vrot.lane.b32.xlu0 %v3753, 64
    %v4843 = vpop.permute.xlu0 %4842
    %v4846 = vsel %vm197, %v4457, 0
    %4848 = vmatprep.subr.mxu0 0.0
    %4849 = vmatpush1.msra.mxu0 0.0
    %4850 = vmatprep.subr.mxu0 0.0
    %4851 = vmatpush1.msra.mxu0 0.0
    %4852 = vmatprep.subr.mxu0 0.0
    %4853 = vmatpush1.msra.mxu0 0.0
    %4854 = vmatprep.subr.mxu0 0.0
    %4855 = vmatpush1.msra.mxu0 0.0
    %4856 = vmatprep.subr.mxu0 0.0
    %4857 = vmatpush1.msra.mxu0 0.0
    %4858 = vmatprep.subr.mxu0 0.0
    %4859 = vmatpush1.msra.mxu0 0.0
    %4860 = vmatprep.subr.mxu0 0.0
    %4861 = vmatpush1.msra.mxu0 0.0
    %4862 = vmatprep.subr.mxu0 0.0
    %4863 = vmatpush1.msra.mxu0 0.0
    %4864 = vmatprep.subr.mxu0 0.0
    %4865 = vmatpush1.msra.mxu0 0.0
    %4866 = vmatprep.subr.mxu0 0.0
    %4867 = vmatpush1.msra.mxu0 0.0
    %4868 = vmatprep.subr.mxu0 0.0
    %4869 = vmatpush1.msra.mxu0 0.0
    %4870 = vmatprep.subr.mxu0 0.0
    %4871 = vmatpush1.msra.mxu0 0.0
    %4872 = vmatprep.subr.mxu0 0.0
    %4873 = vmatpush1.msra.mxu0 0.0
    %4874 = vmatprep.subr.mxu0 0.0
    %4875 = vmatpush1.msra.mxu0 0.0
    %4876 = vmatprep.subr.mxu0 0.0
    %4877 = vmatpush1.msra.mxu0 0.0
    %4878 = vmatprep.subr.mxu0 0.0
    %4879 = vmatpush1.msra.mxu0 %v4843
    %4880 = vmatprep.subr.mxu0 0.0
    %4881 = vmatpush2.msra.mxu0 0.0
    %4882 = vmatprep.subr.mxu0 0.0
    %4883 = vmatpush2.msra.mxu0 0.0
    %4884 = vmatprep.subr.mxu0 0.0
    %4885 = vmatpush2.msra.mxu0 0.0
    %4886 = vmatprep.subr.mxu0 0.0
    %4887 = vmatpush2.msra.mxu0 0.0
    %4888 = vmatprep.subr.mxu0 0.0
    %4889 = vmatpush2.msra.mxu0 0.0
    %4890 = vmatprep.subr.mxu0 0.0
    %4891 = vmatpush2.msra.mxu0 0.0
    %4892 = vmatprep.subr.mxu0 0.0
    %4893 = vmatpush2.msra.mxu0 0.0
    %4894 = vmatprep.subr.mxu0 0.0
    %4895 = vmatpush2.msra.mxu0 0.0
    %4896 = vmatprep.subr.mxu0 0.0
    %4897 = vmatpush2.msra.mxu0 0.0
    %4898 = vmatprep.subr.mxu0 0.0
    %4899 = vmatpush2.msra.mxu0 0.0
    %4900 = vmatprep.subr.mxu0 0.0
    %4901 = vmatpush2.msra.mxu0 0.0
    %4902 = vmatprep.subr.mxu0 0.0
    %4903 = vmatpush2.msra.mxu0 0.0
    %4904 = vmatprep.subr.mxu0 0.0
    %4905 = vmatpush2.msra.mxu0 0.0
    %4906 = vmatprep.subr.mxu0 0.0
    %4907 = vmatpush2.msra.mxu0 0.0
    %4908 = vmatprep.subr.mxu0 0.0
    %4909 = vmatpush2.msra.mxu0 0.0
    %4910 = vmatprep.subr.mxu0 0.0
    %4911 = vmatpush2.msra.mxu0 0.0
    %4912 = vmatprep.mubr.f32.mxu0 0.0
    %4913 = vmatmul.mubr.f32.gmra.mxu0 %v4846
    %v4914 = vpop.f32.mrf.mxu0
    %v4915 = vadd.f32 0.0, %v4914
    %v4916 = vpop.f32.mrf.mxu0
    %4917 = vdwg.mxu0
    %4918 = vrot.lane.b32.xlu0 %v3755, 64
    %v4919 = vpop.permute.xlu0 %4918
    %v4922 = vsel %vm197, %v4459, 0
    %4924 = vmatprep.subr.mxu0 0.0
    %4925 = vmatpush1.msra.mxu0 0.0
    %4926 = vmatprep.subr.mxu0 0.0
    %4927 = vmatpush1.msra.mxu0 0.0
    %4928 = vmatprep.subr.mxu0 0.0
    %4929 = vmatpush1.msra.mxu0 0.0
    %4930 = vmatprep.subr.mxu0 0.0
    %4931 = vmatpush1.msra.mxu0 0.0
    %4932 = vmatprep.subr.mxu0 0.0
    %4933 = vmatpush1.msra.mxu0 0.0
    %4934 = vmatprep.subr.mxu0 0.0
    %4935 = vmatpush1.msra.mxu0 0.0
    %4936 = vmatprep.subr.mxu0 0.0
    %4937 = vmatpush1.msra.mxu0 0.0
    %4938 = vmatprep.subr.mxu0 0.0
    %4939 = vmatpush1.msra.mxu0 0.0
    %4940 = vmatprep.subr.mxu0 0.0
    %4941 = vmatpush1.msra.mxu0 0.0
    %4942 = vmatprep.subr.mxu0 0.0
    %4943 = vmatpush1.msra.mxu0 0.0
    %4944 = vmatprep.subr.mxu0 0.0
    %4945 = vmatpush1.msra.mxu0 0.0
    %4946 = vmatprep.subr.mxu0 0.0
    %4947 = vmatpush1.msra.mxu0 0.0
    %4948 = vmatprep.subr.mxu0 0.0
    %4949 = vmatpush1.msra.mxu0 0.0
    %4950 = vmatprep.subr.mxu0 0.0
    %4951 = vmatpush1.msra.mxu0 0.0
    %4952 = vmatprep.subr.mxu0 0.0
    %4953 = vmatpush1.msra.mxu0 0.0
    %4954 = vmatprep.subr.mxu0 0.0
    %4955 = vmatpush1.msra.mxu0 %v4919
    %4956 = vmatprep.subr.mxu0 0.0
    %4957 = vmatpush2.msra.mxu0 0.0
    %4958 = vmatprep.subr.mxu0 0.0
    %4959 = vmatpush2.msra.mxu0 0.0
    %4960 = vmatprep.subr.mxu0 0.0
    %4961 = vmatpush2.msra.mxu0 0.0
    %4962 = vmatprep.subr.mxu0 0.0
    %4963 = vmatpush2.msra.mxu0 0.0
    %4964 = vmatprep.subr.mxu0 0.0
    %4965 = vmatpush2.msra.mxu0 0.0
    %4966 = vmatprep.subr.mxu0 0.0
    %4967 = vmatpush2.msra.mxu0 0.0
    %4968 = vmatprep.subr.mxu0 0.0
    %4969 = vmatpush2.msra.mxu0 0.0
    %4970 = vmatprep.subr.mxu0 0.0
    %4971 = vmatpush2.msra.mxu0 0.0
    %4972 = vmatprep.subr.mxu0 0.0
    %4973 = vmatpush2.msra.mxu0 0.0
    %4974 = vmatprep.subr.mxu0 0.0
    %4975 = vmatpush2.msra.mxu0 0.0
    %4976 = vmatprep.subr.mxu0 0.0
    %4977 = vmatpush2.msra.mxu0 0.0
    %4978 = vmatprep.subr.mxu0 0.0
    %4979 = vmatpush2.msra.mxu0 0.0
    %4980 = vmatprep.subr.mxu0 0.0
    %4981 = vmatpush2.msra.mxu0 0.0
    %4982 = vmatprep.subr.mxu0 0.0
    %4983 = vmatpush2.msra.mxu0 0.0
    %4984 = vmatprep.subr.mxu0 0.0
    %4985 = vmatpush2.msra.mxu0 0.0
    %4986 = vmatprep.subr.mxu0 0.0
    %4987 = vmatpush2.msra.mxu0 0.0
    %4988 = vmatprep.mubr.f32.mxu0 0.0
    %4989 = vmatmul.mubr.f32.gmra.mxu0 %v4922
    %v4990 = vpop.f32.mrf.mxu0
    %v4991 = vadd.f32 0.0, %v4990
    %v4992 = vpop.f32.mrf.mxu0
    %4993 = vdwg.mxu0
    %4994 = vrot.lane.b32.xlu0 %v3757, 64
    %v4995 = vpop.permute.xlu0 %4994
    %v4998 = vsel %vm197, %v4461, 0
    %5000 = vmatprep.subr.mxu0 0.0
    %5001 = vmatpush1.msra.mxu0 0.0
    %5002 = vmatprep.subr.mxu0 0.0
    %5003 = vmatpush1.msra.mxu0 0.0
    %5004 = vmatprep.subr.mxu0 0.0
    %5005 = vmatpush1.msra.mxu0 0.0
    %5006 = vmatprep.subr.mxu0 0.0
    %5007 = vmatpush1.msra.mxu0 0.0
    %5008 = vmatprep.subr.mxu0 0.0
    %5009 = vmatpush1.msra.mxu0 0.0
    %5010 = vmatprep.subr.mxu0 0.0
    %5011 = vmatpush1.msra.mxu0 0.0
    %5012 = vmatprep.subr.mxu0 0.0
    %5013 = vmatpush1.msra.mxu0 0.0
    %5014 = vmatprep.subr.mxu0 0.0
    %5015 = vmatpush1.msra.mxu0 0.0
    %5016 = vmatprep.subr.mxu0 0.0
    %5017 = vmatpush1.msra.mxu0 0.0
    %5018 = vmatprep.subr.mxu0 0.0
    %5019 = vmatpush1.msra.mxu0 0.0
    %5020 = vmatprep.subr.mxu0 0.0
    %5021 = vmatpush1.msra.mxu0 0.0
    %5022 = vmatprep.subr.mxu0 0.0
    %5023 = vmatpush1.msra.mxu0 0.0
    %5024 = vmatprep.subr.mxu0 0.0
    %5025 = vmatpush1.msra.mxu0 0.0
    %5026 = vmatprep.subr.mxu0 0.0
    %5027 = vmatpush1.msra.mxu0 0.0
    %5028 = vmatprep.subr.mxu0 0.0
    %5029 = vmatpush1.msra.mxu0 0.0
    %5030 = vmatprep.subr.mxu0 0.0
    %5031 = vmatpush1.msra.mxu0 %v4995
    %5032 = vmatprep.subr.mxu0 0.0
    %5033 = vmatpush2.msra.mxu0 0.0
    %5034 = vmatprep.subr.mxu0 0.0
    %5035 = vmatpush2.msra.mxu0 0.0
    %5036 = vmatprep.subr.mxu0 0.0
    %5037 = vmatpush2.msra.mxu0 0.0
    %5038 = vmatprep.subr.mxu0 0.0
    %5039 = vmatpush2.msra.mxu0 0.0
    %5040 = vmatprep.subr.mxu0 0.0
    %5041 = vmatpush2.msra.mxu0 0.0
    %5042 = vmatprep.subr.mxu0 0.0
    %5043 = vmatpush2.msra.mxu0 0.0
    %5044 = vmatprep.subr.mxu0 0.0
    %5045 = vmatpush2.msra.mxu0 0.0
    %5046 = vmatprep.subr.mxu0 0.0
    %5047 = vmatpush2.msra.mxu0 0.0
    %5048 = vmatprep.subr.mxu0 0.0
    %5049 = vmatpush2.msra.mxu0 0.0
    %5050 = vmatprep.subr.mxu0 0.0
    %5051 = vmatpush2.msra.mxu0 0.0
    %5052 = vmatprep.subr.mxu0 0.0
    %5053 = vmatpush2.msra.mxu0 0.0
    %5054 = vmatprep.subr.mxu0 0.0
    %5055 = vmatpush2.msra.mxu0 0.0
    %5056 = vmatprep.subr.mxu0 0.0
    %5057 = vmatpush2.msra.mxu0 0.0
    %5058 = vmatprep.subr.mxu0 0.0
    %5059 = vmatpush2.msra.mxu0 0.0
    %5060 = vmatprep.subr.mxu0 0.0
    %5061 = vmatpush2.msra.mxu0 0.0
    %5062 = vmatprep.subr.mxu0 0.0
    %5063 = vmatpush2.msra.mxu0 0.0
    %5064 = vmatprep.mubr.f32.mxu0 0.0
    %5065 = vmatmul.mubr.f32.gmra.mxu0 %v4998
    %v5066 = vpop.f32.mrf.mxu0
    %v5067 = vadd.f32 0.0, %v5066
    %v5068 = vpop.f32.mrf.mxu0
    %5069 = vdwg.mxu0
    %5072 = vrot.lane.b32.xlu0 %v4687, 8
    %v5073 = vpop.permute.xlu0 %5072
    %5074 = vrot.lane.b32.xlu0 %v4763, 8
    %v5075 = vpop.permute.xlu0 %5074
    %5080 = vrot.lane.b32.xlu0 %v4839, 16
    %v5081 = vpop.permute.xlu0 %5080
    %5082 = vrot.lane.b32.xlu0 %v4915, 16
    %v5083 = vpop.permute.xlu0 %5082
    %5088 = vrot.lane.b32.xlu0 %v4991, 24
    %v5089 = vpop.permute.xlu0 %5088
    %5090 = vrot.lane.b32.xlu0 %v5067, 24
    %v5091 = vpop.permute.xlu0 %5090
    %v5094 = vsel %vm197, %v4535, %v5073
    %v5095 = vsel %vm197, %v4611, %v5075
    %v5096 = vsel %vm1534, %v5094, %v5081
    %v5097 = vsel %vm1534, %v5095, %v5083
    %v5098 = vsel %vm1537, %v5096, %v5089
    %v5099 = vsel %vm1537, %v5097, %v5091
    %v5100 = vlaneseq
    %v5101 = vshrl.u32 %v5100, 7
    %v5102 = vsub.s32 0, %v5101
    %v5103 = vrot.slane %v3653, %v5102
    %v5105 = vsel %vm99, %v5098, 0
    %v5108 = vsel %vm99, %v5099, 0
    %5110 = vmatprep.subr.mxu0 0.0
    %5111 = vmatpush1.msra.mxu0 0.0
    %5112 = vmatprep.subr.mxu0 0.0
    %5113 = vmatpush1.msra.mxu0 0.0
    %5114 = vmatprep.subr.mxu0 0.0
    %5115 = vmatpush1.msra.mxu0 0.0
    %5116 = vmatprep.subr.mxu0 0.0
    %5117 = vmatpush1.msra.mxu0 0.0
    %5118 = vmatprep.subr.mxu0 0.0
    %5119 = vmatpush1.msra.mxu0 0.0
    %5120 = vmatprep.subr.mxu0 0.0
    %5121 = vmatpush1.msra.mxu0 0.0
    %5122 = vmatprep.subr.mxu0 0.0
    %5123 = vmatpush1.msra.mxu0 0.0
    %5124 = vmatprep.subr.mxu0 0.0
    %5125 = vmatpush1.msra.mxu0 0.0
    %5126 = vmatprep.subr.mxu0 0.0
    %5127 = vmatpush1.msra.mxu0 0.0
    %5128 = vmatprep.subr.mxu0 0.0
    %5129 = vmatpush1.msra.mxu0 0.0
    %5130 = vmatprep.subr.mxu0 0.0
    %5131 = vmatpush1.msra.mxu0 0.0
    %5132 = vmatprep.subr.mxu0 0.0
    %5133 = vmatpush1.msra.mxu0 0.0
    %5134 = vmatprep.subr.mxu0 0.0
    %5135 = vmatpush1.msra.mxu0 %v3637
    %5136 = vmatprep.subr.mxu0 0.0
    %5137 = vmatpush1.msra.mxu0 %v3631
    %5138 = vmatprep.subr.mxu0 0.0
    %5139 = vmatpush1.msra.mxu0 %v3625
    %5140 = vmatprep.subr.mxu0 0.0
    %5141 = vmatpush1.msra.mxu0 %v3619
    %5142 = vmatprep.subr.mxu0 0.0
    %5143 = vmatpush2.msra.mxu0 0.0
    %5144 = vmatprep.subr.mxu0 0.0
    %5145 = vmatpush2.msra.mxu0 0.0
    %5146 = vmatprep.subr.mxu0 0.0
    %5147 = vmatpush2.msra.mxu0 0.0
    %5148 = vmatprep.subr.mxu0 0.0
    %5149 = vmatpush2.msra.mxu0 0.0
    %5150 = vmatprep.subr.mxu0 0.0
    %5151 = vmatpush2.msra.mxu0 0.0
    %5152 = vmatprep.subr.mxu0 0.0
    %5153 = vmatpush2.msra.mxu0 0.0
    %5154 = vmatprep.subr.mxu0 0.0
    %5155 = vmatpush2.msra.mxu0 0.0
    %5156 = vmatprep.subr.mxu0 0.0
    %5157 = vmatpush2.msra.mxu0 0.0
    %5158 = vmatprep.subr.mxu0 0.0
    %5159 = vmatpush2.msra.mxu0 0.0
    %5160 = vmatprep.subr.mxu0 0.0
    %5161 = vmatpush2.msra.mxu0 0.0
    %5162 = vmatprep.subr.mxu0 0.0
    %5163 = vmatpush2.msra.mxu0 0.0
    %5164 = vmatprep.subr.mxu0 0.0
    %5165 = vmatpush2.msra.mxu0 0.0
    %5166 = vmatprep.subr.mxu0 0.0
    %5167 = vmatpush2.msra.mxu0 0.0
    %5168 = vmatprep.subr.mxu0 0.0
    %5169 = vmatpush2.msra.mxu0 0.0
    %5170 = vmatprep.subr.mxu0 0.0
    %5171 = vmatpush2.msra.mxu0 0.0
    %5172 = vmatprep.subr.mxu0 0.0
    %5173 = vmatpush2.msra.mxu0 0.0
    %5174 = vmatprep.mubr.f32.mxu0 0.0
    %5175 = vmatmul.mubr.f32.gmra.mxu0 %v5105
    %v5176 = vpop.f32.mrf.mxu0
    %v5177 = vadd.f32 %v5103, %v5176
    %v5178 = vpop.f32.mrf.mxu0
    %5179 = vmatprep.mubr.f32.mxu0 0.0
    %5180 = vmatmul.mubr.f32.gmra.mxu0 %v5108
    %v5181 = vpop.f32.mrf.mxu0
    %v5182 = vadd.f32 %v5103, %v5181
    %v5183 = vpop.f32.mrf.mxu0
    %5184 = vdwg.mxu0
    %v5185 = vadd.f32 %v3615, %v5177
    %v5186 = vadd.f32 %v3616, %v5182
    %v5187 = vsel %vm99, %v5185, 0.0
    %5188 = vadd.xlane.f32.xlu0 %v5187
    %v5189 = vpop.xlane.xlu0 %5188
    %v5190 = vsel %vm99, %v5186, 0.0
    %5191 = vadd.xlane.f32.xlu0 %v5190
    %v5192 = vpop.xlane.xlu0 %5191
    %v5193 = vmul.f32 %v5189, %v1633
    %v5194 = vmul.f32 %v5192, %v1633
    %v5195 = vsub.f32 %v5185, %v5193
    %v5196 = vsub.f32 %v5186, %v5194
    %v5197 = vmul.f32 %v5195, %v5195
    %v5198 = vmul.f32 %v5196, %v5196
    %v5199 = vsel %vm99, %v5197, 0.0
    %5200 = vadd.xlane.f32.xlu0 %v5199
    %v5201 = vpop.xlane.xlu0 %5200
    %v5202 = vsel %vm99, %v5198, 0.0
    %5203 = vadd.xlane.f32.xlu0 %v5202
    %v5204 = vpop.xlane.xlu0 %5203
    %v5205 = vmul.f32 %v5201, %v1633
    %v5206 = vmul.f32 %v5204, %v1633
    %v5207 = vadd.f32 %v5205, 1e-05
    %v5208 = vadd.f32 %v5206, 1e-05
    %v5209 = vrsqrt.pop %v5207
    %v5210 = vrsqrt.pop %v5208
    %v5211 = vmul.f32 %v5195, %v5209
    %v5212 = vmul.f32 %v5196, %v5210
    %v5213 = vlaneseq
    %v5214 = vshrl.u32 %v5213, 7
    %v5215 = vsub.s32 1, %v5214
    %v5216 = vrot.slane %v3652, %v5215
    %v5217 = vmul.f32 %v5211, %v5216
    %v5218 = vmul.f32 %v5212, %v5216
    %v5219 = vlaneseq
    %v5220 = vshrl.u32 %v5219, 7
    %v5221 = vsub.s32 2, %v5220
    %v5222 = vrot.slane %v3652, %v5221
    %v5223 = vadd.f32 %v5217, %v5222
    %v5224 = vadd.f32 %v5218, %v5222
    %v5225 = vlaneseq
    %v5226 = vshrl.u32 %v5225, 7
    %v5227 = vsub.s32 0, %v5226
    %v5228 = vrot.slane %v3654, %v5227
    %v5230 = vsel %vm99, %v5223, 0
    %v5233 = vsel %vm99, %v5224, 0
    %5235 = vmatprep.subr.mxu0 0.0
    %5236 = vmatpush1.msra.mxu0 0.0
    %5237 = vmatprep.subr.mxu0 0.0
    %5238 = vmatpush1.msra.mxu0 0.0
    %5239 = vmatprep.subr.mxu0 0.0
    %5240 = vmatpush1.msra.mxu0 0.0
    %5241 = vmatprep.subr.mxu0 0.0
    %5242 = vmatpush1.msra.mxu0 0.0
    %5243 = vmatprep.subr.mxu0 0.0
    %5244 = vmatpush1.msra.mxu0 0.0
    %5245 = vmatprep.subr.mxu0 0.0
    %5246 = vmatpush1.msra.mxu0 0.0
    %5247 = vmatprep.subr.mxu0 0.0
    %5248 = vmatpush1.msra.mxu0 0.0
    %5249 = vmatprep.subr.mxu0 0.0
    %5250 = vmatpush1.msra.mxu0 0.0
    %5251 = vmatprep.subr.mxu0 0.0
    %5252 = vmatpush1.msra.mxu0 0.0
    %5253 = vmatprep.subr.mxu0 0.0
    %5254 = vmatpush1.msra.mxu0 0.0
    %5255 = vmatprep.subr.mxu0 0.0
    %5256 = vmatpush1.msra.mxu0 0.0
    %5257 = vmatprep.subr.mxu0 0.0
    %5258 = vmatpush1.msra.mxu0 0.0
    %5259 = vmatprep.subr.mxu0 0.0
    %5260 = vmatpush1.msra.mxu0 %v3638
    %5261 = vmatprep.subr.mxu0 0.0
    %5262 = vmatpush1.msra.mxu0 %v3632
    %5263 = vmatprep.subr.mxu0 0.0
    %5264 = vmatpush1.msra.mxu0 %v3626
    %5265 = vmatprep.subr.mxu0 0.0
    %5266 = vmatpush1.msra.mxu0 %v3620
    %5267 = vmatprep.subr.mxu0 0.0
    %5268 = vmatpush2.msra.mxu0 0.0
    %5269 = vmatprep.subr.mxu0 0.0
    %5270 = vmatpush2.msra.mxu0 0.0
    %5271 = vmatprep.subr.mxu0 0.0
    %5272 = vmatpush2.msra.mxu0 0.0
    %5273 = vmatprep.subr.mxu0 0.0
    %5274 = vmatpush2.msra.mxu0 0.0
    %5275 = vmatprep.subr.mxu0 0.0
    %5276 = vmatpush2.msra.mxu0 0.0
    %5277 = vmatprep.subr.mxu0 0.0
    %5278 = vmatpush2.msra.mxu0 0.0
    %5279 = vmatprep.subr.mxu0 0.0
    %5280 = vmatpush2.msra.mxu0 0.0
    %5281 = vmatprep.subr.mxu0 0.0
    %5282 = vmatpush2.msra.mxu0 0.0
    %5283 = vmatprep.subr.mxu0 0.0
    %5284 = vmatpush2.msra.mxu0 0.0
    %5285 = vmatprep.subr.mxu0 0.0
    %5286 = vmatpush2.msra.mxu0 0.0
    %5287 = vmatprep.subr.mxu0 0.0
    %5288 = vmatpush2.msra.mxu0 0.0
    %5289 = vmatprep.subr.mxu0 0.0
    %5290 = vmatpush2.msra.mxu0 0.0
    %5291 = vmatprep.subr.mxu0 0.0
    %5292 = vmatpush2.msra.mxu0 0.0
    %5293 = vmatprep.subr.mxu0 0.0
    %5294 = vmatpush2.msra.mxu0 0.0
    %5295 = vmatprep.subr.mxu0 0.0
    %5296 = vmatpush2.msra.mxu0 0.0
    %5297 = vmatprep.subr.mxu0 0.0
    %5298 = vmatpush2.msra.mxu0 0.0
    %5299 = vmatprep.mubr.f32.mxu0 0.0
    %5300 = vmatmul.mubr.f32.gmra.mxu0 %v5230
    %v5301 = vpop.f32.mrf.mxu0
    %v5302 = vadd.f32 %v5228, %v5301
    %v5303 = vpop.f32.mrf.mxu0
    %5304 = vmatprep.mubr.f32.mxu0 0.0
    %5305 = vmatmul.mubr.f32.gmra.mxu0 %v5233
    %v5306 = vpop.f32.mrf.mxu0
    %v5307 = vadd.f32 %v5228, %v5306
    %v5308 = vpop.f32.mrf.mxu0
    %5309 = vdwg.mxu0
    %v5310 = vlaneseq
    %v5311 = vshrl.u32 %v5310, 7
    %v5312 = vsub.s32 0, %v5311
    %v5313 = vrot.slane %v3655, %v5312
    %5314 = vmatprep.subr.mxu0 0.0
    %5315 = vmatpush1.msra.mxu0 0.0
    %5316 = vmatprep.subr.mxu0 0.0
    %5317 = vmatpush1.msra.mxu0 0.0
    %5318 = vmatprep.subr.mxu0 0.0
    %5319 = vmatpush1.msra.mxu0 0.0
    %5320 = vmatprep.subr.mxu0 0.0
    %5321 = vmatpush1.msra.mxu0 0.0
    %5322 = vmatprep.subr.mxu0 0.0
    %5323 = vmatpush1.msra.mxu0 0.0
    %5324 = vmatprep.subr.mxu0 0.0
    %5325 = vmatpush1.msra.mxu0 0.0
    %5326 = vmatprep.subr.mxu0 0.0
    %5327 = vmatpush1.msra.mxu0 0.0
    %5328 = vmatprep.subr.mxu0 0.0
    %5329 = vmatpush1.msra.mxu0 0.0
    %5330 = vmatprep.subr.mxu0 0.0
    %5331 = vmatpush1.msra.mxu0 0.0
    %5332 = vmatprep.subr.mxu0 0.0
    %5333 = vmatpush1.msra.mxu0 0.0
    %5334 = vmatprep.subr.mxu0 0.0
    %5335 = vmatpush1.msra.mxu0 0.0
    %5336 = vmatprep.subr.mxu0 0.0
    %5337 = vmatpush1.msra.mxu0 0.0
    %5338 = vmatprep.subr.mxu0 0.0
    %5339 = vmatpush1.msra.mxu0 %v3639
    %5340 = vmatprep.subr.mxu0 0.0
    %5341 = vmatpush1.msra.mxu0 %v3633
    %5342 = vmatprep.subr.mxu0 0.0
    %5343 = vmatpush1.msra.mxu0 %v3627
    %5344 = vmatprep.subr.mxu0 0.0
    %5345 = vmatpush1.msra.mxu0 %v3621
    %5346 = vmatprep.subr.mxu0 0.0
    %5347 = vmatpush2.msra.mxu0 0.0
    %5348 = vmatprep.subr.mxu0 0.0
    %5349 = vmatpush2.msra.mxu0 0.0
    %5350 = vmatprep.subr.mxu0 0.0
    %5351 = vmatpush2.msra.mxu0 0.0
    %5352 = vmatprep.subr.mxu0 0.0
    %5353 = vmatpush2.msra.mxu0 0.0
    %5354 = vmatprep.subr.mxu0 0.0
    %5355 = vmatpush2.msra.mxu0 0.0
    %5356 = vmatprep.subr.mxu0 0.0
    %5357 = vmatpush2.msra.mxu0 0.0
    %5358 = vmatprep.subr.mxu0 0.0
    %5359 = vmatpush2.msra.mxu0 0.0
    %5360 = vmatprep.subr.mxu0 0.0
    %5361 = vmatpush2.msra.mxu0 0.0
    %5362 = vmatprep.subr.mxu0 0.0
    %5363 = vmatpush2.msra.mxu0 0.0
    %5364 = vmatprep.subr.mxu0 0.0
    %5365 = vmatpush2.msra.mxu0 0.0
    %5366 = vmatprep.subr.mxu0 0.0
    %5367 = vmatpush2.msra.mxu0 0.0
    %5368 = vmatprep.subr.mxu0 0.0
    %5369 = vmatpush2.msra.mxu0 0.0
    %5370 = vmatprep.subr.mxu0 0.0
    %5371 = vmatpush2.msra.mxu0 0.0
    %5372 = vmatprep.subr.mxu0 0.0
    %5373 = vmatpush2.msra.mxu0 0.0
    %5374 = vmatprep.subr.mxu0 0.0
    %5375 = vmatpush2.msra.mxu0 0.0
    %5376 = vmatprep.subr.mxu0 0.0
    %5377 = vmatpush2.msra.mxu0 0.0
    %5378 = vmatprep.mubr.f32.mxu0 0.0
    %5379 = vmatmul.mubr.f32.gmra.mxu0 %v1756
    %v5380 = vpop.f32.mrf.mxu0
    %v5381 = vadd.f32 %v5313, %v5380
    %v5382 = vpop.f32.mrf.mxu0
    %5383 = vmatprep.mubr.f32.mxu0 0.0
    %5384 = vmatmul.mubr.f32.gmra.mxu0 %v1759
    %v5385 = vpop.f32.mrf.mxu0
    %v5386 = vadd.f32 %v5313, %v5385
    %v5387 = vpop.f32.mrf.mxu0
    %5388 = vmatprep.mubr.f32.mxu0 0.0
    %5389 = vmatmul.mubr.f32.gmra.mxu0 %v1762
    %v5390 = vpop.f32.mrf.mxu0
    %v5391 = vadd.f32 %v5313, %v5390
    %v5392 = vpop.f32.mrf.mxu0
    %5393 = vmatprep.mubr.f32.mxu0 0.0
    %5394 = vmatmul.mubr.f32.gmra.mxu0 %v1765
    %v5395 = vpop.f32.mrf.mxu0
    %v5396 = vadd.f32 %v5313, %v5395
    %v5397 = vpop.f32.mrf.mxu0
    %5398 = vdwg.mxu0
    %5401 = vrot.lane.b32.xlu0 %v5302, 120
    %v5402 = vpop.permute.xlu0 %5401
    %5403 = vrot.lane.b32.xlu0 %v5307, 120
    %v5404 = vpop.permute.xlu0 %5403
    %5405 = vrot.lane.b32.xlu0 %v5302, 112
    %v5406 = vpop.permute.xlu0 %5405
    %5407 = vrot.lane.b32.xlu0 %v5307, 112
    %v5408 = vpop.permute.xlu0 %5407
    %5409 = vrot.lane.b32.xlu0 %v5302, 104
    %v5410 = vpop.permute.xlu0 %5409
    %5411 = vrot.lane.b32.xlu0 %v5307, 104
    %v5412 = vpop.permute.xlu0 %5411
    %5417 = vrot.lane.b32.xlu0 %v5381, 120
    %v5418 = vpop.permute.xlu0 %5417
    %5419 = vrot.lane.b32.xlu0 %v5386, 120
    %v5420 = vpop.permute.xlu0 %5419
    %5421 = vrot.lane.b32.xlu0 %v5391, 120
    %v5422 = vpop.permute.xlu0 %5421
    %5423 = vrot.lane.b32.xlu0 %v5396, 120
    %v5424 = vpop.permute.xlu0 %5423
    %5425 = vrot.lane.b32.xlu0 %v5381, 112
    %v5426 = vpop.permute.xlu0 %5425
    %5427 = vrot.lane.b32.xlu0 %v5386, 112
    %v5428 = vpop.permute.xlu0 %5427
    %5429 = vrot.lane.b32.xlu0 %v5391, 112
    %v5430 = vpop.permute.xlu0 %5429
    %5431 = vrot.lane.b32.xlu0 %v5396, 112
    %v5432 = vpop.permute.xlu0 %5431
    %5433 = vrot.lane.b32.xlu0 %v5381, 104
    %v5434 = vpop.permute.xlu0 %5433
    %5435 = vrot.lane.b32.xlu0 %v5386, 104
    %v5436 = vpop.permute.xlu0 %5435
    %5437 = vrot.lane.b32.xlu0 %v5391, 104
    %v5438 = vpop.permute.xlu0 %5437
    %5439 = vrot.lane.b32.xlu0 %v5396, 104
    %v5440 = vpop.permute.xlu0 %5439
    %v5441 = vsel %vm197, %v5302, 0
    %v5443 = vsel %vm197, %v5381, 0
    %v5445 = vsel %vm197, %v5386, 0
    %5447 = vmatprep.subr.mxu0 0.0
    %5448 = vmatpush1.xpose.msra.mxu0 0.0
    %5449 = vmatprep.subr.mxu0 0.0
    %5450 = vmatpush1.xpose.msra.mxu0 0.0
    %5451 = vmatprep.subr.mxu0 0.0
    %5452 = vmatpush1.xpose.msra.mxu0 0.0
    %5453 = vmatprep.subr.mxu0 0.0
    %5454 = vmatpush1.xpose.msra.mxu0 0.0
    %5455 = vmatprep.subr.mxu0 0.0
    %5456 = vmatpush1.xpose.msra.mxu0 0.0
    %5457 = vmatprep.subr.mxu0 0.0
    %5458 = vmatpush1.xpose.msra.mxu0 0.0
    %5459 = vmatprep.subr.mxu0 0.0
    %5460 = vmatpush1.xpose.msra.mxu0 0.0
    %5461 = vmatprep.subr.mxu0 0.0
    %5462 = vmatpush1.xpose.msra.mxu0 0.0
    %5463 = vmatprep.subr.mxu0 0.0
    %5464 = vmatpush1.xpose.msra.mxu0 0.0
    %5465 = vmatprep.subr.mxu0 0.0
    %5466 = vmatpush1.xpose.msra.mxu0 0.0
    %5467 = vmatprep.subr.mxu0 0.0
    %5468 = vmatpush1.xpose.msra.mxu0 0.0
    %5469 = vmatprep.subr.mxu0 0.0
    %5470 = vmatpush1.xpose.msra.mxu0 0.0
    %5471 = vmatprep.subr.mxu0 0.0
    %5472 = vmatpush1.xpose.msra.mxu0 0.0
    %5473 = vmatprep.subr.mxu0 0.0
    %5474 = vmatpush1.xpose.msra.mxu0 0.0
    %5475 = vmatprep.subr.mxu0 0.0
    %5476 = vmatpush1.xpose.msra.mxu0 %v5445
    %5477 = vmatprep.subr.mxu0 0.0
    %5478 = vmatpush1.xpose.msra.mxu0 %v5443
    %5479 = vmatprep.subr.mxu0 0.0
    %5480 = vmatpush2.xpose.msra.mxu0 0.0
    %5481 = vmatprep.subr.mxu0 0.0
    %5482 = vmatpush2.xpose.msra.mxu0 0.0
    %5483 = vmatprep.subr.mxu0 0.0
    %5484 = vmatpush2.xpose.msra.mxu0 0.0
    %5485 = vmatprep.subr.mxu0 0.0
    %5486 = vmatpush2.xpose.msra.mxu0 0.0
    %5487 = vmatprep.subr.mxu0 0.0
    %5488 = vmatpush2.xpose.msra.mxu0 0.0
    %5489 = vmatprep.subr.mxu0 0.0
    %5490 = vmatpush2.xpose.msra.mxu0 0.0
    %5491 = vmatprep.subr.mxu0 0.0
    %5492 = vmatpush2.xpose.msra.mxu0 0.0
    %5493 = vmatprep.subr.mxu0 0.0
    %5494 = vmatpush2.xpose.msra.mxu0 0.0
    %5495 = vmatprep.subr.mxu0 0.0
    %5496 = vmatpush2.xpose.msra.mxu0 0.0
    %5497 = vmatprep.subr.mxu0 0.0
    %5498 = vmatpush2.xpose.msra.mxu0 0.0
    %5499 = vmatprep.subr.mxu0 0.0
    %5500 = vmatpush2.xpose.msra.mxu0 0.0
    %5501 = vmatprep.subr.mxu0 0.0
    %5502 = vmatpush2.xpose.msra.mxu0 0.0
    %5503 = vmatprep.subr.mxu0 0.0
    %5504 = vmatpush2.xpose.msra.mxu0 0.0
    %5505 = vmatprep.subr.mxu0 0.0
    %5506 = vmatpush2.xpose.msra.mxu0 0.0
    %5507 = vmatprep.subr.mxu0 0.0
    %5508 = vmatpush2.xpose.msra.mxu0 0.0
    %5509 = vmatprep.subr.mxu0 0.0
    %5510 = vmatpush2.xpose.msra.mxu0 0.0
    %5511 = vmatprep.mubr.f32.mxu0 0.0
    %5512 = vmatmul.mubr.f32.gmra.mxu0 %v5441
    %v5513 = vpop.f32.mrf.mxu0
    %v5514 = vadd.f32 0.0, %v5513
    %v5515 = vpop.f32.mrf.mxu0
    %5516 = vdwg.mxu0
    %v5517 = vsel %vm197, %v5307, 0
    %v5519 = vsel %vm197, %v5391, 0
    %v5521 = vsel %vm197, %v5396, 0
    %5523 = vmatprep.subr.mxu0 0.0
    %5524 = vmatpush1.xpose.msra.mxu0 0.0
    %5525 = vmatprep.subr.mxu0 0.0
    %5526 = vmatpush1.xpose.msra.mxu0 0.0
    %5527 = vmatprep.subr.mxu0 0.0
    %5528 = vmatpush1.xpose.msra.mxu0 0.0
    %5529 = vmatprep.subr.mxu0 0.0
    %5530 = vmatpush1.xpose.msra.mxu0 0.0
    %5531 = vmatprep.subr.mxu0 0.0
    %5532 = vmatpush1.xpose.msra.mxu0 0.0
    %5533 = vmatprep.subr.mxu0 0.0
    %5534 = vmatpush1.xpose.msra.mxu0 0.0
    %5535 = vmatprep.subr.mxu0 0.0
    %5536 = vmatpush1.xpose.msra.mxu0 0.0
    %5537 = vmatprep.subr.mxu0 0.0
    %5538 = vmatpush1.xpose.msra.mxu0 0.0
    %5539 = vmatprep.subr.mxu0 0.0
    %5540 = vmatpush1.xpose.msra.mxu0 0.0
    %5541 = vmatprep.subr.mxu0 0.0
    %5542 = vmatpush1.xpose.msra.mxu0 0.0
    %5543 = vmatprep.subr.mxu0 0.0
    %5544 = vmatpush1.xpose.msra.mxu0 0.0
    %5545 = vmatprep.subr.mxu0 0.0
    %5546 = vmatpush1.xpose.msra.mxu0 0.0
    %5547 = vmatprep.subr.mxu0 0.0
    %5548 = vmatpush1.xpose.msra.mxu0 0.0
    %5549 = vmatprep.subr.mxu0 0.0
    %5550 = vmatpush1.xpose.msra.mxu0 0.0
    %5551 = vmatprep.subr.mxu0 0.0
    %5552 = vmatpush1.xpose.msra.mxu0 %v5521
    %5553 = vmatprep.subr.mxu0 0.0
    %5554 = vmatpush1.xpose.msra.mxu0 %v5519
    %5555 = vmatprep.subr.mxu0 0.0
    %5556 = vmatpush2.xpose.msra.mxu0 0.0
    %5557 = vmatprep.subr.mxu0 0.0
    %5558 = vmatpush2.xpose.msra.mxu0 0.0
    %5559 = vmatprep.subr.mxu0 0.0
    %5560 = vmatpush2.xpose.msra.mxu0 0.0
    %5561 = vmatprep.subr.mxu0 0.0
    %5562 = vmatpush2.xpose.msra.mxu0 0.0
    %5563 = vmatprep.subr.mxu0 0.0
    %5564 = vmatpush2.xpose.msra.mxu0 0.0
    %5565 = vmatprep.subr.mxu0 0.0
    %5566 = vmatpush2.xpose.msra.mxu0 0.0
    %5567 = vmatprep.subr.mxu0 0.0
    %5568 = vmatpush2.xpose.msra.mxu0 0.0
    %5569 = vmatprep.subr.mxu0 0.0
    %5570 = vmatpush2.xpose.msra.mxu0 0.0
    %5571 = vmatprep.subr.mxu0 0.0
    %5572 = vmatpush2.xpose.msra.mxu0 0.0
    %5573 = vmatprep.subr.mxu0 0.0
    %5574 = vmatpush2.xpose.msra.mxu0 0.0
    %5575 = vmatprep.subr.mxu0 0.0
    %5576 = vmatpush2.xpose.msra.mxu0 0.0
    %5577 = vmatprep.subr.mxu0 0.0
    %5578 = vmatpush2.xpose.msra.mxu0 0.0
    %5579 = vmatprep.subr.mxu0 0.0
    %5580 = vmatpush2.xpose.msra.mxu0 0.0
    %5581 = vmatprep.subr.mxu0 0.0
    %5582 = vmatpush2.xpose.msra.mxu0 0.0
    %5583 = vmatprep.subr.mxu0 0.0
    %5584 = vmatpush2.xpose.msra.mxu0 0.0
    %5585 = vmatprep.subr.mxu0 0.0
    %5586 = vmatpush2.xpose.msra.mxu0 0.0
    %5587 = vmatprep.mubr.f32.mxu0 0.0
    %5588 = vmatmul.mubr.f32.gmra.mxu0 %v5517
    %v5589 = vpop.f32.mrf.mxu0
    %v5590 = vadd.f32 0.0, %v5589
    %v5591 = vpop.f32.mrf.mxu0
    %5592 = vdwg.mxu0
    %v5593 = vsel %vm197, %v5402, 0
    %v5595 = vsel %vm197, %v5418, 0
    %v5597 = vsel %vm197, %v5420, 0
    %5599 = vmatprep.subr.mxu0 0.0
    %5600 = vmatpush1.xpose.msra.mxu0 0.0
    %5601 = vmatprep.subr.mxu0 0.0
    %5602 = vmatpush1.xpose.msra.mxu0 0.0
    %5603 = vmatprep.subr.mxu0 0.0
    %5604 = vmatpush1.xpose.msra.mxu0 0.0
    %5605 = vmatprep.subr.mxu0 0.0
    %5606 = vmatpush1.xpose.msra.mxu0 0.0
    %5607 = vmatprep.subr.mxu0 0.0
    %5608 = vmatpush1.xpose.msra.mxu0 0.0
    %5609 = vmatprep.subr.mxu0 0.0
    %5610 = vmatpush1.xpose.msra.mxu0 0.0
    %5611 = vmatprep.subr.mxu0 0.0
    %5612 = vmatpush1.xpose.msra.mxu0 0.0
    %5613 = vmatprep.subr.mxu0 0.0
    %5614 = vmatpush1.xpose.msra.mxu0 0.0
    %5615 = vmatprep.subr.mxu0 0.0
    %5616 = vmatpush1.xpose.msra.mxu0 0.0
    %5617 = vmatprep.subr.mxu0 0.0
    %5618 = vmatpush1.xpose.msra.mxu0 0.0
    %5619 = vmatprep.subr.mxu0 0.0
    %5620 = vmatpush1.xpose.msra.mxu0 0.0
    %5621 = vmatprep.subr.mxu0 0.0
    %5622 = vmatpush1.xpose.msra.mxu0 0.0
    %5623 = vmatprep.subr.mxu0 0.0
    %5624 = vmatpush1.xpose.msra.mxu0 0.0
    %5625 = vmatprep.subr.mxu0 0.0
    %5626 = vmatpush1.xpose.msra.mxu0 0.0
    %5627 = vmatprep.subr.mxu0 0.0
    %5628 = vmatpush1.xpose.msra.mxu0 %v5597
    %5629 = vmatprep.subr.mxu0 0.0
    %5630 = vmatpush1.xpose.msra.mxu0 %v5595
    %5631 = vmatprep.subr.mxu0 0.0
    %5632 = vmatpush2.xpose.msra.mxu0 0.0
    %5633 = vmatprep.subr.mxu0 0.0
    %5634 = vmatpush2.xpose.msra.mxu0 0.0
    %5635 = vmatprep.subr.mxu0 0.0
    %5636 = vmatpush2.xpose.msra.mxu0 0.0
    %5637 = vmatprep.subr.mxu0 0.0
    %5638 = vmatpush2.xpose.msra.mxu0 0.0
    %5639 = vmatprep.subr.mxu0 0.0
    %5640 = vmatpush2.xpose.msra.mxu0 0.0
    %5641 = vmatprep.subr.mxu0 0.0
    %5642 = vmatpush2.xpose.msra.mxu0 0.0
    %5643 = vmatprep.subr.mxu0 0.0
    %5644 = vmatpush2.xpose.msra.mxu0 0.0
    %5645 = vmatprep.subr.mxu0 0.0
    %5646 = vmatpush2.xpose.msra.mxu0 0.0
    %5647 = vmatprep.subr.mxu0 0.0
    %5648 = vmatpush2.xpose.msra.mxu0 0.0
    %5649 = vmatprep.subr.mxu0 0.0
    %5650 = vmatpush2.xpose.msra.mxu0 0.0
    %5651 = vmatprep.subr.mxu0 0.0
    %5652 = vmatpush2.xpose.msra.mxu0 0.0
    %5653 = vmatprep.subr.mxu0 0.0
    %5654 = vmatpush2.xpose.msra.mxu0 0.0
    %5655 = vmatprep.subr.mxu0 0.0
    %5656 = vmatpush2.xpose.msra.mxu0 0.0
    %5657 = vmatprep.subr.mxu0 0.0
    %5658 = vmatpush2.xpose.msra.mxu0 0.0
    %5659 = vmatprep.subr.mxu0 0.0
    %5660 = vmatpush2.xpose.msra.mxu0 0.0
    %5661 = vmatprep.subr.mxu0 0.0
    %5662 = vmatpush2.xpose.msra.mxu0 0.0
    %5663 = vmatprep.mubr.f32.mxu0 0.0
    %5664 = vmatmul.mubr.f32.gmra.mxu0 %v5593
    %v5665 = vpop.f32.mrf.mxu0
    %v5666 = vadd.f32 0.0, %v5665
    %v5667 = vpop.f32.mrf.mxu0
    %5668 = vdwg.mxu0
    %v5669 = vsel %vm197, %v5404, 0
    %v5671 = vsel %vm197, %v5422, 0
    %v5673 = vsel %vm197, %v5424, 0
    %5675 = vmatprep.subr.mxu0 0.0
    %5676 = vmatpush1.xpose.msra.mxu0 0.0
    %5677 = vmatprep.subr.mxu0 0.0
    %5678 = vmatpush1.xpose.msra.mxu0 0.0
    %5679 = vmatprep.subr.mxu0 0.0
    %5680 = vmatpush1.xpose.msra.mxu0 0.0
    %5681 = vmatprep.subr.mxu0 0.0
    %5682 = vmatpush1.xpose.msra.mxu0 0.0
    %5683 = vmatprep.subr.mxu0 0.0
    %5684 = vmatpush1.xpose.msra.mxu0 0.0
    %5685 = vmatprep.subr.mxu0 0.0
    %5686 = vmatpush1.xpose.msra.mxu0 0.0
    %5687 = vmatprep.subr.mxu0 0.0
    %5688 = vmatpush1.xpose.msra.mxu0 0.0
    %5689 = vmatprep.subr.mxu0 0.0
    %5690 = vmatpush1.xpose.msra.mxu0 0.0
    %5691 = vmatprep.subr.mxu0 0.0
    %5692 = vmatpush1.xpose.msra.mxu0 0.0
    %5693 = vmatprep.subr.mxu0 0.0
    %5694 = vmatpush1.xpose.msra.mxu0 0.0
    %5695 = vmatprep.subr.mxu0 0.0
    %5696 = vmatpush1.xpose.msra.mxu0 0.0
    %5697 = vmatprep.subr.mxu0 0.0
    %5698 = vmatpush1.xpose.msra.mxu0 0.0
    %5699 = vmatprep.subr.mxu0 0.0
    %5700 = vmatpush1.xpose.msra.mxu0 0.0
    %5701 = vmatprep.subr.mxu0 0.0
    %5702 = vmatpush1.xpose.msra.mxu0 0.0
    %5703 = vmatprep.subr.mxu0 0.0
    %5704 = vmatpush1.xpose.msra.mxu0 %v5673
    %5705 = vmatprep.subr.mxu0 0.0
    %5706 = vmatpush1.xpose.msra.mxu0 %v5671
    %5707 = vmatprep.subr.mxu0 0.0
    %5708 = vmatpush2.xpose.msra.mxu0 0.0
    %5709 = vmatprep.subr.mxu0 0.0
    %5710 = vmatpush2.xpose.msra.mxu0 0.0
    %5711 = vmatprep.subr.mxu0 0.0
    %5712 = vmatpush2.xpose.msra.mxu0 0.0
    %5713 = vmatprep.subr.mxu0 0.0
    %5714 = vmatpush2.xpose.msra.mxu0 0.0
    %5715 = vmatprep.subr.mxu0 0.0
    %5716 = vmatpush2.xpose.msra.mxu0 0.0
    %5717 = vmatprep.subr.mxu0 0.0
    %5718 = vmatpush2.xpose.msra.mxu0 0.0
    %5719 = vmatprep.subr.mxu0 0.0
    %5720 = vmatpush2.xpose.msra.mxu0 0.0
    %5721 = vmatprep.subr.mxu0 0.0
    %5722 = vmatpush2.xpose.msra.mxu0 0.0
    %5723 = vmatprep.subr.mxu0 0.0
    %5724 = vmatpush2.xpose.msra.mxu0 0.0
    %5725 = vmatprep.subr.mxu0 0.0
    %5726 = vmatpush2.xpose.msra.mxu0 0.0
    %5727 = vmatprep.subr.mxu0 0.0
    %5728 = vmatpush2.xpose.msra.mxu0 0.0
    %5729 = vmatprep.subr.mxu0 0.0
    %5730 = vmatpush2.xpose.msra.mxu0 0.0
    %5731 = vmatprep.subr.mxu0 0.0
    %5732 = vmatpush2.xpose.msra.mxu0 0.0
    %5733 = vmatprep.subr.mxu0 0.0
    %5734 = vmatpush2.xpose.msra.mxu0 0.0
    %5735 = vmatprep.subr.mxu0 0.0
    %5736 = vmatpush2.xpose.msra.mxu0 0.0
    %5737 = vmatprep.subr.mxu0 0.0
    %5738 = vmatpush2.xpose.msra.mxu0 0.0
    %5739 = vmatprep.mubr.f32.mxu0 0.0
    %5740 = vmatmul.mubr.f32.gmra.mxu0 %v5669
    %v5741 = vpop.f32.mrf.mxu0
    %v5742 = vadd.f32 0.0, %v5741
    %v5743 = vpop.f32.mrf.mxu0
    %5744 = vdwg.mxu0
    %v5745 = vsel %vm197, %v5406, 0
    %v5747 = vsel %vm197, %v5426, 0
    %v5749 = vsel %vm197, %v5428, 0
    %5751 = vmatprep.subr.mxu0 0.0
    %5752 = vmatpush1.xpose.msra.mxu0 0.0
    %5753 = vmatprep.subr.mxu0 0.0
    %5754 = vmatpush1.xpose.msra.mxu0 0.0
    %5755 = vmatprep.subr.mxu0 0.0
    %5756 = vmatpush1.xpose.msra.mxu0 0.0
    %5757 = vmatprep.subr.mxu0 0.0
    %5758 = vmatpush1.xpose.msra.mxu0 0.0
    %5759 = vmatprep.subr.mxu0 0.0
    %5760 = vmatpush1.xpose.msra.mxu0 0.0
    %5761 = vmatprep.subr.mxu0 0.0
    %5762 = vmatpush1.xpose.msra.mxu0 0.0
    %5763 = vmatprep.subr.mxu0 0.0
    %5764 = vmatpush1.xpose.msra.mxu0 0.0
    %5765 = vmatprep.subr.mxu0 0.0
    %5766 = vmatpush1.xpose.msra.mxu0 0.0
    %5767 = vmatprep.subr.mxu0 0.0
    %5768 = vmatpush1.xpose.msra.mxu0 0.0
    %5769 = vmatprep.subr.mxu0 0.0
    %5770 = vmatpush1.xpose.msra.mxu0 0.0
    %5771 = vmatprep.subr.mxu0 0.0
    %5772 = vmatpush1.xpose.msra.mxu0 0.0
    %5773 = vmatprep.subr.mxu0 0.0
    %5774 = vmatpush1.xpose.msra.mxu0 0.0
    %5775 = vmatprep.subr.mxu0 0.0
    %5776 = vmatpush1.xpose.msra.mxu0 0.0
    %5777 = vmatprep.subr.mxu0 0.0
    %5778 = vmatpush1.xpose.msra.mxu0 0.0
    %5779 = vmatprep.subr.mxu0 0.0
    %5780 = vmatpush1.xpose.msra.mxu0 %v5749
    %5781 = vmatprep.subr.mxu0 0.0
    %5782 = vmatpush1.xpose.msra.mxu0 %v5747
    %5783 = vmatprep.subr.mxu0 0.0
    %5784 = vmatpush2.xpose.msra.mxu0 0.0
    %5785 = vmatprep.subr.mxu0 0.0
    %5786 = vmatpush2.xpose.msra.mxu0 0.0
    %5787 = vmatprep.subr.mxu0 0.0
    %5788 = vmatpush2.xpose.msra.mxu0 0.0
    %5789 = vmatprep.subr.mxu0 0.0
    %5790 = vmatpush2.xpose.msra.mxu0 0.0
    %5791 = vmatprep.subr.mxu0 0.0
    %5792 = vmatpush2.xpose.msra.mxu0 0.0
    %5793 = vmatprep.subr.mxu0 0.0
    %5794 = vmatpush2.xpose.msra.mxu0 0.0
    %5795 = vmatprep.subr.mxu0 0.0
    %5796 = vmatpush2.xpose.msra.mxu0 0.0
    %5797 = vmatprep.subr.mxu0 0.0
    %5798 = vmatpush2.xpose.msra.mxu0 0.0
    %5799 = vmatprep.subr.mxu0 0.0
    %5800 = vmatpush2.xpose.msra.mxu0 0.0
    %5801 = vmatprep.subr.mxu0 0.0
    %5802 = vmatpush2.xpose.msra.mxu0 0.0
    %5803 = vmatprep.subr.mxu0 0.0
    %5804 = vmatpush2.xpose.msra.mxu0 0.0
    %5805 = vmatprep.subr.mxu0 0.0
    %5806 = vmatpush2.xpose.msra.mxu0 0.0
    %5807 = vmatprep.subr.mxu0 0.0
    %5808 = vmatpush2.xpose.msra.mxu0 0.0
    %5809 = vmatprep.subr.mxu0 0.0
    %5810 = vmatpush2.xpose.msra.mxu0 0.0
    %5811 = vmatprep.subr.mxu0 0.0
    %5812 = vmatpush2.xpose.msra.mxu0 0.0
    %5813 = vmatprep.subr.mxu0 0.0
    %5814 = vmatpush2.xpose.msra.mxu0 0.0
    %5815 = vmatprep.mubr.f32.mxu0 0.0
    %5816 = vmatmul.mubr.f32.gmra.mxu0 %v5745
    %v5817 = vpop.f32.mrf.mxu0
    %v5818 = vadd.f32 0.0, %v5817
    %v5819 = vpop.f32.mrf.mxu0
    %5820 = vdwg.mxu0
    %v5821 = vsel %vm197, %v5408, 0
    %v5823 = vsel %vm197, %v5430, 0
    %v5825 = vsel %vm197, %v5432, 0
    %5827 = vmatprep.subr.mxu0 0.0
    %5828 = vmatpush1.xpose.msra.mxu0 0.0
    %5829 = vmatprep.subr.mxu0 0.0
    %5830 = vmatpush1.xpose.msra.mxu0 0.0
    %5831 = vmatprep.subr.mxu0 0.0
    %5832 = vmatpush1.xpose.msra.mxu0 0.0
    %5833 = vmatprep.subr.mxu0 0.0
    %5834 = vmatpush1.xpose.msra.mxu0 0.0
    %5835 = vmatprep.subr.mxu0 0.0
    %5836 = vmatpush1.xpose.msra.mxu0 0.0
    %5837 = vmatprep.subr.mxu0 0.0
    %5838 = vmatpush1.xpose.msra.mxu0 0.0
    %5839 = vmatprep.subr.mxu0 0.0
    %5840 = vmatpush1.xpose.msra.mxu0 0.0
    %5841 = vmatprep.subr.mxu0 0.0
    %5842 = vmatpush1.xpose.msra.mxu0 0.0
    %5843 = vmatprep.subr.mxu0 0.0
    %5844 = vmatpush1.xpose.msra.mxu0 0.0
    %5845 = vmatprep.subr.mxu0 0.0
    %5846 = vmatpush1.xpose.msra.mxu0 0.0
    %5847 = vmatprep.subr.mxu0 0.0
    %5848 = vmatpush1.xpose.msra.mxu0 0.0
    %5849 = vmatprep.subr.mxu0 0.0
    %5850 = vmatpush1.xpose.msra.mxu0 0.0
    %5851 = vmatprep.subr.mxu0 0.0
    %5852 = vmatpush1.xpose.msra.mxu0 0.0
    %5853 = vmatprep.subr.mxu0 0.0
    %5854 = vmatpush1.xpose.msra.mxu0 0.0
    %5855 = vmatprep.subr.mxu0 0.0
    %5856 = vmatpush1.xpose.msra.mxu0 %v5825
    %5857 = vmatprep.subr.mxu0 0.0
    %5858 = vmatpush1.xpose.msra.mxu0 %v5823
    %5859 = vmatprep.subr.mxu0 0.0
    %5860 = vmatpush2.xpose.msra.mxu0 0.0
    %5861 = vmatprep.subr.mxu0 0.0
    %5862 = vmatpush2.xpose.msra.mxu0 0.0
    %5863 = vmatprep.subr.mxu0 0.0
    %5864 = vmatpush2.xpose.msra.mxu0 0.0
    %5865 = vmatprep.subr.mxu0 0.0
    %5866 = vmatpush2.xpose.msra.mxu0 0.0
    %5867 = vmatprep.subr.mxu0 0.0
    %5868 = vmatpush2.xpose.msra.mxu0 0.0
    %5869 = vmatprep.subr.mxu0 0.0
    %5870 = vmatpush2.xpose.msra.mxu0 0.0
    %5871 = vmatprep.subr.mxu0 0.0
    %5872 = vmatpush2.xpose.msra.mxu0 0.0
    %5873 = vmatprep.subr.mxu0 0.0
    %5874 = vmatpush2.xpose.msra.mxu0 0.0
    %5875 = vmatprep.subr.mxu0 0.0
    %5876 = vmatpush2.xpose.msra.mxu0 0.0
    %5877 = vmatprep.subr.mxu0 0.0
    %5878 = vmatpush2.xpose.msra.mxu0 0.0
    %5879 = vmatprep.subr.mxu0 0.0
    %5880 = vmatpush2.xpose.msra.mxu0 0.0
    %5881 = vmatprep.subr.mxu0 0.0
    %5882 = vmatpush2.xpose.msra.mxu0 0.0
    %5883 = vmatprep.subr.mxu0 0.0
    %5884 = vmatpush2.xpose.msra.mxu0 0.0
    %5885 = vmatprep.subr.mxu0 0.0
    %5886 = vmatpush2.xpose.msra.mxu0 0.0
    %5887 = vmatprep.subr.mxu0 0.0
    %5888 = vmatpush2.xpose.msra.mxu0 0.0
    %5889 = vmatprep.subr.mxu0 0.0
    %5890 = vmatpush2.xpose.msra.mxu0 0.0
    %5891 = vmatprep.mubr.f32.mxu0 0.0
    %5892 = vmatmul.mubr.f32.gmra.mxu0 %v5821
    %v5893 = vpop.f32.mrf.mxu0
    %v5894 = vadd.f32 0.0, %v5893
    %v5895 = vpop.f32.mrf.mxu0
    %5896 = vdwg.mxu0
    %v5897 = vsel %vm197, %v5410, 0
    %v5899 = vsel %vm197, %v5434, 0
    %v5901 = vsel %vm197, %v5436, 0
    %5903 = vmatprep.subr.mxu0 0.0
    %5904 = vmatpush1.xpose.msra.mxu0 0.0
    %5905 = vmatprep.subr.mxu0 0.0
    %5906 = vmatpush1.xpose.msra.mxu0 0.0
    %5907 = vmatprep.subr.mxu0 0.0
    %5908 = vmatpush1.xpose.msra.mxu0 0.0
    %5909 = vmatprep.subr.mxu0 0.0
    %5910 = vmatpush1.xpose.msra.mxu0 0.0
    %5911 = vmatprep.subr.mxu0 0.0
    %5912 = vmatpush1.xpose.msra.mxu0 0.0
    %5913 = vmatprep.subr.mxu0 0.0
    %5914 = vmatpush1.xpose.msra.mxu0 0.0
    %5915 = vmatprep.subr.mxu0 0.0
    %5916 = vmatpush1.xpose.msra.mxu0 0.0
    %5917 = vmatprep.subr.mxu0 0.0
    %5918 = vmatpush1.xpose.msra.mxu0 0.0
    %5919 = vmatprep.subr.mxu0 0.0
    %5920 = vmatpush1.xpose.msra.mxu0 0.0
    %5921 = vmatprep.subr.mxu0 0.0
    %5922 = vmatpush1.xpose.msra.mxu0 0.0
    %5923 = vmatprep.subr.mxu0 0.0
    %5924 = vmatpush1.xpose.msra.mxu0 0.0
    %5925 = vmatprep.subr.mxu0 0.0
    %5926 = vmatpush1.xpose.msra.mxu0 0.0
    %5927 = vmatprep.subr.mxu0 0.0
    %5928 = vmatpush1.xpose.msra.mxu0 0.0
    %5929 = vmatprep.subr.mxu0 0.0
    %5930 = vmatpush1.xpose.msra.mxu0 0.0
    %5931 = vmatprep.subr.mxu0 0.0
    %5932 = vmatpush1.xpose.msra.mxu0 %v5901
    %5933 = vmatprep.subr.mxu0 0.0
    %5934 = vmatpush1.xpose.msra.mxu0 %v5899
    %5935 = vmatprep.subr.mxu0 0.0
    %5936 = vmatpush2.xpose.msra.mxu0 0.0
    %5937 = vmatprep.subr.mxu0 0.0
    %5938 = vmatpush2.xpose.msra.mxu0 0.0
    %5939 = vmatprep.subr.mxu0 0.0
    %5940 = vmatpush2.xpose.msra.mxu0 0.0
    %5941 = vmatprep.subr.mxu0 0.0
    %5942 = vmatpush2.xpose.msra.mxu0 0.0
    %5943 = vmatprep.subr.mxu0 0.0
    %5944 = vmatpush2.xpose.msra.mxu0 0.0
    %5945 = vmatprep.subr.mxu0 0.0
    %5946 = vmatpush2.xpose.msra.mxu0 0.0
    %5947 = vmatprep.subr.mxu0 0.0
    %5948 = vmatpush2.xpose.msra.mxu0 0.0
    %5949 = vmatprep.subr.mxu0 0.0
    %5950 = vmatpush2.xpose.msra.mxu0 0.0
    %5951 = vmatprep.subr.mxu0 0.0
    %5952 = vmatpush2.xpose.msra.mxu0 0.0
    %5953 = vmatprep.subr.mxu0 0.0
    %5954 = vmatpush2.xpose.msra.mxu0 0.0
    %5955 = vmatprep.subr.mxu0 0.0
    %5956 = vmatpush2.xpose.msra.mxu0 0.0
    %5957 = vmatprep.subr.mxu0 0.0
    %5958 = vmatpush2.xpose.msra.mxu0 0.0
    %5959 = vmatprep.subr.mxu0 0.0
    %5960 = vmatpush2.xpose.msra.mxu0 0.0
    %5961 = vmatprep.subr.mxu0 0.0
    %5962 = vmatpush2.xpose.msra.mxu0 0.0
    %5963 = vmatprep.subr.mxu0 0.0
    %5964 = vmatpush2.xpose.msra.mxu0 0.0
    %5965 = vmatprep.subr.mxu0 0.0
    %5966 = vmatpush2.xpose.msra.mxu0 0.0
    %5967 = vmatprep.mubr.f32.mxu0 0.0
    %5968 = vmatmul.mubr.f32.gmra.mxu0 %v5897
    %v5969 = vpop.f32.mrf.mxu0
    %v5970 = vadd.f32 0.0, %v5969
    %v5971 = vpop.f32.mrf.mxu0
    %5972 = vdwg.mxu0
    %v5973 = vsel %vm197, %v5412, 0
    %v5975 = vsel %vm197, %v5438, 0
    %v5977 = vsel %vm197, %v5440, 0
    %5979 = vmatprep.subr.mxu0 0.0
    %5980 = vmatpush1.xpose.msra.mxu0 0.0
    %5981 = vmatprep.subr.mxu0 0.0
    %5982 = vmatpush1.xpose.msra.mxu0 0.0
    %5983 = vmatprep.subr.mxu0 0.0
    %5984 = vmatpush1.xpose.msra.mxu0 0.0
    %5985 = vmatprep.subr.mxu0 0.0
    %5986 = vmatpush1.xpose.msra.mxu0 0.0
    %5987 = vmatprep.subr.mxu0 0.0
    %5988 = vmatpush1.xpose.msra.mxu0 0.0
    %5989 = vmatprep.subr.mxu0 0.0
    %5990 = vmatpush1.xpose.msra.mxu0 0.0
    %5991 = vmatprep.subr.mxu0 0.0
    %5992 = vmatpush1.xpose.msra.mxu0 0.0
    %5993 = vmatprep.subr.mxu0 0.0
    %5994 = vmatpush1.xpose.msra.mxu0 0.0
    %5995 = vmatprep.subr.mxu0 0.0
    %5996 = vmatpush1.xpose.msra.mxu0 0.0
    %5997 = vmatprep.subr.mxu0 0.0
    %5998 = vmatpush1.xpose.msra.mxu0 0.0
    %5999 = vmatprep.subr.mxu0 0.0
    %6000 = vmatpush1.xpose.msra.mxu0 0.0
    %6001 = vmatprep.subr.mxu0 0.0
    %6002 = vmatpush1.xpose.msra.mxu0 0.0
    %6003 = vmatprep.subr.mxu0 0.0
    %6004 = vmatpush1.xpose.msra.mxu0 0.0
    %6005 = vmatprep.subr.mxu0 0.0
    %6006 = vmatpush1.xpose.msra.mxu0 0.0
    %6007 = vmatprep.subr.mxu0 0.0
    %6008 = vmatpush1.xpose.msra.mxu0 %v5977
    %6009 = vmatprep.subr.mxu0 0.0
    %6010 = vmatpush1.xpose.msra.mxu0 %v5975
    %6011 = vmatprep.subr.mxu0 0.0
    %6012 = vmatpush2.xpose.msra.mxu0 0.0
    %6013 = vmatprep.subr.mxu0 0.0
    %6014 = vmatpush2.xpose.msra.mxu0 0.0
    %6015 = vmatprep.subr.mxu0 0.0
    %6016 = vmatpush2.xpose.msra.mxu0 0.0
    %6017 = vmatprep.subr.mxu0 0.0
    %6018 = vmatpush2.xpose.msra.mxu0 0.0
    %6019 = vmatprep.subr.mxu0 0.0
    %6020 = vmatpush2.xpose.msra.mxu0 0.0
    %6021 = vmatprep.subr.mxu0 0.0
    %6022 = vmatpush2.xpose.msra.mxu0 0.0
    %6023 = vmatprep.subr.mxu0 0.0
    %6024 = vmatpush2.xpose.msra.mxu0 0.0
    %6025 = vmatprep.subr.mxu0 0.0
    %6026 = vmatpush2.xpose.msra.mxu0 0.0
    %6027 = vmatprep.subr.mxu0 0.0
    %6028 = vmatpush2.xpose.msra.mxu0 0.0
    %6029 = vmatprep.subr.mxu0 0.0
    %6030 = vmatpush2.xpose.msra.mxu0 0.0
    %6031 = vmatprep.subr.mxu0 0.0
    %6032 = vmatpush2.xpose.msra.mxu0 0.0
    %6033 = vmatprep.subr.mxu0 0.0
    %6034 = vmatpush2.xpose.msra.mxu0 0.0
    %6035 = vmatprep.subr.mxu0 0.0
    %6036 = vmatpush2.xpose.msra.mxu0 0.0
    %6037 = vmatprep.subr.mxu0 0.0
    %6038 = vmatpush2.xpose.msra.mxu0 0.0
    %6039 = vmatprep.subr.mxu0 0.0
    %6040 = vmatpush2.xpose.msra.mxu0 0.0
    %6041 = vmatprep.subr.mxu0 0.0
    %6042 = vmatpush2.xpose.msra.mxu0 0.0
    %6043 = vmatprep.mubr.f32.mxu0 0.0
    %6044 = vmatmul.mubr.f32.gmra.mxu0 %v5973
    %v6045 = vpop.f32.mrf.mxu0
    %v6046 = vadd.f32 0.0, %v6045
    %v6047 = vpop.f32.mrf.mxu0
    %6048 = vdwg.mxu0
    %v6049 = vmul.f32 %v5514, 0.35355338
    %v6050 = vmul.f32 %v5590, 0.35355338
    %v6051 = vmul.f32 %v5666, 0.35355338
    %v6052 = vmul.f32 %v5742, 0.35355338
    %v6053 = vmul.f32 %v5818, 0.35355338
    %v6054 = vmul.f32 %v5894, 0.35355338
    %v6055 = vmul.f32 %v5970, 0.35355338
    %v6056 = vmul.f32 %v6046, 0.35355338
    %v6057 = vsel %vm1534, %v6049, -inf
    %6058 = vmax.xlane.f32.xlu0 %v6057
    %v6059 = vpop.xlane.xlu0 %6058
    %v6060 = vsel %vm1534, %v6050, -inf
    %6061 = vmax.xlane.f32.xlu0 %v6060
    %v6062 = vpop.xlane.xlu0 %6061
    %v6063 = vsel %vm1534, %v6051, -inf
    %6064 = vmax.xlane.f32.xlu0 %v6063
    %v6065 = vpop.xlane.xlu0 %6064
    %v6066 = vsel %vm1534, %v6052, -inf
    %6067 = vmax.xlane.f32.xlu0 %v6066
    %v6068 = vpop.xlane.xlu0 %6067
    %v6069 = vsel %vm1534, %v6053, -inf
    %6070 = vmax.xlane.f32.xlu0 %v6069
    %v6071 = vpop.xlane.xlu0 %6070
    %v6072 = vsel %vm1534, %v6054, -inf
    %6073 = vmax.xlane.f32.xlu0 %v6072
    %v6074 = vpop.xlane.xlu0 %6073
    %v6075 = vsel %vm1534, %v6055, -inf
    %6076 = vmax.xlane.f32.xlu0 %v6075
    %v6077 = vpop.xlane.xlu0 %6076
    %v6078 = vsel %vm1534, %v6056, -inf
    %6079 = vmax.xlane.f32.xlu0 %v6078
    %v6080 = vpop.xlane.xlu0 %6079
    %v6081 = vsub.f32 %v6049, %v6059
    %v6082 = vsub.f32 %v6050, %v6062
    %v6083 = vsub.f32 %v6051, %v6065
    %v6084 = vsub.f32 %v6052, %v6068
    %v6085 = vsub.f32 %v6053, %v6071
    %v6086 = vsub.f32 %v6054, %v6074
    %v6087 = vsub.f32 %v6055, %v6077
    %v6088 = vsub.f32 %v6056, %v6080
    %v6089 = vmul.f32 %v6081, 1.442695
    %v6090 = vpow.pop %v6089
    %v6091 = vmul.f32 %v6082, 1.442695
    %v6092 = vpow.pop %v6091
    %v6093 = vmul.f32 %v6083, 1.442695
    %v6094 = vpow.pop %v6093
    %v6095 = vmul.f32 %v6084, 1.442695
    %v6096 = vpow.pop %v6095
    %v6097 = vmul.f32 %v6085, 1.442695
    %v6098 = vpow.pop %v6097
    %v6099 = vmul.f32 %v6086, 1.442695
    %v6100 = vpow.pop %v6099
    %v6101 = vmul.f32 %v6087, 1.442695
    %v6102 = vpow.pop %v6101
    %v6103 = vmul.f32 %v6088, 1.442695
    %v6104 = vpow.pop %v6103
    %v6105 = vsel %vm1534, %v6090, 0.0
    %6106 = vadd.xlane.f32.xlu0 %v6105
    %v6107 = vpop.xlane.xlu0 %6106
    %v6108 = vsel %vm1534, %v6092, 0.0
    %6109 = vadd.xlane.f32.xlu0 %v6108
    %v6110 = vpop.xlane.xlu0 %6109
    %v6111 = vsel %vm1534, %v6094, 0.0
    %6112 = vadd.xlane.f32.xlu0 %v6111
    %v6113 = vpop.xlane.xlu0 %6112
    %v6114 = vsel %vm1534, %v6096, 0.0
    %6115 = vadd.xlane.f32.xlu0 %v6114
    %v6116 = vpop.xlane.xlu0 %6115
    %v6117 = vsel %vm1534, %v6098, 0.0
    %6118 = vadd.xlane.f32.xlu0 %v6117
    %v6119 = vpop.xlane.xlu0 %6118
    %v6120 = vsel %vm1534, %v6100, 0.0
    %6121 = vadd.xlane.f32.xlu0 %v6120
    %v6122 = vpop.xlane.xlu0 %6121
    %v6123 = vsel %vm1534, %v6102, 0.0
    %6124 = vadd.xlane.f32.xlu0 %v6123
    %v6125 = vpop.xlane.xlu0 %6124
    %v6126 = vsel %vm1534, %v6104, 0.0
    %6127 = vadd.xlane.f32.xlu0 %v6126
    %v6128 = vpop.xlane.xlu0 %6127
    %v6129 = vrcp.pop %v6107
    %v6130 = vmul.f32 %v6090, %v6129
    %v6131 = vrcp.pop %v6110
    %v6132 = vmul.f32 %v6092, %v6131
    %v6133 = vrcp.pop %v6113
    %v6134 = vmul.f32 %v6094, %v6133
    %v6135 = vrcp.pop %v6116
    %v6136 = vmul.f32 %v6096, %v6135
    %v6137 = vrcp.pop %v6119
    %v6138 = vmul.f32 %v6098, %v6137
    %v6139 = vrcp.pop %v6122
    %v6140 = vmul.f32 %v6100, %v6139
    %v6141 = vrcp.pop %v6125
    %v6142 = vmul.f32 %v6102, %v6141
    %v6143 = vrcp.pop %v6128
    %v6144 = vmul.f32 %v6104, %v6143
    %6145 = vrot.lane.b32.xlu0 %v5381, 96
    %v6146 = vpop.permute.xlu0 %6145
    %6147 = vrot.lane.b32.xlu0 %v5386, 96
    %v6148 = vpop.permute.xlu0 %6147
    %v6152 = vsel %vm1534, %v6130, 0
    %6154 = vmatprep.subr.mxu0 0.0
    %6155 = vmatpush1.msra.mxu0 0.0
    %6156 = vmatprep.subr.mxu0 0.0
    %6157 = vmatpush1.msra.mxu0 0.0
    %6158 = vmatprep.subr.mxu0 0.0
    %6159 = vmatpush1.msra.mxu0 0.0
    %6160 = vmatprep.subr.mxu0 0.0
    %6161 = vmatpush1.msra.mxu0 0.0
    %6162 = vmatprep.subr.mxu0 0.0
    %6163 = vmatpush1.msra.mxu0 0.0
    %6164 = vmatprep.subr.mxu0 0.0
    %6165 = vmatpush1.msra.mxu0 0.0
    %6166 = vmatprep.subr.mxu0 0.0
    %6167 = vmatpush1.msra.mxu0 0.0
    %6168 = vmatprep.subr.mxu0 0.0
    %6169 = vmatpush1.msra.mxu0 0.0
    %6170 = vmatprep.subr.mxu0 0.0
    %6171 = vmatpush1.msra.mxu0 0.0
    %6172 = vmatprep.subr.mxu0 0.0
    %6173 = vmatpush1.msra.mxu0 0.0
    %6174 = vmatprep.subr.mxu0 0.0
    %6175 = vmatpush1.msra.mxu0 0.0
    %6176 = vmatprep.subr.mxu0 0.0
    %6177 = vmatpush1.msra.mxu0 0.0
    %6178 = vmatprep.subr.mxu0 0.0
    %6179 = vmatpush1.msra.mxu0 0.0
    %6180 = vmatprep.subr.mxu0 0.0
    %6181 = vmatpush1.msra.mxu0 0.0
    %6182 = vmatprep.subr.mxu0 0.0
    %6183 = vmatpush1.msra.mxu0 %v6148
    %6184 = vmatprep.subr.mxu0 0.0
    %6185 = vmatpush1.msra.mxu0 %v6146
    %6186 = vmatprep.subr.mxu0 0.0
    %6187 = vmatpush2.msra.mxu0 0.0
    %6188 = vmatprep.subr.mxu0 0.0
    %6189 = vmatpush2.msra.mxu0 0.0
    %6190 = vmatprep.subr.mxu0 0.0
    %6191 = vmatpush2.msra.mxu0 0.0
    %6192 = vmatprep.subr.mxu0 0.0
    %6193 = vmatpush2.msra.mxu0 0.0
    %6194 = vmatprep.subr.mxu0 0.0
    %6195 = vmatpush2.msra.mxu0 0.0
    %6196 = vmatprep.subr.mxu0 0.0
    %6197 = vmatpush2.msra.mxu0 0.0
    %6198 = vmatprep.subr.mxu0 0.0
    %6199 = vmatpush2.msra.mxu0 0.0
    %6200 = vmatprep.subr.mxu0 0.0
    %6201 = vmatpush2.msra.mxu0 0.0
    %6202 = vmatprep.subr.mxu0 0.0
    %6203 = vmatpush2.msra.mxu0 0.0
    %6204 = vmatprep.subr.mxu0 0.0
    %6205 = vmatpush2.msra.mxu0 0.0
    %6206 = vmatprep.subr.mxu0 0.0
    %6207 = vmatpush2.msra.mxu0 0.0
    %6208 = vmatprep.subr.mxu0 0.0
    %6209 = vmatpush2.msra.mxu0 0.0
    %6210 = vmatprep.subr.mxu0 0.0
    %6211 = vmatpush2.msra.mxu0 0.0
    %6212 = vmatprep.subr.mxu0 0.0
    %6213 = vmatpush2.msra.mxu0 0.0
    %6214 = vmatprep.subr.mxu0 0.0
    %6215 = vmatpush2.msra.mxu0 0.0
    %6216 = vmatprep.subr.mxu0 0.0
    %6217 = vmatpush2.msra.mxu0 0.0
    %6218 = vmatprep.mubr.f32.mxu0 0.0
    %6219 = vmatmul.mubr.f32.gmra.mxu0 %v6152
    %v6220 = vpop.f32.mrf.mxu0
    %v6221 = vadd.f32 0.0, %v6220
    %v6222 = vpop.f32.mrf.mxu0
    %6223 = vdwg.mxu0
    %6224 = vrot.lane.b32.xlu0 %v5391, 96
    %v6225 = vpop.permute.xlu0 %6224
    %6226 = vrot.lane.b32.xlu0 %v5396, 96
    %v6227 = vpop.permute.xlu0 %6226
    %v6231 = vsel %vm1534, %v6132, 0
    %6233 = vmatprep.subr.mxu0 0.0
    %6234 = vmatpush1.msra.mxu0 0.0
    %6235 = vmatprep.subr.mxu0 0.0
    %6236 = vmatpush1.msra.mxu0 0.0
    %6237 = vmatprep.subr.mxu0 0.0
    %6238 = vmatpush1.msra.mxu0 0.0
    %6239 = vmatprep.subr.mxu0 0.0
    %6240 = vmatpush1.msra.mxu0 0.0
    %6241 = vmatprep.subr.mxu0 0.0
    %6242 = vmatpush1.msra.mxu0 0.0
    %6243 = vmatprep.subr.mxu0 0.0
    %6244 = vmatpush1.msra.mxu0 0.0
    %6245 = vmatprep.subr.mxu0 0.0
    %6246 = vmatpush1.msra.mxu0 0.0
    %6247 = vmatprep.subr.mxu0 0.0
    %6248 = vmatpush1.msra.mxu0 0.0
    %6249 = vmatprep.subr.mxu0 0.0
    %6250 = vmatpush1.msra.mxu0 0.0
    %6251 = vmatprep.subr.mxu0 0.0
    %6252 = vmatpush1.msra.mxu0 0.0
    %6253 = vmatprep.subr.mxu0 0.0
    %6254 = vmatpush1.msra.mxu0 0.0
    %6255 = vmatprep.subr.mxu0 0.0
    %6256 = vmatpush1.msra.mxu0 0.0
    %6257 = vmatprep.subr.mxu0 0.0
    %6258 = vmatpush1.msra.mxu0 0.0
    %6259 = vmatprep.subr.mxu0 0.0
    %6260 = vmatpush1.msra.mxu0 0.0
    %6261 = vmatprep.subr.mxu0 0.0
    %6262 = vmatpush1.msra.mxu0 %v6227
    %6263 = vmatprep.subr.mxu0 0.0
    %6264 = vmatpush1.msra.mxu0 %v6225
    %6265 = vmatprep.subr.mxu0 0.0
    %6266 = vmatpush2.msra.mxu0 0.0
    %6267 = vmatprep.subr.mxu0 0.0
    %6268 = vmatpush2.msra.mxu0 0.0
    %6269 = vmatprep.subr.mxu0 0.0
    %6270 = vmatpush2.msra.mxu0 0.0
    %6271 = vmatprep.subr.mxu0 0.0
    %6272 = vmatpush2.msra.mxu0 0.0
    %6273 = vmatprep.subr.mxu0 0.0
    %6274 = vmatpush2.msra.mxu0 0.0
    %6275 = vmatprep.subr.mxu0 0.0
    %6276 = vmatpush2.msra.mxu0 0.0
    %6277 = vmatprep.subr.mxu0 0.0
    %6278 = vmatpush2.msra.mxu0 0.0
    %6279 = vmatprep.subr.mxu0 0.0
    %6280 = vmatpush2.msra.mxu0 0.0
    %6281 = vmatprep.subr.mxu0 0.0
    %6282 = vmatpush2.msra.mxu0 0.0
    %6283 = vmatprep.subr.mxu0 0.0
    %6284 = vmatpush2.msra.mxu0 0.0
    %6285 = vmatprep.subr.mxu0 0.0
    %6286 = vmatpush2.msra.mxu0 0.0
    %6287 = vmatprep.subr.mxu0 0.0
    %6288 = vmatpush2.msra.mxu0 0.0
    %6289 = vmatprep.subr.mxu0 0.0
    %6290 = vmatpush2.msra.mxu0 0.0
    %6291 = vmatprep.subr.mxu0 0.0
    %6292 = vmatpush2.msra.mxu0 0.0
    %6293 = vmatprep.subr.mxu0 0.0
    %6294 = vmatpush2.msra.mxu0 0.0
    %6295 = vmatprep.subr.mxu0 0.0
    %6296 = vmatpush2.msra.mxu0 0.0
    %6297 = vmatprep.mubr.f32.mxu0 0.0
    %6298 = vmatmul.mubr.f32.gmra.mxu0 %v6231
    %v6299 = vpop.f32.mrf.mxu0
    %v6300 = vadd.f32 0.0, %v6299
    %v6301 = vpop.f32.mrf.mxu0
    %6302 = vdwg.mxu0
    %6303 = vrot.lane.b32.xlu0 %v5418, 96
    %v6304 = vpop.permute.xlu0 %6303
    %6305 = vrot.lane.b32.xlu0 %v5420, 96
    %v6306 = vpop.permute.xlu0 %6305
    %v6310 = vsel %vm1534, %v6134, 0
    %6312 = vmatprep.subr.mxu0 0.0
    %6313 = vmatpush1.msra.mxu0 0.0
    %6314 = vmatprep.subr.mxu0 0.0
    %6315 = vmatpush1.msra.mxu0 0.0
    %6316 = vmatprep.subr.mxu0 0.0
    %6317 = vmatpush1.msra.mxu0 0.0
    %6318 = vmatprep.subr.mxu0 0.0
    %6319 = vmatpush1.msra.mxu0 0.0
    %6320 = vmatprep.subr.mxu0 0.0
    %6321 = vmatpush1.msra.mxu0 0.0
    %6322 = vmatprep.subr.mxu0 0.0
    %6323 = vmatpush1.msra.mxu0 0.0
    %6324 = vmatprep.subr.mxu0 0.0
    %6325 = vmatpush1.msra.mxu0 0.0
    %6326 = vmatprep.subr.mxu0 0.0
    %6327 = vmatpush1.msra.mxu0 0.0
    %6328 = vmatprep.subr.mxu0 0.0
    %6329 = vmatpush1.msra.mxu0 0.0
    %6330 = vmatprep.subr.mxu0 0.0
    %6331 = vmatpush1.msra.mxu0 0.0
    %6332 = vmatprep.subr.mxu0 0.0
    %6333 = vmatpush1.msra.mxu0 0.0
    %6334 = vmatprep.subr.mxu0 0.0
    %6335 = vmatpush1.msra.mxu0 0.0
    %6336 = vmatprep.subr.mxu0 0.0
    %6337 = vmatpush1.msra.mxu0 0.0
    %6338 = vmatprep.subr.mxu0 0.0
    %6339 = vmatpush1.msra.mxu0 0.0
    %6340 = vmatprep.subr.mxu0 0.0
    %6341 = vmatpush1.msra.mxu0 %v6306
    %6342 = vmatprep.subr.mxu0 0.0
    %6343 = vmatpush1.msra.mxu0 %v6304
    %6344 = vmatprep.subr.mxu0 0.0
    %6345 = vmatpush2.msra.mxu0 0.0
    %6346 = vmatprep.subr.mxu0 0.0
    %6347 = vmatpush2.msra.mxu0 0.0
    %6348 = vmatprep.subr.mxu0 0.0
    %6349 = vmatpush2.msra.mxu0 0.0
    %6350 = vmatprep.subr.mxu0 0.0
    %6351 = vmatpush2.msra.mxu0 0.0
    %6352 = vmatprep.subr.mxu0 0.0
    %6353 = vmatpush2.msra.mxu0 0.0
    %6354 = vmatprep.subr.mxu0 0.0
    %6355 = vmatpush2.msra.mxu0 0.0
    %6356 = vmatprep.subr.mxu0 0.0
    %6357 = vmatpush2.msra.mxu0 0.0
    %6358 = vmatprep.subr.mxu0 0.0
    %6359 = vmatpush2.msra.mxu0 0.0
    %6360 = vmatprep.subr.mxu0 0.0
    %6361 = vmatpush2.msra.mxu0 0.0
    %6362 = vmatprep.subr.mxu0 0.0
    %6363 = vmatpush2.msra.mxu0 0.0
    %6364 = vmatprep.subr.mxu0 0.0
    %6365 = vmatpush2.msra.mxu0 0.0
    %6366 = vmatprep.subr.mxu0 0.0
    %6367 = vmatpush2.msra.mxu0 0.0
    %6368 = vmatprep.subr.mxu0 0.0
    %6369 = vmatpush2.msra.mxu0 0.0
    %6370 = vmatprep.subr.mxu0 0.0
    %6371 = vmatpush2.msra.mxu0 0.0
    %6372 = vmatprep.subr.mxu0 0.0
    %6373 = vmatpush2.msra.mxu0 0.0
    %6374 = vmatprep.subr.mxu0 0.0
    %6375 = vmatpush2.msra.mxu0 0.0
    %6376 = vmatprep.mubr.f32.mxu0 0.0
    %6377 = vmatmul.mubr.f32.gmra.mxu0 %v6310
    %v6378 = vpop.f32.mrf.mxu0
    %v6379 = vadd.f32 0.0, %v6378
    %v6380 = vpop.f32.mrf.mxu0
    %6381 = vdwg.mxu0
    %6382 = vrot.lane.b32.xlu0 %v5422, 96
    %v6383 = vpop.permute.xlu0 %6382
    %6384 = vrot.lane.b32.xlu0 %v5424, 96
    %v6385 = vpop.permute.xlu0 %6384
    %v6389 = vsel %vm1534, %v6136, 0
    %6391 = vmatprep.subr.mxu0 0.0
    %6392 = vmatpush1.msra.mxu0 0.0
    %6393 = vmatprep.subr.mxu0 0.0
    %6394 = vmatpush1.msra.mxu0 0.0
    %6395 = vmatprep.subr.mxu0 0.0
    %6396 = vmatpush1.msra.mxu0 0.0
    %6397 = vmatprep.subr.mxu0 0.0
    %6398 = vmatpush1.msra.mxu0 0.0
    %6399 = vmatprep.subr.mxu0 0.0
    %6400 = vmatpush1.msra.mxu0 0.0
    %6401 = vmatprep.subr.mxu0 0.0
    %6402 = vmatpush1.msra.mxu0 0.0
    %6403 = vmatprep.subr.mxu0 0.0
    %6404 = vmatpush1.msra.mxu0 0.0
    %6405 = vmatprep.subr.mxu0 0.0
    %6406 = vmatpush1.msra.mxu0 0.0
    %6407 = vmatprep.subr.mxu0 0.0
    %6408 = vmatpush1.msra.mxu0 0.0
    %6409 = vmatprep.subr.mxu0 0.0
    %6410 = vmatpush1.msra.mxu0 0.0
    %6411 = vmatprep.subr.mxu0 0.0
    %6412 = vmatpush1.msra.mxu0 0.0
    %6413 = vmatprep.subr.mxu0 0.0
    %6414 = vmatpush1.msra.mxu0 0.0
    %6415 = vmatprep.subr.mxu0 0.0
    %6416 = vmatpush1.msra.mxu0 0.0
    %6417 = vmatprep.subr.mxu0 0.0
    %6418 = vmatpush1.msra.mxu0 0.0
    %6419 = vmatprep.subr.mxu0 0.0
    %6420 = vmatpush1.msra.mxu0 %v6385
    %6421 = vmatprep.subr.mxu0 0.0
    %6422 = vmatpush1.msra.mxu0 %v6383
    %6423 = vmatprep.subr.mxu0 0.0
    %6424 = vmatpush2.msra.mxu0 0.0
    %6425 = vmatprep.subr.mxu0 0.0
    %6426 = vmatpush2.msra.mxu0 0.0
    %6427 = vmatprep.subr.mxu0 0.0
    %6428 = vmatpush2.msra.mxu0 0.0
    %6429 = vmatprep.subr.mxu0 0.0
    %6430 = vmatpush2.msra.mxu0 0.0
    %6431 = vmatprep.subr.mxu0 0.0
    %6432 = vmatpush2.msra.mxu0 0.0
    %6433 = vmatprep.subr.mxu0 0.0
    %6434 = vmatpush2.msra.mxu0 0.0
    %6435 = vmatprep.subr.mxu0 0.0
    %6436 = vmatpush2.msra.mxu0 0.0
    %6437 = vmatprep.subr.mxu0 0.0
    %6438 = vmatpush2.msra.mxu0 0.0
    %6439 = vmatprep.subr.mxu0 0.0
    %6440 = vmatpush2.msra.mxu0 0.0
    %6441 = vmatprep.subr.mxu0 0.0
    %6442 = vmatpush2.msra.mxu0 0.0
    %6443 = vmatprep.subr.mxu0 0.0
    %6444 = vmatpush2.msra.mxu0 0.0
    %6445 = vmatprep.subr.mxu0 0.0
    %6446 = vmatpush2.msra.mxu0 0.0
    %6447 = vmatprep.subr.mxu0 0.0
    %6448 = vmatpush2.msra.mxu0 0.0
    %6449 = vmatprep.subr.mxu0 0.0
    %6450 = vmatpush2.msra.mxu0 0.0
    %6451 = vmatprep.subr.mxu0 0.0
    %6452 = vmatpush2.msra.mxu0 0.0
    %6453 = vmatprep.subr.mxu0 0.0
    %6454 = vmatpush2.msra.mxu0 0.0
    %6455 = vmatprep.mubr.f32.mxu0 0.0
    %6456 = vmatmul.mubr.f32.gmra.mxu0 %v6389
    %v6457 = vpop.f32.mrf.mxu0
    %v6458 = vadd.f32 0.0, %v6457
    %v6459 = vpop.f32.mrf.mxu0
    %6460 = vdwg.mxu0
    %6461 = vrot.lane.b32.xlu0 %v5426, 96
    %v6462 = vpop.permute.xlu0 %6461
    %6463 = vrot.lane.b32.xlu0 %v5428, 96
    %v6464 = vpop.permute.xlu0 %6463
    %v6468 = vsel %vm1534, %v6138, 0
    %6470 = vmatprep.subr.mxu0 0.0
    %6471 = vmatpush1.msra.mxu0 0.0
    %6472 = vmatprep.subr.mxu0 0.0
    %6473 = vmatpush1.msra.mxu0 0.0
    %6474 = vmatprep.subr.mxu0 0.0
    %6475 = vmatpush1.msra.mxu0 0.0
    %6476 = vmatprep.subr.mxu0 0.0
    %6477 = vmatpush1.msra.mxu0 0.0
    %6478 = vmatprep.subr.mxu0 0.0
    %6479 = vmatpush1.msra.mxu0 0.0
    %6480 = vmatprep.subr.mxu0 0.0
    %6481 = vmatpush1.msra.mxu0 0.0
    %6482 = vmatprep.subr.mxu0 0.0
    %6483 = vmatpush1.msra.mxu0 0.0
    %6484 = vmatprep.subr.mxu0 0.0
    %6485 = vmatpush1.msra.mxu0 0.0
    %6486 = vmatprep.subr.mxu0 0.0
    %6487 = vmatpush1.msra.mxu0 0.0
    %6488 = vmatprep.subr.mxu0 0.0
    %6489 = vmatpush1.msra.mxu0 0.0
    %6490 = vmatprep.subr.mxu0 0.0
    %6491 = vmatpush1.msra.mxu0 0.0
    %6492 = vmatprep.subr.mxu0 0.0
    %6493 = vmatpush1.msra.mxu0 0.0
    %6494 = vmatprep.subr.mxu0 0.0
    %6495 = vmatpush1.msra.mxu0 0.0
    %6496 = vmatprep.subr.mxu0 0.0
    %6497 = vmatpush1.msra.mxu0 0.0
    %6498 = vmatprep.subr.mxu0 0.0
    %6499 = vmatpush1.msra.mxu0 %v6464
    %6500 = vmatprep.subr.mxu0 0.0
    %6501 = vmatpush1.msra.mxu0 %v6462
    %6502 = vmatprep.subr.mxu0 0.0
    %6503 = vmatpush2.msra.mxu0 0.0
    %6504 = vmatprep.subr.mxu0 0.0
    %6505 = vmatpush2.msra.mxu0 0.0
    %6506 = vmatprep.subr.mxu0 0.0
    %6507 = vmatpush2.msra.mxu0 0.0
    %6508 = vmatprep.subr.mxu0 0.0
    %6509 = vmatpush2.msra.mxu0 0.0
    %6510 = vmatprep.subr.mxu0 0.0
    %6511 = vmatpush2.msra.mxu0 0.0
    %6512 = vmatprep.subr.mxu0 0.0
    %6513 = vmatpush2.msra.mxu0 0.0
    %6514 = vmatprep.subr.mxu0 0.0
    %6515 = vmatpush2.msra.mxu0 0.0
    %6516 = vmatprep.subr.mxu0 0.0
    %6517 = vmatpush2.msra.mxu0 0.0
    %6518 = vmatprep.subr.mxu0 0.0
    %6519 = vmatpush2.msra.mxu0 0.0
    %6520 = vmatprep.subr.mxu0 0.0
    %6521 = vmatpush2.msra.mxu0 0.0
    %6522 = vmatprep.subr.mxu0 0.0
    %6523 = vmatpush2.msra.mxu0 0.0
    %6524 = vmatprep.subr.mxu0 0.0
    %6525 = vmatpush2.msra.mxu0 0.0
    %6526 = vmatprep.subr.mxu0 0.0
    %6527 = vmatpush2.msra.mxu0 0.0
    %6528 = vmatprep.subr.mxu0 0.0
    %6529 = vmatpush2.msra.mxu0 0.0
    %6530 = vmatprep.subr.mxu0 0.0
    %6531 = vmatpush2.msra.mxu0 0.0
    %6532 = vmatprep.subr.mxu0 0.0
    %6533 = vmatpush2.msra.mxu0 0.0
    %6534 = vmatprep.mubr.f32.mxu0 0.0
    %6535 = vmatmul.mubr.f32.gmra.mxu0 %v6468
    %v6536 = vpop.f32.mrf.mxu0
    %v6537 = vadd.f32 0.0, %v6536
    %v6538 = vpop.f32.mrf.mxu0
    %6539 = vdwg.mxu0
    %6540 = vrot.lane.b32.xlu0 %v5430, 96
    %v6541 = vpop.permute.xlu0 %6540
    %6542 = vrot.lane.b32.xlu0 %v5432, 96
    %v6543 = vpop.permute.xlu0 %6542
    %v6547 = vsel %vm1534, %v6140, 0
    %6549 = vmatprep.subr.mxu0 0.0
    %6550 = vmatpush1.msra.mxu0 0.0
    %6551 = vmatprep.subr.mxu0 0.0
    %6552 = vmatpush1.msra.mxu0 0.0
    %6553 = vmatprep.subr.mxu0 0.0
    %6554 = vmatpush1.msra.mxu0 0.0
    %6555 = vmatprep.subr.mxu0 0.0
    %6556 = vmatpush1.msra.mxu0 0.0
    %6557 = vmatprep.subr.mxu0 0.0
    %6558 = vmatpush1.msra.mxu0 0.0
    %6559 = vmatprep.subr.mxu0 0.0
    %6560 = vmatpush1.msra.mxu0 0.0
    %6561 = vmatprep.subr.mxu0 0.0
    %6562 = vmatpush1.msra.mxu0 0.0
    %6563 = vmatprep.subr.mxu0 0.0
    %6564 = vmatpush1.msra.mxu0 0.0
    %6565 = vmatprep.subr.mxu0 0.0
    %6566 = vmatpush1.msra.mxu0 0.0
    %6567 = vmatprep.subr.mxu0 0.0
    %6568 = vmatpush1.msra.mxu0 0.0
    %6569 = vmatprep.subr.mxu0 0.0
    %6570 = vmatpush1.msra.mxu0 0.0
    %6571 = vmatprep.subr.mxu0 0.0
    %6572 = vmatpush1.msra.mxu0 0.0
    %6573 = vmatprep.subr.mxu0 0.0
    %6574 = vmatpush1.msra.mxu0 0.0
    %6575 = vmatprep.subr.mxu0 0.0
    %6576 = vmatpush1.msra.mxu0 0.0
    %6577 = vmatprep.subr.mxu0 0.0
    %6578 = vmatpush1.msra.mxu0 %v6543
    %6579 = vmatprep.subr.mxu0 0.0
    %6580 = vmatpush1.msra.mxu0 %v6541
    %6581 = vmatprep.subr.mxu0 0.0
    %6582 = vmatpush2.msra.mxu0 0.0
    %6583 = vmatprep.subr.mxu0 0.0
    %6584 = vmatpush2.msra.mxu0 0.0
    %6585 = vmatprep.subr.mxu0 0.0
    %6586 = vmatpush2.msra.mxu0 0.0
    %6587 = vmatprep.subr.mxu0 0.0
    %6588 = vmatpush2.msra.mxu0 0.0
    %6589 = vmatprep.subr.mxu0 0.0
    %6590 = vmatpush2.msra.mxu0 0.0
    %6591 = vmatprep.subr.mxu0 0.0
    %6592 = vmatpush2.msra.mxu0 0.0
    %6593 = vmatprep.subr.mxu0 0.0
    %6594 = vmatpush2.msra.mxu0 0.0
    %6595 = vmatprep.subr.mxu0 0.0
    %6596 = vmatpush2.msra.mxu0 0.0
    %6597 = vmatprep.subr.mxu0 0.0
    %6598 = vmatpush2.msra.mxu0 0.0
    %6599 = vmatprep.subr.mxu0 0.0
    %6600 = vmatpush2.msra.mxu0 0.0
    %6601 = vmatprep.subr.mxu0 0.0
    %6602 = vmatpush2.msra.mxu0 0.0
    %6603 = vmatprep.subr.mxu0 0.0
    %6604 = vmatpush2.msra.mxu0 0.0
    %6605 = vmatprep.subr.mxu0 0.0
    %6606 = vmatpush2.msra.mxu0 0.0
    %6607 = vmatprep.subr.mxu0 0.0
    %6608 = vmatpush2.msra.mxu0 0.0
    %6609 = vmatprep.subr.mxu0 0.0
    %6610 = vmatpush2.msra.mxu0 0.0
    %6611 = vmatprep.subr.mxu0 0.0
    %6612 = vmatpush2.msra.mxu0 0.0
    %6613 = vmatprep.mubr.f32.mxu0 0.0
    %6614 = vmatmul.mubr.f32.gmra.mxu0 %v6547
    %v6615 = vpop.f32.mrf.mxu0
    %v6616 = vadd.f32 0.0, %v6615
    %v6617 = vpop.f32.mrf.mxu0
    %6618 = vdwg.mxu0
    %6619 = vrot.lane.b32.xlu0 %v5434, 96
    %v6620 = vpop.permute.xlu0 %6619
    %6621 = vrot.lane.b32.xlu0 %v5436, 96
    %v6622 = vpop.permute.xlu0 %6621
    %v6626 = vsel %vm1534, %v6142, 0
    %6628 = vmatprep.subr.mxu0 0.0
    %6629 = vmatpush1.msra.mxu0 0.0
    %6630 = vmatprep.subr.mxu0 0.0
    %6631 = vmatpush1.msra.mxu0 0.0
    %6632 = vmatprep.subr.mxu0 0.0
    %6633 = vmatpush1.msra.mxu0 0.0
    %6634 = vmatprep.subr.mxu0 0.0
    %6635 = vmatpush1.msra.mxu0 0.0
    %6636 = vmatprep.subr.mxu0 0.0
    %6637 = vmatpush1.msra.mxu0 0.0
    %6638 = vmatprep.subr.mxu0 0.0
    %6639 = vmatpush1.msra.mxu0 0.0
    %6640 = vmatprep.subr.mxu0 0.0
    %6641 = vmatpush1.msra.mxu0 0.0
    %6642 = vmatprep.subr.mxu0 0.0
    %6643 = vmatpush1.msra.mxu0 0.0
    %6644 = vmatprep.subr.mxu0 0.0
    %6645 = vmatpush1.msra.mxu0 0.0
    %6646 = vmatprep.subr.mxu0 0.0
    %6647 = vmatpush1.msra.mxu0 0.0
    %6648 = vmatprep.subr.mxu0 0.0
    %6649 = vmatpush1.msra.mxu0 0.0
    %6650 = vmatprep.subr.mxu0 0.0
    %6651 = vmatpush1.msra.mxu0 0.0
    %6652 = vmatprep.subr.mxu0 0.0
    %6653 = vmatpush1.msra.mxu0 0.0
    %6654 = vmatprep.subr.mxu0 0.0
    %6655 = vmatpush1.msra.mxu0 0.0
    %6656 = vmatprep.subr.mxu0 0.0
    %6657 = vmatpush1.msra.mxu0 %v6622
    %6658 = vmatprep.subr.mxu0 0.0
    %6659 = vmatpush1.msra.mxu0 %v6620
    %6660 = vmatprep.subr.mxu0 0.0
    %6661 = vmatpush2.msra.mxu0 0.0
    %6662 = vmatprep.subr.mxu0 0.0
    %6663 = vmatpush2.msra.mxu0 0.0
    %6664 = vmatprep.subr.mxu0 0.0
    %6665 = vmatpush2.msra.mxu0 0.0
    %6666 = vmatprep.subr.mxu0 0.0
    %6667 = vmatpush2.msra.mxu0 0.0
    %6668 = vmatprep.subr.mxu0 0.0
    %6669 = vmatpush2.msra.mxu0 0.0
    %6670 = vmatprep.subr.mxu0 0.0
    %6671 = vmatpush2.msra.mxu0 0.0
    %6672 = vmatprep.subr.mxu0 0.0
    %6673 = vmatpush2.msra.mxu0 0.0
    %6674 = vmatprep.subr.mxu0 0.0
    %6675 = vmatpush2.msra.mxu0 0.0
    %6676 = vmatprep.subr.mxu0 0.0
    %6677 = vmatpush2.msra.mxu0 0.0
    %6678 = vmatprep.subr.mxu0 0.0
    %6679 = vmatpush2.msra.mxu0 0.0
    %6680 = vmatprep.subr.mxu0 0.0
    %6681 = vmatpush2.msra.mxu0 0.0
    %6682 = vmatprep.subr.mxu0 0.0
    %6683 = vmatpush2.msra.mxu0 0.0
    %6684 = vmatprep.subr.mxu0 0.0
    %6685 = vmatpush2.msra.mxu0 0.0
    %6686 = vmatprep.subr.mxu0 0.0
    %6687 = vmatpush2.msra.mxu0 0.0
    %6688 = vmatprep.subr.mxu0 0.0
    %6689 = vmatpush2.msra.mxu0 0.0
    %6690 = vmatprep.subr.mxu0 0.0
    %6691 = vmatpush2.msra.mxu0 0.0
    %6692 = vmatprep.mubr.f32.mxu0 0.0
    %6693 = vmatmul.mubr.f32.gmra.mxu0 %v6626
    %v6694 = vpop.f32.mrf.mxu0
    %v6695 = vadd.f32 0.0, %v6694
    %v6696 = vpop.f32.mrf.mxu0
    %6697 = vdwg.mxu0
    %6698 = vrot.lane.b32.xlu0 %v5438, 96
    %v6699 = vpop.permute.xlu0 %6698
    %6700 = vrot.lane.b32.xlu0 %v5440, 96
    %v6701 = vpop.permute.xlu0 %6700
    %v6705 = vsel %vm1534, %v6144, 0
    %6707 = vmatprep.subr.mxu0 0.0
    %6708 = vmatpush1.msra.mxu0 0.0
    %6709 = vmatprep.subr.mxu0 0.0
    %6710 = vmatpush1.msra.mxu0 0.0
    %6711 = vmatprep.subr.mxu0 0.0
    %6712 = vmatpush1.msra.mxu0 0.0
    %6713 = vmatprep.subr.mxu0 0.0
    %6714 = vmatpush1.msra.mxu0 0.0
    %6715 = vmatprep.subr.mxu0 0.0
    %6716 = vmatpush1.msra.mxu0 0.0
    %6717 = vmatprep.subr.mxu0 0.0
    %6718 = vmatpush1.msra.mxu0 0.0
    %6719 = vmatprep.subr.mxu0 0.0
    %6720 = vmatpush1.msra.mxu0 0.0
    %6721 = vmatprep.subr.mxu0 0.0
    %6722 = vmatpush1.msra.mxu0 0.0
    %6723 = vmatprep.subr.mxu0 0.0
    %6724 = vmatpush1.msra.mxu0 0.0
    %6725 = vmatprep.subr.mxu0 0.0
    %6726 = vmatpush1.msra.mxu0 0.0
    %6727 = vmatprep.subr.mxu0 0.0
    %6728 = vmatpush1.msra.mxu0 0.0
    %6729 = vmatprep.subr.mxu0 0.0
    %6730 = vmatpush1.msra.mxu0 0.0
    %6731 = vmatprep.subr.mxu0 0.0
    %6732 = vmatpush1.msra.mxu0 0.0
    %6733 = vmatprep.subr.mxu0 0.0
    %6734 = vmatpush1.msra.mxu0 0.0
    %6735 = vmatprep.subr.mxu0 0.0
    %6736 = vmatpush1.msra.mxu0 %v6701
    %6737 = vmatprep.subr.mxu0 0.0
    %6738 = vmatpush1.msra.mxu0 %v6699
    %6739 = vmatprep.subr.mxu0 0.0
    %6740 = vmatpush2.msra.mxu0 0.0
    %6741 = vmatprep.subr.mxu0 0.0
    %6742 = vmatpush2.msra.mxu0 0.0
    %6743 = vmatprep.subr.mxu0 0.0
    %6744 = vmatpush2.msra.mxu0 0.0
    %6745 = vmatprep.subr.mxu0 0.0
    %6746 = vmatpush2.msra.mxu0 0.0
    %6747 = vmatprep.subr.mxu0 0.0
    %6748 = vmatpush2.msra.mxu0 0.0
    %6749 = vmatprep.subr.mxu0 0.0
    %6750 = vmatpush2.msra.mxu0 0.0
    %6751 = vmatprep.subr.mxu0 0.0
    %6752 = vmatpush2.msra.mxu0 0.0
    %6753 = vmatprep.subr.mxu0 0.0
    %6754 = vmatpush2.msra.mxu0 0.0
    %6755 = vmatprep.subr.mxu0 0.0
    %6756 = vmatpush2.msra.mxu0 0.0
    %6757 = vmatprep.subr.mxu0 0.0
    %6758 = vmatpush2.msra.mxu0 0.0
    %6759 = vmatprep.subr.mxu0 0.0
    %6760 = vmatpush2.msra.mxu0 0.0
    %6761 = vmatprep.subr.mxu0 0.0
    %6762 = vmatpush2.msra.mxu0 0.0
    %6763 = vmatprep.subr.mxu0 0.0
    %6764 = vmatpush2.msra.mxu0 0.0
    %6765 = vmatprep.subr.mxu0 0.0
    %6766 = vmatpush2.msra.mxu0 0.0
    %6767 = vmatprep.subr.mxu0 0.0
    %6768 = vmatpush2.msra.mxu0 0.0
    %6769 = vmatprep.subr.mxu0 0.0
    %6770 = vmatpush2.msra.mxu0 0.0
    %6771 = vmatprep.mubr.f32.mxu0 0.0
    %6772 = vmatmul.mubr.f32.gmra.mxu0 %v6705
    %v6773 = vpop.f32.mrf.mxu0
    %v6774 = vadd.f32 0.0, %v6773
    %v6775 = vpop.f32.mrf.mxu0
    %6776 = vdwg.mxu0
    %6779 = vrot.lane.b32.xlu0 %v6379, 8
    %v6780 = vpop.permute.xlu0 %6779
    %6781 = vrot.lane.b32.xlu0 %v6458, 8
    %v6782 = vpop.permute.xlu0 %6781
    %6787 = vrot.lane.b32.xlu0 %v6537, 16
    %v6788 = vpop.permute.xlu0 %6787
    %6789 = vrot.lane.b32.xlu0 %v6616, 16
    %v6790 = vpop.permute.xlu0 %6789
    %6795 = vrot.lane.b32.xlu0 %v6695, 24
    %v6796 = vpop.permute.xlu0 %6795
    %6797 = vrot.lane.b32.xlu0 %v6774, 24
    %v6798 = vpop.permute.xlu0 %6797
    %v6801 = vsel %vm197, %v6221, %v6780
    %v6802 = vsel %vm197, %v6300, %v6782
    %v6803 = vsel %vm1534, %v6801, %v6788
    %v6804 = vsel %vm1534, %v6802, %v6790
    %v6805 = vsel %vm1537, %v6803, %v6796
    %v6806 = vsel %vm1537, %v6804, %v6798
    %v6807 = vlaneseq
    %v6808 = vshrl.u32 %v6807, 7
    %v6809 = vsub.s32 0, %v6808
    %v6810 = vrot.slane %v3656, %v6809
    %v6812 = vsel %vm99, %v6805, 0
    %v6815 = vsel %vm99, %v6806, 0
    %6817 = vmatprep.subr.mxu0 0.0
    %6818 = vmatpush1.msra.mxu0 0.0
    %6819 = vmatprep.subr.mxu0 0.0
    %6820 = vmatpush1.msra.mxu0 0.0
    %6821 = vmatprep.subr.mxu0 0.0
    %6822 = vmatpush1.msra.mxu0 0.0
    %6823 = vmatprep.subr.mxu0 0.0
    %6824 = vmatpush1.msra.mxu0 0.0
    %6825 = vmatprep.subr.mxu0 0.0
    %6826 = vmatpush1.msra.mxu0 0.0
    %6827 = vmatprep.subr.mxu0 0.0
    %6828 = vmatpush1.msra.mxu0 0.0
    %6829 = vmatprep.subr.mxu0 0.0
    %6830 = vmatpush1.msra.mxu0 0.0
    %6831 = vmatprep.subr.mxu0 0.0
    %6832 = vmatpush1.msra.mxu0 0.0
    %6833 = vmatprep.subr.mxu0 0.0
    %6834 = vmatpush1.msra.mxu0 0.0
    %6835 = vmatprep.subr.mxu0 0.0
    %6836 = vmatpush1.msra.mxu0 0.0
    %6837 = vmatprep.subr.mxu0 0.0
    %6838 = vmatpush1.msra.mxu0 0.0
    %6839 = vmatprep.subr.mxu0 0.0
    %6840 = vmatpush1.msra.mxu0 0.0
    %6841 = vmatprep.subr.mxu0 0.0
    %6842 = vmatpush1.msra.mxu0 %v3640
    %6843 = vmatprep.subr.mxu0 0.0
    %6844 = vmatpush1.msra.mxu0 %v3634
    %6845 = vmatprep.subr.mxu0 0.0
    %6846 = vmatpush1.msra.mxu0 %v3628
    %6847 = vmatprep.subr.mxu0 0.0
    %6848 = vmatpush1.msra.mxu0 %v3622
    %6849 = vmatprep.subr.mxu0 0.0
    %6850 = vmatpush2.msra.mxu0 0.0
    %6851 = vmatprep.subr.mxu0 0.0
    %6852 = vmatpush2.msra.mxu0 0.0
    %6853 = vmatprep.subr.mxu0 0.0
    %6854 = vmatpush2.msra.mxu0 0.0
    %6855 = vmatprep.subr.mxu0 0.0
    %6856 = vmatpush2.msra.mxu0 0.0
    %6857 = vmatprep.subr.mxu0 0.0
    %6858 = vmatpush2.msra.mxu0 0.0
    %6859 = vmatprep.subr.mxu0 0.0
    %6860 = vmatpush2.msra.mxu0 0.0
    %6861 = vmatprep.subr.mxu0 0.0
    %6862 = vmatpush2.msra.mxu0 0.0
    %6863 = vmatprep.subr.mxu0 0.0
    %6864 = vmatpush2.msra.mxu0 0.0
    %6865 = vmatprep.subr.mxu0 0.0
    %6866 = vmatpush2.msra.mxu0 0.0
    %6867 = vmatprep.subr.mxu0 0.0
    %6868 = vmatpush2.msra.mxu0 0.0
    %6869 = vmatprep.subr.mxu0 0.0
    %6870 = vmatpush2.msra.mxu0 0.0
    %6871 = vmatprep.subr.mxu0 0.0
    %6872 = vmatpush2.msra.mxu0 0.0
    %6873 = vmatprep.subr.mxu0 0.0
    %6874 = vmatpush2.msra.mxu0 0.0
    %6875 = vmatprep.subr.mxu0 0.0
    %6876 = vmatpush2.msra.mxu0 0.0
    %6877 = vmatprep.subr.mxu0 0.0
    %6878 = vmatpush2.msra.mxu0 0.0
    %6879 = vmatprep.subr.mxu0 0.0
    %6880 = vmatpush2.msra.mxu0 0.0
    %6881 = vmatprep.mubr.f32.mxu0 0.0
    %6882 = vmatmul.mubr.f32.gmra.mxu0 %v6812
    %v6883 = vpop.f32.mrf.mxu0
    %v6884 = vadd.f32 %v6810, %v6883
    %v6885 = vpop.f32.mrf.mxu0
    %6886 = vmatprep.mubr.f32.mxu0 0.0
    %6887 = vmatmul.mubr.f32.gmra.mxu0 %v6815
    %v6888 = vpop.f32.mrf.mxu0
    %v6889 = vadd.f32 %v6810, %v6888
    %v6890 = vpop.f32.mrf.mxu0
    %6891 = vdwg.mxu0
    %v6892 = vsel %vm1534, %v6130, 0.0
    %v6893 = vsel %vm1534, %v6134, 0.0
    %v6894 = vadd.f32 %v6892, %v6893
    %v6895 = vsel %vm1534, %v6138, 0.0
    %v6896 = vadd.f32 %v6894, %v6895
    %v6897 = vsel %vm1534, %v6142, 0.0
    %v6898 = vadd.f32 %v6896, %v6897
    %v6899 = vsel %vm1534, %v6132, 0.0
    %v6900 = vsel %vm1534, %v6136, 0.0
    %v6901 = vadd.f32 %v6899, %v6900
    %v6902 = vsel %vm1534, %v6140, 0.0
    %v6903 = vadd.f32 %v6901, %v6902
    %v6904 = vsel %vm1534, %v6144, 0.0
    %v6905 = vadd.f32 %v6903, %v6904
    %v6906 = vmul.f32 %v6898, %v3359
    %v6907 = vmul.f32 %v6905, %v3359
    %v6908 = vadd.f32 %v3362, %v6906
    %v6909 = vadd.f32 %v3363, %v6907
    %v6910 = vadd.f32 %v5223, %v6884
    %v6911 = vadd.f32 %v5224, %v6889
    %v6912 = vsel %vm99, %v6910, 0.0
    %6913 = vadd.xlane.f32.xlu0 %v6912
    %v6914 = vpop.xlane.xlu0 %6913
    %v6915 = vsel %vm99, %v6911, 0.0
    %6916 = vadd.xlane.f32.xlu0 %v6915
    %v6917 = vpop.xlane.xlu0 %6916
    %v6918 = vmul.f32 %v6914, %v1633
    %v6919 = vmul.f32 %v6917, %v1633
    %v6920 = vsub.f32 %v6910, %v6918
    %v6921 = vsub.f32 %v6911, %v6919
    %v6922 = vmul.f32 %v6920, %v6920
    %v6923 = vmul.f32 %v6921, %v6921
    %v6924 = vsel %vm99, %v6922, 0.0
    %6925 = vadd.xlane.f32.xlu0 %v6924
    %v6926 = vpop.xlane.xlu0 %6925
    %v6927 = vsel %vm99, %v6923, 0.0
    %6928 = vadd.xlane.f32.xlu0 %v6927
    %v6929 = vpop.xlane.xlu0 %6928
    %v6930 = vmul.f32 %v6926, %v1633
    %v6931 = vmul.f32 %v6929, %v1633
    %v6932 = vadd.f32 %v6930, 1e-05
    %v6933 = vadd.f32 %v6931, 1e-05
    %v6934 = vrsqrt.pop %v6932
    %v6935 = vrsqrt.pop %v6933
    %v6936 = vmul.f32 %v6920, %v6934
    %v6937 = vmul.f32 %v6921, %v6935
    %v6938 = vlaneseq
    %v6939 = vshrl.u32 %v6938, 7
    %v6940 = vsub.s32 3, %v6939
    %v6941 = vrot.slane %v3652, %v6940
    %v6942 = vmul.f32 %v6936, %v6941
    %v6943 = vmul.f32 %v6937, %v6941
    %v6944 = vlaneseq
    %v6945 = vshrl.u32 %v6944, 7
    %v6946 = vsub.s32 4, %v6945
    %v6947 = vrot.slane %v3652, %v6946
    %v6948 = vadd.f32 %v6942, %v6947
    %v6949 = vadd.f32 %v6943, %v6947
    %v6950 = vlaneseq
    %v6951 = vshrl.u32 %v6950, 7
    %v6952 = vsub.s32 0, %v6951
    %v6953 = vrot.slane %v3657, %v6952
    %v6955 = vsel %vm99, %v6948, 0
    %v6958 = vsel %vm99, %v6949, 0
    %6960 = vmatprep.subr.mxu0 0.0
    %6961 = vmatpush1.msra.mxu0 0.0
    %6962 = vmatprep.subr.mxu0 0.0
    %6963 = vmatpush1.msra.mxu0 0.0
    %6964 = vmatprep.subr.mxu0 0.0
    %6965 = vmatpush1.msra.mxu0 0.0
    %6966 = vmatprep.subr.mxu0 0.0
    %6967 = vmatpush1.msra.mxu0 0.0
    %6968 = vmatprep.subr.mxu0 0.0
    %6969 = vmatpush1.msra.mxu0 0.0
    %6970 = vmatprep.subr.mxu0 0.0
    %6971 = vmatpush1.msra.mxu0 0.0
    %6972 = vmatprep.subr.mxu0 0.0
    %6973 = vmatpush1.msra.mxu0 0.0
    %6974 = vmatprep.subr.mxu0 0.0
    %6975 = vmatpush1.msra.mxu0 0.0
    %6976 = vmatprep.subr.mxu0 0.0
    %6977 = vmatpush1.msra.mxu0 0.0
    %6978 = vmatprep.subr.mxu0 0.0
    %6979 = vmatpush1.msra.mxu0 0.0
    %6980 = vmatprep.subr.mxu0 0.0
    %6981 = vmatpush1.msra.mxu0 0.0
    %6982 = vmatprep.subr.mxu0 0.0
    %6983 = vmatpush1.msra.mxu0 0.0
    %6984 = vmatprep.subr.mxu0 0.0
    %6985 = vmatpush1.msra.mxu0 %v3641
    %6986 = vmatprep.subr.mxu0 0.0
    %6987 = vmatpush1.msra.mxu0 %v3635
    %6988 = vmatprep.subr.mxu0 0.0
    %6989 = vmatpush1.msra.mxu0 %v3629
    %6990 = vmatprep.subr.mxu0 0.0
    %6991 = vmatpush1.msra.mxu0 %v3623
    %6992 = vmatprep.subr.mxu0 0.0
    %6993 = vmatpush2.msra.mxu0 0.0
    %6994 = vmatprep.subr.mxu0 0.0
    %6995 = vmatpush2.msra.mxu0 0.0
    %6996 = vmatprep.subr.mxu0 0.0
    %6997 = vmatpush2.msra.mxu0 0.0
    %6998 = vmatprep.subr.mxu0 0.0
    %6999 = vmatpush2.msra.mxu0 0.0
    %7000 = vmatprep.subr.mxu0 0.0
    %7001 = vmatpush2.msra.mxu0 0.0
    %7002 = vmatprep.subr.mxu0 0.0
    %7003 = vmatpush2.msra.mxu0 0.0
    %7004 = vmatprep.subr.mxu0 0.0
    %7005 = vmatpush2.msra.mxu0 0.0
    %7006 = vmatprep.subr.mxu0 0.0
    %7007 = vmatpush2.msra.mxu0 0.0
    %7008 = vmatprep.subr.mxu0 0.0
    %7009 = vmatpush2.msra.mxu0 0.0
    %7010 = vmatprep.subr.mxu0 0.0
    %7011 = vmatpush2.msra.mxu0 0.0
    %7012 = vmatprep.subr.mxu0 0.0
    %7013 = vmatpush2.msra.mxu0 0.0
    %7014 = vmatprep.subr.mxu0 0.0
    %7015 = vmatpush2.msra.mxu0 0.0
    %7016 = vmatprep.subr.mxu0 0.0
    %7017 = vmatpush2.msra.mxu0 0.0
    %7018 = vmatprep.subr.mxu0 0.0
    %7019 = vmatpush2.msra.mxu0 0.0
    %7020 = vmatprep.subr.mxu0 0.0
    %7021 = vmatpush2.msra.mxu0 0.0
    %7022 = vmatprep.subr.mxu0 0.0
    %7023 = vmatpush2.msra.mxu0 0.0
    %7024 = vmatprep.mubr.f32.mxu0 0.0
    %7025 = vmatmul.mubr.f32.gmra.mxu0 %v6955
    %v7026 = vpop.f32.mrf.mxu0
    %v7027 = vadd.f32 %v6953, %v7026
    %v7028 = vpop.f32.mrf.mxu0
    %7029 = vmatprep.mubr.f32.mxu0 0.0
    %7030 = vmatmul.mubr.f32.gmra.mxu0 %v6958
    %v7031 = vpop.f32.mrf.mxu0
    %v7032 = vadd.f32 %v6953, %v7031
    %v7033 = vpop.f32.mrf.mxu0
    %7034 = vdwg.mxu0
    %v7035 = vmax.f32 %v7027, 0.0
    %v7036 = vmax.f32 %v7032, 0.0
    %v7037 = vlaneseq
    %v7038 = vshrl.u32 %v7037, 7
    %v7039 = vsub.s32 0, %v7038
    %v7040 = vrot.slane %v3658, %v7039
    %v7042 = vsel %vm3495, %v7035, 0
    %v7045 = vsel %vm3495, %v7036, 0
    %7047 = vmatprep.subr.mxu0 0.0
    %7048 = vmatpush1.msra.mxu0 0.0
    %7049 = vmatprep.subr.mxu0 0.0
    %7050 = vmatpush1.msra.mxu0 0.0
    %7051 = vmatprep.subr.mxu0 0.0
    %7052 = vmatpush1.msra.mxu0 0.0
    %7053 = vmatprep.subr.mxu0 0.0
    %7054 = vmatpush1.msra.mxu0 0.0
    %7055 = vmatprep.subr.mxu0 0.0
    %7056 = vmatpush1.msra.mxu0 0.0
    %7057 = vmatprep.subr.mxu0 0.0
    %7058 = vmatpush1.msra.mxu0 0.0
    %7059 = vmatprep.subr.mxu0 0.0
    %7060 = vmatpush1.msra.mxu0 0.0
    %7061 = vmatprep.subr.mxu0 0.0
    %7062 = vmatpush1.msra.mxu0 0.0
    %7063 = vmatprep.subr.mxu0 0.0
    %7064 = vmatpush1.msra.mxu0 %v3650
    %7065 = vmatprep.subr.mxu0 0.0
    %7066 = vmatpush1.msra.mxu0 %v3649
    %7067 = vmatprep.subr.mxu0 0.0
    %7068 = vmatpush1.msra.mxu0 %v3648
    %7069 = vmatprep.subr.mxu0 0.0
    %7070 = vmatpush1.msra.mxu0 %v3647
    %7071 = vmatprep.subr.mxu0 0.0
    %7072 = vmatpush1.msra.mxu0 %v3646
    %7073 = vmatprep.subr.mxu0 0.0
    %7074 = vmatpush1.msra.mxu0 %v3645
    %7075 = vmatprep.subr.mxu0 0.0
    %7076 = vmatpush1.msra.mxu0 %v3644
    %7077 = vmatprep.subr.mxu0 0.0
    %7078 = vmatpush1.msra.mxu0 %v3643
    %7079 = vmatprep.subr.mxu0 0.0
    %7080 = vmatpush2.msra.mxu0 0.0
    %7081 = vmatprep.subr.mxu0 0.0
    %7082 = vmatpush2.msra.mxu0 0.0
    %7083 = vmatprep.subr.mxu0 0.0
    %7084 = vmatpush2.msra.mxu0 0.0
    %7085 = vmatprep.subr.mxu0 0.0
    %7086 = vmatpush2.msra.mxu0 0.0
    %7087 = vmatprep.subr.mxu0 0.0
    %7088 = vmatpush2.msra.mxu0 0.0
    %7089 = vmatprep.subr.mxu0 0.0
    %7090 = vmatpush2.msra.mxu0 0.0
    %7091 = vmatprep.subr.mxu0 0.0
    %7092 = vmatpush2.msra.mxu0 0.0
    %7093 = vmatprep.subr.mxu0 0.0
    %7094 = vmatpush2.msra.mxu0 0.0
    %7095 = vmatprep.subr.mxu0 0.0
    %7096 = vmatpush2.msra.mxu0 0.0
    %7097 = vmatprep.subr.mxu0 0.0
    %7098 = vmatpush2.msra.mxu0 0.0
    %7099 = vmatprep.subr.mxu0 0.0
    %7100 = vmatpush2.msra.mxu0 0.0
    %7101 = vmatprep.subr.mxu0 0.0
    %7102 = vmatpush2.msra.mxu0 0.0
    %7103 = vmatprep.subr.mxu0 0.0
    %7104 = vmatpush2.msra.mxu0 0.0
    %7105 = vmatprep.subr.mxu0 0.0
    %7106 = vmatpush2.msra.mxu0 0.0
    %7107 = vmatprep.subr.mxu0 0.0
    %7108 = vmatpush2.msra.mxu0 0.0
    %7109 = vmatprep.subr.mxu0 0.0
    %7110 = vmatpush2.msra.mxu0 0.0
    %7111 = vmatprep.mubr.f32.mxu0 0.0
    %7112 = vmatmul.mubr.f32.gmra.mxu0 %v7042
    %v7113 = vpop.f32.mrf.mxu0
    %v7114 = vadd.f32 %v7040, %v7113
    %v7115 = vpop.f32.mrf.mxu0
    %7116 = vmatprep.mubr.f32.mxu0 0.0
    %7117 = vmatmul.mubr.f32.gmra.mxu0 %v7045
    %v7118 = vpop.f32.mrf.mxu0
    %v7119 = vadd.f32 %v7040, %v7118
    %v7120 = vpop.f32.mrf.mxu0
    %7121 = vdwg.mxu0
    %v7122 = vadd.f32 %v6948, %v7114
    %v7123 = vadd.f32 %v6949, %v7119
    %v7124 = vsel %vm99, %v7122, 0.0
    %7125 = vadd.xlane.f32.xlu0 %v7124
    %v7126 = vpop.xlane.xlu0 %7125
    %v7127 = vsel %vm99, %v7123, 0.0
    %7128 = vadd.xlane.f32.xlu0 %v7127
    %v7129 = vpop.xlane.xlu0 %7128
    %v7130 = vmul.f32 %v7126, %v1633
    %v7131 = vmul.f32 %v7129, %v1633
    %v7132 = vsub.f32 %v7122, %v7130
    %v7133 = vsub.f32 %v7123, %v7131
    %v7134 = vmul.f32 %v7132, %v7132
    %v7135 = vmul.f32 %v7133, %v7133
    %v7136 = vsel %vm99, %v7134, 0.0
    %7137 = vadd.xlane.f32.xlu0 %v7136
    %v7138 = vpop.xlane.xlu0 %7137
    %v7139 = vsel %vm99, %v7135, 0.0
    %7140 = vadd.xlane.f32.xlu0 %v7139
    %v7141 = vpop.xlane.xlu0 %7140
    %v7142 = vmul.f32 %v7138, %v1633
    %v7143 = vmul.f32 %v7141, %v1633
    %v7144 = vadd.f32 %v7142, 1e-05
    %v7145 = vadd.f32 %v7143, 1e-05
    %v7146 = vrsqrt.pop %v7144
    %v7147 = vrsqrt.pop %v7145
    %v7148 = vmul.f32 %v7132, %v7146
    %v7149 = vmul.f32 %v7133, %v7147
    %v7150 = vlaneseq
    %v7151 = vshrl.u32 %v7150, 7
    %v7152 = vsub.s32 5, %v7151
    %v7153 = vrot.slane %v3652, %v7152
    %v7154 = vmul.f32 %v7148, %v7153
    %v7155 = vmul.f32 %v7149, %v7153
    %v7156 = vlaneseq
    %v7157 = vshrl.u32 %v7156, 7
    %v7158 = vsub.s32 6, %v7157
    %v7159 = vrot.slane %v3652, %v7158
    %v7160 = vadd.f32 %v7154, %v7159
    %v7161 = vadd.f32 %v7155, %v7159
    %s7162 = scalar_lea.vmem %s4, 112
    %v7163 = vld [vmem:[%s7162] sm:$0xff]
    %v7164 = vsel %vm99, %v7160, 0.0
    %7165 = vadd.xlane.f32.xlu0 %v7164
    %v7166 = vpop.xlane.xlu0 %7165
    %v7167 = vsel %vm99, %v7161, 0.0
    %7168 = vadd.xlane.f32.xlu0 %v7167
    %v7169 = vpop.xlane.xlu0 %7168
    %v7170 = vmul.f32 %v7166, %v1633
    %v7171 = vmul.f32 %v7169, %v1633
    %v7172 = vsub.f32 %v7160, %v7170
    %v7173 = vsub.f32 %v7161, %v7171
    %v7174 = vmul.f32 %v7172, %v7172
    %v7175 = vmul.f32 %v7173, %v7173
    %v7176 = vsel %vm99, %v7174, 0.0
    %7177 = vadd.xlane.f32.xlu0 %v7176
    %v7178 = vpop.xlane.xlu0 %7177
    %v7179 = vsel %vm99, %v7175, 0.0
    %7180 = vadd.xlane.f32.xlu0 %v7179
    %v7181 = vpop.xlane.xlu0 %7180
    %v7182 = vmul.f32 %v7178, %v1633
    %v7183 = vmul.f32 %v7181, %v1633
    %v7184 = vadd.f32 %v7182, 1e-05
    %v7185 = vadd.f32 %v7183, 1e-05
    %v7186 = vrsqrt.pop %v7184
    %v7187 = vrsqrt.pop %v7185
    %v7188 = vmul.f32 %v7172, %v7186
    %v7189 = vmul.f32 %v7173, %v7187
    %v7190 = vlaneseq
    %v7191 = vshrl.u32 %v7190, 7
    %v7192 = vsub.s32 0, %v7191
    %v7193 = vrot.slane %v7163, %v7192
    %v7194 = vmul.f32 %v7188, %v7193
    %v7195 = vmul.f32 %v7189, %v7193
    %v7196 = vlaneseq
    %v7197 = vshrl.u32 %v7196, 7
    %v7198 = vsub.s32 1, %v7197
    %v7199 = vrot.slane %v7163, %v7198
    %v7200 = vadd.f32 %v7194, %v7199
    %v7201 = vadd.f32 %v7195, %v7199
    %v7203 = vrot.slane %v7200, 1
    %7204 = vrot.lane.b32.xlu0 %v7203, 32
    %v7205 = vpop.permute.xlu0 %7204
    %v7207 = vrot.slane %v7200, 2
    %7208 = vrot.lane.b32.xlu0 %v7207, 64
    %v7209 = vpop.permute.xlu0 %7208
    %v7211 = vrot.slane %v7200, 3
    %7212 = vrot.lane.b32.xlu0 %v7211, 96
    %v7213 = vpop.permute.xlu0 %7212
    %v7215 = vsel %vm99, %v7200, %v7205
    %v7216 = vsel %vm3495, %v7215, %v7209
    %vm7217 = vcmask 785408
    %v7218 = vsel %vm7217, %v7216, %v7213
    %v7220 = vrot.slane %v7201, 1
    %7221 = vrot.lane.b32.xlu0 %v7220, 32
    %v7222 = vpop.permute.xlu0 %7221
    %v7224 = vrot.slane %v7201, 2
    %7225 = vrot.lane.b32.xlu0 %v7224, 64
    %v7226 = vpop.permute.xlu0 %7225
    %v7228 = vrot.slane %v7201, 3
    %7229 = vrot.lane.b32.xlu0 %v7228, 96
    %v7230 = vpop.permute.xlu0 %7229
    %v7232 = vsel %vm99, %v7201, %v7222
    %v7233 = vsel %vm3495, %v7232, %v7226
    %v7234 = vsel %vm7217, %v7233, %v7230
    %v7236 = vrot.slane %v7218, 3
    %v7239 = vrot.slane %v7234, 6
    %v7241 = vrot.slane %v7234, 1
    %vm7243 = vcmask 1040384
    %v7244 = vsel %vm7243, %v7218, %v7236
    %vm7245 = vcmask 1041408
    %v7246 = vsel %vm7245, %v7244, %v7239
    %vm7247 = vcmask 1042432
    %v7248 = vsel %vm7247, %v7246, %v7241
    %7249 = vst [vmem:[%s5] sm:$0xf] %v7248
    %v7250 = vmul.f32 %v6908, 0.5
    %v7251 = vmul.f32 %v6909, 0.5
    %v7253 = vrot.slane %v7250, 1
    %7254 = vrot.lane.b32.xlu0 %v7253, 16
    %v7255 = vpop.permute.xlu0 %7254
    %v7257 = vrot.slane %v7250, 2
    %7258 = vrot.lane.b32.xlu0 %v7257, 32
    %v7259 = vpop.permute.xlu0 %7258
    %v7261 = vrot.slane %v7250, 3
    %7262 = vrot.lane.b32.xlu0 %v7261, 48
    %v7263 = vpop.permute.xlu0 %7262
    %v7265 = vrot.slane %v7250, 4
    %7266 = vrot.lane.b32.xlu0 %v7265, 64
    %v7267 = vpop.permute.xlu0 %7266
    %v7269 = vrot.slane %v7250, 5
    %7270 = vrot.lane.b32.xlu0 %v7269, 80
    %v7271 = vpop.permute.xlu0 %7270
    %v7273 = vrot.slane %v7250, 6
    %7274 = vrot.lane.b32.xlu0 %v7273, 96
    %v7275 = vpop.permute.xlu0 %7274
    %v7277 = vrot.slane %v7250, 7
    %7278 = vrot.lane.b32.xlu0 %v7277, 112
    %v7279 = vpop.permute.xlu0 %7278
    %v7281 = vsel %vm1534, %v7250, %v7255
    %v7282 = vsel %vm99, %v7281, %v7259
    %vm7283 = vcmask 392192
    %v7284 = vsel %vm7283, %v7282, %v7263
    %v7285 = vsel %vm3495, %v7284, %v7267
    %vm7286 = vcmask 654336
    %v7287 = vsel %vm7286, %v7285, %v7271
    %v7288 = vsel %vm7217, %v7287, %v7275
    %vm7289 = vcmask 916480
    %v7290 = vsel %vm7289, %v7288, %v7279
    %v7292 = vrot.slane %v7251, 1
    %7293 = vrot.lane.b32.xlu0 %v7292, 16
    %v7294 = vpop.permute.xlu0 %7293
    %v7296 = vrot.slane %v7251, 2
    %7297 = vrot.lane.b32.xlu0 %v7296, 32
    %v7298 = vpop.permute.xlu0 %7297
    %v7300 = vrot.slane %v7251, 3
    %7301 = vrot.lane.b32.xlu0 %v7300, 48
    %v7302 = vpop.permute.xlu0 %7301
    %v7304 = vrot.slane %v7251, 4
    %7305 = vrot.lane.b32.xlu0 %v7304, 64
    %v7306 = vpop.permute.xlu0 %7305
    %v7308 = vrot.slane %v7251, 5
    %7309 = vrot.lane.b32.xlu0 %v7308, 80
    %v7310 = vpop.permute.xlu0 %7309
    %v7312 = vrot.slane %v7251, 6
    %7313 = vrot.lane.b32.xlu0 %v7312, 96
    %v7314 = vpop.permute.xlu0 %7313
    %v7316 = vrot.slane %v7251, 7
    %7317 = vrot.lane.b32.xlu0 %v7316, 112
    %v7318 = vpop.permute.xlu0 %7317
    %v7320 = vsel %vm1534, %v7251, %v7294
    %v7321 = vsel %vm99, %v7320, %v7298
    %v7322 = vsel %vm7283, %v7321, %v7302
    %v7323 = vsel %vm3495, %v7322, %v7306
    %v7324 = vsel %vm7286, %v7323, %v7310
    %v7325 = vsel %vm7217, %v7324, %v7314
    %v7326 = vsel %vm7289, %v7325, %v7318
    %v7328 = vrot.slane %v7326, 7
    %v7330 = vsel %vm7243, %v7290, %v7328
    %7331 = vst [vmem:[%s6] sm:$0x3] %v7330
    // Predicated region
    $region30: #{transformer_decoder_with_attention.1} parent=1 // pred_check
      _
    $region31: #{transformer_decoder_with_attention.1} parent=1 // pred_check_branch
      %7333 = sbr.rel (0) target = $region33
    $region32: #{transformer_decoder_with_attention.1} parent=1 // pred_region
      _
    $region33: #{transformer_decoder_with_attention.1} parent=1 // pred_fallthru
      _
    // Predicated region
    $region34: #{transformer_decoder_with_attention.1} parent=1 // pred_check
      _
    $region35: #{transformer_decoder_with_attention.1} parent=1 // pred_check_branch
      %7335 = sbr.rel (0) target = $region37
    $region36: #{transformer_decoder_with_attention.1} parent=1 // pred_region
      _
    $region37: #{transformer_decoder_with_attention.1} parent=1 // pred_fallthru
      _
    // Predicated region
    $region38: #{transformer_decoder_with_attention.1} parent=1 // pred_check
      _
    $region39: #{transformer_decoder_with_attention.1} parent=1 // pred_check_branch
      %7337 = sbr.rel (0) target = $region41
    $region40: #{transformer_decoder_with_attention.1} parent=1 // pred_region
      _
    $region41: #{transformer_decoder_with_attention.1} parent=1 // pred_fallthru
      _
    // Predicated region
    $region42: #{transformer_decoder_with_attention.1} parent=1 // pred_check
      _
    $region43: #{transformer_decoder_with_attention.1} parent=1 // pred_check_branch
      %7339 = sbr.rel (0) target = $region45
    $region44: #{transformer_decoder_with_attention.1} parent=1 // pred_region
      _
    $region45: #{transformer_decoder_with_attention.1} parent=1 // pred_fallthru
      _
    %7340 = vsyncpa [#allocation3], 1
    %7341 = vsyncpa [#allocation5], 1

</llo_original>
